<compile_context>
chip_gen: v7x
topology: tpu7x:2x2x1
jax: 0.10.0
libtpu: 0.0.40
codegen_flags: <defaults>
</compile_context>

<pallas_src>
import jax
import jax.numpy as jnp
from jax.experimental import pallas as pl
from jax.experimental.pallas import tpu as pltpu  # noqa: F401  (TPU backend)

D = 64            # transformer_width = text_projection.shape[-1]
H = 8             # nn.MultiheadAttention(..., 8, ...)
HD = D // H       # per-head dim
EPS = 1e-5        # nn.LayerNorm default eps
NEG = -1e30       # additive mask for cross-batch attention


# ------------------------------- the kernel -------------------------------- #
def pathway_kernel(txt_ref, cls_ref, pat_ref,          # folded activations
                   mtp_ref, mct_ref,                   # block-diag attn masks
                   vec_ref,                            # packed (13, D) vectors
                   qkvw_ref, qkvb_ref, outw_ref,       # per-head attn weights
                   w1_ref, w2_ref,                     # FFN (b1 folded into w1)
                   cls_out_ref, pat_out_ref):
    txt = txt_ref[...]      # (B*St, D)
    cls = cls_ref[...]      # (B*Sc, D)
    pat = pat_ref[...]      # (B*Sp, D)

    # vec rows: 0..4 = ln_0..ln_4 gamma, 5..9 = ln_0..ln_4 beta,
    #           10..11 = attn out-proj bias (text_attn, cross_attn), 12 = ffn b2
    def vec(i):
        return vec_ref[i:i + 1, :]          # (1, D) static sublane slice

    def ln(x, i):
        mu = jnp.mean(x, axis=-1, keepdims=True)
        xc = x - mu
        var = jnp.mean(xc * xc, axis=-1, keepdims=True)
        return xc * jax.lax.rsqrt(var + EPS) * vec(i) + vec(5 + i)

    cls = ln(cls, 0)        # ln_0
    txt = ln(txt, 1)        # ln_1
    pat = ln(pat, 4)        # ln_4

    scale = 1.0 / (HD ** 0.5)

    def mha(a, xq, xk, xv, bias):
        mq = xq.shape[0]
        acc = jnp.zeros((mq, D), jnp.float32)
        for h in range(H):                              # static, unrolled
            def proj(x, t):
                idx = (a * 3 + t) * H + h               # static flat index
                y = jnp.dot(x, qkvw_ref[idx],           # (M, D) @ (D, HD)
                            preferred_element_type=jnp.float32)
                return y + qkvb_ref[idx]                # + (1, HD)
            qh = proj(xq, 0)
            kh = proj(xk, 1)
            vh = proj(xv, 2)
            s = jax.lax.dot_general(qh, kh, (((1,), (1,)), ((), ())),
                                    preferred_element_type=jnp.float32)
            s = s * scale + bias                        # block-diagonal mask
            s = s - jnp.max(s, axis=-1, keepdims=True)
            p = jnp.exp(s)
            p = p * pl.reciprocal(jnp.sum(p, axis=-1, keepdims=True),
                                  approx=True)
            oh = jnp.dot(p, vh, preferred_element_type=jnp.float32)   # (M, HD)
            # fold head straight into the out-projection: no concat
            acc = acc + jnp.dot(oh, outw_ref[a * H + h],
                                preferred_element_type=jnp.float32)
        return acc + vec(10 + a)

    # class = class + text_attention(Q=class, K=patch, V=patch)
    cls = cls + mha(0, cls, pat, pat, mtp_ref[...])
    cls = ln(cls, 2)        # ln_2
    # class = class + cross_attention(Q=class, K=text, V=class)
    cls = cls + mha(1, cls, txt, cls, mct_ref[...])

    # class = class + text_feed(ln_3(class))
    x = ln(cls, 3)
    h1 = jnp.dot(x, w1_ref[0:D, :],
                 preferred_element_type=jnp.float32) + w1_ref[D:D + 1, :]
    h1 = h1 * pl.reciprocal(1.0 + jnp.exp(-1.702 * h1), approx=True)  # QuickGELU
    cls = cls + jnp.dot(h1, w2_ref[...],
                        preferred_element_type=jnp.float32) + vec(12)

    cls_out_ref[...] = cls
    pat_out_ref[...] = pat


# --------------------------------- wrapper ---------------------------------- #
@jax.jit
def pathway_forward(text, cls, patch, params):
    (ln_g, ln_b, ain_w, ain_b, aout_w, aout_b, w1, b1, w2, b2) = params
    B, St, _ = text.shape
    Sc, Sp = cls.shape[1], patch.shape[1]
    # cross_attention(Q=class, K=text, V=class) requires St == Sc (as in PyTorch).
    assert St == Sc, "cross_attention requires text seq len == class seq len"

    # ---- fold batch into the M (sublane) axis ----
    txt2 = text.reshape(B * St, D)
    cls2 = cls.reshape(B * Sc, D)
    pat2 = patch.reshape(B * Sp, D)

    # ---- block-diagonal additive masks (0 within batch, -1e30 across) ----
    def block_mask(lq, lk):
        bi = jnp.repeat(jnp.arange(B), lq)
        bj = jnp.repeat(jnp.arange(B), lk)
        return jnp.where(bi[:, None] == bj[None, :], 0.0, NEG).astype(jnp.float32)
    mask_tp = block_mask(Sc, Sp)            # (B*Sc, B*Sp)  text_attention
    mask_ct = block_mask(Sc, St)            # (B*Sc, B*St)  cross_attention

    # ---- pre-transpose / pre-split weights (done once in XLA, not in-kernel) ----
    # in_proj: (2, 3D, D) [out,in] -> per-head (D, HD) in (in,out) layout
    qkv_wT = ain_w.reshape(2, 3, D, D).transpose(0, 1, 3, 2)          # (2,3,Din,Dout)
    qkv_wT = qkv_wT.reshape(2, 3, D, H, HD).transpose(0, 1, 3, 2, 4)  # (2,3,H,D,HD)
    qkv_wT = qkv_wT.reshape(2 * 3 * H, D, HD)
    qkv_b = ain_b.reshape(2 * 3 * H, 1, HD)
    # out_proj: (2, D, D) [out,in] -> per-head (HD, D) in (in,out) layout
    out_wT = aout_w.transpose(0, 2, 1).reshape(2 * H, HD, D)
    # FFN: pre-transpose, fold b1 into w1 as an extra row
    w1b = jnp.concatenate([w1.T, b1], axis=0)        # (D+1, 4D)
    w2T = w2.T                                       # (4D, D)
    # packed small vectors: ln gammas(5), ln betas(5), out biases(2), b2(1)
    vecs = jnp.concatenate([ln_g, ln_b, aout_b, b2], axis=0)   # (13, D)

    cls_out, pat_out = pl.pallas_call(
        pathway_kernel,
        out_shape=(jax.ShapeDtypeStruct((B * Sc, D), jnp.float32),
                   jax.ShapeDtypeStruct((B * Sp, D), jnp.float32)),
    )(txt2, cls2, pat2, mask_tp, mask_ct, vecs, qkv_wT, qkv_b, out_wT, w1b, w2T)

    return cls_out.reshape(B, Sc, D), pat_out.reshape(B, Sp, D)


# ---------------------------- deterministic params --------------------------- #
def init_params(key):
    keys = jax.random.split(key, 10)
    s = 0.02
    ln_g = 1.0 + s * jax.random.normal(keys[0], (5, D), jnp.float32)    # ln_0..ln_4 gamma
    ln_b = s * jax.random.normal(keys[1], (5, D), jnp.float32)          # ln_0..ln_4 beta
    ain_w = s * jax.random.normal(keys[2], (2, 3 * D, D), jnp.float32)  # in_proj [Wq;Wk;Wv]
    ain_b = s * jax.random.normal(keys[3], (2, 3 * D), jnp.float32)
    aout_w = s * jax.random.normal(keys[4], (2, D, D), jnp.float32)     # out_proj
    aout_b = s * jax.random.normal(keys[5], (2, D), jnp.float32)
    w1 = s * jax.random.normal(keys[6], (4 * D, D), jnp.float32)        # Linear(D, 4D)
    b1 = s * jax.random.normal(keys[7], (1, 4 * D), jnp.float32)
    w2 = s * jax.random.normal(keys[8], (D, 4 * D), jnp.float32)        # Linear(4D, D)
    b2 = s * jax.random.normal(keys[9], (1, D), jnp.float32)
    return (ln_g, ln_b, ain_w, ain_b, aout_w, aout_b, w1, b1, w2, b2)


# ------------------------------ pure-JAX reference --------------------------- #
def reference_forward(text, cls, patch, params):
    (ln_g, ln_b, ain_w, ain_b, aout_w, aout_b, w1, b1, w2, b2) = params

    def ln(x, i):
        mu = x.mean(-1, keepdims=True)
        var = ((x - mu) ** 2).mean(-1, keepdims=True)
        return (x - mu) / jnp.sqrt(var + EPS) * ln_g[i] + ln_b[i]

    def mha(q_in, k_in, v_in, a):
        in_w, in_b = ain_w[a], ain_b[a]
        out_w, out_b = aout_w[a], aout_b[a]
        B_, Lq, _ = q_in.shape
        Lk = k_in.shape[1]
        q = q_in @ in_w[:D].T + in_b[:D]
        k = k_in @ in_w[D:2 * D].T + in_b[D:2 * D]
        v = v_in @ in_w[2 * D:].T + in_b[2 * D:]
        q = q.reshape(B_, Lq, H, HD).transpose(0, 2, 1, 3)
        k = k.reshape(B_, Lk, H, HD).transpose(0, 2, 1, 3)
        v = v.reshape(B_, Lk, H, HD).transpose(0, 2, 1, 3)
        s = jnp.einsum('bhqd,bhkd->bhqk', q, k) * (1.0 / (HD ** 0.5))
        p = jax.nn.softmax(s, axis=-1)
        o = jnp.einsum('bhqk,bhkd->bhqd', p, v).transpose(0, 2, 1, 3).reshape(B_, Lq, D)
        return o @ out_w.T + out_b

    c = ln(cls, 0)
    t = ln(text, 1)
    p = ln(patch, 4)
    c = c + mha(c, p, p, 0)
    c = ln(c, 2)
    c = c + mha(c, t, c, 1)
    x = ln(c, 3)
    hdn = x @ w1.T + b1
    hdn = hdn * jax.nn.sigmoid(1.702 * hdn)
    c = c + hdn @ w2.T + b2
    return c, p


if __name__ == "__main__":
    key = jax.random.PRNGKey(0)
    k_text, k_cls, k_patch, k_params = jax.random.split(key, 4)

    B, St, Sc, Sp = 2, 8, 8, 16
    text_features_ori = jax.random.normal(k_text, (B, St, D), jnp.float32)
    class_features_ori = jax.random.normal(k_cls, (B, Sc, D), jnp.float32)
    patch_features_ori = jax.random.normal(k_patch, (B, Sp, D), jnp.float32)
    params = init_params(k_params)

    out_c, out_p = pathway_forward(text_features_ori, class_features_ori,
                                   patch_features_ori, params)
    jax.block_until_ready((out_c, out_p))

    ref_c, ref_p = reference_forward(text_features_ori, class_features_ori,
                                     patch_features_ori, params)
    assert out_c.shape == (B, Sc, D) and out_p.shape == (B, Sp, D)
    assert jnp.allclose(out_c, ref_c, atol=3e-3, rtol=3e-3)
    assert jnp.allclose(out_p, ref_p, atol=3e-3, rtol=3e-3)
    print("KERNEL_OK")
</pallas_src>

<mosaic_0001>
module attributes {stable_mosaic.version = 11 : i64} {
  func.func @pathway_kernel(%arg0: memref<16x64xf32, #tpu.memory_space<vmem>>, %arg1: memref<16x64xf32, #tpu.memory_space<vmem>>, %arg2: memref<32x64xf32, #tpu.memory_space<vmem>>, %arg3: memref<16x32xf32, #tpu.memory_space<vmem>>, %arg4: memref<16x16xf32, #tpu.memory_space<vmem>>, %arg5: memref<13x64xf32, #tpu.memory_space<vmem>>, %arg6: memref<48x64x8xf32, #tpu.memory_space<vmem>>, %arg7: memref<48x1x8xf32, #tpu.memory_space<vmem>>, %arg8: memref<16x8x64xf32, #tpu.memory_space<vmem>>, %arg9: memref<65x256xf32, #tpu.memory_space<vmem>>, %arg10: memref<256x64xf32, #tpu.memory_space<vmem>>, %arg11: memref<16x64xf32, #tpu.memory_space<vmem>>, %arg12: memref<32x64xf32, #tpu.memory_space<vmem>>) attributes {dimension_semantics = [], scalar_prefetch = 0 : i64, scratch_operands = 0 : i64, tpu.core_type = #tpu.core_type<tc>} {
    %c0 = arith.constant 0 : index
    %c0_0 = arith.constant 0 : index
    %0 = vector.load %arg0[%c0, %c0_0] : memref<16x64xf32, #tpu.memory_space<vmem>>, vector<16x64xf32>
    %c0_1 = arith.constant 0 : index
    %c0_2 = arith.constant 0 : index
    %1 = vector.load %arg1[%c0_1, %c0_2] : memref<16x64xf32, #tpu.memory_space<vmem>>, vector<16x64xf32>
    %c0_3 = arith.constant 0 : index
    %c0_4 = arith.constant 0 : index
    %2 = vector.load %arg2[%c0_3, %c0_4] : memref<32x64xf32, #tpu.memory_space<vmem>>, vector<32x64xf32>
    %cst = arith.constant dense<0.000000e+00> : vector<16xf32>
    %3 = vector.multi_reduction <add>, %1, %cst [1] : vector<16x64xf32> to vector<16xf32>
    %4 = vector.shape_cast %3 : vector<16xf32> to vector<16x1xf32>
    %cst_5 = arith.constant 6.400000e+01 : f32
    %5 = vector.broadcast %cst_5 : f32 to vector<16x1xf32>
    %6 = arith.divf %4, %5 : vector<16x1xf32>
    %7 = vector.broadcast %6 : vector<16x1xf32> to vector<16x64xf32>
    %8 = arith.subf %1, %7 : vector<16x64xf32>
    %9 = arith.mulf %8, %8 : vector<16x64xf32>
    %cst_6 = arith.constant dense<0.000000e+00> : vector<16xf32>
    %10 = vector.multi_reduction <add>, %9, %cst_6 [1] : vector<16x64xf32> to vector<16xf32>
    %11 = vector.shape_cast %10 : vector<16xf32> to vector<16x1xf32>
    %cst_7 = arith.constant 6.400000e+01 : f32
    %12 = vector.broadcast %cst_7 : f32 to vector<16x1xf32>
    %13 = arith.divf %11, %12 : vector<16x1xf32>
    %cst_8 = arith.constant 9.99999974E-6 : f32
    %14 = vector.broadcast %cst_8 : f32 to vector<16x1xf32>
    %15 = arith.addf %13, %14 : vector<16x1xf32>
    %16 = math.rsqrt %15 : vector<16x1xf32>
    %17 = vector.broadcast %16 : vector<16x1xf32> to vector<16x64xf32>
    %18 = arith.mulf %8, %17 : vector<16x64xf32>
    %c0_9 = arith.constant 0 : index
    %c0_10 = arith.constant 0 : index
    %19 = vector.load %arg5[%c0_9, %c0_10] : memref<13x64xf32, #tpu.memory_space<vmem>>, vector<1x64xf32>
    %20 = vector.broadcast %19 : vector<1x64xf32> to vector<16x64xf32>
    %21 = arith.mulf %18, %20 : vector<16x64xf32>
    %c5 = arith.constant 5 : index
    %c0_11 = arith.constant 0 : index
    %22 = vector.load %arg5[%c5, %c0_11] : memref<13x64xf32, #tpu.memory_space<vmem>>, vector<1x64xf32>
    %23 = vector.broadcast %22 : vector<1x64xf32> to vector<16x64xf32>
    %24 = arith.addf %21, %23 : vector<16x64xf32>
    %cst_12 = arith.constant dense<0.000000e+00> : vector<16xf32>
    %25 = vector.multi_reduction <add>, %0, %cst_12 [1] : vector<16x64xf32> to vector<16xf32>
    %26 = vector.shape_cast %25 : vector<16xf32> to vector<16x1xf32>
    %cst_13 = arith.constant 6.400000e+01 : f32
    %27 = vector.broadcast %cst_13 : f32 to vector<16x1xf32>
    %28 = arith.divf %26, %27 : vector<16x1xf32>
    %29 = vector.broadcast %28 : vector<16x1xf32> to vector<16x64xf32>
    %30 = arith.subf %0, %29 : vector<16x64xf32>
    %31 = arith.mulf %30, %30 : vector<16x64xf32>
    %cst_14 = arith.constant dense<0.000000e+00> : vector<16xf32>
    %32 = vector.multi_reduction <add>, %31, %cst_14 [1] : vector<16x64xf32> to vector<16xf32>
    %33 = vector.shape_cast %32 : vector<16xf32> to vector<16x1xf32>
    %cst_15 = arith.constant 6.400000e+01 : f32
    %34 = vector.broadcast %cst_15 : f32 to vector<16x1xf32>
    %35 = arith.divf %33, %34 : vector<16x1xf32>
    %cst_16 = arith.constant 9.99999974E-6 : f32
    %36 = vector.broadcast %cst_16 : f32 to vector<16x1xf32>
    %37 = arith.addf %35, %36 : vector<16x1xf32>
    %38 = math.rsqrt %37 : vector<16x1xf32>
    %39 = vector.broadcast %38 : vector<16x1xf32> to vector<16x64xf32>
    %40 = arith.mulf %30, %39 : vector<16x64xf32>
    %c1 = arith.constant 1 : index
    %c0_17 = arith.constant 0 : index
    %41 = vector.load %arg5[%c1, %c0_17] : memref<13x64xf32, #tpu.memory_space<vmem>>, vector<1x64xf32>
    %42 = vector.broadcast %41 : vector<1x64xf32> to vector<16x64xf32>
    %43 = arith.mulf %40, %42 : vector<16x64xf32>
    %c6 = arith.constant 6 : index
    %c0_18 = arith.constant 0 : index
    %44 = vector.load %arg5[%c6, %c0_18] : memref<13x64xf32, #tpu.memory_space<vmem>>, vector<1x64xf32>
    %45 = vector.broadcast %44 : vector<1x64xf32> to vector<16x64xf32>
    %46 = arith.addf %43, %45 : vector<16x64xf32>
    %cst_19 = arith.constant dense<0.000000e+00> : vector<32xf32>
    %47 = vector.multi_reduction <add>, %2, %cst_19 [1] : vector<32x64xf32> to vector<32xf32>
    %48 = vector.shape_cast %47 : vector<32xf32> to vector<32x1xf32>
    %cst_20 = arith.constant 6.400000e+01 : f32
    %49 = vector.broadcast %cst_20 : f32 to vector<32x1xf32>
    %50 = arith.divf %48, %49 : vector<32x1xf32>
    %51 = vector.broadcast %50 : vector<32x1xf32> to vector<32x64xf32>
    %52 = arith.subf %2, %51 : vector<32x64xf32>
    %53 = arith.mulf %52, %52 : vector<32x64xf32>
    %cst_21 = arith.constant dense<0.000000e+00> : vector<32xf32>
    %54 = vector.multi_reduction <add>, %53, %cst_21 [1] : vector<32x64xf32> to vector<32xf32>
    %55 = vector.shape_cast %54 : vector<32xf32> to vector<32x1xf32>
    %cst_22 = arith.constant 6.400000e+01 : f32
    %56 = vector.broadcast %cst_22 : f32 to vector<32x1xf32>
    %57 = arith.divf %55, %56 : vector<32x1xf32>
    %cst_23 = arith.constant 9.99999974E-6 : f32
    %58 = vector.broadcast %cst_23 : f32 to vector<32x1xf32>
    %59 = arith.addf %57, %58 : vector<32x1xf32>
    %60 = math.rsqrt %59 : vector<32x1xf32>
    %61 = vector.broadcast %60 : vector<32x1xf32> to vector<32x64xf32>
    %62 = arith.mulf %52, %61 : vector<32x64xf32>
    %c4 = arith.constant 4 : index
    %c0_24 = arith.constant 0 : index
    %63 = vector.load %arg5[%c4, %c0_24] : memref<13x64xf32, #tpu.memory_space<vmem>>, vector<1x64xf32>
    %64 = vector.broadcast %63 : vector<1x64xf32> to vector<32x64xf32>
    %65 = arith.mulf %62, %64 : vector<32x64xf32>
    %c9 = arith.constant 9 : index
    %c0_25 = arith.constant 0 : index
    %66 = vector.load %arg5[%c9, %c0_25] : memref<13x64xf32, #tpu.memory_space<vmem>>, vector<1x64xf32>
    %67 = vector.broadcast %66 : vector<1x64xf32> to vector<32x64xf32>
    %68 = arith.addf %65, %67 : vector<32x64xf32>
    %c0_26 = arith.constant 0 : index
    %c0_27 = arith.constant 0 : index
    %69 = vector.load %arg3[%c0_26, %c0_27] : memref<16x32xf32, #tpu.memory_space<vmem>>, vector<16x32xf32>
    %cst_28 = arith.constant 0.000000e+00 : f32
    %70 = vector.broadcast %cst_28 : f32 to vector<16x64xf32>
    %c0_29 = arith.constant 0 : index
    %c0_30 = arith.constant 0 : index
    %c0_31 = arith.constant 0 : index
    %71 = vector.load %arg6[%c0_29, %c0_30, %c0_31] : memref<48x64x8xf32, #tpu.memory_space<vmem>>, vector<1x64x8xf32>
    %72 = vector.shape_cast %71 : vector<1x64x8xf32> to vector<64x8xf32>
    %cst_32 = arith.constant dense<0.000000e+00> : vector<16x8xf32>
    %73 = tpu.matmul %24, %72, %cst_32 {dimension_numbers = #tpu.dot_dimension_numbers<[1], [0], [0], [1], [0, 0, 1, 1], [], []>} : vector<16x64xf32>, vector<64x8xf32>, vector<16x8xf32> -> vector<16x8xf32>
    %c0_33 = arith.constant 0 : index
    %c0_34 = arith.constant 0 : index
    %c0_35 = arith.constant 0 : index
    %74 = vector.load %arg7[%c0_33, %c0_34, %c0_35] : memref<48x1x8xf32, #tpu.memory_space<vmem>>, vector<1x1x8xf32>
    %75 = vector.shape_cast %74 : vector<1x1x8xf32> to vector<1x8xf32>
    %76 = vector.broadcast %75 : vector<1x8xf32> to vector<16x8xf32>
    %77 = arith.addf %73, %76 : vector<16x8xf32>
    %c8 = arith.constant 8 : index
    %c0_36 = arith.constant 0 : index
    %c0_37 = arith.constant 0 : index
    %78 = vector.load %arg6[%c8, %c0_36, %c0_37] : memref<48x64x8xf32, #tpu.memory_space<vmem>>, vector<1x64x8xf32>
    %79 = vector.shape_cast %78 : vector<1x64x8xf32> to vector<64x8xf32>
    %cst_38 = arith.constant dense<0.000000e+00> : vector<32x8xf32>
    %80 = tpu.matmul %68, %79, %cst_38 {dimension_numbers = #tpu.dot_dimension_numbers<[1], [0], [0], [1], [0, 0, 1, 1], [], []>} : vector<32x64xf32>, vector<64x8xf32>, vector<32x8xf32> -> vector<32x8xf32>
    %c8_39 = arith.constant 8 : index
    %c0_40 = arith.constant 0 : index
    %c0_41 = arith.constant 0 : index
    %81 = vector.load %arg7[%c8_39, %c0_40, %c0_41] : memref<48x1x8xf32, #tpu.memory_space<vmem>>, vector<1x1x8xf32>
    %82 = vector.shape_cast %81 : vector<1x1x8xf32> to vector<1x8xf32>
    %83 = vector.broadcast %82 : vector<1x8xf32> to vector<32x8xf32>
    %84 = arith.addf %80, %83 : vector<32x8xf32>
    %c16 = arith.constant 16 : index
    %c0_42 = arith.constant 0 : index
    %c0_43 = arith.constant 0 : index
    %85 = vector.load %arg6[%c16, %c0_42, %c0_43] : memref<48x64x8xf32, #tpu.memory_space<vmem>>, vector<1x64x8xf32>
    %86 = vector.shape_cast %85 : vector<1x64x8xf32> to vector<64x8xf32>
    %cst_44 = arith.constant dense<0.000000e+00> : vector<32x8xf32>
    %87 = tpu.matmul %68, %86, %cst_44 {dimension_numbers = #tpu.dot_dimension_numbers<[1], [0], [0], [1], [0, 0, 1, 1], [], []>} : vector<32x64xf32>, vector<64x8xf32>, vector<32x8xf32> -> vector<32x8xf32>
    %c16_45 = arith.constant 16 : index
    %c0_46 = arith.constant 0 : index
    %c0_47 = arith.constant 0 : index
    %88 = vector.load %arg7[%c16_45, %c0_46, %c0_47] : memref<48x1x8xf32, #tpu.memory_space<vmem>>, vector<1x1x8xf32>
    %89 = vector.shape_cast %88 : vector<1x1x8xf32> to vector<1x8xf32>
    %90 = vector.broadcast %89 : vector<1x8xf32> to vector<32x8xf32>
    %91 = arith.addf %87, %90 : vector<32x8xf32>
    %cst_48 = arith.constant dense<0.000000e+00> : vector<16x32xf32>
    %92 = tpu.matmul %77, %84, %cst_48 {dimension_numbers = #tpu.dot_dimension_numbers<[1], [1], [0], [0], [0, 0, 1, 0], [], []>} : vector<16x8xf32>, vector<32x8xf32>, vector<16x32xf32> -> vector<16x32xf32>
    %cst_49 = arith.constant 0.353553385 : f32
    %93 = vector.broadcast %cst_49 : f32 to vector<16x32xf32>
    %94 = arith.mulf %92, %93 : vector<16x32xf32>
    %95 = arith.addf %94, %69 : vector<16x32xf32>
    %cst_50 = arith.constant dense<0xFF800000> : vector<16xf32>
    %96 = vector.multi_reduction <maximumf>, %95, %cst_50 [1] : vector<16x32xf32> to vector<16xf32>
    %97 = vector.shape_cast %96 : vector<16xf32> to vector<16x1xf32>
    %98 = vector.broadcast %97 : vector<16x1xf32> to vector<16x32xf32>
    %99 = arith.subf %95, %98 : vector<16x32xf32>
    %100 = math.exp %99 : vector<16x32xf32>
    %cst_51 = arith.constant dense<0.000000e+00> : vector<16xf32>
    %101 = vector.multi_reduction <add>, %100, %cst_51 [1] : vector<16x32xf32> to vector<16xf32>
    %102 = vector.shape_cast %101 : vector<16xf32> to vector<16x1xf32>
    %103 = tpu.reciprocal %102 {approx = true} : vector<16x1xf32> -> vector<16x1xf32>
    %104 = vector.broadcast %103 : vector<16x1xf32> to vector<16x32xf32>
    %105 = arith.mulf %100, %104 : vector<16x32xf32>
    %cst_52 = arith.constant dense<0.000000e+00> : vector<16x8xf32>
    %106 = tpu.matmul %105, %91, %cst_52 {dimension_numbers = #tpu.dot_dimension_numbers<[1], [0], [0], [1], [0, 0, 1, 1], [], []>} : vector<16x32xf32>, vector<32x8xf32>, vector<16x8xf32> -> vector<16x8xf32>
    %c0_53 = arith.constant 0 : index
    %c0_54 = arith.constant 0 : index
    %c0_55 = arith.constant 0 : index
    %107 = vector.load %arg8[%c0_53, %c0_54, %c0_55] : memref<16x8x64xf32, #tpu.memory_space<vmem>>, vector<1x8x64xf32>
    %108 = vector.shape_cast %107 : vector<1x8x64xf32> to vector<8x64xf32>
    %cst_56 = arith.constant dense<0.000000e+00> : vector<16x64xf32>
    %109 = tpu.matmul %106, %108, %cst_56 {dimension_numbers = #tpu.dot_dimension_numbers<[1], [0], [0], [1], [0, 0, 1, 1], [], []>} : vector<16x8xf32>, vector<8x64xf32>, vector<16x64xf32> -> vector<16x64xf32>
    %110 = arith.addf %70, %109 : vector<16x64xf32>
    %c1_57 = arith.constant 1 : index
    %c0_58 = arith.constant 0 : index
    %c0_59 = arith.constant 0 : index
    %111 = vector.load %arg6[%c1_57, %c0_58, %c0_59] : memref<48x64x8xf32, #tpu.memory_space<vmem>>, vector<1x64x8xf32>
    %112 = vector.shape_cast %111 : vector<1x64x8xf32> to vector<64x8xf32>
    %cst_60 = arith.constant dense<0.000000e+00> : vector<16x8xf32>
    %113 = tpu.matmul %24, %112, %cst_60 {dimension_numbers = #tpu.dot_dimension_numbers<[1], [0], [0], [1], [0, 0, 1, 1], [], []>} : vector<16x64xf32>, vector<64x8xf32>, vector<16x8xf32> -> vector<16x8xf32>
    %c1_61 = arith.constant 1 : index
    %c0_62 = arith.constant 0 : index
    %c0_63 = arith.constant 0 : index
    %114 = vector.load %arg7[%c1_61, %c0_62, %c0_63] : memref<48x1x8xf32, #tpu.memory_space<vmem>>, vector<1x1x8xf32>
    %115 = vector.shape_cast %114 : vector<1x1x8xf32> to vector<1x8xf32>
    %116 = vector.broadcast %115 : vector<1x8xf32> to vector<16x8xf32>
    %117 = arith.addf %113, %116 : vector<16x8xf32>
    %c9_64 = arith.constant 9 : index
    %c0_65 = arith.constant 0 : index
    %c0_66 = arith.constant 0 : index
    %118 = vector.load %arg6[%c9_64, %c0_65, %c0_66] : memref<48x64x8xf32, #tpu.memory_space<vmem>>, vector<1x64x8xf32>
    %119 = vector.shape_cast %118 : vector<1x64x8xf32> to vector<64x8xf32>
    %cst_67 = arith.constant dense<0.000000e+00> : vector<32x8xf32>
    %120 = tpu.matmul %68, %119, %cst_67 {dimension_numbers = #tpu.dot_dimension_numbers<[1], [0], [0], [1], [0, 0, 1, 1], [], []>} : vector<32x64xf32>, vector<64x8xf32>, vector<32x8xf32> -> vector<32x8xf32>
    %c9_68 = arith.constant 9 : index
    %c0_69 = arith.constant 0 : index
    %c0_70 = arith.constant 0 : index
    %121 = vector.load %arg7[%c9_68, %c0_69, %c0_70] : memref<48x1x8xf32, #tpu.memory_space<vmem>>, vector<1x1x8xf32>
    %122 = vector.shape_cast %121 : vector<1x1x8xf32> to vector<1x8xf32>
    %123 = vector.broadcast %122 : vector<1x8xf32> to vector<32x8xf32>
    %124 = arith.addf %120, %123 : vector<32x8xf32>
    %c17 = arith.constant 17 : index
    %c0_71 = arith.constant 0 : index
    %c0_72 = arith.constant 0 : index
    %125 = vector.load %arg6[%c17, %c0_71, %c0_72] : memref<48x64x8xf32, #tpu.memory_space<vmem>>, vector<1x64x8xf32>
    %126 = vector.shape_cast %125 : vector<1x64x8xf32> to vector<64x8xf32>
    %cst_73 = arith.constant dense<0.000000e+00> : vector<32x8xf32>
    %127 = tpu.matmul %68, %126, %cst_73 {dimension_numbers = #tpu.dot_dimension_numbers<[1], [0], [0], [1], [0, 0, 1, 1], [], []>} : vector<32x64xf32>, vector<64x8xf32>, vector<32x8xf32> -> vector<32x8xf32>
    %c17_74 = arith.constant 17 : index
    %c0_75 = arith.constant 0 : index
    %c0_76 = arith.constant 0 : index
    %128 = vector.load %arg7[%c17_74, %c0_75, %c0_76] : memref<48x1x8xf32, #tpu.memory_space<vmem>>, vector<1x1x8xf32>
    %129 = vector.shape_cast %128 : vector<1x1x8xf32> to vector<1x8xf32>
    %130 = vector.broadcast %129 : vector<1x8xf32> to vector<32x8xf32>
    %131 = arith.addf %127, %130 : vector<32x8xf32>
    %cst_77 = arith.constant dense<0.000000e+00> : vector<16x32xf32>
    %132 = tpu.matmul %117, %124, %cst_77 {dimension_numbers = #tpu.dot_dimension_numbers<[1], [1], [0], [0], [0, 0, 1, 0], [], []>} : vector<16x8xf32>, vector<32x8xf32>, vector<16x32xf32> -> vector<16x32xf32>
    %cst_78 = arith.constant 0.353553385 : f32
    %133 = vector.broadcast %cst_78 : f32 to vector<16x32xf32>
    %134 = arith.mulf %132, %133 : vector<16x32xf32>
    %135 = arith.addf %134, %69 : vector<16x32xf32>
    %cst_79 = arith.constant dense<0xFF800000> : vector<16xf32>
    %136 = vector.multi_reduction <maximumf>, %135, %cst_79 [1] : vector<16x32xf32> to vector<16xf32>
    %137 = vector.shape_cast %136 : vector<16xf32> to vector<16x1xf32>
    %138 = vector.broadcast %137 : vector<16x1xf32> to vector<16x32xf32>
    %139 = arith.subf %135, %138 : vector<16x32xf32>
    %140 = math.exp %139 : vector<16x32xf32>
    %cst_80 = arith.constant dense<0.000000e+00> : vector<16xf32>
    %141 = vector.multi_reduction <add>, %140, %cst_80 [1] : vector<16x32xf32> to vector<16xf32>
    %142 = vector.shape_cast %141 : vector<16xf32> to vector<16x1xf32>
    %143 = tpu.reciprocal %142 {approx = true} : vector<16x1xf32> -> vector<16x1xf32>
    %144 = vector.broadcast %143 : vector<16x1xf32> to vector<16x32xf32>
    %145 = arith.mulf %140, %144 : vector<16x32xf32>
    %cst_81 = arith.constant dense<0.000000e+00> : vector<16x8xf32>
    %146 = tpu.matmul %145, %131, %cst_81 {dimension_numbers = #tpu.dot_dimension_numbers<[1], [0], [0], [1], [0, 0, 1, 1], [], []>} : vector<16x32xf32>, vector<32x8xf32>, vector<16x8xf32> -> vector<16x8xf32>
    %c1_82 = arith.constant 1 : index
    %c0_83 = arith.constant 0 : index
    %c0_84 = arith.constant 0 : index
    %147 = vector.load %arg8[%c1_82, %c0_83, %c0_84] : memref<16x8x64xf32, #tpu.memory_space<vmem>>, vector<1x8x64xf32>
    %148 = vector.shape_cast %147 : vector<1x8x64xf32> to vector<8x64xf32>
    %cst_85 = arith.constant dense<0.000000e+00> : vector<16x64xf32>
    %149 = tpu.matmul %146, %148, %cst_85 {dimension_numbers = #tpu.dot_dimension_numbers<[1], [0], [0], [1], [0, 0, 1, 1], [], []>} : vector<16x8xf32>, vector<8x64xf32>, vector<16x64xf32> -> vector<16x64xf32>
    %150 = arith.addf %110, %149 : vector<16x64xf32>
    %c2 = arith.constant 2 : index
    %c0_86 = arith.constant 0 : index
    %c0_87 = arith.constant 0 : index
    %151 = vector.load %arg6[%c2, %c0_86, %c0_87] : memref<48x64x8xf32, #tpu.memory_space<vmem>>, vector<1x64x8xf32>
    %152 = vector.shape_cast %151 : vector<1x64x8xf32> to vector<64x8xf32>
    %cst_88 = arith.constant dense<0.000000e+00> : vector<16x8xf32>
    %153 = tpu.matmul %24, %152, %cst_88 {dimension_numbers = #tpu.dot_dimension_numbers<[1], [0], [0], [1], [0, 0, 1, 1], [], []>} : vector<16x64xf32>, vector<64x8xf32>, vector<16x8xf32> -> vector<16x8xf32>
    %c2_89 = arith.constant 2 : index
    %c0_90 = arith.constant 0 : index
    %c0_91 = arith.constant 0 : index
    %154 = vector.load %arg7[%c2_89, %c0_90, %c0_91] : memref<48x1x8xf32, #tpu.memory_space<vmem>>, vector<1x1x8xf32>
    %155 = vector.shape_cast %154 : vector<1x1x8xf32> to vector<1x8xf32>
    %156 = vector.broadcast %155 : vector<1x8xf32> to vector<16x8xf32>
    %157 = arith.addf %153, %156 : vector<16x8xf32>
    %c10 = arith.constant 10 : index
    %c0_92 = arith.constant 0 : index
    %c0_93 = arith.constant 0 : index
    %158 = vector.load %arg6[%c10, %c0_92, %c0_93] : memref<48x64x8xf32, #tpu.memory_space<vmem>>, vector<1x64x8xf32>
    %159 = vector.shape_cast %158 : vector<1x64x8xf32> to vector<64x8xf32>
    %cst_94 = arith.constant dense<0.000000e+00> : vector<32x8xf32>
    %160 = tpu.matmul %68, %159, %cst_94 {dimension_numbers = #tpu.dot_dimension_numbers<[1], [0], [0], [1], [0, 0, 1, 1], [], []>} : vector<32x64xf32>, vector<64x8xf32>, vector<32x8xf32> -> vector<32x8xf32>
    %c10_95 = arith.constant 10 : index
    %c0_96 = arith.constant 0 : index
    %c0_97 = arith.constant 0 : index
    %161 = vector.load %arg7[%c10_95, %c0_96, %c0_97] : memref<48x1x8xf32, #tpu.memory_space<vmem>>, vector<1x1x8xf32>
    %162 = vector.shape_cast %161 : vector<1x1x8xf32> to vector<1x8xf32>
    %163 = vector.broadcast %162 : vector<1x8xf32> to vector<32x8xf32>
    %164 = arith.addf %160, %163 : vector<32x8xf32>
    %c18 = arith.constant 18 : index
    %c0_98 = arith.constant 0 : index
    %c0_99 = arith.constant 0 : index
    %165 = vector.load %arg6[%c18, %c0_98, %c0_99] : memref<48x64x8xf32, #tpu.memory_space<vmem>>, vector<1x64x8xf32>
    %166 = vector.shape_cast %165 : vector<1x64x8xf32> to vector<64x8xf32>
    %cst_100 = arith.constant dense<0.000000e+00> : vector<32x8xf32>
    %167 = tpu.matmul %68, %166, %cst_100 {dimension_numbers = #tpu.dot_dimension_numbers<[1], [0], [0], [1], [0, 0, 1, 1], [], []>} : vector<32x64xf32>, vector<64x8xf32>, vector<32x8xf32> -> vector<32x8xf32>
    %c18_101 = arith.constant 18 : index
    %c0_102 = arith.constant 0 : index
    %c0_103 = arith.constant 0 : index
    %168 = vector.load %arg7[%c18_101, %c0_102, %c0_103] : memref<48x1x8xf32, #tpu.memory_space<vmem>>, vector<1x1x8xf32>
    %169 = vector.shape_cast %168 : vector<1x1x8xf32> to vector<1x8xf32>
    %170 = vector.broadcast %169 : vector<1x8xf32> to vector<32x8xf32>
    %171 = arith.addf %167, %170 : vector<32x8xf32>
    %cst_104 = arith.constant dense<0.000000e+00> : vector<16x32xf32>
    %172 = tpu.matmul %157, %164, %cst_104 {dimension_numbers = #tpu.dot_dimension_numbers<[1], [1], [0], [0], [0, 0, 1, 0], [], []>} : vector<16x8xf32>, vector<32x8xf32>, vector<16x32xf32> -> vector<16x32xf32>
    %cst_105 = arith.constant 0.353553385 : f32
    %173 = vector.broadcast %cst_105 : f32 to vector<16x32xf32>
    %174 = arith.mulf %172, %173 : vector<16x32xf32>
    %175 = arith.addf %174, %69 : vector<16x32xf32>
    %cst_106 = arith.constant dense<0xFF800000> : vector<16xf32>
    %176 = vector.multi_reduction <maximumf>, %175, %cst_106 [1] : vector<16x32xf32> to vector<16xf32>
    %177 = vector.shape_cast %176 : vector<16xf32> to vector<16x1xf32>
    %178 = vector.broadcast %177 : vector<16x1xf32> to vector<16x32xf32>
    %179 = arith.subf %175, %178 : vector<16x32xf32>
    %180 = math.exp %179 : vector<16x32xf32>
    %cst_107 = arith.constant dense<0.000000e+00> : vector<16xf32>
    %181 = vector.multi_reduction <add>, %180, %cst_107 [1] : vector<16x32xf32> to vector<16xf32>
    %182 = vector.shape_cast %181 : vector<16xf32> to vector<16x1xf32>
    %183 = tpu.reciprocal %182 {approx = true} : vector<16x1xf32> -> vector<16x1xf32>
    %184 = vector.broadcast %183 : vector<16x1xf32> to vector<16x32xf32>
    %185 = arith.mulf %180, %184 : vector<16x32xf32>
    %cst_108 = arith.constant dense<0.000000e+00> : vector<16x8xf32>
    %186 = tpu.matmul %185, %171, %cst_108 {dimension_numbers = #tpu.dot_dimension_numbers<[1], [0], [0], [1], [0, 0, 1, 1], [], []>} : vector<16x32xf32>, vector<32x8xf32>, vector<16x8xf32> -> vector<16x8xf32>
    %c2_109 = arith.constant 2 : index
    %c0_110 = arith.constant 0 : index
    %c0_111 = arith.constant 0 : index
    %187 = vector.load %arg8[%c2_109, %c0_110, %c0_111] : memref<16x8x64xf32, #tpu.memory_space<vmem>>, vector<1x8x64xf32>
    %188 = vector.shape_cast %187 : vector<1x8x64xf32> to vector<8x64xf32>
    %cst_112 = arith.constant dense<0.000000e+00> : vector<16x64xf32>
    %189 = tpu.matmul %186, %188, %cst_112 {dimension_numbers = #tpu.dot_dimension_numbers<[1], [0], [0], [1], [0, 0, 1, 1], [], []>} : vector<16x8xf32>, vector<8x64xf32>, vector<16x64xf32> -> vector<16x64xf32>
    %190 = arith.addf %150, %189 : vector<16x64xf32>
    %c3 = arith.constant 3 : index
    %c0_113 = arith.constant 0 : index
    %c0_114 = arith.constant 0 : index
    %191 = vector.load %arg6[%c3, %c0_113, %c0_114] : memref<48x64x8xf32, #tpu.memory_space<vmem>>, vector<1x64x8xf32>
    %192 = vector.shape_cast %191 : vector<1x64x8xf32> to vector<64x8xf32>
    %cst_115 = arith.constant dense<0.000000e+00> : vector<16x8xf32>
    %193 = tpu.matmul %24, %192, %cst_115 {dimension_numbers = #tpu.dot_dimension_numbers<[1], [0], [0], [1], [0, 0, 1, 1], [], []>} : vector<16x64xf32>, vector<64x8xf32>, vector<16x8xf32> -> vector<16x8xf32>
    %c3_116 = arith.constant 3 : index
    %c0_117 = arith.constant 0 : index
    %c0_118 = arith.constant 0 : index
    %194 = vector.load %arg7[%c3_116, %c0_117, %c0_118] : memref<48x1x8xf32, #tpu.memory_space<vmem>>, vector<1x1x8xf32>
    %195 = vector.shape_cast %194 : vector<1x1x8xf32> to vector<1x8xf32>
    %196 = vector.broadcast %195 : vector<1x8xf32> to vector<16x8xf32>
    %197 = arith.addf %193, %196 : vector<16x8xf32>
    %c11 = arith.constant 11 : index
    %c0_119 = arith.constant 0 : index
    %c0_120 = arith.constant 0 : index
    %198 = vector.load %arg6[%c11, %c0_119, %c0_120] : memref<48x64x8xf32, #tpu.memory_space<vmem>>, vector<1x64x8xf32>
    %199 = vector.shape_cast %198 : vector<1x64x8xf32> to vector<64x8xf32>
    %cst_121 = arith.constant dense<0.000000e+00> : vector<32x8xf32>
    %200 = tpu.matmul %68, %199, %cst_121 {dimension_numbers = #tpu.dot_dimension_numbers<[1], [0], [0], [1], [0, 0, 1, 1], [], []>} : vector<32x64xf32>, vector<64x8xf32>, vector<32x8xf32> -> vector<32x8xf32>
    %c11_122 = arith.constant 11 : index
    %c0_123 = arith.constant 0 : index
    %c0_124 = arith.constant 0 : index
    %201 = vector.load %arg7[%c11_122, %c0_123, %c0_124] : memref<48x1x8xf32, #tpu.memory_space<vmem>>, vector<1x1x8xf32>
    %202 = vector.shape_cast %201 : vector<1x1x8xf32> to vector<1x8xf32>
    %203 = vector.broadcast %202 : vector<1x8xf32> to vector<32x8xf32>
    %204 = arith.addf %200, %203 : vector<32x8xf32>
    %c19 = arith.constant 19 : index
    %c0_125 = arith.constant 0 : index
    %c0_126 = arith.constant 0 : index
    %205 = vector.load %arg6[%c19, %c0_125, %c0_126] : memref<48x64x8xf32, #tpu.memory_space<vmem>>, vector<1x64x8xf32>
    %206 = vector.shape_cast %205 : vector<1x64x8xf32> to vector<64x8xf32>
    %cst_127 = arith.constant dense<0.000000e+00> : vector<32x8xf32>
    %207 = tpu.matmul %68, %206, %cst_127 {dimension_numbers = #tpu.dot_dimension_numbers<[1], [0], [0], [1], [0, 0, 1, 1], [], []>} : vector<32x64xf32>, vector<64x8xf32>, vector<32x8xf32> -> vector<32x8xf32>
    %c19_128 = arith.constant 19 : index
    %c0_129 = arith.constant 0 : index
    %c0_130 = arith.constant 0 : index
    %208 = vector.load %arg7[%c19_128, %c0_129, %c0_130] : memref<48x1x8xf32, #tpu.memory_space<vmem>>, vector<1x1x8xf32>
    %209 = vector.shape_cast %208 : vector<1x1x8xf32> to vector<1x8xf32>
    %210 = vector.broadcast %209 : vector<1x8xf32> to vector<32x8xf32>
    %211 = arith.addf %207, %210 : vector<32x8xf32>
    %cst_131 = arith.constant dense<0.000000e+00> : vector<16x32xf32>
    %212 = tpu.matmul %197, %204, %cst_131 {dimension_numbers = #tpu.dot_dimension_numbers<[1], [1], [0], [0], [0, 0, 1, 0], [], []>} : vector<16x8xf32>, vector<32x8xf32>, vector<16x32xf32> -> vector<16x32xf32>
    %cst_132 = arith.constant 0.353553385 : f32
    %213 = vector.broadcast %cst_132 : f32 to vector<16x32xf32>
    %214 = arith.mulf %212, %213 : vector<16x32xf32>
    %215 = arith.addf %214, %69 : vector<16x32xf32>
    %cst_133 = arith.constant dense<0xFF800000> : vector<16xf32>
    %216 = vector.multi_reduction <maximumf>, %215, %cst_133 [1] : vector<16x32xf32> to vector<16xf32>
    %217 = vector.shape_cast %216 : vector<16xf32> to vector<16x1xf32>
    %218 = vector.broadcast %217 : vector<16x1xf32> to vector<16x32xf32>
    %219 = arith.subf %215, %218 : vector<16x32xf32>
    %220 = math.exp %219 : vector<16x32xf32>
    %cst_134 = arith.constant dense<0.000000e+00> : vector<16xf32>
    %221 = vector.multi_reduction <add>, %220, %cst_134 [1] : vector<16x32xf32> to vector<16xf32>
    %222 = vector.shape_cast %221 : vector<16xf32> to vector<16x1xf32>
    %223 = tpu.reciprocal %222 {approx = true} : vector<16x1xf32> -> vector<16x1xf32>
    %224 = vector.broadcast %223 : vector<16x1xf32> to vector<16x32xf32>
    %225 = arith.mulf %220, %224 : vector<16x32xf32>
    %cst_135 = arith.constant dense<0.000000e+00> : vector<16x8xf32>
    %226 = tpu.matmul %225, %211, %cst_135 {dimension_numbers = #tpu.dot_dimension_numbers<[1], [0], [0], [1], [0, 0, 1, 1], [], []>} : vector<16x32xf32>, vector<32x8xf32>, vector<16x8xf32> -> vector<16x8xf32>
    %c3_136 = arith.constant 3 : index
    %c0_137 = arith.constant 0 : index
    %c0_138 = arith.constant 0 : index
    %227 = vector.load %arg8[%c3_136, %c0_137, %c0_138] : memref<16x8x64xf32, #tpu.memory_space<vmem>>, vector<1x8x64xf32>
    %228 = vector.shape_cast %227 : vector<1x8x64xf32> to vector<8x64xf32>
    %cst_139 = arith.constant dense<0.000000e+00> : vector<16x64xf32>
    %229 = tpu.matmul %226, %228, %cst_139 {dimension_numbers = #tpu.dot_dimension_numbers<[1], [0], [0], [1], [0, 0, 1, 1], [], []>} : vector<16x8xf32>, vector<8x64xf32>, vector<16x64xf32> -> vector<16x64xf32>
    %230 = arith.addf %190, %229 : vector<16x64xf32>
    %c4_140 = arith.constant 4 : index
    %c0_141 = arith.constant 0 : index
    %c0_142 = arith.constant 0 : index
    %231 = vector.load %arg6[%c4_140, %c0_141, %c0_142] : memref<48x64x8xf32, #tpu.memory_space<vmem>>, vector<1x64x8xf32>
    %232 = vector.shape_cast %231 : vector<1x64x8xf32> to vector<64x8xf32>
    %cst_143 = arith.constant dense<0.000000e+00> : vector<16x8xf32>
    %233 = tpu.matmul %24, %232, %cst_143 {dimension_numbers = #tpu.dot_dimension_numbers<[1], [0], [0], [1], [0, 0, 1, 1], [], []>} : vector<16x64xf32>, vector<64x8xf32>, vector<16x8xf32> -> vector<16x8xf32>
    %c4_144 = arith.constant 4 : index
    %c0_145 = arith.constant 0 : index
    %c0_146 = arith.constant 0 : index
    %234 = vector.load %arg7[%c4_144, %c0_145, %c0_146] : memref<48x1x8xf32, #tpu.memory_space<vmem>>, vector<1x1x8xf32>
    %235 = vector.shape_cast %234 : vector<1x1x8xf32> to vector<1x8xf32>
    %236 = vector.broadcast %235 : vector<1x8xf32> to vector<16x8xf32>
    %237 = arith.addf %233, %236 : vector<16x8xf32>
    %c12 = arith.constant 12 : index
    %c0_147 = arith.constant 0 : index
    %c0_148 = arith.constant 0 : index
    %238 = vector.load %arg6[%c12, %c0_147, %c0_148] : memref<48x64x8xf32, #tpu.memory_space<vmem>>, vector<1x64x8xf32>
    %239 = vector.shape_cast %238 : vector<1x64x8xf32> to vector<64x8xf32>
    %cst_149 = arith.constant dense<0.000000e+00> : vector<32x8xf32>
    %240 = tpu.matmul %68, %239, %cst_149 {dimension_numbers = #tpu.dot_dimension_numbers<[1], [0], [0], [1], [0, 0, 1, 1], [], []>} : vector<32x64xf32>, vector<64x8xf32>, vector<32x8xf32> -> vector<32x8xf32>
    %c12_150 = arith.constant 12 : index
    %c0_151 = arith.constant 0 : index
    %c0_152 = arith.constant 0 : index
    %241 = vector.load %arg7[%c12_150, %c0_151, %c0_152] : memref<48x1x8xf32, #tpu.memory_space<vmem>>, vector<1x1x8xf32>
    %242 = vector.shape_cast %241 : vector<1x1x8xf32> to vector<1x8xf32>
    %243 = vector.broadcast %242 : vector<1x8xf32> to vector<32x8xf32>
    %244 = arith.addf %240, %243 : vector<32x8xf32>
    %c20 = arith.constant 20 : index
    %c0_153 = arith.constant 0 : index
    %c0_154 = arith.constant 0 : index
    %245 = vector.load %arg6[%c20, %c0_153, %c0_154] : memref<48x64x8xf32, #tpu.memory_space<vmem>>, vector<1x64x8xf32>
    %246 = vector.shape_cast %245 : vector<1x64x8xf32> to vector<64x8xf32>
    %cst_155 = arith.constant dense<0.000000e+00> : vector<32x8xf32>
    %247 = tpu.matmul %68, %246, %cst_155 {dimension_numbers = #tpu.dot_dimension_numbers<[1], [0], [0], [1], [0, 0, 1, 1], [], []>} : vector<32x64xf32>, vector<64x8xf32>, vector<32x8xf32> -> vector<32x8xf32>
    %c20_156 = arith.constant 20 : index
    %c0_157 = arith.constant 0 : index
    %c0_158 = arith.constant 0 : index
    %248 = vector.load %arg7[%c20_156, %c0_157, %c0_158] : memref<48x1x8xf32, #tpu.memory_space<vmem>>, vector<1x1x8xf32>
    %249 = vector.shape_cast %248 : vector<1x1x8xf32> to vector<1x8xf32>
    %250 = vector.broadcast %249 : vector<1x8xf32> to vector<32x8xf32>
    %251 = arith.addf %247, %250 : vector<32x8xf32>
    %cst_159 = arith.constant dense<0.000000e+00> : vector<16x32xf32>
    %252 = tpu.matmul %237, %244, %cst_159 {dimension_numbers = #tpu.dot_dimension_numbers<[1], [1], [0], [0], [0, 0, 1, 0], [], []>} : vector<16x8xf32>, vector<32x8xf32>, vector<16x32xf32> -> vector<16x32xf32>
    %cst_160 = arith.constant 0.353553385 : f32
    %253 = vector.broadcast %cst_160 : f32 to vector<16x32xf32>
    %254 = arith.mulf %252, %253 : vector<16x32xf32>
    %255 = arith.addf %254, %69 : vector<16x32xf32>
    %cst_161 = arith.constant dense<0xFF800000> : vector<16xf32>
    %256 = vector.multi_reduction <maximumf>, %255, %cst_161 [1] : vector<16x32xf32> to vector<16xf32>
    %257 = vector.shape_cast %256 : vector<16xf32> to vector<16x1xf32>
    %258 = vector.broadcast %257 : vector<16x1xf32> to vector<16x32xf32>
    %259 = arith.subf %255, %258 : vector<16x32xf32>
    %260 = math.exp %259 : vector<16x32xf32>
    %cst_162 = arith.constant dense<0.000000e+00> : vector<16xf32>
    %261 = vector.multi_reduction <add>, %260, %cst_162 [1] : vector<16x32xf32> to vector<16xf32>
    %262 = vector.shape_cast %261 : vector<16xf32> to vector<16x1xf32>
    %263 = tpu.reciprocal %262 {approx = true} : vector<16x1xf32> -> vector<16x1xf32>
    %264 = vector.broadcast %263 : vector<16x1xf32> to vector<16x32xf32>
    %265 = arith.mulf %260, %264 : vector<16x32xf32>
    %cst_163 = arith.constant dense<0.000000e+00> : vector<16x8xf32>
    %266 = tpu.matmul %265, %251, %cst_163 {dimension_numbers = #tpu.dot_dimension_numbers<[1], [0], [0], [1], [0, 0, 1, 1], [], []>} : vector<16x32xf32>, vector<32x8xf32>, vector<16x8xf32> -> vector<16x8xf32>
    %c4_164 = arith.constant 4 : index
    %c0_165 = arith.constant 0 : index
    %c0_166 = arith.constant 0 : index
    %267 = vector.load %arg8[%c4_164, %c0_165, %c0_166] : memref<16x8x64xf32, #tpu.memory_space<vmem>>, vector<1x8x64xf32>
    %268 = vector.shape_cast %267 : vector<1x8x64xf32> to vector<8x64xf32>
    %cst_167 = arith.constant dense<0.000000e+00> : vector<16x64xf32>
    %269 = tpu.matmul %266, %268, %cst_167 {dimension_numbers = #tpu.dot_dimension_numbers<[1], [0], [0], [1], [0, 0, 1, 1], [], []>} : vector<16x8xf32>, vector<8x64xf32>, vector<16x64xf32> -> vector<16x64xf32>
    %270 = arith.addf %230, %269 : vector<16x64xf32>
    %c5_168 = arith.constant 5 : index
    %c0_169 = arith.constant 0 : index
    %c0_170 = arith.constant 0 : index
    %271 = vector.load %arg6[%c5_168, %c0_169, %c0_170] : memref<48x64x8xf32, #tpu.memory_space<vmem>>, vector<1x64x8xf32>
    %272 = vector.shape_cast %271 : vector<1x64x8xf32> to vector<64x8xf32>
    %cst_171 = arith.constant dense<0.000000e+00> : vector<16x8xf32>
    %273 = tpu.matmul %24, %272, %cst_171 {dimension_numbers = #tpu.dot_dimension_numbers<[1], [0], [0], [1], [0, 0, 1, 1], [], []>} : vector<16x64xf32>, vector<64x8xf32>, vector<16x8xf32> -> vector<16x8xf32>
    %c5_172 = arith.constant 5 : index
    %c0_173 = arith.constant 0 : index
    %c0_174 = arith.constant 0 : index
    %274 = vector.load %arg7[%c5_172, %c0_173, %c0_174] : memref<48x1x8xf32, #tpu.memory_space<vmem>>, vector<1x1x8xf32>
    %275 = vector.shape_cast %274 : vector<1x1x8xf32> to vector<1x8xf32>
    %276 = vector.broadcast %275 : vector<1x8xf32> to vector<16x8xf32>
    %277 = arith.addf %273, %276 : vector<16x8xf32>
    %c13 = arith.constant 13 : index
    %c0_175 = arith.constant 0 : index
    %c0_176 = arith.constant 0 : index
    %278 = vector.load %arg6[%c13, %c0_175, %c0_176] : memref<48x64x8xf32, #tpu.memory_space<vmem>>, vector<1x64x8xf32>
    %279 = vector.shape_cast %278 : vector<1x64x8xf32> to vector<64x8xf32>
    %cst_177 = arith.constant dense<0.000000e+00> : vector<32x8xf32>
    %280 = tpu.matmul %68, %279, %cst_177 {dimension_numbers = #tpu.dot_dimension_numbers<[1], [0], [0], [1], [0, 0, 1, 1], [], []>} : vector<32x64xf32>, vector<64x8xf32>, vector<32x8xf32> -> vector<32x8xf32>
    %c13_178 = arith.constant 13 : index
    %c0_179 = arith.constant 0 : index
    %c0_180 = arith.constant 0 : index
    %281 = vector.load %arg7[%c13_178, %c0_179, %c0_180] : memref<48x1x8xf32, #tpu.memory_space<vmem>>, vector<1x1x8xf32>
    %282 = vector.shape_cast %281 : vector<1x1x8xf32> to vector<1x8xf32>
    %283 = vector.broadcast %282 : vector<1x8xf32> to vector<32x8xf32>
    %284 = arith.addf %280, %283 : vector<32x8xf32>
    %c21 = arith.constant 21 : index
    %c0_181 = arith.constant 0 : index
    %c0_182 = arith.constant 0 : index
    %285 = vector.load %arg6[%c21, %c0_181, %c0_182] : memref<48x64x8xf32, #tpu.memory_space<vmem>>, vector<1x64x8xf32>
    %286 = vector.shape_cast %285 : vector<1x64x8xf32> to vector<64x8xf32>
    %cst_183 = arith.constant dense<0.000000e+00> : vector<32x8xf32>
    %287 = tpu.matmul %68, %286, %cst_183 {dimension_numbers = #tpu.dot_dimension_numbers<[1], [0], [0], [1], [0, 0, 1, 1], [], []>} : vector<32x64xf32>, vector<64x8xf32>, vector<32x8xf32> -> vector<32x8xf32>
    %c21_184 = arith.constant 21 : index
    %c0_185 = arith.constant 0 : index
    %c0_186 = arith.constant 0 : index
    %288 = vector.load %arg7[%c21_184, %c0_185, %c0_186] : memref<48x1x8xf32, #tpu.memory_space<vmem>>, vector<1x1x8xf32>
    %289 = vector.shape_cast %288 : vector<1x1x8xf32> to vector<1x8xf32>
    %290 = vector.broadcast %289 : vector<1x8xf32> to vector<32x8xf32>
    %291 = arith.addf %287, %290 : vector<32x8xf32>
    %cst_187 = arith.constant dense<0.000000e+00> : vector<16x32xf32>
    %292 = tpu.matmul %277, %284, %cst_187 {dimension_numbers = #tpu.dot_dimension_numbers<[1], [1], [0], [0], [0, 0, 1, 0], [], []>} : vector<16x8xf32>, vector<32x8xf32>, vector<16x32xf32> -> vector<16x32xf32>
    %cst_188 = arith.constant 0.353553385 : f32
    %293 = vector.broadcast %cst_188 : f32 to vector<16x32xf32>
    %294 = arith.mulf %292, %293 : vector<16x32xf32>
    %295 = arith.addf %294, %69 : vector<16x32xf32>
    %cst_189 = arith.constant dense<0xFF800000> : vector<16xf32>
    %296 = vector.multi_reduction <maximumf>, %295, %cst_189 [1] : vector<16x32xf32> to vector<16xf32>
    %297 = vector.shape_cast %296 : vector<16xf32> to vector<16x1xf32>
    %298 = vector.broadcast %297 : vector<16x1xf32> to vector<16x32xf32>
    %299 = arith.subf %295, %298 : vector<16x32xf32>
    %300 = math.exp %299 : vector<16x32xf32>
    %cst_190 = arith.constant dense<0.000000e+00> : vector<16xf32>
    %301 = vector.multi_reduction <add>, %300, %cst_190 [1] : vector<16x32xf32> to vector<16xf32>
    %302 = vector.shape_cast %301 : vector<16xf32> to vector<16x1xf32>
    %303 = tpu.reciprocal %302 {approx = true} : vector<16x1xf32> -> vector<16x1xf32>
    %304 = vector.broadcast %303 : vector<16x1xf32> to vector<16x32xf32>
    %305 = arith.mulf %300, %304 : vector<16x32xf32>
    %cst_191 = arith.constant dense<0.000000e+00> : vector<16x8xf32>
    %306 = tpu.matmul %305, %291, %cst_191 {dimension_numbers = #tpu.dot_dimension_numbers<[1], [0], [0], [1], [0, 0, 1, 1], [], []>} : vector<16x32xf32>, vector<32x8xf32>, vector<16x8xf32> -> vector<16x8xf32>
    %c5_192 = arith.constant 5 : index
    %c0_193 = arith.constant 0 : index
    %c0_194 = arith.constant 0 : index
    %307 = vector.load %arg8[%c5_192, %c0_193, %c0_194] : memref<16x8x64xf32, #tpu.memory_space<vmem>>, vector<1x8x64xf32>
    %308 = vector.shape_cast %307 : vector<1x8x64xf32> to vector<8x64xf32>
    %cst_195 = arith.constant dense<0.000000e+00> : vector<16x64xf32>
    %309 = tpu.matmul %306, %308, %cst_195 {dimension_numbers = #tpu.dot_dimension_numbers<[1], [0], [0], [1], [0, 0, 1, 1], [], []>} : vector<16x8xf32>, vector<8x64xf32>, vector<16x64xf32> -> vector<16x64xf32>
    %310 = arith.addf %270, %309 : vector<16x64xf32>
    %c6_196 = arith.constant 6 : index
    %c0_197 = arith.constant 0 : index
    %c0_198 = arith.constant 0 : index
    %311 = vector.load %arg6[%c6_196, %c0_197, %c0_198] : memref<48x64x8xf32, #tpu.memory_space<vmem>>, vector<1x64x8xf32>
    %312 = vector.shape_cast %311 : vector<1x64x8xf32> to vector<64x8xf32>
    %cst_199 = arith.constant dense<0.000000e+00> : vector<16x8xf32>
    %313 = tpu.matmul %24, %312, %cst_199 {dimension_numbers = #tpu.dot_dimension_numbers<[1], [0], [0], [1], [0, 0, 1, 1], [], []>} : vector<16x64xf32>, vector<64x8xf32>, vector<16x8xf32> -> vector<16x8xf32>
    %c6_200 = arith.constant 6 : index
    %c0_201 = arith.constant 0 : index
    %c0_202 = arith.constant 0 : index
    %314 = vector.load %arg7[%c6_200, %c0_201, %c0_202] : memref<48x1x8xf32, #tpu.memory_space<vmem>>, vector<1x1x8xf32>
    %315 = vector.shape_cast %314 : vector<1x1x8xf32> to vector<1x8xf32>
    %316 = vector.broadcast %315 : vector<1x8xf32> to vector<16x8xf32>
    %317 = arith.addf %313, %316 : vector<16x8xf32>
    %c14 = arith.constant 14 : index
    %c0_203 = arith.constant 0 : index
    %c0_204 = arith.constant 0 : index
    %318 = vector.load %arg6[%c14, %c0_203, %c0_204] : memref<48x64x8xf32, #tpu.memory_space<vmem>>, vector<1x64x8xf32>
    %319 = vector.shape_cast %318 : vector<1x64x8xf32> to vector<64x8xf32>
    %cst_205 = arith.constant dense<0.000000e+00> : vector<32x8xf32>
    %320 = tpu.matmul %68, %319, %cst_205 {dimension_numbers = #tpu.dot_dimension_numbers<[1], [0], [0], [1], [0, 0, 1, 1], [], []>} : vector<32x64xf32>, vector<64x8xf32>, vector<32x8xf32> -> vector<32x8xf32>
    %c14_206 = arith.constant 14 : index
    %c0_207 = arith.constant 0 : index
    %c0_208 = arith.constant 0 : index
    %321 = vector.load %arg7[%c14_206, %c0_207, %c0_208] : memref<48x1x8xf32, #tpu.memory_space<vmem>>, vector<1x1x8xf32>
    %322 = vector.shape_cast %321 : vector<1x1x8xf32> to vector<1x8xf32>
    %323 = vector.broadcast %322 : vector<1x8xf32> to vector<32x8xf32>
    %324 = arith.addf %320, %323 : vector<32x8xf32>
    %c22 = arith.constant 22 : index
    %c0_209 = arith.constant 0 : index
    %c0_210 = arith.constant 0 : index
    %325 = vector.load %arg6[%c22, %c0_209, %c0_210] : memref<48x64x8xf32, #tpu.memory_space<vmem>>, vector<1x64x8xf32>
    %326 = vector.shape_cast %325 : vector<1x64x8xf32> to vector<64x8xf32>
    %cst_211 = arith.constant dense<0.000000e+00> : vector<32x8xf32>
    %327 = tpu.matmul %68, %326, %cst_211 {dimension_numbers = #tpu.dot_dimension_numbers<[1], [0], [0], [1], [0, 0, 1, 1], [], []>} : vector<32x64xf32>, vector<64x8xf32>, vector<32x8xf32> -> vector<32x8xf32>
    %c22_212 = arith.constant 22 : index
    %c0_213 = arith.constant 0 : index
    %c0_214 = arith.constant 0 : index
    %328 = vector.load %arg7[%c22_212, %c0_213, %c0_214] : memref<48x1x8xf32, #tpu.memory_space<vmem>>, vector<1x1x8xf32>
    %329 = vector.shape_cast %328 : vector<1x1x8xf32> to vector<1x8xf32>
    %330 = vector.broadcast %329 : vector<1x8xf32> to vector<32x8xf32>
    %331 = arith.addf %327, %330 : vector<32x8xf32>
    %cst_215 = arith.constant dense<0.000000e+00> : vector<16x32xf32>
    %332 = tpu.matmul %317, %324, %cst_215 {dimension_numbers = #tpu.dot_dimension_numbers<[1], [1], [0], [0], [0, 0, 1, 0], [], []>} : vector<16x8xf32>, vector<32x8xf32>, vector<16x32xf32> -> vector<16x32xf32>
    %cst_216 = arith.constant 0.353553385 : f32
    %333 = vector.broadcast %cst_216 : f32 to vector<16x32xf32>
    %334 = arith.mulf %332, %333 : vector<16x32xf32>
    %335 = arith.addf %334, %69 : vector<16x32xf32>
    %cst_217 = arith.constant dense<0xFF800000> : vector<16xf32>
    %336 = vector.multi_reduction <maximumf>, %335, %cst_217 [1] : vector<16x32xf32> to vector<16xf32>
    %337 = vector.shape_cast %336 : vector<16xf32> to vector<16x1xf32>
    %338 = vector.broadcast %337 : vector<16x1xf32> to vector<16x32xf32>
    %339 = arith.subf %335, %338 : vector<16x32xf32>
    %340 = math.exp %339 : vector<16x32xf32>
    %cst_218 = arith.constant dense<0.000000e+00> : vector<16xf32>
    %341 = vector.multi_reduction <add>, %340, %cst_218 [1] : vector<16x32xf32> to vector<16xf32>
    %342 = vector.shape_cast %341 : vector<16xf32> to vector<16x1xf32>
    %343 = tpu.reciprocal %342 {approx = true} : vector<16x1xf32> -> vector<16x1xf32>
    %344 = vector.broadcast %343 : vector<16x1xf32> to vector<16x32xf32>
    %345 = arith.mulf %340, %344 : vector<16x32xf32>
    %cst_219 = arith.constant dense<0.000000e+00> : vector<16x8xf32>
    %346 = tpu.matmul %345, %331, %cst_219 {dimension_numbers = #tpu.dot_dimension_numbers<[1], [0], [0], [1], [0, 0, 1, 1], [], []>} : vector<16x32xf32>, vector<32x8xf32>, vector<16x8xf32> -> vector<16x8xf32>
    %c6_220 = arith.constant 6 : index
    %c0_221 = arith.constant 0 : index
    %c0_222 = arith.constant 0 : index
    %347 = vector.load %arg8[%c6_220, %c0_221, %c0_222] : memref<16x8x64xf32, #tpu.memory_space<vmem>>, vector<1x8x64xf32>
    %348 = vector.shape_cast %347 : vector<1x8x64xf32> to vector<8x64xf32>
    %cst_223 = arith.constant dense<0.000000e+00> : vector<16x64xf32>
    %349 = tpu.matmul %346, %348, %cst_223 {dimension_numbers = #tpu.dot_dimension_numbers<[1], [0], [0], [1], [0, 0, 1, 1], [], []>} : vector<16x8xf32>, vector<8x64xf32>, vector<16x64xf32> -> vector<16x64xf32>
    %350 = arith.addf %310, %349 : vector<16x64xf32>
    %c7 = arith.constant 7 : index
    %c0_224 = arith.constant 0 : index
    %c0_225 = arith.constant 0 : index
    %351 = vector.load %arg6[%c7, %c0_224, %c0_225] : memref<48x64x8xf32, #tpu.memory_space<vmem>>, vector<1x64x8xf32>
    %352 = vector.shape_cast %351 : vector<1x64x8xf32> to vector<64x8xf32>
    %cst_226 = arith.constant dense<0.000000e+00> : vector<16x8xf32>
    %353 = tpu.matmul %24, %352, %cst_226 {dimension_numbers = #tpu.dot_dimension_numbers<[1], [0], [0], [1], [0, 0, 1, 1], [], []>} : vector<16x64xf32>, vector<64x8xf32>, vector<16x8xf32> -> vector<16x8xf32>
    %c7_227 = arith.constant 7 : index
    %c0_228 = arith.constant 0 : index
    %c0_229 = arith.constant 0 : index
    %354 = vector.load %arg7[%c7_227, %c0_228, %c0_229] : memref<48x1x8xf32, #tpu.memory_space<vmem>>, vector<1x1x8xf32>
    %355 = vector.shape_cast %354 : vector<1x1x8xf32> to vector<1x8xf32>
    %356 = vector.broadcast %355 : vector<1x8xf32> to vector<16x8xf32>
    %357 = arith.addf %353, %356 : vector<16x8xf32>
    %c15 = arith.constant 15 : index
    %c0_230 = arith.constant 0 : index
    %c0_231 = arith.constant 0 : index
    %358 = vector.load %arg6[%c15, %c0_230, %c0_231] : memref<48x64x8xf32, #tpu.memory_space<vmem>>, vector<1x64x8xf32>
    %359 = vector.shape_cast %358 : vector<1x64x8xf32> to vector<64x8xf32>
    %cst_232 = arith.constant dense<0.000000e+00> : vector<32x8xf32>
    %360 = tpu.matmul %68, %359, %cst_232 {dimension_numbers = #tpu.dot_dimension_numbers<[1], [0], [0], [1], [0, 0, 1, 1], [], []>} : vector<32x64xf32>, vector<64x8xf32>, vector<32x8xf32> -> vector<32x8xf32>
    %c15_233 = arith.constant 15 : index
    %c0_234 = arith.constant 0 : index
    %c0_235 = arith.constant 0 : index
    %361 = vector.load %arg7[%c15_233, %c0_234, %c0_235] : memref<48x1x8xf32, #tpu.memory_space<vmem>>, vector<1x1x8xf32>
    %362 = vector.shape_cast %361 : vector<1x1x8xf32> to vector<1x8xf32>
    %363 = vector.broadcast %362 : vector<1x8xf32> to vector<32x8xf32>
    %364 = arith.addf %360, %363 : vector<32x8xf32>
    %c23 = arith.constant 23 : index
    %c0_236 = arith.constant 0 : index
    %c0_237 = arith.constant 0 : index
    %365 = vector.load %arg6[%c23, %c0_236, %c0_237] : memref<48x64x8xf32, #tpu.memory_space<vmem>>, vector<1x64x8xf32>
    %366 = vector.shape_cast %365 : vector<1x64x8xf32> to vector<64x8xf32>
    %cst_238 = arith.constant dense<0.000000e+00> : vector<32x8xf32>
    %367 = tpu.matmul %68, %366, %cst_238 {dimension_numbers = #tpu.dot_dimension_numbers<[1], [0], [0], [1], [0, 0, 1, 1], [], []>} : vector<32x64xf32>, vector<64x8xf32>, vector<32x8xf32> -> vector<32x8xf32>
    %c23_239 = arith.constant 23 : index
    %c0_240 = arith.constant 0 : index
    %c0_241 = arith.constant 0 : index
    %368 = vector.load %arg7[%c23_239, %c0_240, %c0_241] : memref<48x1x8xf32, #tpu.memory_space<vmem>>, vector<1x1x8xf32>
    %369 = vector.shape_cast %368 : vector<1x1x8xf32> to vector<1x8xf32>
    %370 = vector.broadcast %369 : vector<1x8xf32> to vector<32x8xf32>
    %371 = arith.addf %367, %370 : vector<32x8xf32>
    %cst_242 = arith.constant dense<0.000000e+00> : vector<16x32xf32>
    %372 = tpu.matmul %357, %364, %cst_242 {dimension_numbers = #tpu.dot_dimension_numbers<[1], [1], [0], [0], [0, 0, 1, 0], [], []>} : vector<16x8xf32>, vector<32x8xf32>, vector<16x32xf32> -> vector<16x32xf32>
    %cst_243 = arith.constant 0.353553385 : f32
    %373 = vector.broadcast %cst_243 : f32 to vector<16x32xf32>
    %374 = arith.mulf %372, %373 : vector<16x32xf32>
    %375 = arith.addf %374, %69 : vector<16x32xf32>
    %cst_244 = arith.constant dense<0xFF800000> : vector<16xf32>
    %376 = vector.multi_reduction <maximumf>, %375, %cst_244 [1] : vector<16x32xf32> to vector<16xf32>
    %377 = vector.shape_cast %376 : vector<16xf32> to vector<16x1xf32>
    %378 = vector.broadcast %377 : vector<16x1xf32> to vector<16x32xf32>
    %379 = arith.subf %375, %378 : vector<16x32xf32>
    %380 = math.exp %379 : vector<16x32xf32>
    %cst_245 = arith.constant dense<0.000000e+00> : vector<16xf32>
    %381 = vector.multi_reduction <add>, %380, %cst_245 [1] : vector<16x32xf32> to vector<16xf32>
    %382 = vector.shape_cast %381 : vector<16xf32> to vector<16x1xf32>
    %383 = tpu.reciprocal %382 {approx = true} : vector<16x1xf32> -> vector<16x1xf32>
    %384 = vector.broadcast %383 : vector<16x1xf32> to vector<16x32xf32>
    %385 = arith.mulf %380, %384 : vector<16x32xf32>
    %cst_246 = arith.constant dense<0.000000e+00> : vector<16x8xf32>
    %386 = tpu.matmul %385, %371, %cst_246 {dimension_numbers = #tpu.dot_dimension_numbers<[1], [0], [0], [1], [0, 0, 1, 1], [], []>} : vector<16x32xf32>, vector<32x8xf32>, vector<16x8xf32> -> vector<16x8xf32>
    %c7_247 = arith.constant 7 : index
    %c0_248 = arith.constant 0 : index
    %c0_249 = arith.constant 0 : index
    %387 = vector.load %arg8[%c7_247, %c0_248, %c0_249] : memref<16x8x64xf32, #tpu.memory_space<vmem>>, vector<1x8x64xf32>
    %388 = vector.shape_cast %387 : vector<1x8x64xf32> to vector<8x64xf32>
    %cst_250 = arith.constant dense<0.000000e+00> : vector<16x64xf32>
    %389 = tpu.matmul %386, %388, %cst_250 {dimension_numbers = #tpu.dot_dimension_numbers<[1], [0], [0], [1], [0, 0, 1, 1], [], []>} : vector<16x8xf32>, vector<8x64xf32>, vector<16x64xf32> -> vector<16x64xf32>
    %390 = arith.addf %350, %389 : vector<16x64xf32>
    %c10_251 = arith.constant 10 : index
    %c0_252 = arith.constant 0 : index
    %391 = vector.load %arg5[%c10_251, %c0_252] : memref<13x64xf32, #tpu.memory_space<vmem>>, vector<1x64xf32>
    %392 = vector.broadcast %391 : vector<1x64xf32> to vector<16x64xf32>
    %393 = arith.addf %390, %392 : vector<16x64xf32>
    %394 = arith.addf %24, %393 : vector<16x64xf32>
    %cst_253 = arith.constant dense<0.000000e+00> : vector<16xf32>
    %395 = vector.multi_reduction <add>, %394, %cst_253 [1] : vector<16x64xf32> to vector<16xf32>
    %396 = vector.shape_cast %395 : vector<16xf32> to vector<16x1xf32>
    %cst_254 = arith.constant 6.400000e+01 : f32
    %397 = vector.broadcast %cst_254 : f32 to vector<16x1xf32>
    %398 = arith.divf %396, %397 : vector<16x1xf32>
    %399 = vector.broadcast %398 : vector<16x1xf32> to vector<16x64xf32>
    %400 = arith.subf %394, %399 : vector<16x64xf32>
    %401 = arith.mulf %400, %400 : vector<16x64xf32>
    %cst_255 = arith.constant dense<0.000000e+00> : vector<16xf32>
    %402 = vector.multi_reduction <add>, %401, %cst_255 [1] : vector<16x64xf32> to vector<16xf32>
    %403 = vector.shape_cast %402 : vector<16xf32> to vector<16x1xf32>
    %cst_256 = arith.constant 6.400000e+01 : f32
    %404 = vector.broadcast %cst_256 : f32 to vector<16x1xf32>
    %405 = arith.divf %403, %404 : vector<16x1xf32>
    %cst_257 = arith.constant 9.99999974E-6 : f32
    %406 = vector.broadcast %cst_257 : f32 to vector<16x1xf32>
    %407 = arith.addf %405, %406 : vector<16x1xf32>
    %408 = math.rsqrt %407 : vector<16x1xf32>
    %409 = vector.broadcast %408 : vector<16x1xf32> to vector<16x64xf32>
    %410 = arith.mulf %400, %409 : vector<16x64xf32>
    %c2_258 = arith.constant 2 : index
    %c0_259 = arith.constant 0 : index
    %411 = vector.load %arg5[%c2_258, %c0_259] : memref<13x64xf32, #tpu.memory_space<vmem>>, vector<1x64xf32>
    %412 = vector.broadcast %411 : vector<1x64xf32> to vector<16x64xf32>
    %413 = arith.mulf %410, %412 : vector<16x64xf32>
    %c7_260 = arith.constant 7 : index
    %c0_261 = arith.constant 0 : index
    %414 = vector.load %arg5[%c7_260, %c0_261] : memref<13x64xf32, #tpu.memory_space<vmem>>, vector<1x64xf32>
    %415 = vector.broadcast %414 : vector<1x64xf32> to vector<16x64xf32>
    %416 = arith.addf %413, %415 : vector<16x64xf32>
    %c0_262 = arith.constant 0 : index
    %c0_263 = arith.constant 0 : index
    %417 = vector.load %arg4[%c0_262, %c0_263] : memref<16x16xf32, #tpu.memory_space<vmem>>, vector<16x16xf32>
    %cst_264 = arith.constant 0.000000e+00 : f32
    %418 = vector.broadcast %cst_264 : f32 to vector<16x64xf32>
    %c24 = arith.constant 24 : index
    %c0_265 = arith.constant 0 : index
    %c0_266 = arith.constant 0 : index
    %419 = vector.load %arg6[%c24, %c0_265, %c0_266] : memref<48x64x8xf32, #tpu.memory_space<vmem>>, vector<1x64x8xf32>
    %420 = vector.shape_cast %419 : vector<1x64x8xf32> to vector<64x8xf32>
    %cst_267 = arith.constant dense<0.000000e+00> : vector<16x8xf32>
    %421 = tpu.matmul %416, %420, %cst_267 {dimension_numbers = #tpu.dot_dimension_numbers<[1], [0], [0], [1], [0, 0, 1, 1], [], []>} : vector<16x64xf32>, vector<64x8xf32>, vector<16x8xf32> -> vector<16x8xf32>
    %c24_268 = arith.constant 24 : index
    %c0_269 = arith.constant 0 : index
    %c0_270 = arith.constant 0 : index
    %422 = vector.load %arg7[%c24_268, %c0_269, %c0_270] : memref<48x1x8xf32, #tpu.memory_space<vmem>>, vector<1x1x8xf32>
    %423 = vector.shape_cast %422 : vector<1x1x8xf32> to vector<1x8xf32>
    %424 = vector.broadcast %423 : vector<1x8xf32> to vector<16x8xf32>
    %425 = arith.addf %421, %424 : vector<16x8xf32>
    %c32 = arith.constant 32 : index
    %c0_271 = arith.constant 0 : index
    %c0_272 = arith.constant 0 : index
    %426 = vector.load %arg6[%c32, %c0_271, %c0_272] : memref<48x64x8xf32, #tpu.memory_space<vmem>>, vector<1x64x8xf32>
    %427 = vector.shape_cast %426 : vector<1x64x8xf32> to vector<64x8xf32>
    %cst_273 = arith.constant dense<0.000000e+00> : vector<16x8xf32>
    %428 = tpu.matmul %46, %427, %cst_273 {dimension_numbers = #tpu.dot_dimension_numbers<[1], [0], [0], [1], [0, 0, 1, 1], [], []>} : vector<16x64xf32>, vector<64x8xf32>, vector<16x8xf32> -> vector<16x8xf32>
    %c32_274 = arith.constant 32 : index
    %c0_275 = arith.constant 0 : index
    %c0_276 = arith.constant 0 : index
    %429 = vector.load %arg7[%c32_274, %c0_275, %c0_276] : memref<48x1x8xf32, #tpu.memory_space<vmem>>, vector<1x1x8xf32>
    %430 = vector.shape_cast %429 : vector<1x1x8xf32> to vector<1x8xf32>
    %431 = vector.broadcast %430 : vector<1x8xf32> to vector<16x8xf32>
    %432 = arith.addf %428, %431 : vector<16x8xf32>
    %c40 = arith.constant 40 : index
    %c0_277 = arith.constant 0 : index
    %c0_278 = arith.constant 0 : index
    %433 = vector.load %arg6[%c40, %c0_277, %c0_278] : memref<48x64x8xf32, #tpu.memory_space<vmem>>, vector<1x64x8xf32>
    %434 = vector.shape_cast %433 : vector<1x64x8xf32> to vector<64x8xf32>
    %cst_279 = arith.constant dense<0.000000e+00> : vector<16x8xf32>
    %435 = tpu.matmul %416, %434, %cst_279 {dimension_numbers = #tpu.dot_dimension_numbers<[1], [0], [0], [1], [0, 0, 1, 1], [], []>} : vector<16x64xf32>, vector<64x8xf32>, vector<16x8xf32> -> vector<16x8xf32>
    %c40_280 = arith.constant 40 : index
    %c0_281 = arith.constant 0 : index
    %c0_282 = arith.constant 0 : index
    %436 = vector.load %arg7[%c40_280, %c0_281, %c0_282] : memref<48x1x8xf32, #tpu.memory_space<vmem>>, vector<1x1x8xf32>
    %437 = vector.shape_cast %436 : vector<1x1x8xf32> to vector<1x8xf32>
    %438 = vector.broadcast %437 : vector<1x8xf32> to vector<16x8xf32>
    %439 = arith.addf %435, %438 : vector<16x8xf32>
    %cst_283 = arith.constant dense<0.000000e+00> : vector<16x16xf32>
    %440 = tpu.matmul %425, %432, %cst_283 {dimension_numbers = #tpu.dot_dimension_numbers<[1], [1], [0], [0], [0, 0, 1, 0], [], []>} : vector<16x8xf32>, vector<16x8xf32>, vector<16x16xf32> -> vector<16x16xf32>
    %cst_284 = arith.constant 0.353553385 : f32
    %441 = vector.broadcast %cst_284 : f32 to vector<16x16xf32>
    %442 = arith.mulf %440, %441 : vector<16x16xf32>
    %443 = arith.addf %442, %417 : vector<16x16xf32>
    %cst_285 = arith.constant dense<0xFF800000> : vector<16xf32>
    %444 = vector.multi_reduction <maximumf>, %443, %cst_285 [1] : vector<16x16xf32> to vector<16xf32>
    %445 = vector.shape_cast %444 : vector<16xf32> to vector<16x1xf32>
    %446 = vector.broadcast %445 : vector<16x1xf32> to vector<16x16xf32>
    %447 = arith.subf %443, %446 : vector<16x16xf32>
    %448 = math.exp %447 : vector<16x16xf32>
    %cst_286 = arith.constant dense<0.000000e+00> : vector<16xf32>
    %449 = vector.multi_reduction <add>, %448, %cst_286 [1] : vector<16x16xf32> to vector<16xf32>
    %450 = vector.shape_cast %449 : vector<16xf32> to vector<16x1xf32>
    %451 = tpu.reciprocal %450 {approx = true} : vector<16x1xf32> -> vector<16x1xf32>
    %452 = vector.broadcast %451 : vector<16x1xf32> to vector<16x16xf32>
    %453 = arith.mulf %448, %452 : vector<16x16xf32>
    %cst_287 = arith.constant dense<0.000000e+00> : vector<16x8xf32>
    %454 = tpu.matmul %453, %439, %cst_287 {dimension_numbers = #tpu.dot_dimension_numbers<[1], [0], [0], [1], [0, 0, 1, 1], [], []>} : vector<16x16xf32>, vector<16x8xf32>, vector<16x8xf32> -> vector<16x8xf32>
    %c8_288 = arith.constant 8 : index
    %c0_289 = arith.constant 0 : index
    %c0_290 = arith.constant 0 : index
    %455 = vector.load %arg8[%c8_288, %c0_289, %c0_290] : memref<16x8x64xf32, #tpu.memory_space<vmem>>, vector<1x8x64xf32>
    %456 = vector.shape_cast %455 : vector<1x8x64xf32> to vector<8x64xf32>
    %cst_291 = arith.constant dense<0.000000e+00> : vector<16x64xf32>
    %457 = tpu.matmul %454, %456, %cst_291 {dimension_numbers = #tpu.dot_dimension_numbers<[1], [0], [0], [1], [0, 0, 1, 1], [], []>} : vector<16x8xf32>, vector<8x64xf32>, vector<16x64xf32> -> vector<16x64xf32>
    %458 = arith.addf %418, %457 : vector<16x64xf32>
    %c25 = arith.constant 25 : index
    %c0_292 = arith.constant 0 : index
    %c0_293 = arith.constant 0 : index
    %459 = vector.load %arg6[%c25, %c0_292, %c0_293] : memref<48x64x8xf32, #tpu.memory_space<vmem>>, vector<1x64x8xf32>
    %460 = vector.shape_cast %459 : vector<1x64x8xf32> to vector<64x8xf32>
    %cst_294 = arith.constant dense<0.000000e+00> : vector<16x8xf32>
    %461 = tpu.matmul %416, %460, %cst_294 {dimension_numbers = #tpu.dot_dimension_numbers<[1], [0], [0], [1], [0, 0, 1, 1], [], []>} : vector<16x64xf32>, vector<64x8xf32>, vector<16x8xf32> -> vector<16x8xf32>
    %c25_295 = arith.constant 25 : index
    %c0_296 = arith.constant 0 : index
    %c0_297 = arith.constant 0 : index
    %462 = vector.load %arg7[%c25_295, %c0_296, %c0_297] : memref<48x1x8xf32, #tpu.memory_space<vmem>>, vector<1x1x8xf32>
    %463 = vector.shape_cast %462 : vector<1x1x8xf32> to vector<1x8xf32>
    %464 = vector.broadcast %463 : vector<1x8xf32> to vector<16x8xf32>
    %465 = arith.addf %461, %464 : vector<16x8xf32>
    %c33 = arith.constant 33 : index
    %c0_298 = arith.constant 0 : index
    %c0_299 = arith.constant 0 : index
    %466 = vector.load %arg6[%c33, %c0_298, %c0_299] : memref<48x64x8xf32, #tpu.memory_space<vmem>>, vector<1x64x8xf32>
    %467 = vector.shape_cast %466 : vector<1x64x8xf32> to vector<64x8xf32>
    %cst_300 = arith.constant dense<0.000000e+00> : vector<16x8xf32>
    %468 = tpu.matmul %46, %467, %cst_300 {dimension_numbers = #tpu.dot_dimension_numbers<[1], [0], [0], [1], [0, 0, 1, 1], [], []>} : vector<16x64xf32>, vector<64x8xf32>, vector<16x8xf32> -> vector<16x8xf32>
    %c33_301 = arith.constant 33 : index
    %c0_302 = arith.constant 0 : index
    %c0_303 = arith.constant 0 : index
    %469 = vector.load %arg7[%c33_301, %c0_302, %c0_303] : memref<48x1x8xf32, #tpu.memory_space<vmem>>, vector<1x1x8xf32>
    %470 = vector.shape_cast %469 : vector<1x1x8xf32> to vector<1x8xf32>
    %471 = vector.broadcast %470 : vector<1x8xf32> to vector<16x8xf32>
    %472 = arith.addf %468, %471 : vector<16x8xf32>
    %c41 = arith.constant 41 : index
    %c0_304 = arith.constant 0 : index
    %c0_305 = arith.constant 0 : index
    %473 = vector.load %arg6[%c41, %c0_304, %c0_305] : memref<48x64x8xf32, #tpu.memory_space<vmem>>, vector<1x64x8xf32>
    %474 = vector.shape_cast %473 : vector<1x64x8xf32> to vector<64x8xf32>
    %cst_306 = arith.constant dense<0.000000e+00> : vector<16x8xf32>
    %475 = tpu.matmul %416, %474, %cst_306 {dimension_numbers = #tpu.dot_dimension_numbers<[1], [0], [0], [1], [0, 0, 1, 1], [], []>} : vector<16x64xf32>, vector<64x8xf32>, vector<16x8xf32> -> vector<16x8xf32>
    %c41_307 = arith.constant 41 : index
    %c0_308 = arith.constant 0 : index
    %c0_309 = arith.constant 0 : index
    %476 = vector.load %arg7[%c41_307, %c0_308, %c0_309] : memref<48x1x8xf32, #tpu.memory_space<vmem>>, vector<1x1x8xf32>
    %477 = vector.shape_cast %476 : vector<1x1x8xf32> to vector<1x8xf32>
    %478 = vector.broadcast %477 : vector<1x8xf32> to vector<16x8xf32>
    %479 = arith.addf %475, %478 : vector<16x8xf32>
    %cst_310 = arith.constant dense<0.000000e+00> : vector<16x16xf32>
    %480 = tpu.matmul %465, %472, %cst_310 {dimension_numbers = #tpu.dot_dimension_numbers<[1], [1], [0], [0], [0, 0, 1, 0], [], []>} : vector<16x8xf32>, vector<16x8xf32>, vector<16x16xf32> -> vector<16x16xf32>
    %cst_311 = arith.constant 0.353553385 : f32
    %481 = vector.broadcast %cst_311 : f32 to vector<16x16xf32>
    %482 = arith.mulf %480, %481 : vector<16x16xf32>
    %483 = arith.addf %482, %417 : vector<16x16xf32>
    %cst_312 = arith.constant dense<0xFF800000> : vector<16xf32>
    %484 = vector.multi_reduction <maximumf>, %483, %cst_312 [1] : vector<16x16xf32> to vector<16xf32>
    %485 = vector.shape_cast %484 : vector<16xf32> to vector<16x1xf32>
    %486 = vector.broadcast %485 : vector<16x1xf32> to vector<16x16xf32>
    %487 = arith.subf %483, %486 : vector<16x16xf32>
    %488 = math.exp %487 : vector<16x16xf32>
    %cst_313 = arith.constant dense<0.000000e+00> : vector<16xf32>
    %489 = vector.multi_reduction <add>, %488, %cst_313 [1] : vector<16x16xf32> to vector<16xf32>
    %490 = vector.shape_cast %489 : vector<16xf32> to vector<16x1xf32>
    %491 = tpu.reciprocal %490 {approx = true} : vector<16x1xf32> -> vector<16x1xf32>
    %492 = vector.broadcast %491 : vector<16x1xf32> to vector<16x16xf32>
    %493 = arith.mulf %488, %492 : vector<16x16xf32>
    %cst_314 = arith.constant dense<0.000000e+00> : vector<16x8xf32>
    %494 = tpu.matmul %493, %479, %cst_314 {dimension_numbers = #tpu.dot_dimension_numbers<[1], [0], [0], [1], [0, 0, 1, 1], [], []>} : vector<16x16xf32>, vector<16x8xf32>, vector<16x8xf32> -> vector<16x8xf32>
    %c9_315 = arith.constant 9 : index
    %c0_316 = arith.constant 0 : index
    %c0_317 = arith.constant 0 : index
    %495 = vector.load %arg8[%c9_315, %c0_316, %c0_317] : memref<16x8x64xf32, #tpu.memory_space<vmem>>, vector<1x8x64xf32>
    %496 = vector.shape_cast %495 : vector<1x8x64xf32> to vector<8x64xf32>
    %cst_318 = arith.constant dense<0.000000e+00> : vector<16x64xf32>
    %497 = tpu.matmul %494, %496, %cst_318 {dimension_numbers = #tpu.dot_dimension_numbers<[1], [0], [0], [1], [0, 0, 1, 1], [], []>} : vector<16x8xf32>, vector<8x64xf32>, vector<16x64xf32> -> vector<16x64xf32>
    %498 = arith.addf %458, %497 : vector<16x64xf32>
    %c26 = arith.constant 26 : index
    %c0_319 = arith.constant 0 : index
    %c0_320 = arith.constant 0 : index
    %499 = vector.load %arg6[%c26, %c0_319, %c0_320] : memref<48x64x8xf32, #tpu.memory_space<vmem>>, vector<1x64x8xf32>
    %500 = vector.shape_cast %499 : vector<1x64x8xf32> to vector<64x8xf32>
    %cst_321 = arith.constant dense<0.000000e+00> : vector<16x8xf32>
    %501 = tpu.matmul %416, %500, %cst_321 {dimension_numbers = #tpu.dot_dimension_numbers<[1], [0], [0], [1], [0, 0, 1, 1], [], []>} : vector<16x64xf32>, vector<64x8xf32>, vector<16x8xf32> -> vector<16x8xf32>
    %c26_322 = arith.constant 26 : index
    %c0_323 = arith.constant 0 : index
    %c0_324 = arith.constant 0 : index
    %502 = vector.load %arg7[%c26_322, %c0_323, %c0_324] : memref<48x1x8xf32, #tpu.memory_space<vmem>>, vector<1x1x8xf32>
    %503 = vector.shape_cast %502 : vector<1x1x8xf32> to vector<1x8xf32>
    %504 = vector.broadcast %503 : vector<1x8xf32> to vector<16x8xf32>
    %505 = arith.addf %501, %504 : vector<16x8xf32>
    %c34 = arith.constant 34 : index
    %c0_325 = arith.constant 0 : index
    %c0_326 = arith.constant 0 : index
    %506 = vector.load %arg6[%c34, %c0_325, %c0_326] : memref<48x64x8xf32, #tpu.memory_space<vmem>>, vector<1x64x8xf32>
    %507 = vector.shape_cast %506 : vector<1x64x8xf32> to vector<64x8xf32>
    %cst_327 = arith.constant dense<0.000000e+00> : vector<16x8xf32>
    %508 = tpu.matmul %46, %507, %cst_327 {dimension_numbers = #tpu.dot_dimension_numbers<[1], [0], [0], [1], [0, 0, 1, 1], [], []>} : vector<16x64xf32>, vector<64x8xf32>, vector<16x8xf32> -> vector<16x8xf32>
    %c34_328 = arith.constant 34 : index
    %c0_329 = arith.constant 0 : index
    %c0_330 = arith.constant 0 : index
    %509 = vector.load %arg7[%c34_328, %c0_329, %c0_330] : memref<48x1x8xf32, #tpu.memory_space<vmem>>, vector<1x1x8xf32>
    %510 = vector.shape_cast %509 : vector<1x1x8xf32> to vector<1x8xf32>
    %511 = vector.broadcast %510 : vector<1x8xf32> to vector<16x8xf32>
    %512 = arith.addf %508, %511 : vector<16x8xf32>
    %c42 = arith.constant 42 : index
    %c0_331 = arith.constant 0 : index
    %c0_332 = arith.constant 0 : index
    %513 = vector.load %arg6[%c42, %c0_331, %c0_332] : memref<48x64x8xf32, #tpu.memory_space<vmem>>, vector<1x64x8xf32>
    %514 = vector.shape_cast %513 : vector<1x64x8xf32> to vector<64x8xf32>
    %cst_333 = arith.constant dense<0.000000e+00> : vector<16x8xf32>
    %515 = tpu.matmul %416, %514, %cst_333 {dimension_numbers = #tpu.dot_dimension_numbers<[1], [0], [0], [1], [0, 0, 1, 1], [], []>} : vector<16x64xf32>, vector<64x8xf32>, vector<16x8xf32> -> vector<16x8xf32>
    %c42_334 = arith.constant 42 : index
    %c0_335 = arith.constant 0 : index
    %c0_336 = arith.constant 0 : index
    %516 = vector.load %arg7[%c42_334, %c0_335, %c0_336] : memref<48x1x8xf32, #tpu.memory_space<vmem>>, vector<1x1x8xf32>
    %517 = vector.shape_cast %516 : vector<1x1x8xf32> to vector<1x8xf32>
    %518 = vector.broadcast %517 : vector<1x8xf32> to vector<16x8xf32>
    %519 = arith.addf %515, %518 : vector<16x8xf32>
    %cst_337 = arith.constant dense<0.000000e+00> : vector<16x16xf32>
    %520 = tpu.matmul %505, %512, %cst_337 {dimension_numbers = #tpu.dot_dimension_numbers<[1], [1], [0], [0], [0, 0, 1, 0], [], []>} : vector<16x8xf32>, vector<16x8xf32>, vector<16x16xf32> -> vector<16x16xf32>
    %cst_338 = arith.constant 0.353553385 : f32
    %521 = vector.broadcast %cst_338 : f32 to vector<16x16xf32>
    %522 = arith.mulf %520, %521 : vector<16x16xf32>
    %523 = arith.addf %522, %417 : vector<16x16xf32>
    %cst_339 = arith.constant dense<0xFF800000> : vector<16xf32>
    %524 = vector.multi_reduction <maximumf>, %523, %cst_339 [1] : vector<16x16xf32> to vector<16xf32>
    %525 = vector.shape_cast %524 : vector<16xf32> to vector<16x1xf32>
    %526 = vector.broadcast %525 : vector<16x1xf32> to vector<16x16xf32>
    %527 = arith.subf %523, %526 : vector<16x16xf32>
    %528 = math.exp %527 : vector<16x16xf32>
    %cst_340 = arith.constant dense<0.000000e+00> : vector<16xf32>
    %529 = vector.multi_reduction <add>, %528, %cst_340 [1] : vector<16x16xf32> to vector<16xf32>
    %530 = vector.shape_cast %529 : vector<16xf32> to vector<16x1xf32>
    %531 = tpu.reciprocal %530 {approx = true} : vector<16x1xf32> -> vector<16x1xf32>
    %532 = vector.broadcast %531 : vector<16x1xf32> to vector<16x16xf32>
    %533 = arith.mulf %528, %532 : vector<16x16xf32>
    %cst_341 = arith.constant dense<0.000000e+00> : vector<16x8xf32>
    %534 = tpu.matmul %533, %519, %cst_341 {dimension_numbers = #tpu.dot_dimension_numbers<[1], [0], [0], [1], [0, 0, 1, 1], [], []>} : vector<16x16xf32>, vector<16x8xf32>, vector<16x8xf32> -> vector<16x8xf32>
    %c10_342 = arith.constant 10 : index
    %c0_343 = arith.constant 0 : index
    %c0_344 = arith.constant 0 : index
    %535 = vector.load %arg8[%c10_342, %c0_343, %c0_344] : memref<16x8x64xf32, #tpu.memory_space<vmem>>, vector<1x8x64xf32>
    %536 = vector.shape_cast %535 : vector<1x8x64xf32> to vector<8x64xf32>
    %cst_345 = arith.constant dense<0.000000e+00> : vector<16x64xf32>
    %537 = tpu.matmul %534, %536, %cst_345 {dimension_numbers = #tpu.dot_dimension_numbers<[1], [0], [0], [1], [0, 0, 1, 1], [], []>} : vector<16x8xf32>, vector<8x64xf32>, vector<16x64xf32> -> vector<16x64xf32>
    %538 = arith.addf %498, %537 : vector<16x64xf32>
    %c27 = arith.constant 27 : index
    %c0_346 = arith.constant 0 : index
    %c0_347 = arith.constant 0 : index
    %539 = vector.load %arg6[%c27, %c0_346, %c0_347] : memref<48x64x8xf32, #tpu.memory_space<vmem>>, vector<1x64x8xf32>
    %540 = vector.shape_cast %539 : vector<1x64x8xf32> to vector<64x8xf32>
    %cst_348 = arith.constant dense<0.000000e+00> : vector<16x8xf32>
    %541 = tpu.matmul %416, %540, %cst_348 {dimension_numbers = #tpu.dot_dimension_numbers<[1], [0], [0], [1], [0, 0, 1, 1], [], []>} : vector<16x64xf32>, vector<64x8xf32>, vector<16x8xf32> -> vector<16x8xf32>
    %c27_349 = arith.constant 27 : index
    %c0_350 = arith.constant 0 : index
    %c0_351 = arith.constant 0 : index
    %542 = vector.load %arg7[%c27_349, %c0_350, %c0_351] : memref<48x1x8xf32, #tpu.memory_space<vmem>>, vector<1x1x8xf32>
    %543 = vector.shape_cast %542 : vector<1x1x8xf32> to vector<1x8xf32>
    %544 = vector.broadcast %543 : vector<1x8xf32> to vector<16x8xf32>
    %545 = arith.addf %541, %544 : vector<16x8xf32>
    %c35 = arith.constant 35 : index
    %c0_352 = arith.constant 0 : index
    %c0_353 = arith.constant 0 : index
    %546 = vector.load %arg6[%c35, %c0_352, %c0_353] : memref<48x64x8xf32, #tpu.memory_space<vmem>>, vector<1x64x8xf32>
    %547 = vector.shape_cast %546 : vector<1x64x8xf32> to vector<64x8xf32>
    %cst_354 = arith.constant dense<0.000000e+00> : vector<16x8xf32>
    %548 = tpu.matmul %46, %547, %cst_354 {dimension_numbers = #tpu.dot_dimension_numbers<[1], [0], [0], [1], [0, 0, 1, 1], [], []>} : vector<16x64xf32>, vector<64x8xf32>, vector<16x8xf32> -> vector<16x8xf32>
    %c35_355 = arith.constant 35 : index
    %c0_356 = arith.constant 0 : index
    %c0_357 = arith.constant 0 : index
    %549 = vector.load %arg7[%c35_355, %c0_356, %c0_357] : memref<48x1x8xf32, #tpu.memory_space<vmem>>, vector<1x1x8xf32>
    %550 = vector.shape_cast %549 : vector<1x1x8xf32> to vector<1x8xf32>
    %551 = vector.broadcast %550 : vector<1x8xf32> to vector<16x8xf32>
    %552 = arith.addf %548, %551 : vector<16x8xf32>
    %c43 = arith.constant 43 : index
    %c0_358 = arith.constant 0 : index
    %c0_359 = arith.constant 0 : index
    %553 = vector.load %arg6[%c43, %c0_358, %c0_359] : memref<48x64x8xf32, #tpu.memory_space<vmem>>, vector<1x64x8xf32>
    %554 = vector.shape_cast %553 : vector<1x64x8xf32> to vector<64x8xf32>
    %cst_360 = arith.constant dense<0.000000e+00> : vector<16x8xf32>
    %555 = tpu.matmul %416, %554, %cst_360 {dimension_numbers = #tpu.dot_dimension_numbers<[1], [0], [0], [1], [0, 0, 1, 1], [], []>} : vector<16x64xf32>, vector<64x8xf32>, vector<16x8xf32> -> vector<16x8xf32>
    %c43_361 = arith.constant 43 : index
    %c0_362 = arith.constant 0 : index
    %c0_363 = arith.constant 0 : index
    %556 = vector.load %arg7[%c43_361, %c0_362, %c0_363] : memref<48x1x8xf32, #tpu.memory_space<vmem>>, vector<1x1x8xf32>
    %557 = vector.shape_cast %556 : vector<1x1x8xf32> to vector<1x8xf32>
    %558 = vector.broadcast %557 : vector<1x8xf32> to vector<16x8xf32>
    %559 = arith.addf %555, %558 : vector<16x8xf32>
    %cst_364 = arith.constant dense<0.000000e+00> : vector<16x16xf32>
    %560 = tpu.matmul %545, %552, %cst_364 {dimension_numbers = #tpu.dot_dimension_numbers<[1], [1], [0], [0], [0, 0, 1, 0], [], []>} : vector<16x8xf32>, vector<16x8xf32>, vector<16x16xf32> -> vector<16x16xf32>
    %cst_365 = arith.constant 0.353553385 : f32
    %561 = vector.broadcast %cst_365 : f32 to vector<16x16xf32>
    %562 = arith.mulf %560, %561 : vector<16x16xf32>
    %563 = arith.addf %562, %417 : vector<16x16xf32>
    %cst_366 = arith.constant dense<0xFF800000> : vector<16xf32>
    %564 = vector.multi_reduction <maximumf>, %563, %cst_366 [1] : vector<16x16xf32> to vector<16xf32>
    %565 = vector.shape_cast %564 : vector<16xf32> to vector<16x1xf32>
    %566 = vector.broadcast %565 : vector<16x1xf32> to vector<16x16xf32>
    %567 = arith.subf %563, %566 : vector<16x16xf32>
    %568 = math.exp %567 : vector<16x16xf32>
    %cst_367 = arith.constant dense<0.000000e+00> : vector<16xf32>
    %569 = vector.multi_reduction <add>, %568, %cst_367 [1] : vector<16x16xf32> to vector<16xf32>
    %570 = vector.shape_cast %569 : vector<16xf32> to vector<16x1xf32>
    %571 = tpu.reciprocal %570 {approx = true} : vector<16x1xf32> -> vector<16x1xf32>
    %572 = vector.broadcast %571 : vector<16x1xf32> to vector<16x16xf32>
    %573 = arith.mulf %568, %572 : vector<16x16xf32>
    %cst_368 = arith.constant dense<0.000000e+00> : vector<16x8xf32>
    %574 = tpu.matmul %573, %559, %cst_368 {dimension_numbers = #tpu.dot_dimension_numbers<[1], [0], [0], [1], [0, 0, 1, 1], [], []>} : vector<16x16xf32>, vector<16x8xf32>, vector<16x8xf32> -> vector<16x8xf32>
    %c11_369 = arith.constant 11 : index
    %c0_370 = arith.constant 0 : index
    %c0_371 = arith.constant 0 : index
    %575 = vector.load %arg8[%c11_369, %c0_370, %c0_371] : memref<16x8x64xf32, #tpu.memory_space<vmem>>, vector<1x8x64xf32>
    %576 = vector.shape_cast %575 : vector<1x8x64xf32> to vector<8x64xf32>
    %cst_372 = arith.constant dense<0.000000e+00> : vector<16x64xf32>
    %577 = tpu.matmul %574, %576, %cst_372 {dimension_numbers = #tpu.dot_dimension_numbers<[1], [0], [0], [1], [0, 0, 1, 1], [], []>} : vector<16x8xf32>, vector<8x64xf32>, vector<16x64xf32> -> vector<16x64xf32>
    %578 = arith.addf %538, %577 : vector<16x64xf32>
    %c28 = arith.constant 28 : index
    %c0_373 = arith.constant 0 : index
    %c0_374 = arith.constant 0 : index
    %579 = vector.load %arg6[%c28, %c0_373, %c0_374] : memref<48x64x8xf32, #tpu.memory_space<vmem>>, vector<1x64x8xf32>
    %580 = vector.shape_cast %579 : vector<1x64x8xf32> to vector<64x8xf32>
    %cst_375 = arith.constant dense<0.000000e+00> : vector<16x8xf32>
    %581 = tpu.matmul %416, %580, %cst_375 {dimension_numbers = #tpu.dot_dimension_numbers<[1], [0], [0], [1], [0, 0, 1, 1], [], []>} : vector<16x64xf32>, vector<64x8xf32>, vector<16x8xf32> -> vector<16x8xf32>
    %c28_376 = arith.constant 28 : index
    %c0_377 = arith.constant 0 : index
    %c0_378 = arith.constant 0 : index
    %582 = vector.load %arg7[%c28_376, %c0_377, %c0_378] : memref<48x1x8xf32, #tpu.memory_space<vmem>>, vector<1x1x8xf32>
    %583 = vector.shape_cast %582 : vector<1x1x8xf32> to vector<1x8xf32>
    %584 = vector.broadcast %583 : vector<1x8xf32> to vector<16x8xf32>
    %585 = arith.addf %581, %584 : vector<16x8xf32>
    %c36 = arith.constant 36 : index
    %c0_379 = arith.constant 0 : index
    %c0_380 = arith.constant 0 : index
    %586 = vector.load %arg6[%c36, %c0_379, %c0_380] : memref<48x64x8xf32, #tpu.memory_space<vmem>>, vector<1x64x8xf32>
    %587 = vector.shape_cast %586 : vector<1x64x8xf32> to vector<64x8xf32>
    %cst_381 = arith.constant dense<0.000000e+00> : vector<16x8xf32>
    %588 = tpu.matmul %46, %587, %cst_381 {dimension_numbers = #tpu.dot_dimension_numbers<[1], [0], [0], [1], [0, 0, 1, 1], [], []>} : vector<16x64xf32>, vector<64x8xf32>, vector<16x8xf32> -> vector<16x8xf32>
    %c36_382 = arith.constant 36 : index
    %c0_383 = arith.constant 0 : index
    %c0_384 = arith.constant 0 : index
    %589 = vector.load %arg7[%c36_382, %c0_383, %c0_384] : memref<48x1x8xf32, #tpu.memory_space<vmem>>, vector<1x1x8xf32>
    %590 = vector.shape_cast %589 : vector<1x1x8xf32> to vector<1x8xf32>
    %591 = vector.broadcast %590 : vector<1x8xf32> to vector<16x8xf32>
    %592 = arith.addf %588, %591 : vector<16x8xf32>
    %c44 = arith.constant 44 : index
    %c0_385 = arith.constant 0 : index
    %c0_386 = arith.constant 0 : index
    %593 = vector.load %arg6[%c44, %c0_385, %c0_386] : memref<48x64x8xf32, #tpu.memory_space<vmem>>, vector<1x64x8xf32>
    %594 = vector.shape_cast %593 : vector<1x64x8xf32> to vector<64x8xf32>
    %cst_387 = arith.constant dense<0.000000e+00> : vector<16x8xf32>
    %595 = tpu.matmul %416, %594, %cst_387 {dimension_numbers = #tpu.dot_dimension_numbers<[1], [0], [0], [1], [0, 0, 1, 1], [], []>} : vector<16x64xf32>, vector<64x8xf32>, vector<16x8xf32> -> vector<16x8xf32>
    %c44_388 = arith.constant 44 : index
    %c0_389 = arith.constant 0 : index
    %c0_390 = arith.constant 0 : index
    %596 = vector.load %arg7[%c44_388, %c0_389, %c0_390] : memref<48x1x8xf32, #tpu.memory_space<vmem>>, vector<1x1x8xf32>
    %597 = vector.shape_cast %596 : vector<1x1x8xf32> to vector<1x8xf32>
    %598 = vector.broadcast %597 : vector<1x8xf32> to vector<16x8xf32>
    %599 = arith.addf %595, %598 : vector<16x8xf32>
    %cst_391 = arith.constant dense<0.000000e+00> : vector<16x16xf32>
    %600 = tpu.matmul %585, %592, %cst_391 {dimension_numbers = #tpu.dot_dimension_numbers<[1], [1], [0], [0], [0, 0, 1, 0], [], []>} : vector<16x8xf32>, vector<16x8xf32>, vector<16x16xf32> -> vector<16x16xf32>
    %cst_392 = arith.constant 0.353553385 : f32
    %601 = vector.broadcast %cst_392 : f32 to vector<16x16xf32>
    %602 = arith.mulf %600, %601 : vector<16x16xf32>
    %603 = arith.addf %602, %417 : vector<16x16xf32>
    %cst_393 = arith.constant dense<0xFF800000> : vector<16xf32>
    %604 = vector.multi_reduction <maximumf>, %603, %cst_393 [1] : vector<16x16xf32> to vector<16xf32>
    %605 = vector.shape_cast %604 : vector<16xf32> to vector<16x1xf32>
    %606 = vector.broadcast %605 : vector<16x1xf32> to vector<16x16xf32>
    %607 = arith.subf %603, %606 : vector<16x16xf32>
    %608 = math.exp %607 : vector<16x16xf32>
    %cst_394 = arith.constant dense<0.000000e+00> : vector<16xf32>
    %609 = vector.multi_reduction <add>, %608, %cst_394 [1] : vector<16x16xf32> to vector<16xf32>
    %610 = vector.shape_cast %609 : vector<16xf32> to vector<16x1xf32>
    %611 = tpu.reciprocal %610 {approx = true} : vector<16x1xf32> -> vector<16x1xf32>
    %612 = vector.broadcast %611 : vector<16x1xf32> to vector<16x16xf32>
    %613 = arith.mulf %608, %612 : vector<16x16xf32>
    %cst_395 = arith.constant dense<0.000000e+00> : vector<16x8xf32>
    %614 = tpu.matmul %613, %599, %cst_395 {dimension_numbers = #tpu.dot_dimension_numbers<[1], [0], [0], [1], [0, 0, 1, 1], [], []>} : vector<16x16xf32>, vector<16x8xf32>, vector<16x8xf32> -> vector<16x8xf32>
    %c12_396 = arith.constant 12 : index
    %c0_397 = arith.constant 0 : index
    %c0_398 = arith.constant 0 : index
    %615 = vector.load %arg8[%c12_396, %c0_397, %c0_398] : memref<16x8x64xf32, #tpu.memory_space<vmem>>, vector<1x8x64xf32>
    %616 = vector.shape_cast %615 : vector<1x8x64xf32> to vector<8x64xf32>
    %cst_399 = arith.constant dense<0.000000e+00> : vector<16x64xf32>
    %617 = tpu.matmul %614, %616, %cst_399 {dimension_numbers = #tpu.dot_dimension_numbers<[1], [0], [0], [1], [0, 0, 1, 1], [], []>} : vector<16x8xf32>, vector<8x64xf32>, vector<16x64xf32> -> vector<16x64xf32>
    %618 = arith.addf %578, %617 : vector<16x64xf32>
    %c29 = arith.constant 29 : index
    %c0_400 = arith.constant 0 : index
    %c0_401 = arith.constant 0 : index
    %619 = vector.load %arg6[%c29, %c0_400, %c0_401] : memref<48x64x8xf32, #tpu.memory_space<vmem>>, vector<1x64x8xf32>
    %620 = vector.shape_cast %619 : vector<1x64x8xf32> to vector<64x8xf32>
    %cst_402 = arith.constant dense<0.000000e+00> : vector<16x8xf32>
    %621 = tpu.matmul %416, %620, %cst_402 {dimension_numbers = #tpu.dot_dimension_numbers<[1], [0], [0], [1], [0, 0, 1, 1], [], []>} : vector<16x64xf32>, vector<64x8xf32>, vector<16x8xf32> -> vector<16x8xf32>
    %c29_403 = arith.constant 29 : index
    %c0_404 = arith.constant 0 : index
    %c0_405 = arith.constant 0 : index
    %622 = vector.load %arg7[%c29_403, %c0_404, %c0_405] : memref<48x1x8xf32, #tpu.memory_space<vmem>>, vector<1x1x8xf32>
    %623 = vector.shape_cast %622 : vector<1x1x8xf32> to vector<1x8xf32>
    %624 = vector.broadcast %623 : vector<1x8xf32> to vector<16x8xf32>
    %625 = arith.addf %621, %624 : vector<16x8xf32>
    %c37 = arith.constant 37 : index
    %c0_406 = arith.constant 0 : index
    %c0_407 = arith.constant 0 : index
    %626 = vector.load %arg6[%c37, %c0_406, %c0_407] : memref<48x64x8xf32, #tpu.memory_space<vmem>>, vector<1x64x8xf32>
    %627 = vector.shape_cast %626 : vector<1x64x8xf32> to vector<64x8xf32>
    %cst_408 = arith.constant dense<0.000000e+00> : vector<16x8xf32>
    %628 = tpu.matmul %46, %627, %cst_408 {dimension_numbers = #tpu.dot_dimension_numbers<[1], [0], [0], [1], [0, 0, 1, 1], [], []>} : vector<16x64xf32>, vector<64x8xf32>, vector<16x8xf32> -> vector<16x8xf32>
    %c37_409 = arith.constant 37 : index
    %c0_410 = arith.constant 0 : index
    %c0_411 = arith.constant 0 : index
    %629 = vector.load %arg7[%c37_409, %c0_410, %c0_411] : memref<48x1x8xf32, #tpu.memory_space<vmem>>, vector<1x1x8xf32>
    %630 = vector.shape_cast %629 : vector<1x1x8xf32> to vector<1x8xf32>
    %631 = vector.broadcast %630 : vector<1x8xf32> to vector<16x8xf32>
    %632 = arith.addf %628, %631 : vector<16x8xf32>
    %c45 = arith.constant 45 : index
    %c0_412 = arith.constant 0 : index
    %c0_413 = arith.constant 0 : index
    %633 = vector.load %arg6[%c45, %c0_412, %c0_413] : memref<48x64x8xf32, #tpu.memory_space<vmem>>, vector<1x64x8xf32>
    %634 = vector.shape_cast %633 : vector<1x64x8xf32> to vector<64x8xf32>
    %cst_414 = arith.constant dense<0.000000e+00> : vector<16x8xf32>
    %635 = tpu.matmul %416, %634, %cst_414 {dimension_numbers = #tpu.dot_dimension_numbers<[1], [0], [0], [1], [0, 0, 1, 1], [], []>} : vector<16x64xf32>, vector<64x8xf32>, vector<16x8xf32> -> vector<16x8xf32>
    %c45_415 = arith.constant 45 : index
    %c0_416 = arith.constant 0 : index
    %c0_417 = arith.constant 0 : index
    %636 = vector.load %arg7[%c45_415, %c0_416, %c0_417] : memref<48x1x8xf32, #tpu.memory_space<vmem>>, vector<1x1x8xf32>
    %637 = vector.shape_cast %636 : vector<1x1x8xf32> to vector<1x8xf32>
    %638 = vector.broadcast %637 : vector<1x8xf32> to vector<16x8xf32>
    %639 = arith.addf %635, %638 : vector<16x8xf32>
    %cst_418 = arith.constant dense<0.000000e+00> : vector<16x16xf32>
    %640 = tpu.matmul %625, %632, %cst_418 {dimension_numbers = #tpu.dot_dimension_numbers<[1], [1], [0], [0], [0, 0, 1, 0], [], []>} : vector<16x8xf32>, vector<16x8xf32>, vector<16x16xf32> -> vector<16x16xf32>
    %cst_419 = arith.constant 0.353553385 : f32
    %641 = vector.broadcast %cst_419 : f32 to vector<16x16xf32>
    %642 = arith.mulf %640, %641 : vector<16x16xf32>
    %643 = arith.addf %642, %417 : vector<16x16xf32>
    %cst_420 = arith.constant dense<0xFF800000> : vector<16xf32>
    %644 = vector.multi_reduction <maximumf>, %643, %cst_420 [1] : vector<16x16xf32> to vector<16xf32>
    %645 = vector.shape_cast %644 : vector<16xf32> to vector<16x1xf32>
    %646 = vector.broadcast %645 : vector<16x1xf32> to vector<16x16xf32>
    %647 = arith.subf %643, %646 : vector<16x16xf32>
    %648 = math.exp %647 : vector<16x16xf32>
    %cst_421 = arith.constant dense<0.000000e+00> : vector<16xf32>
    %649 = vector.multi_reduction <add>, %648, %cst_421 [1] : vector<16x16xf32> to vector<16xf32>
    %650 = vector.shape_cast %649 : vector<16xf32> to vector<16x1xf32>
    %651 = tpu.reciprocal %650 {approx = true} : vector<16x1xf32> -> vector<16x1xf32>
    %652 = vector.broadcast %651 : vector<16x1xf32> to vector<16x16xf32>
    %653 = arith.mulf %648, %652 : vector<16x16xf32>
    %cst_422 = arith.constant dense<0.000000e+00> : vector<16x8xf32>
    %654 = tpu.matmul %653, %639, %cst_422 {dimension_numbers = #tpu.dot_dimension_numbers<[1], [0], [0], [1], [0, 0, 1, 1], [], []>} : vector<16x16xf32>, vector<16x8xf32>, vector<16x8xf32> -> vector<16x8xf32>
    %c13_423 = arith.constant 13 : index
    %c0_424 = arith.constant 0 : index
    %c0_425 = arith.constant 0 : index
    %655 = vector.load %arg8[%c13_423, %c0_424, %c0_425] : memref<16x8x64xf32, #tpu.memory_space<vmem>>, vector<1x8x64xf32>
    %656 = vector.shape_cast %655 : vector<1x8x64xf32> to vector<8x64xf32>
    %cst_426 = arith.constant dense<0.000000e+00> : vector<16x64xf32>
    %657 = tpu.matmul %654, %656, %cst_426 {dimension_numbers = #tpu.dot_dimension_numbers<[1], [0], [0], [1], [0, 0, 1, 1], [], []>} : vector<16x8xf32>, vector<8x64xf32>, vector<16x64xf32> -> vector<16x64xf32>
    %658 = arith.addf %618, %657 : vector<16x64xf32>
    %c30 = arith.constant 30 : index
    %c0_427 = arith.constant 0 : index
    %c0_428 = arith.constant 0 : index
    %659 = vector.load %arg6[%c30, %c0_427, %c0_428] : memref<48x64x8xf32, #tpu.memory_space<vmem>>, vector<1x64x8xf32>
    %660 = vector.shape_cast %659 : vector<1x64x8xf32> to vector<64x8xf32>
    %cst_429 = arith.constant dense<0.000000e+00> : vector<16x8xf32>
    %661 = tpu.matmul %416, %660, %cst_429 {dimension_numbers = #tpu.dot_dimension_numbers<[1], [0], [0], [1], [0, 0, 1, 1], [], []>} : vector<16x64xf32>, vector<64x8xf32>, vector<16x8xf32> -> vector<16x8xf32>
    %c30_430 = arith.constant 30 : index
    %c0_431 = arith.constant 0 : index
    %c0_432 = arith.constant 0 : index
    %662 = vector.load %arg7[%c30_430, %c0_431, %c0_432] : memref<48x1x8xf32, #tpu.memory_space<vmem>>, vector<1x1x8xf32>
    %663 = vector.shape_cast %662 : vector<1x1x8xf32> to vector<1x8xf32>
    %664 = vector.broadcast %663 : vector<1x8xf32> to vector<16x8xf32>
    %665 = arith.addf %661, %664 : vector<16x8xf32>
    %c38 = arith.constant 38 : index
    %c0_433 = arith.constant 0 : index
    %c0_434 = arith.constant 0 : index
    %666 = vector.load %arg6[%c38, %c0_433, %c0_434] : memref<48x64x8xf32, #tpu.memory_space<vmem>>, vector<1x64x8xf32>
    %667 = vector.shape_cast %666 : vector<1x64x8xf32> to vector<64x8xf32>
    %cst_435 = arith.constant dense<0.000000e+00> : vector<16x8xf32>
    %668 = tpu.matmul %46, %667, %cst_435 {dimension_numbers = #tpu.dot_dimension_numbers<[1], [0], [0], [1], [0, 0, 1, 1], [], []>} : vector<16x64xf32>, vector<64x8xf32>, vector<16x8xf32> -> vector<16x8xf32>
    %c38_436 = arith.constant 38 : index
    %c0_437 = arith.constant 0 : index
    %c0_438 = arith.constant 0 : index
    %669 = vector.load %arg7[%c38_436, %c0_437, %c0_438] : memref<48x1x8xf32, #tpu.memory_space<vmem>>, vector<1x1x8xf32>
    %670 = vector.shape_cast %669 : vector<1x1x8xf32> to vector<1x8xf32>
    %671 = vector.broadcast %670 : vector<1x8xf32> to vector<16x8xf32>
    %672 = arith.addf %668, %671 : vector<16x8xf32>
    %c46 = arith.constant 46 : index
    %c0_439 = arith.constant 0 : index
    %c0_440 = arith.constant 0 : index
    %673 = vector.load %arg6[%c46, %c0_439, %c0_440] : memref<48x64x8xf32, #tpu.memory_space<vmem>>, vector<1x64x8xf32>
    %674 = vector.shape_cast %673 : vector<1x64x8xf32> to vector<64x8xf32>
    %cst_441 = arith.constant dense<0.000000e+00> : vector<16x8xf32>
    %675 = tpu.matmul %416, %674, %cst_441 {dimension_numbers = #tpu.dot_dimension_numbers<[1], [0], [0], [1], [0, 0, 1, 1], [], []>} : vector<16x64xf32>, vector<64x8xf32>, vector<16x8xf32> -> vector<16x8xf32>
    %c46_442 = arith.constant 46 : index
    %c0_443 = arith.constant 0 : index
    %c0_444 = arith.constant 0 : index
    %676 = vector.load %arg7[%c46_442, %c0_443, %c0_444] : memref<48x1x8xf32, #tpu.memory_space<vmem>>, vector<1x1x8xf32>
    %677 = vector.shape_cast %676 : vector<1x1x8xf32> to vector<1x8xf32>
    %678 = vector.broadcast %677 : vector<1x8xf32> to vector<16x8xf32>
    %679 = arith.addf %675, %678 : vector<16x8xf32>
    %cst_445 = arith.constant dense<0.000000e+00> : vector<16x16xf32>
    %680 = tpu.matmul %665, %672, %cst_445 {dimension_numbers = #tpu.dot_dimension_numbers<[1], [1], [0], [0], [0, 0, 1, 0], [], []>} : vector<16x8xf32>, vector<16x8xf32>, vector<16x16xf32> -> vector<16x16xf32>
    %cst_446 = arith.constant 0.353553385 : f32
    %681 = vector.broadcast %cst_446 : f32 to vector<16x16xf32>
    %682 = arith.mulf %680, %681 : vector<16x16xf32>
    %683 = arith.addf %682, %417 : vector<16x16xf32>
    %cst_447 = arith.constant dense<0xFF800000> : vector<16xf32>
    %684 = vector.multi_reduction <maximumf>, %683, %cst_447 [1] : vector<16x16xf32> to vector<16xf32>
    %685 = vector.shape_cast %684 : vector<16xf32> to vector<16x1xf32>
    %686 = vector.broadcast %685 : vector<16x1xf32> to vector<16x16xf32>
    %687 = arith.subf %683, %686 : vector<16x16xf32>
    %688 = math.exp %687 : vector<16x16xf32>
    %cst_448 = arith.constant dense<0.000000e+00> : vector<16xf32>
    %689 = vector.multi_reduction <add>, %688, %cst_448 [1] : vector<16x16xf32> to vector<16xf32>
    %690 = vector.shape_cast %689 : vector<16xf32> to vector<16x1xf32>
    %691 = tpu.reciprocal %690 {approx = true} : vector<16x1xf32> -> vector<16x1xf32>
    %692 = vector.broadcast %691 : vector<16x1xf32> to vector<16x16xf32>
    %693 = arith.mulf %688, %692 : vector<16x16xf32>
    %cst_449 = arith.constant dense<0.000000e+00> : vector<16x8xf32>
    %694 = tpu.matmul %693, %679, %cst_449 {dimension_numbers = #tpu.dot_dimension_numbers<[1], [0], [0], [1], [0, 0, 1, 1], [], []>} : vector<16x16xf32>, vector<16x8xf32>, vector<16x8xf32> -> vector<16x8xf32>
    %c14_450 = arith.constant 14 : index
    %c0_451 = arith.constant 0 : index
    %c0_452 = arith.constant 0 : index
    %695 = vector.load %arg8[%c14_450, %c0_451, %c0_452] : memref<16x8x64xf32, #tpu.memory_space<vmem>>, vector<1x8x64xf32>
    %696 = vector.shape_cast %695 : vector<1x8x64xf32> to vector<8x64xf32>
    %cst_453 = arith.constant dense<0.000000e+00> : vector<16x64xf32>
    %697 = tpu.matmul %694, %696, %cst_453 {dimension_numbers = #tpu.dot_dimension_numbers<[1], [0], [0], [1], [0, 0, 1, 1], [], []>} : vector<16x8xf32>, vector<8x64xf32>, vector<16x64xf32> -> vector<16x64xf32>
    %698 = arith.addf %658, %697 : vector<16x64xf32>
    %c31 = arith.constant 31 : index
    %c0_454 = arith.constant 0 : index
    %c0_455 = arith.constant 0 : index
    %699 = vector.load %arg6[%c31, %c0_454, %c0_455] : memref<48x64x8xf32, #tpu.memory_space<vmem>>, vector<1x64x8xf32>
    %700 = vector.shape_cast %699 : vector<1x64x8xf32> to vector<64x8xf32>
    %cst_456 = arith.constant dense<0.000000e+00> : vector<16x8xf32>
    %701 = tpu.matmul %416, %700, %cst_456 {dimension_numbers = #tpu.dot_dimension_numbers<[1], [0], [0], [1], [0, 0, 1, 1], [], []>} : vector<16x64xf32>, vector<64x8xf32>, vector<16x8xf32> -> vector<16x8xf32>
    %c31_457 = arith.constant 31 : index
    %c0_458 = arith.constant 0 : index
    %c0_459 = arith.constant 0 : index
    %702 = vector.load %arg7[%c31_457, %c0_458, %c0_459] : memref<48x1x8xf32, #tpu.memory_space<vmem>>, vector<1x1x8xf32>
    %703 = vector.shape_cast %702 : vector<1x1x8xf32> to vector<1x8xf32>
    %704 = vector.broadcast %703 : vector<1x8xf32> to vector<16x8xf32>
    %705 = arith.addf %701, %704 : vector<16x8xf32>
    %c39 = arith.constant 39 : index
    %c0_460 = arith.constant 0 : index
    %c0_461 = arith.constant 0 : index
    %706 = vector.load %arg6[%c39, %c0_460, %c0_461] : memref<48x64x8xf32, #tpu.memory_space<vmem>>, vector<1x64x8xf32>
    %707 = vector.shape_cast %706 : vector<1x64x8xf32> to vector<64x8xf32>
    %cst_462 = arith.constant dense<0.000000e+00> : vector<16x8xf32>
    %708 = tpu.matmul %46, %707, %cst_462 {dimension_numbers = #tpu.dot_dimension_numbers<[1], [0], [0], [1], [0, 0, 1, 1], [], []>} : vector<16x64xf32>, vector<64x8xf32>, vector<16x8xf32> -> vector<16x8xf32>
    %c39_463 = arith.constant 39 : index
    %c0_464 = arith.constant 0 : index
    %c0_465 = arith.constant 0 : index
    %709 = vector.load %arg7[%c39_463, %c0_464, %c0_465] : memref<48x1x8xf32, #tpu.memory_space<vmem>>, vector<1x1x8xf32>
    %710 = vector.shape_cast %709 : vector<1x1x8xf32> to vector<1x8xf32>
    %711 = vector.broadcast %710 : vector<1x8xf32> to vector<16x8xf32>
    %712 = arith.addf %708, %711 : vector<16x8xf32>
    %c47 = arith.constant 47 : index
    %c0_466 = arith.constant 0 : index
    %c0_467 = arith.constant 0 : index
    %713 = vector.load %arg6[%c47, %c0_466, %c0_467] : memref<48x64x8xf32, #tpu.memory_space<vmem>>, vector<1x64x8xf32>
    %714 = vector.shape_cast %713 : vector<1x64x8xf32> to vector<64x8xf32>
    %cst_468 = arith.constant dense<0.000000e+00> : vector<16x8xf32>
    %715 = tpu.matmul %416, %714, %cst_468 {dimension_numbers = #tpu.dot_dimension_numbers<[1], [0], [0], [1], [0, 0, 1, 1], [], []>} : vector<16x64xf32>, vector<64x8xf32>, vector<16x8xf32> -> vector<16x8xf32>
    %c47_469 = arith.constant 47 : index
    %c0_470 = arith.constant 0 : index
    %c0_471 = arith.constant 0 : index
    %716 = vector.load %arg7[%c47_469, %c0_470, %c0_471] : memref<48x1x8xf32, #tpu.memory_space<vmem>>, vector<1x1x8xf32>
    %717 = vector.shape_cast %716 : vector<1x1x8xf32> to vector<1x8xf32>
    %718 = vector.broadcast %717 : vector<1x8xf32> to vector<16x8xf32>
    %719 = arith.addf %715, %718 : vector<16x8xf32>
    %cst_472 = arith.constant dense<0.000000e+00> : vector<16x16xf32>
    %720 = tpu.matmul %705, %712, %cst_472 {dimension_numbers = #tpu.dot_dimension_numbers<[1], [1], [0], [0], [0, 0, 1, 0], [], []>} : vector<16x8xf32>, vector<16x8xf32>, vector<16x16xf32> -> vector<16x16xf32>
    %cst_473 = arith.constant 0.353553385 : f32
    %721 = vector.broadcast %cst_473 : f32 to vector<16x16xf32>
    %722 = arith.mulf %720, %721 : vector<16x16xf32>
    %723 = arith.addf %722, %417 : vector<16x16xf32>
    %cst_474 = arith.constant dense<0xFF800000> : vector<16xf32>
    %724 = vector.multi_reduction <maximumf>, %723, %cst_474 [1] : vector<16x16xf32> to vector<16xf32>
    %725 = vector.shape_cast %724 : vector<16xf32> to vector<16x1xf32>
    %726 = vector.broadcast %725 : vector<16x1xf32> to vector<16x16xf32>
    %727 = arith.subf %723, %726 : vector<16x16xf32>
    %728 = math.exp %727 : vector<16x16xf32>
    %cst_475 = arith.constant dense<0.000000e+00> : vector<16xf32>
    %729 = vector.multi_reduction <add>, %728, %cst_475 [1] : vector<16x16xf32> to vector<16xf32>
    %730 = vector.shape_cast %729 : vector<16xf32> to vector<16x1xf32>
    %731 = tpu.reciprocal %730 {approx = true} : vector<16x1xf32> -> vector<16x1xf32>
    %732 = vector.broadcast %731 : vector<16x1xf32> to vector<16x16xf32>
    %733 = arith.mulf %728, %732 : vector<16x16xf32>
    %cst_476 = arith.constant dense<0.000000e+00> : vector<16x8xf32>
    %734 = tpu.matmul %733, %719, %cst_476 {dimension_numbers = #tpu.dot_dimension_numbers<[1], [0], [0], [1], [0, 0, 1, 1], [], []>} : vector<16x16xf32>, vector<16x8xf32>, vector<16x8xf32> -> vector<16x8xf32>
    %c15_477 = arith.constant 15 : index
    %c0_478 = arith.constant 0 : index
    %c0_479 = arith.constant 0 : index
    %735 = vector.load %arg8[%c15_477, %c0_478, %c0_479] : memref<16x8x64xf32, #tpu.memory_space<vmem>>, vector<1x8x64xf32>
    %736 = vector.shape_cast %735 : vector<1x8x64xf32> to vector<8x64xf32>
    %cst_480 = arith.constant dense<0.000000e+00> : vector<16x64xf32>
    %737 = tpu.matmul %734, %736, %cst_480 {dimension_numbers = #tpu.dot_dimension_numbers<[1], [0], [0], [1], [0, 0, 1, 1], [], []>} : vector<16x8xf32>, vector<8x64xf32>, vector<16x64xf32> -> vector<16x64xf32>
    %738 = arith.addf %698, %737 : vector<16x64xf32>
    %c11_481 = arith.constant 11 : index
    %c0_482 = arith.constant 0 : index
    %739 = vector.load %arg5[%c11_481, %c0_482] : memref<13x64xf32, #tpu.memory_space<vmem>>, vector<1x64xf32>
    %740 = vector.broadcast %739 : vector<1x64xf32> to vector<16x64xf32>
    %741 = arith.addf %738, %740 : vector<16x64xf32>
    %742 = arith.addf %416, %741 : vector<16x64xf32>
    %cst_483 = arith.constant dense<0.000000e+00> : vector<16xf32>
    %743 = vector.multi_reduction <add>, %742, %cst_483 [1] : vector<16x64xf32> to vector<16xf32>
    %744 = vector.shape_cast %743 : vector<16xf32> to vector<16x1xf32>
    %cst_484 = arith.constant 6.400000e+01 : f32
    %745 = vector.broadcast %cst_484 : f32 to vector<16x1xf32>
    %746 = arith.divf %744, %745 : vector<16x1xf32>
    %747 = vector.broadcast %746 : vector<16x1xf32> to vector<16x64xf32>
    %748 = arith.subf %742, %747 : vector<16x64xf32>
    %749 = arith.mulf %748, %748 : vector<16x64xf32>
    %cst_485 = arith.constant dense<0.000000e+00> : vector<16xf32>
    %750 = vector.multi_reduction <add>, %749, %cst_485 [1] : vector<16x64xf32> to vector<16xf32>
    %751 = vector.shape_cast %750 : vector<16xf32> to vector<16x1xf32>
    %cst_486 = arith.constant 6.400000e+01 : f32
    %752 = vector.broadcast %cst_486 : f32 to vector<16x1xf32>
    %753 = arith.divf %751, %752 : vector<16x1xf32>
    %cst_487 = arith.constant 9.99999974E-6 : f32
    %754 = vector.broadcast %cst_487 : f32 to vector<16x1xf32>
    %755 = arith.addf %753, %754 : vector<16x1xf32>
    %756 = math.rsqrt %755 : vector<16x1xf32>
    %757 = vector.broadcast %756 : vector<16x1xf32> to vector<16x64xf32>
    %758 = arith.mulf %748, %757 : vector<16x64xf32>
    %c3_488 = arith.constant 3 : index
    %c0_489 = arith.constant 0 : index
    %759 = vector.load %arg5[%c3_488, %c0_489] : memref<13x64xf32, #tpu.memory_space<vmem>>, vector<1x64xf32>
    %760 = vector.broadcast %759 : vector<1x64xf32> to vector<16x64xf32>
    %761 = arith.mulf %758, %760 : vector<16x64xf32>
    %c8_490 = arith.constant 8 : index
    %c0_491 = arith.constant 0 : index
    %762 = vector.load %arg5[%c8_490, %c0_491] : memref<13x64xf32, #tpu.memory_space<vmem>>, vector<1x64xf32>
    %763 = vector.broadcast %762 : vector<1x64xf32> to vector<16x64xf32>
    %764 = arith.addf %761, %763 : vector<16x64xf32>
    %c0_492 = arith.constant 0 : index
    %c0_493 = arith.constant 0 : index
    %765 = vector.load %arg9[%c0_492, %c0_493] : memref<65x256xf32, #tpu.memory_space<vmem>>, vector<64x256xf32>
    %cst_494 = arith.constant dense<0.000000e+00> : vector<16x256xf32>
    %766 = tpu.matmul %764, %765, %cst_494 {dimension_numbers = #tpu.dot_dimension_numbers<[1], [0], [0], [1], [0, 0, 1, 1], [], []>} : vector<16x64xf32>, vector<64x256xf32>, vector<16x256xf32> -> vector<16x256xf32>
    %c64 = arith.constant 64 : index
    %c0_495 = arith.constant 0 : index
    %767 = vector.load %arg9[%c64, %c0_495] : memref<65x256xf32, #tpu.memory_space<vmem>>, vector<1x256xf32>
    %768 = vector.broadcast %767 : vector<1x256xf32> to vector<16x256xf32>
    %769 = arith.addf %766, %768 : vector<16x256xf32>
    %cst_496 = arith.constant -1.702000e+00 : f32
    %770 = vector.broadcast %cst_496 : f32 to vector<16x256xf32>
    %771 = arith.mulf %770, %769 : vector<16x256xf32>
    %772 = math.exp %771 : vector<16x256xf32>
    %cst_497 = arith.constant 1.000000e+00 : f32
    %773 = vector.broadcast %cst_497 : f32 to vector<16x256xf32>
    %774 = arith.addf %773, %772 : vector<16x256xf32>
    %775 = tpu.reciprocal %774 {approx = true} : vector<16x256xf32> -> vector<16x256xf32>
    %776 = arith.mulf %769, %775 : vector<16x256xf32>
    %c0_498 = arith.constant 0 : index
    %c0_499 = arith.constant 0 : index
    %777 = vector.load %arg10[%c0_498, %c0_499] : memref<256x64xf32, #tpu.memory_space<vmem>>, vector<256x64xf32>
    %cst_500 = arith.constant dense<0.000000e+00> : vector<16x64xf32>
    %778 = tpu.matmul %776, %777, %cst_500 {dimension_numbers = #tpu.dot_dimension_numbers<[1], [0], [0], [1], [0, 0, 1, 1], [], []>} : vector<16x256xf32>, vector<256x64xf32>, vector<16x64xf32> -> vector<16x64xf32>
    %779 = arith.addf %742, %778 : vector<16x64xf32>
    %c12_501 = arith.constant 12 : index
    %c0_502 = arith.constant 0 : index
    %780 = vector.load %arg5[%c12_501, %c0_502] : memref<13x64xf32, #tpu.memory_space<vmem>>, vector<1x64xf32>
    %781 = vector.broadcast %780 : vector<1x64xf32> to vector<16x64xf32>
    %782 = arith.addf %779, %781 : vector<16x64xf32>
    %c0_503 = arith.constant 0 : index
    %c0_504 = arith.constant 0 : index
    %783 = vector.load %arg11[%c0_503, %c0_504] : memref<16x64xf32, #tpu.memory_space<vmem>>, vector<16x64xf32>
    tpu.vector_store %arg11[%c0_503, %c0_504], %782 {strides = array<i32>} : memref<16x64xf32, #tpu.memory_space<vmem>>, vector<16x64xf32>,
    %c0_505 = arith.constant 0 : index
    %c0_506 = arith.constant 0 : index
    %784 = vector.load %arg12[%c0_505, %c0_506] : memref<32x64xf32, #tpu.memory_space<vmem>>, vector<32x64xf32>
    tpu.vector_store %arg12[%c0_505, %c0_506], %68 {strides = array<i32>} : memref<32x64xf32, #tpu.memory_space<vmem>>, vector<32x64xf32>,
    return
  }
}

</mosaic_0001>

<llo_original>
// kernel: eq.15
$region0: #{eq.15}
  %s0 = inlined_call_operand.vmem [shape: s32[2,8], index: 0, kind: input, shape index: {}]
  %s1 = inlined_call_operand.vmem [shape: s32[16], index: 1, kind: output, shape index: {}]
  $region1: #{eq.15} parent=0
    #allocation0 [shape = 'u8[4096]{0}', space=vmem, size = 0x1000, scoped, tag = 'scoped mem for output reshape']
    #allocation1 [shape = 'u8[4096]{0}', space=vmem, size = 0x1000, scoped, tag = 'scoped mem for input reshape']
    %s3 = sshllo.u32 0, 2
    %v4 = vld [vmem:[%s0] sm:%s3]
    %5 = vst [vmem:[#allocation1] sm:%s3] %v4
    %v6 = vld [vmem:[#allocation1] sm:$0x1]
    %vm7 = vcmask 64512
    %8 = vst.msk [vmem:[#allocation0] sm:$0x1] %vm7, %v6
    %s9 = scalar_lea.vmem [#allocation1], 1
    %v10 = vld [vmem:[%s9] sm:$0x1]
    %11 = vrot.lane.b32.xlu0 %v10, 8
    %v12 = vpop.permute.xlu0 %11
    %vm13 = vcmask 130112
    %14 = vst.msk [vmem:[#allocation0] sm:$0x1] %vm13, %v12
    %s16 = sshllo.u32 0, 1
    %v18 = vld [vmem:[#allocation0] sm:%s16]
    %s19 = sshllo.u32 0, 1
    %20 = vst [vmem:[%s1] sm:%s19] %v18

// kernel: eq.18
$region0: #{eq.18}
  %s0 = inlined_call_operand.vmem [shape: s32[2,16], index: 0, kind: input, shape index: {}]
  %s1 = inlined_call_operand.vmem [shape: s32[32], index: 1, kind: output, shape index: {}]
  $region1: #{eq.18} parent=0
    #allocation0 [shape = 'u8[4096]{0}', space=vmem, size = 0x1000, scoped, tag = 'scoped mem for output reshape']
    #allocation1 [shape = 'u8[4096]{0}', space=vmem, size = 0x1000, scoped, tag = 'scoped mem for input reshape']
    %s3 = sshllo.u32 0, 2
    %v4 = vld [vmem:[%s0] sm:%s3]
    %5 = vst [vmem:[#allocation1] sm:%s3] %v4
    %v6 = vld [vmem:[#allocation1] sm:$0x1]
    %vm7 = vcmask 130048
    %8 = vst.msk [vmem:[#allocation0] sm:$0x1] %vm7, %v6
    %s9 = scalar_lea.vmem [#allocation1], 1
    %v10 = vld [vmem:[%s9] sm:$0x1]
    %11 = vrot.lane.b32.xlu0 %v10, 16
    %v12 = vpop.permute.xlu0 %11
    %vm13 = vcmask 261248
    %14 = vst.msk [vmem:[#allocation0] sm:$0x1] %vm13, %v12
    %s16 = sshllo.u32 0, 1
    %v18 = vld [vmem:[#allocation0] sm:%s16]
    %s19 = sshllo.u32 0, 1
    %20 = vst [vmem:[%s1] sm:%s19] %v18

// kernel: pathway_forward.1
$region0: #{pathway_forward.1}
  #allocation0 [shape = 'u32[]', space=smem, size = 0x4, offset = 0x4, fixed_abs, tag = 'smem constant byte address 0x4 - core index']
  #allocation1 [shape = 'u32[144,128]{1,0:T(1,128)}', space=vmem, size = 0x12000, scoped, tag = 'internal scratch']
  %s0 = inlined_call_operand.vmem [shape: f32[16,64], index: 0, kind: input, shape index: {}]
  %s1 = inlined_call_operand.vmem [shape: f32[16,64], index: 1, kind: input, shape index: {}]
  %s2 = inlined_call_operand.vmem [shape: f32[32,64], index: 2, kind: input, shape index: {}]
  %s3 = inlined_call_operand.vmem [shape: f32[16,32], index: 3, kind: input, shape index: {}]
  %s4 = inlined_call_operand.vmem [shape: f32[16,16], index: 4, kind: input, shape index: {}]
  %s5 = inlined_call_operand.vmem [shape: f32[13,64], index: 5, kind: input, shape index: {}]
  %s6 = inlined_call_operand.vmem [shape: f32[48,64,8], index: 6, kind: input, shape index: {}]
  %s7 = inlined_call_operand.vmem [shape: f32[48,1,8], index: 7, kind: input, shape index: {}]
  %s8 = inlined_call_operand.vmem [shape: f32[16,8,64], index: 8, kind: input, shape index: {}]
  %s9 = inlined_call_operand.vmem [shape: f32[65,256], index: 9, kind: input, shape index: {}]
  %s10 = inlined_call_operand.vmem [shape: f32[256,64], index: 10, kind: input, shape index: {}]
  %s11 = inlined_call_operand.hbm [shape: f32[16,64], index: 11, kind: output, shape index: {0}]
  %s12 = inlined_call_operand.hbm [shape: f32[32,64], index: 12, kind: output, shape index: {1}]
  %13 = xla_tuple %s11, %s12
  %s14 = sld [smem:[#allocation0]]
  $region62: #{pathway_forward.1} parent=0
    _
  %s16 = ssub.s32 1, %s14
  %s17 = scalar_select 0, %s16, %s14
  $region1: #{pathway_forward.1} parent=0
    #allocation2 [shape = 'u8[8192]{0}', space=vmem, size = 0x2000, scoped, tag = 'output window, operand 0, single buffered']
    #allocation3 [shape = 's32[1]{0}', space=sflag, size = 0x4, scoped, tag = 'scoped memory for pathway_forward.1']
    #allocation4 [shape = 'u8[16384]{0}', space=vmem, size = 0x4000, scoped, tag = 'output window, operand 1, single buffered']
    #allocation5 [shape = 's32[1]{0}', space=sflag, size = 0x4, scoped, tag = 'scoped memory for pathway_forward.1']
    %18 = vsyncpa [#allocation3], 0
    %19 = vsyncpa [#allocation5], 0
    // Predicated region
    $region2: #{pathway_forward.1} parent=1 // pred_check
      _
    $region3: #{pathway_forward.1} parent=1 // pred_check_branch
      %21 = sbr.rel (0) target = $region5
    $region4: #{pathway_forward.1} parent=1 // pred_region
      _
    $region5: #{pathway_forward.1} parent=1 // pred_fallthru
      _
    // Predicated region
    $region6: #{pathway_forward.1} parent=1 // pred_check
      _
    $region7: #{pathway_forward.1} parent=1 // pred_check_branch
      %23 = sbr.rel (0) target = $region9
    $region8: #{pathway_forward.1} parent=1 // pred_region
      _
    $region9: #{pathway_forward.1} parent=1 // pred_fallthru
      _
    // Predicated region
    $region10: #{pathway_forward.1} parent=1 // pred_check
      _
    $region11: #{pathway_forward.1} parent=1 // pred_check_branch
      %25 = sbr.rel (0) target = $region13
    $region12: #{pathway_forward.1} parent=1 // pred_region
      _
    $region13: #{pathway_forward.1} parent=1 // pred_fallthru
      _
    // Predicated region
    $region14: #{pathway_forward.1} parent=1 // pred_check
      _
    $region15: #{pathway_forward.1} parent=1 // pred_check_branch
      %27 = sbr.rel (0) target = $region17
    $region16: #{pathway_forward.1} parent=1 // pred_region
      _
    $region17: #{pathway_forward.1} parent=1 // pred_fallthru
      _
    // Predicated region
    $region18: #{pathway_forward.1} parent=1 // pred_check
      _
    $region19: #{pathway_forward.1} parent=1 // pred_check_branch
      %29 = sbr.rel (0) target = $region21
    $region20: #{pathway_forward.1} parent=1 // pred_region
      _
    $region21: #{pathway_forward.1} parent=1 // pred_fallthru
      _
    // Predicated region
    $region22: #{pathway_forward.1} parent=1 // pred_check
      _
    $region23: #{pathway_forward.1} parent=1 // pred_check_branch
      %31 = sbr.rel (0) target = $region25
    $region24: #{pathway_forward.1} parent=1 // pred_region
      _
    $region25: #{pathway_forward.1} parent=1 // pred_fallthru
      _
    // Predicated region
    $region26: #{pathway_forward.1} parent=1 // pred_check
      _
    $region27: #{pathway_forward.1} parent=1 // pred_check_branch
      %33 = sbr.rel (0) target = $region29
    $region28: #{pathway_forward.1} parent=1 // pred_region
      _
    $region29: #{pathway_forward.1} parent=1 // pred_fallthru
      _
    // Predicated region
    $region30: #{pathway_forward.1} parent=1 // pred_check
      _
    $region31: #{pathway_forward.1} parent=1 // pred_check_branch
      %35 = sbr.rel (0) target = $region33
    $region32: #{pathway_forward.1} parent=1 // pred_region
      _
    $region33: #{pathway_forward.1} parent=1 // pred_fallthru
      _
    // Predicated region
    $region34: #{pathway_forward.1} parent=1 // pred_check
      _
    $region35: #{pathway_forward.1} parent=1 // pred_check_branch
      %37 = sbr.rel (0) target = $region37
    $region36: #{pathway_forward.1} parent=1 // pred_region
      _
    $region37: #{pathway_forward.1} parent=1 // pred_fallthru
      _
    // Predicated region
    $region38: #{pathway_forward.1} parent=1 // pred_check
      _
    $region39: #{pathway_forward.1} parent=1 // pred_check_branch
      %39 = sbr.rel (0) target = $region41
    $region40: #{pathway_forward.1} parent=1 // pred_region
      _
    $region41: #{pathway_forward.1} parent=1 // pred_fallthru
      _
    // Predicated region
    $region42: #{pathway_forward.1} parent=1 // pred_check
      _
    $region43: #{pathway_forward.1} parent=1 // pred_check_branch
      %41 = sbr.rel (0) target = $region45
    $region44: #{pathway_forward.1} parent=1 // pred_region
      _
    $region45: #{pathway_forward.1} parent=1 // pred_fallthru
      _
    %v42 = vld [vmem:[%s0] sm:$0xff]
    %v43 = vld [vmem:[%s0 + $0x8] sm:$0xff]
    %v44 = vld [vmem:[%s1] sm:$0xff]
    %v45 = vld [vmem:[%s1 + $0x8] sm:$0xff]
    %v46 = vld [vmem:[%s2] sm:$0xff]
    %v47 = vld [vmem:[%s2 + $0x8] sm:$0xff]
    %v48 = vld [vmem:[%s2 + $0x10] sm:$0xff]
    %v49 = vld [vmem:[%s2 + $0x18] sm:$0xff]
    %vm50 = vcmask 523264
    %v51 = vsel %vm50, %v44, 0.0
    %52 = vadd.xlane.f32.xlu0 %v51
    %v53 = vpop.xlane.xlu0 %52
    %v54 = vsel %vm50, %v45, 0.0
    %55 = vadd.xlane.f32.xlu0 %v54
    %v56 = vpop.xlane.xlu0 %55
    %v57 = vrcp.pop 64.0
    %v58 = vmul.f32 %v53, %v57
    %v59 = vmul.f32 %v56, %v57
    %v60 = vsub.f32 %v44, %v58
    %v61 = vsub.f32 %v45, %v59
    %v62 = vmul.f32 %v60, %v60
    %v63 = vmul.f32 %v61, %v61
    %v64 = vsel %vm50, %v62, 0.0
    %65 = vadd.xlane.f32.xlu0 %v64
    %v66 = vpop.xlane.xlu0 %65
    %v67 = vsel %vm50, %v63, 0.0
    %68 = vadd.xlane.f32.xlu0 %v67
    %v69 = vpop.xlane.xlu0 %68
    %v70 = vmul.f32 %v66, %v57
    %v71 = vmul.f32 %v69, %v57
    %v72 = vadd.f32 %v70, 1e-05
    %v73 = vadd.f32 %v71, 1e-05
    %v74 = vrsqrt.pop %v72
    %v75 = vrsqrt.pop %v73
    %v76 = vmul.f32 %v60, %v74
    %v77 = vmul.f32 %v61, %v75
    %v78 = vld [vmem:[%s5] sm:$0x1]
    %v79 = vlaneseq
    %v80 = vshrl.u32 %v79, 7
    %v81 = vsub.s32 0, %v80
    %v82 = vrot.slane %v78, %v81
    %v83 = vmul.f32 %v76, %v82
    %v84 = vmul.f32 %v77, %v82
    %v85 = vld [vmem:[%s5 + $0x5] sm:$0x1]
    %v86 = vlaneseq
    %v87 = vshrl.u32 %v86, 7
    %v88 = vsub.s32 0, %v87
    %v89 = vrot.slane %v85, %v88
    %v90 = vadd.f32 %v83, %v89
    %v91 = vadd.f32 %v84, %v89
    %v92 = vsel %vm50, %v42, 0.0
    %93 = vadd.xlane.f32.xlu0 %v92
    %v94 = vpop.xlane.xlu0 %93
    %v95 = vsel %vm50, %v43, 0.0
    %96 = vadd.xlane.f32.xlu0 %v95
    %v97 = vpop.xlane.xlu0 %96
    %v98 = vmul.f32 %v94, %v57
    %v99 = vmul.f32 %v97, %v57
    %v100 = vsub.f32 %v42, %v98
    %v101 = vsub.f32 %v43, %v99
    %v102 = vmul.f32 %v100, %v100
    %v103 = vmul.f32 %v101, %v101
    %v104 = vsel %vm50, %v102, 0.0
    %105 = vadd.xlane.f32.xlu0 %v104
    %v106 = vpop.xlane.xlu0 %105
    %v107 = vsel %vm50, %v103, 0.0
    %108 = vadd.xlane.f32.xlu0 %v107
    %v109 = vpop.xlane.xlu0 %108
    %v110 = vmul.f32 %v106, %v57
    %v111 = vmul.f32 %v109, %v57
    %v112 = vadd.f32 %v110, 1e-05
    %v113 = vadd.f32 %v111, 1e-05
    %v114 = vrsqrt.pop %v112
    %v115 = vrsqrt.pop %v113
    %v116 = vmul.f32 %v100, %v114
    %v117 = vmul.f32 %v101, %v115
    %v118 = vld [vmem:[%s5 + $0x1] sm:$0x1]
    %v119 = vlaneseq
    %v120 = vshrl.u32 %v119, 7
    %v121 = vsub.s32 0, %v120
    %v122 = vrot.slane %v118, %v121
    %v123 = vmul.f32 %v116, %v122
    %v124 = vmul.f32 %v117, %v122
    %v125 = vld [vmem:[%s5 + $0x6] sm:$0x1]
    %v126 = vlaneseq
    %v127 = vshrl.u32 %v126, 7
    %v128 = vsub.s32 0, %v127
    %v129 = vrot.slane %v125, %v128
    %v130 = vadd.f32 %v123, %v129
    %v131 = vadd.f32 %v124, %v129
    %v132 = vsel %vm50, %v46, 0.0
    %133 = vadd.xlane.f32.xlu0 %v132
    %v134 = vpop.xlane.xlu0 %133
    %v135 = vsel %vm50, %v47, 0.0
    %136 = vadd.xlane.f32.xlu0 %v135
    %v137 = vpop.xlane.xlu0 %136
    %v138 = vsel %vm50, %v48, 0.0
    %139 = vadd.xlane.f32.xlu0 %v138
    %v140 = vpop.xlane.xlu0 %139
    %v141 = vsel %vm50, %v49, 0.0
    %142 = vadd.xlane.f32.xlu0 %v141
    %v143 = vpop.xlane.xlu0 %142
    %v144 = vmul.f32 %v134, %v57
    %v145 = vmul.f32 %v137, %v57
    %v146 = vmul.f32 %v140, %v57
    %v147 = vmul.f32 %v143, %v57
    %v148 = vsub.f32 %v46, %v144
    %v149 = vsub.f32 %v47, %v145
    %v150 = vsub.f32 %v48, %v146
    %v151 = vsub.f32 %v49, %v147
    %v152 = vmul.f32 %v148, %v148
    %v153 = vmul.f32 %v149, %v149
    %v154 = vmul.f32 %v150, %v150
    %v155 = vmul.f32 %v151, %v151
    %v156 = vsel %vm50, %v152, 0.0
    %157 = vadd.xlane.f32.xlu0 %v156
    %v158 = vpop.xlane.xlu0 %157
    %v159 = vsel %vm50, %v153, 0.0
    %160 = vadd.xlane.f32.xlu0 %v159
    %v161 = vpop.xlane.xlu0 %160
    %v162 = vsel %vm50, %v154, 0.0
    %163 = vadd.xlane.f32.xlu0 %v162
    %v164 = vpop.xlane.xlu0 %163
    %v165 = vsel %vm50, %v155, 0.0
    %166 = vadd.xlane.f32.xlu0 %v165
    %v167 = vpop.xlane.xlu0 %166
    %v168 = vmul.f32 %v158, %v57
    %v169 = vmul.f32 %v161, %v57
    %v170 = vmul.f32 %v164, %v57
    %v171 = vmul.f32 %v167, %v57
    %v172 = vadd.f32 %v168, 1e-05
    %v173 = vadd.f32 %v169, 1e-05
    %v174 = vadd.f32 %v170, 1e-05
    %v175 = vadd.f32 %v171, 1e-05
    %v176 = vrsqrt.pop %v172
    %v177 = vrsqrt.pop %v173
    %v178 = vrsqrt.pop %v174
    %v179 = vrsqrt.pop %v175
    %v180 = vmul.f32 %v148, %v176
    %v181 = vmul.f32 %v149, %v177
    %v182 = vmul.f32 %v150, %v178
    %v183 = vmul.f32 %v151, %v179
    %v184 = vld [vmem:[%s5 + $0x4] sm:$0x1]
    %v185 = vlaneseq
    %v186 = vshrl.u32 %v185, 7
    %v187 = vsub.s32 0, %v186
    %v188 = vrot.slane %v184, %v187
    %v189 = vmul.f32 %v180, %v188
    %v190 = vmul.f32 %v181, %v188
    %v191 = vmul.f32 %v182, %v188
    %v192 = vmul.f32 %v183, %v188
    %v193 = vld [vmem:[%s5 + $0x9] sm:$0x1]
    %v194 = vlaneseq
    %v195 = vshrl.u32 %v194, 7
    %v196 = vsub.s32 0, %v195
    %v197 = vrot.slane %v193, %v196
    %v198 = vadd.f32 %v189, %v197
    %v199 = vadd.f32 %v190, %v197
    %v200 = vadd.f32 %v191, %v197
    %v201 = vadd.f32 %v192, %v197
    %v202 = vld [vmem:[%s3] sm:$0xff]
    %v203 = vld [vmem:[%s3 + $0x8] sm:$0xff]
    %v204 = vld [vmem:[%s6] sm:$0xff]
    %v205 = vld [vmem:[%s6 + $0x8] sm:$0xff]
    %v206 = vld [vmem:[%s6 + $0x10] sm:$0xff]
    %v207 = vld [vmem:[%s6 + $0x18] sm:$0xff]
    %v208 = vld [vmem:[%s6 + $0x20] sm:$0xff]
    %v209 = vld [vmem:[%s6 + $0x28] sm:$0xff]
    %v210 = vld [vmem:[%s6 + $0x30] sm:$0xff]
    %v211 = vld [vmem:[%s6 + $0x38] sm:$0xff]
    %v212 = vld [vmem:[%s7] sm:$0x1]
    %v214 = vlaneseq
    %v215 = vshrl.u32 %v214, 7
    %v216 = vsub.s32 0, %v215
    %v217 = vrot.slane %v212, %v216
    %v220 = vsel %vm50, %v90, 0
    %v223 = vsel %vm50, %v91, 0
    %225 = vmatprep.subr.mxu0 0.0
    %226 = vmatpush1.msra.mxu0 %v204
    %227 = vmatprep.subr.mxu0 0.0
    %228 = vmatpush1.msra.mxu0 %v205
    %229 = vmatprep.subr.mxu0 0.0
    %230 = vmatpush1.msra.mxu0 %v206
    %231 = vmatprep.subr.mxu0 0.0
    %232 = vmatpush1.msra.mxu0 %v207
    %233 = vmatprep.subr.mxu0 0.0
    %234 = vmatpush1.msra.mxu0 %v208
    %235 = vmatprep.subr.mxu0 0.0
    %236 = vmatpush1.msra.mxu0 %v209
    %237 = vmatprep.subr.mxu0 0.0
    %238 = vmatpush1.msra.mxu0 %v210
    %239 = vmatprep.subr.mxu0 0.0
    %240 = vmatpush1.msra.mxu0 %v211
    %241 = vmatprep.subr.mxu0 0.0
    %242 = vmatpush1.msra.mxu0 0.0
    %243 = vmatprep.subr.mxu0 0.0
    %244 = vmatpush1.msra.mxu0 0.0
    %245 = vmatprep.subr.mxu0 0.0
    %246 = vmatpush1.msra.mxu0 0.0
    %247 = vmatprep.subr.mxu0 0.0
    %248 = vmatpush1.msra.mxu0 0.0
    %249 = vmatprep.subr.mxu0 0.0
    %250 = vmatpush1.msra.mxu0 0.0
    %251 = vmatprep.subr.mxu0 0.0
    %252 = vmatpush1.msra.mxu0 0.0
    %253 = vmatprep.subr.mxu0 0.0
    %254 = vmatpush1.msra.mxu0 0.0
    %255 = vmatprep.subr.mxu0 0.0
    %256 = vmatpush1.msra.mxu0 0.0
    %257 = vmatprep.subr.mxu0 0.0
    %258 = vmatpush1.msra.mxu0 0.0
    %259 = vmatprep.subr.mxu0 0.0
    %260 = vmatpush1.msra.mxu0 0.0
    %261 = vmatprep.subr.mxu0 0.0
    %262 = vmatpush1.msra.mxu0 0.0
    %263 = vmatprep.subr.mxu0 0.0
    %264 = vmatpush1.msra.mxu0 0.0
    %265 = vmatprep.subr.mxu0 0.0
    %266 = vmatpush1.msra.mxu0 0.0
    %267 = vmatprep.subr.mxu0 0.0
    %268 = vmatpush1.msra.mxu0 0.0
    %269 = vmatprep.subr.mxu0 0.0
    %270 = vmatpush1.msra.mxu0 0.0
    %271 = vmatprep.subr.mxu0 0.0
    %272 = vmatpush1.msra.mxu0 0.0
    %273 = vmatprep.subr.mxu0 0.0
    %274 = vmatpush1.msra.mxu0 0.0
    %275 = vmatprep.subr.mxu0 0.0
    %276 = vmatpush1.msra.mxu0 0.0
    %277 = vmatprep.subr.mxu0 0.0
    %278 = vmatpush1.msra.mxu0 0.0
    %279 = vmatprep.subr.mxu0 0.0
    %280 = vmatpush1.msra.mxu0 0.0
    %281 = vmatprep.subr.mxu0 0.0
    %282 = vmatpush1.msra.mxu0 0.0
    %283 = vmatprep.subr.mxu0 0.0
    %284 = vmatpush1.msra.mxu0 0.0
    %285 = vmatprep.subr.mxu0 0.0
    %286 = vmatpush1.msra.mxu0 0.0
    %287 = vmatprep.subr.mxu0 0.0
    %288 = vmatpush1.msra.mxu0 0.0
    %289 = vmatprep.mubr.f32.mxu0 0.0
    %290 = vmatmul.mubr.f32.gmra.mrb[0].mxu0 %v220
    %v291 = vpop.f32.mrb[0].mxu0
    %v292 = vadd.f32 %v217, %v291
    %v293 = vpop.f32.mrb[0].mxu0
    %294 = vmatprep.mubr.f32.mxu0 0.0
    %295 = vmatmul.mubr.f32.gmra.mrb[0].mxu0 %v223
    %v296 = vpop.f32.mrb[0].mxu0
    %v297 = vadd.f32 %v217, %v296
    %v298 = vpop.f32.mrb[0].mxu0
    %299 = vdwg.mxu0
    %s300 = scalar_lea.vmem %s6, 512
    %v301 = vld [vmem:[%s300] sm:$0xff]
    %v302 = vld [vmem:[%s300 + $0x8] sm:$0xff]
    %v303 = vld [vmem:[%s300 + $0x10] sm:$0xff]
    %v304 = vld [vmem:[%s300 + $0x18] sm:$0xff]
    %v305 = vld [vmem:[%s300 + $0x20] sm:$0xff]
    %v306 = vld [vmem:[%s300 + $0x28] sm:$0xff]
    %v307 = vld [vmem:[%s300 + $0x30] sm:$0xff]
    %v308 = vld [vmem:[%s300 + $0x38] sm:$0xff]
    %s309 = scalar_lea.vmem %s7, 8
    %v310 = vld [vmem:[%s309] sm:$0x1]
    %v312 = vlaneseq
    %v313 = vshrl.u32 %v312, 7
    %v314 = vsub.s32 0, %v313
    %v315 = vrot.slane %v310, %v314
    %v318 = vsel %vm50, %v198, 0
    %v321 = vsel %vm50, %v199, 0
    %v324 = vsel %vm50, %v200, 0
    %v327 = vsel %vm50, %v201, 0
    %329 = vmatprep.subr.mxu0 0.0
    %330 = vmatpush1.msra.mxu0 %v301
    %331 = vmatprep.subr.mxu0 0.0
    %332 = vmatpush1.msra.mxu0 %v302
    %333 = vmatprep.subr.mxu0 0.0
    %334 = vmatpush1.msra.mxu0 %v303
    %335 = vmatprep.subr.mxu0 0.0
    %336 = vmatpush1.msra.mxu0 %v304
    %337 = vmatprep.subr.mxu0 0.0
    %338 = vmatpush1.msra.mxu0 %v305
    %339 = vmatprep.subr.mxu0 0.0
    %340 = vmatpush1.msra.mxu0 %v306
    %341 = vmatprep.subr.mxu0 0.0
    %342 = vmatpush1.msra.mxu0 %v307
    %343 = vmatprep.subr.mxu0 0.0
    %344 = vmatpush1.msra.mxu0 %v308
    %345 = vmatprep.subr.mxu0 0.0
    %346 = vmatpush1.msra.mxu0 0.0
    %347 = vmatprep.subr.mxu0 0.0
    %348 = vmatpush1.msra.mxu0 0.0
    %349 = vmatprep.subr.mxu0 0.0
    %350 = vmatpush1.msra.mxu0 0.0
    %351 = vmatprep.subr.mxu0 0.0
    %352 = vmatpush1.msra.mxu0 0.0
    %353 = vmatprep.subr.mxu0 0.0
    %354 = vmatpush1.msra.mxu0 0.0
    %355 = vmatprep.subr.mxu0 0.0
    %356 = vmatpush1.msra.mxu0 0.0
    %357 = vmatprep.subr.mxu0 0.0
    %358 = vmatpush1.msra.mxu0 0.0
    %359 = vmatprep.subr.mxu0 0.0
    %360 = vmatpush1.msra.mxu0 0.0
    %361 = vmatprep.subr.mxu0 0.0
    %362 = vmatpush1.msra.mxu0 0.0
    %363 = vmatprep.subr.mxu0 0.0
    %364 = vmatpush1.msra.mxu0 0.0
    %365 = vmatprep.subr.mxu0 0.0
    %366 = vmatpush1.msra.mxu0 0.0
    %367 = vmatprep.subr.mxu0 0.0
    %368 = vmatpush1.msra.mxu0 0.0
    %369 = vmatprep.subr.mxu0 0.0
    %370 = vmatpush1.msra.mxu0 0.0
    %371 = vmatprep.subr.mxu0 0.0
    %372 = vmatpush1.msra.mxu0 0.0
    %373 = vmatprep.subr.mxu0 0.0
    %374 = vmatpush1.msra.mxu0 0.0
    %375 = vmatprep.subr.mxu0 0.0
    %376 = vmatpush1.msra.mxu0 0.0
    %377 = vmatprep.subr.mxu0 0.0
    %378 = vmatpush1.msra.mxu0 0.0
    %379 = vmatprep.subr.mxu0 0.0
    %380 = vmatpush1.msra.mxu0 0.0
    %381 = vmatprep.subr.mxu0 0.0
    %382 = vmatpush1.msra.mxu0 0.0
    %383 = vmatprep.subr.mxu0 0.0
    %384 = vmatpush1.msra.mxu0 0.0
    %385 = vmatprep.subr.mxu0 0.0
    %386 = vmatpush1.msra.mxu0 0.0
    %387 = vmatprep.subr.mxu0 0.0
    %388 = vmatpush1.msra.mxu0 0.0
    %389 = vmatprep.subr.mxu0 0.0
    %390 = vmatpush1.msra.mxu0 0.0
    %391 = vmatprep.subr.mxu0 0.0
    %392 = vmatpush1.msra.mxu0 0.0
    %393 = vmatprep.mubr.f32.mxu0 0.0
    %394 = vmatmul.mubr.f32.gmra.mrb[0].mxu0 %v318
    %v395 = vpop.f32.mrb[0].mxu0
    %v396 = vadd.f32 %v315, %v395
    %v397 = vpop.f32.mrb[0].mxu0
    %398 = vmatprep.mubr.f32.mxu0 0.0
    %399 = vmatmul.mubr.f32.gmra.mrb[0].mxu0 %v321
    %v400 = vpop.f32.mrb[0].mxu0
    %v401 = vadd.f32 %v315, %v400
    %v402 = vpop.f32.mrb[0].mxu0
    %403 = vmatprep.mubr.f32.mxu0 0.0
    %404 = vmatmul.mubr.f32.gmra.mrb[0].mxu0 %v324
    %v405 = vpop.f32.mrb[0].mxu0
    %v406 = vadd.f32 %v315, %v405
    %v407 = vpop.f32.mrb[0].mxu0
    %408 = vmatprep.mubr.f32.mxu0 0.0
    %409 = vmatmul.mubr.f32.gmra.mrb[0].mxu0 %v327
    %v410 = vpop.f32.mrb[0].mxu0
    %v411 = vadd.f32 %v315, %v410
    %v412 = vpop.f32.mrb[0].mxu0
    %413 = vdwg.mxu0
    %s414 = scalar_lea.vmem %s6, 1024
    %v415 = vld [vmem:[%s414] sm:$0xff]
    %v416 = vld [vmem:[%s414 + $0x8] sm:$0xff]
    %v417 = vld [vmem:[%s414 + $0x10] sm:$0xff]
    %v418 = vld [vmem:[%s414 + $0x18] sm:$0xff]
    %v419 = vld [vmem:[%s414 + $0x20] sm:$0xff]
    %v420 = vld [vmem:[%s414 + $0x28] sm:$0xff]
    %v421 = vld [vmem:[%s414 + $0x30] sm:$0xff]
    %v422 = vld [vmem:[%s414 + $0x38] sm:$0xff]
    %s423 = scalar_lea.vmem %s7, 16
    %v424 = vld [vmem:[%s423] sm:$0x1]
    %v426 = vlaneseq
    %v427 = vshrl.u32 %v426, 7
    %v428 = vsub.s32 0, %v427
    %v429 = vrot.slane %v424, %v428
    %431 = vmatprep.subr.mxu0 0.0
    %432 = vmatpush1.msra.mxu0 %v415
    %433 = vmatprep.subr.mxu0 0.0
    %434 = vmatpush1.msra.mxu0 %v416
    %435 = vmatprep.subr.mxu0 0.0
    %436 = vmatpush1.msra.mxu0 %v417
    %437 = vmatprep.subr.mxu0 0.0
    %438 = vmatpush1.msra.mxu0 %v418
    %439 = vmatprep.subr.mxu0 0.0
    %440 = vmatpush1.msra.mxu0 %v419
    %441 = vmatprep.subr.mxu0 0.0
    %442 = vmatpush1.msra.mxu0 %v420
    %443 = vmatprep.subr.mxu0 0.0
    %444 = vmatpush1.msra.mxu0 %v421
    %445 = vmatprep.subr.mxu0 0.0
    %446 = vmatpush1.msra.mxu0 %v422
    %447 = vmatprep.subr.mxu0 0.0
    %448 = vmatpush1.msra.mxu0 0.0
    %449 = vmatprep.subr.mxu0 0.0
    %450 = vmatpush1.msra.mxu0 0.0
    %451 = vmatprep.subr.mxu0 0.0
    %452 = vmatpush1.msra.mxu0 0.0
    %453 = vmatprep.subr.mxu0 0.0
    %454 = vmatpush1.msra.mxu0 0.0
    %455 = vmatprep.subr.mxu0 0.0
    %456 = vmatpush1.msra.mxu0 0.0
    %457 = vmatprep.subr.mxu0 0.0
    %458 = vmatpush1.msra.mxu0 0.0
    %459 = vmatprep.subr.mxu0 0.0
    %460 = vmatpush1.msra.mxu0 0.0
    %461 = vmatprep.subr.mxu0 0.0
    %462 = vmatpush1.msra.mxu0 0.0
    %463 = vmatprep.subr.mxu0 0.0
    %464 = vmatpush1.msra.mxu0 0.0
    %465 = vmatprep.subr.mxu0 0.0
    %466 = vmatpush1.msra.mxu0 0.0
    %467 = vmatprep.subr.mxu0 0.0
    %468 = vmatpush1.msra.mxu0 0.0
    %469 = vmatprep.subr.mxu0 0.0
    %470 = vmatpush1.msra.mxu0 0.0
    %471 = vmatprep.subr.mxu0 0.0
    %472 = vmatpush1.msra.mxu0 0.0
    %473 = vmatprep.subr.mxu0 0.0
    %474 = vmatpush1.msra.mxu0 0.0
    %475 = vmatprep.subr.mxu0 0.0
    %476 = vmatpush1.msra.mxu0 0.0
    %477 = vmatprep.subr.mxu0 0.0
    %478 = vmatpush1.msra.mxu0 0.0
    %479 = vmatprep.subr.mxu0 0.0
    %480 = vmatpush1.msra.mxu0 0.0
    %481 = vmatprep.subr.mxu0 0.0
    %482 = vmatpush1.msra.mxu0 0.0
    %483 = vmatprep.subr.mxu0 0.0
    %484 = vmatpush1.msra.mxu0 0.0
    %485 = vmatprep.subr.mxu0 0.0
    %486 = vmatpush1.msra.mxu0 0.0
    %487 = vmatprep.subr.mxu0 0.0
    %488 = vmatpush1.msra.mxu0 0.0
    %489 = vmatprep.subr.mxu0 0.0
    %490 = vmatpush1.msra.mxu0 0.0
    %491 = vmatprep.subr.mxu0 0.0
    %492 = vmatpush1.msra.mxu0 0.0
    %493 = vmatprep.subr.mxu0 0.0
    %494 = vmatpush1.msra.mxu0 0.0
    %495 = vmatprep.mubr.f32.mxu0 0.0
    %496 = vmatmul.mubr.f32.gmra.mrb[0].mxu0 %v318
    %v497 = vpop.f32.mrb[0].mxu0
    %v498 = vadd.f32 %v429, %v497
    %v499 = vpop.f32.mrb[0].mxu0
    %500 = vmatprep.mubr.f32.mxu0 0.0
    %501 = vmatmul.mubr.f32.gmra.mrb[0].mxu0 %v321
    %v502 = vpop.f32.mrb[0].mxu0
    %v503 = vadd.f32 %v429, %v502
    %v504 = vpop.f32.mrb[0].mxu0
    %505 = vmatprep.mubr.f32.mxu0 0.0
    %506 = vmatmul.mubr.f32.gmra.mrb[0].mxu0 %v324
    %v507 = vpop.f32.mrb[0].mxu0
    %v508 = vadd.f32 %v429, %v507
    %v509 = vpop.f32.mrb[0].mxu0
    %510 = vmatprep.mubr.f32.mxu0 0.0
    %511 = vmatmul.mubr.f32.gmra.mrb[0].mxu0 %v327
    %v512 = vpop.f32.mrb[0].mxu0
    %v513 = vadd.f32 %v429, %v512
    %v514 = vpop.f32.mrb[0].mxu0
    %515 = vdwg.mxu0
    %vm516 = vcmask 64512
    %v518 = vsel %vm516, %v292, 0
    %v521 = vsel %vm516, %v297, 0
    %v524 = vsel %vm516, %v396, 0
    %v527 = vsel %vm516, %v401, 0
    %v530 = vsel %vm516, %v406, 0
    %v533 = vsel %vm516, %v411, 0
    %535 = vmatprep.subr.mxu0 0.0
    %536 = vmatpush1.xpose.msra.mxu0 %v524
    %537 = vmatprep.subr.mxu0 0.0
    %538 = vmatpush1.xpose.msra.mxu0 %v527
    %539 = vmatprep.subr.mxu0 0.0
    %540 = vmatpush1.xpose.msra.mxu0 %v530
    %541 = vmatprep.subr.mxu0 0.0
    %542 = vmatpush1.xpose.msra.mxu0 %v533
    %543 = vmatprep.subr.mxu0 0.0
    %544 = vmatpush1.xpose.msra.mxu0 0.0
    %545 = vmatprep.subr.mxu0 0.0
    %546 = vmatpush1.xpose.msra.mxu0 0.0
    %547 = vmatprep.subr.mxu0 0.0
    %548 = vmatpush1.xpose.msra.mxu0 0.0
    %549 = vmatprep.subr.mxu0 0.0
    %550 = vmatpush1.xpose.msra.mxu0 0.0
    %551 = vmatprep.subr.mxu0 0.0
    %552 = vmatpush1.xpose.msra.mxu0 0.0
    %553 = vmatprep.subr.mxu0 0.0
    %554 = vmatpush1.xpose.msra.mxu0 0.0
    %555 = vmatprep.subr.mxu0 0.0
    %556 = vmatpush1.xpose.msra.mxu0 0.0
    %557 = vmatprep.subr.mxu0 0.0
    %558 = vmatpush1.xpose.msra.mxu0 0.0
    %559 = vmatprep.subr.mxu0 0.0
    %560 = vmatpush1.xpose.msra.mxu0 0.0
    %561 = vmatprep.subr.mxu0 0.0
    %562 = vmatpush1.xpose.msra.mxu0 0.0
    %563 = vmatprep.subr.mxu0 0.0
    %564 = vmatpush1.xpose.msra.mxu0 0.0
    %565 = vmatprep.subr.mxu0 0.0
    %566 = vmatpush1.xpose.msra.mxu0 0.0
    %567 = vmatprep.subr.mxu0 0.0
    %568 = vmatpush1.xpose.msra.mxu0 0.0
    %569 = vmatprep.subr.mxu0 0.0
    %570 = vmatpush1.xpose.msra.mxu0 0.0
    %571 = vmatprep.subr.mxu0 0.0
    %572 = vmatpush1.xpose.msra.mxu0 0.0
    %573 = vmatprep.subr.mxu0 0.0
    %574 = vmatpush1.xpose.msra.mxu0 0.0
    %575 = vmatprep.subr.mxu0 0.0
    %576 = vmatpush1.xpose.msra.mxu0 0.0
    %577 = vmatprep.subr.mxu0 0.0
    %578 = vmatpush1.xpose.msra.mxu0 0.0
    %579 = vmatprep.subr.mxu0 0.0
    %580 = vmatpush1.xpose.msra.mxu0 0.0
    %581 = vmatprep.subr.mxu0 0.0
    %582 = vmatpush1.xpose.msra.mxu0 0.0
    %583 = vmatprep.subr.mxu0 0.0
    %584 = vmatpush1.xpose.msra.mxu0 0.0
    %585 = vmatprep.subr.mxu0 0.0
    %586 = vmatpush1.xpose.msra.mxu0 0.0
    %587 = vmatprep.subr.mxu0 0.0
    %588 = vmatpush1.xpose.msra.mxu0 0.0
    %589 = vmatprep.subr.mxu0 0.0
    %590 = vmatpush1.xpose.msra.mxu0 0.0
    %591 = vmatprep.subr.mxu0 0.0
    %592 = vmatpush1.xpose.msra.mxu0 0.0
    %593 = vmatprep.subr.mxu0 0.0
    %594 = vmatpush1.xpose.msra.mxu0 0.0
    %595 = vmatprep.subr.mxu0 0.0
    %596 = vmatpush1.xpose.msra.mxu0 0.0
    %597 = vmatprep.subr.mxu0 0.0
    %598 = vmatpush1.xpose.msra.mxu0 0.0
    %599 = vmatprep.mubr.f32.mxu0 0.0
    %600 = vmatmul.mubr.f32.gmra.mrb[0].mxu0 %v518
    %v601 = vpop.f32.mrb[0].mxu0
    %v602 = vadd.f32 0.0, %v601
    %v603 = vpop.f32.mrb[0].mxu0
    %604 = vmatprep.mubr.f32.mxu0 0.0
    %605 = vmatmul.mubr.f32.gmra.mrb[0].mxu0 %v521
    %v606 = vpop.f32.mrb[0].mxu0
    %v607 = vadd.f32 0.0, %v606
    %v608 = vpop.f32.mrb[0].mxu0
    %609 = vdwg.mxu0
    %v610 = vmul.f32 %v602, 0.35355338
    %v611 = vmul.f32 %v607, 0.35355338
    %v612 = vadd.f32 %v610, %v202
    %v613 = vadd.f32 %v611, %v203
    %vm614 = vcmask 261120
    %v615 = vsel %vm614, %v612, -inf
    %616 = vmax.xlane.f32.xlu0 %v615
    %v617 = vpop.xlane.xlu0 %616
    %v618 = vsel %vm614, %v613, -inf
    %619 = vmax.xlane.f32.xlu0 %v618
    %v620 = vpop.xlane.xlu0 %619
    %v621 = vsub.f32 %v612, %v617
    %v622 = vsub.f32 %v613, %v620
    %v623 = vmul.f32 %v621, 1.442695
    %v624 = vpow.pop %v623
    %v625 = vmul.f32 %v622, 1.442695
    %v626 = vpow.pop %v625
    %v627 = vsel %vm614, %v624, 0.0
    %628 = vadd.xlane.f32.xlu0 %v627
    %v629 = vpop.xlane.xlu0 %628
    %v630 = vsel %vm614, %v626, 0.0
    %631 = vadd.xlane.f32.xlu0 %v630
    %v632 = vpop.xlane.xlu0 %631
    %v633 = vrcp.pop %v629
    %v634 = vrcp.pop %v632
    %v635 = vmul.f32 %v624, %v633
    %v636 = vmul.f32 %v626, %v634
    %v638 = vsel %vm614, %v635, 0
    %v641 = vsel %vm614, %v636, 0
    %643 = vmatprep.subr.mxu0 0.0
    %644 = vmatpush1.msra.mxu0 %v498
    %645 = vmatprep.subr.mxu0 0.0
    %646 = vmatpush1.msra.mxu0 %v503
    %647 = vmatprep.subr.mxu0 0.0
    %648 = vmatpush1.msra.mxu0 %v508
    %649 = vmatprep.subr.mxu0 0.0
    %650 = vmatpush1.msra.mxu0 %v513
    %651 = vmatprep.subr.mxu0 0.0
    %652 = vmatpush1.msra.mxu0 0.0
    %653 = vmatprep.subr.mxu0 0.0
    %654 = vmatpush1.msra.mxu0 0.0
    %655 = vmatprep.subr.mxu0 0.0
    %656 = vmatpush1.msra.mxu0 0.0
    %657 = vmatprep.subr.mxu0 0.0
    %658 = vmatpush1.msra.mxu0 0.0
    %659 = vmatprep.subr.mxu0 0.0
    %660 = vmatpush1.msra.mxu0 0.0
    %661 = vmatprep.subr.mxu0 0.0
    %662 = vmatpush1.msra.mxu0 0.0
    %663 = vmatprep.subr.mxu0 0.0
    %664 = vmatpush1.msra.mxu0 0.0
    %665 = vmatprep.subr.mxu0 0.0
    %666 = vmatpush1.msra.mxu0 0.0
    %667 = vmatprep.subr.mxu0 0.0
    %668 = vmatpush1.msra.mxu0 0.0
    %669 = vmatprep.subr.mxu0 0.0
    %670 = vmatpush1.msra.mxu0 0.0
    %671 = vmatprep.subr.mxu0 0.0
    %672 = vmatpush1.msra.mxu0 0.0
    %673 = vmatprep.subr.mxu0 0.0
    %674 = vmatpush1.msra.mxu0 0.0
    %675 = vmatprep.subr.mxu0 0.0
    %676 = vmatpush1.msra.mxu0 0.0
    %677 = vmatprep.subr.mxu0 0.0
    %678 = vmatpush1.msra.mxu0 0.0
    %679 = vmatprep.subr.mxu0 0.0
    %680 = vmatpush1.msra.mxu0 0.0
    %681 = vmatprep.subr.mxu0 0.0
    %682 = vmatpush1.msra.mxu0 0.0
    %683 = vmatprep.subr.mxu0 0.0
    %684 = vmatpush1.msra.mxu0 0.0
    %685 = vmatprep.subr.mxu0 0.0
    %686 = vmatpush1.msra.mxu0 0.0
    %687 = vmatprep.subr.mxu0 0.0
    %688 = vmatpush1.msra.mxu0 0.0
    %689 = vmatprep.subr.mxu0 0.0
    %690 = vmatpush1.msra.mxu0 0.0
    %691 = vmatprep.subr.mxu0 0.0
    %692 = vmatpush1.msra.mxu0 0.0
    %693 = vmatprep.subr.mxu0 0.0
    %694 = vmatpush1.msra.mxu0 0.0
    %695 = vmatprep.subr.mxu0 0.0
    %696 = vmatpush1.msra.mxu0 0.0
    %697 = vmatprep.subr.mxu0 0.0
    %698 = vmatpush1.msra.mxu0 0.0
    %699 = vmatprep.subr.mxu0 0.0
    %700 = vmatpush1.msra.mxu0 0.0
    %701 = vmatprep.subr.mxu0 0.0
    %702 = vmatpush1.msra.mxu0 0.0
    %703 = vmatprep.subr.mxu0 0.0
    %704 = vmatpush1.msra.mxu0 0.0
    %705 = vmatprep.subr.mxu0 0.0
    %706 = vmatpush1.msra.mxu0 0.0
    %707 = vmatprep.mubr.f32.mxu0 0.0
    %708 = vmatmul.mubr.f32.gmra.mrb[0].mxu0 %v638
    %v709 = vpop.f32.mrb[0].mxu0
    %v710 = vadd.f32 0.0, %v709
    %v711 = vpop.f32.mrb[0].mxu0
    %712 = vmatprep.mubr.f32.mxu0 0.0
    %713 = vmatmul.mubr.f32.gmra.mrb[0].mxu0 %v641
    %v714 = vpop.f32.mrb[0].mxu0
    %v715 = vadd.f32 0.0, %v714
    %v716 = vpop.f32.mrb[0].mxu0
    %717 = vdwg.mxu0
    %v718 = vld [vmem:[%s8] sm:$0xff]
    %s719 = scalar_lea.vmem %s6, 64
    %v720 = vld [vmem:[%s719] sm:$0xff]
    %v721 = vld [vmem:[%s719 + $0x8] sm:$0xff]
    %v722 = vld [vmem:[%s719 + $0x10] sm:$0xff]
    %v723 = vld [vmem:[%s719 + $0x18] sm:$0xff]
    %v724 = vld [vmem:[%s719 + $0x20] sm:$0xff]
    %v725 = vld [vmem:[%s719 + $0x28] sm:$0xff]
    %v726 = vld [vmem:[%s719 + $0x30] sm:$0xff]
    %v727 = vld [vmem:[%s719 + $0x38] sm:$0xff]
    %s728 = scalar_lea.vmem %s7, 1
    %v729 = vld [vmem:[%s728] sm:$0x1]
    %v731 = vlaneseq
    %v732 = vshrl.u32 %v731, 7
    %v733 = vsub.s32 0, %v732
    %v734 = vrot.slane %v729, %v733
    %736 = vmatprep.subr.mxu0 0.0
    %737 = vmatpush1.msra.mxu0 %v720
    %738 = vmatprep.subr.mxu0 0.0
    %739 = vmatpush1.msra.mxu0 %v721
    %740 = vmatprep.subr.mxu0 0.0
    %741 = vmatpush1.msra.mxu0 %v722
    %742 = vmatprep.subr.mxu0 0.0
    %743 = vmatpush1.msra.mxu0 %v723
    %744 = vmatprep.subr.mxu0 0.0
    %745 = vmatpush1.msra.mxu0 %v724
    %746 = vmatprep.subr.mxu0 0.0
    %747 = vmatpush1.msra.mxu0 %v725
    %748 = vmatprep.subr.mxu0 0.0
    %749 = vmatpush1.msra.mxu0 %v726
    %750 = vmatprep.subr.mxu0 0.0
    %751 = vmatpush1.msra.mxu0 %v727
    %752 = vmatprep.subr.mxu0 0.0
    %753 = vmatpush1.msra.mxu0 0.0
    %754 = vmatprep.subr.mxu0 0.0
    %755 = vmatpush1.msra.mxu0 0.0
    %756 = vmatprep.subr.mxu0 0.0
    %757 = vmatpush1.msra.mxu0 0.0
    %758 = vmatprep.subr.mxu0 0.0
    %759 = vmatpush1.msra.mxu0 0.0
    %760 = vmatprep.subr.mxu0 0.0
    %761 = vmatpush1.msra.mxu0 0.0
    %762 = vmatprep.subr.mxu0 0.0
    %763 = vmatpush1.msra.mxu0 0.0
    %764 = vmatprep.subr.mxu0 0.0
    %765 = vmatpush1.msra.mxu0 0.0
    %766 = vmatprep.subr.mxu0 0.0
    %767 = vmatpush1.msra.mxu0 0.0
    %768 = vmatprep.subr.mxu0 0.0
    %769 = vmatpush1.msra.mxu0 0.0
    %770 = vmatprep.subr.mxu0 0.0
    %771 = vmatpush1.msra.mxu0 0.0
    %772 = vmatprep.subr.mxu0 0.0
    %773 = vmatpush1.msra.mxu0 0.0
    %774 = vmatprep.subr.mxu0 0.0
    %775 = vmatpush1.msra.mxu0 0.0
    %776 = vmatprep.subr.mxu0 0.0
    %777 = vmatpush1.msra.mxu0 0.0
    %778 = vmatprep.subr.mxu0 0.0
    %779 = vmatpush1.msra.mxu0 0.0
    %780 = vmatprep.subr.mxu0 0.0
    %781 = vmatpush1.msra.mxu0 0.0
    %782 = vmatprep.subr.mxu0 0.0
    %783 = vmatpush1.msra.mxu0 0.0
    %784 = vmatprep.subr.mxu0 0.0
    %785 = vmatpush1.msra.mxu0 0.0
    %786 = vmatprep.subr.mxu0 0.0
    %787 = vmatpush1.msra.mxu0 0.0
    %788 = vmatprep.subr.mxu0 0.0
    %789 = vmatpush1.msra.mxu0 0.0
    %790 = vmatprep.subr.mxu0 0.0
    %791 = vmatpush1.msra.mxu0 0.0
    %792 = vmatprep.subr.mxu0 0.0
    %793 = vmatpush1.msra.mxu0 0.0
    %794 = vmatprep.subr.mxu0 0.0
    %795 = vmatpush1.msra.mxu0 0.0
    %796 = vmatprep.subr.mxu0 0.0
    %797 = vmatpush1.msra.mxu0 0.0
    %798 = vmatprep.subr.mxu0 0.0
    %799 = vmatpush1.msra.mxu0 0.0
    %800 = vmatprep.mubr.f32.mxu0 0.0
    %801 = vmatmul.mubr.f32.gmra.mrb[0].mxu0 %v220
    %v802 = vpop.f32.mrb[0].mxu0
    %v803 = vadd.f32 %v734, %v802
    %v804 = vpop.f32.mrb[0].mxu0
    %805 = vmatprep.mubr.f32.mxu0 0.0
    %806 = vmatmul.mubr.f32.gmra.mrb[0].mxu0 %v223
    %v807 = vpop.f32.mrb[0].mxu0
    %v808 = vadd.f32 %v734, %v807
    %v809 = vpop.f32.mrb[0].mxu0
    %810 = vdwg.mxu0
    %s811 = scalar_lea.vmem %s6, 576
    %v812 = vld [vmem:[%s811] sm:$0xff]
    %v813 = vld [vmem:[%s811 + $0x8] sm:$0xff]
    %v814 = vld [vmem:[%s811 + $0x10] sm:$0xff]
    %v815 = vld [vmem:[%s811 + $0x18] sm:$0xff]
    %v816 = vld [vmem:[%s811 + $0x20] sm:$0xff]
    %v817 = vld [vmem:[%s811 + $0x28] sm:$0xff]
    %v818 = vld [vmem:[%s811 + $0x30] sm:$0xff]
    %v819 = vld [vmem:[%s811 + $0x38] sm:$0xff]
    %s820 = scalar_lea.vmem %s7, 9
    %v821 = vld [vmem:[%s820] sm:$0x1]
    %v823 = vlaneseq
    %v824 = vshrl.u32 %v823, 7
    %v825 = vsub.s32 0, %v824
    %v826 = vrot.slane %v821, %v825
    %828 = vmatprep.subr.mxu0 0.0
    %829 = vmatpush1.msra.mxu0 %v812
    %830 = vmatprep.subr.mxu0 0.0
    %831 = vmatpush1.msra.mxu0 %v813
    %832 = vmatprep.subr.mxu0 0.0
    %833 = vmatpush1.msra.mxu0 %v814
    %834 = vmatprep.subr.mxu0 0.0
    %835 = vmatpush1.msra.mxu0 %v815
    %836 = vmatprep.subr.mxu0 0.0
    %837 = vmatpush1.msra.mxu0 %v816
    %838 = vmatprep.subr.mxu0 0.0
    %839 = vmatpush1.msra.mxu0 %v817
    %840 = vmatprep.subr.mxu0 0.0
    %841 = vmatpush1.msra.mxu0 %v818
    %842 = vmatprep.subr.mxu0 0.0
    %843 = vmatpush1.msra.mxu0 %v819
    %844 = vmatprep.subr.mxu0 0.0
    %845 = vmatpush1.msra.mxu0 0.0
    %846 = vmatprep.subr.mxu0 0.0
    %847 = vmatpush1.msra.mxu0 0.0
    %848 = vmatprep.subr.mxu0 0.0
    %849 = vmatpush1.msra.mxu0 0.0
    %850 = vmatprep.subr.mxu0 0.0
    %851 = vmatpush1.msra.mxu0 0.0
    %852 = vmatprep.subr.mxu0 0.0
    %853 = vmatpush1.msra.mxu0 0.0
    %854 = vmatprep.subr.mxu0 0.0
    %855 = vmatpush1.msra.mxu0 0.0
    %856 = vmatprep.subr.mxu0 0.0
    %857 = vmatpush1.msra.mxu0 0.0
    %858 = vmatprep.subr.mxu0 0.0
    %859 = vmatpush1.msra.mxu0 0.0
    %860 = vmatprep.subr.mxu0 0.0
    %861 = vmatpush1.msra.mxu0 0.0
    %862 = vmatprep.subr.mxu0 0.0
    %863 = vmatpush1.msra.mxu0 0.0
    %864 = vmatprep.subr.mxu0 0.0
    %865 = vmatpush1.msra.mxu0 0.0
    %866 = vmatprep.subr.mxu0 0.0
    %867 = vmatpush1.msra.mxu0 0.0
    %868 = vmatprep.subr.mxu0 0.0
    %869 = vmatpush1.msra.mxu0 0.0
    %870 = vmatprep.subr.mxu0 0.0
    %871 = vmatpush1.msra.mxu0 0.0
    %872 = vmatprep.subr.mxu0 0.0
    %873 = vmatpush1.msra.mxu0 0.0
    %874 = vmatprep.subr.mxu0 0.0
    %875 = vmatpush1.msra.mxu0 0.0
    %876 = vmatprep.subr.mxu0 0.0
    %877 = vmatpush1.msra.mxu0 0.0
    %878 = vmatprep.subr.mxu0 0.0
    %879 = vmatpush1.msra.mxu0 0.0
    %880 = vmatprep.subr.mxu0 0.0
    %881 = vmatpush1.msra.mxu0 0.0
    %882 = vmatprep.subr.mxu0 0.0
    %883 = vmatpush1.msra.mxu0 0.0
    %884 = vmatprep.subr.mxu0 0.0
    %885 = vmatpush1.msra.mxu0 0.0
    %886 = vmatprep.subr.mxu0 0.0
    %887 = vmatpush1.msra.mxu0 0.0
    %888 = vmatprep.subr.mxu0 0.0
    %889 = vmatpush1.msra.mxu0 0.0
    %890 = vmatprep.subr.mxu0 0.0
    %891 = vmatpush1.msra.mxu0 0.0
    %892 = vmatprep.mubr.f32.mxu0 0.0
    %893 = vmatmul.mubr.f32.gmra.mrb[0].mxu0 %v318
    %v894 = vpop.f32.mrb[0].mxu0
    %v895 = vadd.f32 %v826, %v894
    %v896 = vpop.f32.mrb[0].mxu0
    %897 = vmatprep.mubr.f32.mxu0 0.0
    %898 = vmatmul.mubr.f32.gmra.mrb[0].mxu0 %v321
    %v899 = vpop.f32.mrb[0].mxu0
    %v900 = vadd.f32 %v826, %v899
    %v901 = vpop.f32.mrb[0].mxu0
    %902 = vmatprep.mubr.f32.mxu0 0.0
    %903 = vmatmul.mubr.f32.gmra.mrb[0].mxu0 %v324
    %v904 = vpop.f32.mrb[0].mxu0
    %v905 = vadd.f32 %v826, %v904
    %v906 = vpop.f32.mrb[0].mxu0
    %907 = vmatprep.mubr.f32.mxu0 0.0
    %908 = vmatmul.mubr.f32.gmra.mrb[0].mxu0 %v327
    %v909 = vpop.f32.mrb[0].mxu0
    %v910 = vadd.f32 %v826, %v909
    %v911 = vpop.f32.mrb[0].mxu0
    %912 = vdwg.mxu0
    %s913 = scalar_lea.vmem %s6, 1088
    %v914 = vld [vmem:[%s913] sm:$0xff]
    %v915 = vld [vmem:[%s913 + $0x8] sm:$0xff]
    %v916 = vld [vmem:[%s913 + $0x10] sm:$0xff]
    %v917 = vld [vmem:[%s913 + $0x18] sm:$0xff]
    %v918 = vld [vmem:[%s913 + $0x20] sm:$0xff]
    %v919 = vld [vmem:[%s913 + $0x28] sm:$0xff]
    %v920 = vld [vmem:[%s913 + $0x30] sm:$0xff]
    %v921 = vld [vmem:[%s913 + $0x38] sm:$0xff]
    %s922 = scalar_lea.vmem %s7, 17
    %v923 = vld [vmem:[%s922] sm:$0x1]
    %v925 = vlaneseq
    %v926 = vshrl.u32 %v925, 7
    %v927 = vsub.s32 0, %v926
    %v928 = vrot.slane %v923, %v927
    %930 = vmatprep.subr.mxu0 0.0
    %931 = vmatpush1.msra.mxu0 %v914
    %932 = vmatprep.subr.mxu0 0.0
    %933 = vmatpush1.msra.mxu0 %v915
    %934 = vmatprep.subr.mxu0 0.0
    %935 = vmatpush1.msra.mxu0 %v916
    %936 = vmatprep.subr.mxu0 0.0
    %937 = vmatpush1.msra.mxu0 %v917
    %938 = vmatprep.subr.mxu0 0.0
    %939 = vmatpush1.msra.mxu0 %v918
    %940 = vmatprep.subr.mxu0 0.0
    %941 = vmatpush1.msra.mxu0 %v919
    %942 = vmatprep.subr.mxu0 0.0
    %943 = vmatpush1.msra.mxu0 %v920
    %944 = vmatprep.subr.mxu0 0.0
    %945 = vmatpush1.msra.mxu0 %v921
    %946 = vmatprep.subr.mxu0 0.0
    %947 = vmatpush1.msra.mxu0 0.0
    %948 = vmatprep.subr.mxu0 0.0
    %949 = vmatpush1.msra.mxu0 0.0
    %950 = vmatprep.subr.mxu0 0.0
    %951 = vmatpush1.msra.mxu0 0.0
    %952 = vmatprep.subr.mxu0 0.0
    %953 = vmatpush1.msra.mxu0 0.0
    %954 = vmatprep.subr.mxu0 0.0
    %955 = vmatpush1.msra.mxu0 0.0
    %956 = vmatprep.subr.mxu0 0.0
    %957 = vmatpush1.msra.mxu0 0.0
    %958 = vmatprep.subr.mxu0 0.0
    %959 = vmatpush1.msra.mxu0 0.0
    %960 = vmatprep.subr.mxu0 0.0
    %961 = vmatpush1.msra.mxu0 0.0
    %962 = vmatprep.subr.mxu0 0.0
    %963 = vmatpush1.msra.mxu0 0.0
    %964 = vmatprep.subr.mxu0 0.0
    %965 = vmatpush1.msra.mxu0 0.0
    %966 = vmatprep.subr.mxu0 0.0
    %967 = vmatpush1.msra.mxu0 0.0
    %968 = vmatprep.subr.mxu0 0.0
    %969 = vmatpush1.msra.mxu0 0.0
    %970 = vmatprep.subr.mxu0 0.0
    %971 = vmatpush1.msra.mxu0 0.0
    %972 = vmatprep.subr.mxu0 0.0
    %973 = vmatpush1.msra.mxu0 0.0
    %974 = vmatprep.subr.mxu0 0.0
    %975 = vmatpush1.msra.mxu0 0.0
    %976 = vmatprep.subr.mxu0 0.0
    %977 = vmatpush1.msra.mxu0 0.0
    %978 = vmatprep.subr.mxu0 0.0
    %979 = vmatpush1.msra.mxu0 0.0
    %980 = vmatprep.subr.mxu0 0.0
    %981 = vmatpush1.msra.mxu0 0.0
    %982 = vmatprep.subr.mxu0 0.0
    %983 = vmatpush1.msra.mxu0 0.0
    %984 = vmatprep.subr.mxu0 0.0
    %985 = vmatpush1.msra.mxu0 0.0
    %986 = vmatprep.subr.mxu0 0.0
    %987 = vmatpush1.msra.mxu0 0.0
    %988 = vmatprep.subr.mxu0 0.0
    %989 = vmatpush1.msra.mxu0 0.0
    %990 = vmatprep.subr.mxu0 0.0
    %991 = vmatpush1.msra.mxu0 0.0
    %992 = vmatprep.subr.mxu0 0.0
    %993 = vmatpush1.msra.mxu0 0.0
    %994 = vmatprep.mubr.f32.mxu0 0.0
    %995 = vmatmul.mubr.f32.gmra.mrb[0].mxu0 %v318
    %v996 = vpop.f32.mrb[0].mxu0
    %v997 = vadd.f32 %v928, %v996
    %v998 = vpop.f32.mrb[0].mxu0
    %999 = vmatprep.mubr.f32.mxu0 0.0
    %1000 = vmatmul.mubr.f32.gmra.mrb[0].mxu0 %v321
    %v1001 = vpop.f32.mrb[0].mxu0
    %v1002 = vadd.f32 %v928, %v1001
    %v1003 = vpop.f32.mrb[0].mxu0
    %1004 = vmatprep.mubr.f32.mxu0 0.0
    %1005 = vmatmul.mubr.f32.gmra.mrb[0].mxu0 %v324
    %v1006 = vpop.f32.mrb[0].mxu0
    %v1007 = vadd.f32 %v928, %v1006
    %v1008 = vpop.f32.mrb[0].mxu0
    %1009 = vmatprep.mubr.f32.mxu0 0.0
    %1010 = vmatmul.mubr.f32.gmra.mrb[0].mxu0 %v327
    %v1011 = vpop.f32.mrb[0].mxu0
    %v1012 = vadd.f32 %v928, %v1011
    %v1013 = vpop.f32.mrb[0].mxu0
    %1014 = vdwg.mxu0
    %v1016 = vsel %vm516, %v803, 0
    %v1019 = vsel %vm516, %v808, 0
    %v1022 = vsel %vm516, %v895, 0
    %v1025 = vsel %vm516, %v900, 0
    %v1028 = vsel %vm516, %v905, 0
    %v1031 = vsel %vm516, %v910, 0
    %1033 = vmatprep.subr.mxu0 0.0
    %1034 = vmatpush1.xpose.msra.mxu0 %v1022
    %1035 = vmatprep.subr.mxu0 0.0
    %1036 = vmatpush1.xpose.msra.mxu0 %v1025
    %1037 = vmatprep.subr.mxu0 0.0
    %1038 = vmatpush1.xpose.msra.mxu0 %v1028
    %1039 = vmatprep.subr.mxu0 0.0
    %1040 = vmatpush1.xpose.msra.mxu0 %v1031
    %1041 = vmatprep.subr.mxu0 0.0
    %1042 = vmatpush1.xpose.msra.mxu0 0.0
    %1043 = vmatprep.subr.mxu0 0.0
    %1044 = vmatpush1.xpose.msra.mxu0 0.0
    %1045 = vmatprep.subr.mxu0 0.0
    %1046 = vmatpush1.xpose.msra.mxu0 0.0
    %1047 = vmatprep.subr.mxu0 0.0
    %1048 = vmatpush1.xpose.msra.mxu0 0.0
    %1049 = vmatprep.subr.mxu0 0.0
    %1050 = vmatpush1.xpose.msra.mxu0 0.0
    %1051 = vmatprep.subr.mxu0 0.0
    %1052 = vmatpush1.xpose.msra.mxu0 0.0
    %1053 = vmatprep.subr.mxu0 0.0
    %1054 = vmatpush1.xpose.msra.mxu0 0.0
    %1055 = vmatprep.subr.mxu0 0.0
    %1056 = vmatpush1.xpose.msra.mxu0 0.0
    %1057 = vmatprep.subr.mxu0 0.0
    %1058 = vmatpush1.xpose.msra.mxu0 0.0
    %1059 = vmatprep.subr.mxu0 0.0
    %1060 = vmatpush1.xpose.msra.mxu0 0.0
    %1061 = vmatprep.subr.mxu0 0.0
    %1062 = vmatpush1.xpose.msra.mxu0 0.0
    %1063 = vmatprep.subr.mxu0 0.0
    %1064 = vmatpush1.xpose.msra.mxu0 0.0
    %1065 = vmatprep.subr.mxu0 0.0
    %1066 = vmatpush1.xpose.msra.mxu0 0.0
    %1067 = vmatprep.subr.mxu0 0.0
    %1068 = vmatpush1.xpose.msra.mxu0 0.0
    %1069 = vmatprep.subr.mxu0 0.0
    %1070 = vmatpush1.xpose.msra.mxu0 0.0
    %1071 = vmatprep.subr.mxu0 0.0
    %1072 = vmatpush1.xpose.msra.mxu0 0.0
    %1073 = vmatprep.subr.mxu0 0.0
    %1074 = vmatpush1.xpose.msra.mxu0 0.0
    %1075 = vmatprep.subr.mxu0 0.0
    %1076 = vmatpush1.xpose.msra.mxu0 0.0
    %1077 = vmatprep.subr.mxu0 0.0
    %1078 = vmatpush1.xpose.msra.mxu0 0.0
    %1079 = vmatprep.subr.mxu0 0.0
    %1080 = vmatpush1.xpose.msra.mxu0 0.0
    %1081 = vmatprep.subr.mxu0 0.0
    %1082 = vmatpush1.xpose.msra.mxu0 0.0
    %1083 = vmatprep.subr.mxu0 0.0
    %1084 = vmatpush1.xpose.msra.mxu0 0.0
    %1085 = vmatprep.subr.mxu0 0.0
    %1086 = vmatpush1.xpose.msra.mxu0 0.0
    %1087 = vmatprep.subr.mxu0 0.0
    %1088 = vmatpush1.xpose.msra.mxu0 0.0
    %1089 = vmatprep.subr.mxu0 0.0
    %1090 = vmatpush1.xpose.msra.mxu0 0.0
    %1091 = vmatprep.subr.mxu0 0.0
    %1092 = vmatpush1.xpose.msra.mxu0 0.0
    %1093 = vmatprep.subr.mxu0 0.0
    %1094 = vmatpush1.xpose.msra.mxu0 0.0
    %1095 = vmatprep.subr.mxu0 0.0
    %1096 = vmatpush1.xpose.msra.mxu0 0.0
    %1097 = vmatprep.mubr.f32.mxu0 0.0
    %1098 = vmatmul.mubr.f32.gmra.mrb[0].mxu0 %v1016
    %v1099 = vpop.f32.mrb[0].mxu0
    %v1100 = vadd.f32 0.0, %v1099
    %v1101 = vpop.f32.mrb[0].mxu0
    %1102 = vmatprep.mubr.f32.mxu0 0.0
    %1103 = vmatmul.mubr.f32.gmra.mrb[0].mxu0 %v1019
    %v1104 = vpop.f32.mrb[0].mxu0
    %v1105 = vadd.f32 0.0, %v1104
    %v1106 = vpop.f32.mrb[0].mxu0
    %1107 = vdwg.mxu0
    %v1108 = vmul.f32 %v1100, 0.35355338
    %v1109 = vmul.f32 %v1105, 0.35355338
    %v1110 = vadd.f32 %v1108, %v202
    %v1111 = vadd.f32 %v1109, %v203
    %v1112 = vsel %vm614, %v1110, -inf
    %1113 = vmax.xlane.f32.xlu0 %v1112
    %v1114 = vpop.xlane.xlu0 %1113
    %v1115 = vsel %vm614, %v1111, -inf
    %1116 = vmax.xlane.f32.xlu0 %v1115
    %v1117 = vpop.xlane.xlu0 %1116
    %v1118 = vsub.f32 %v1110, %v1114
    %v1119 = vsub.f32 %v1111, %v1117
    %v1120 = vmul.f32 %v1118, 1.442695
    %v1121 = vpow.pop %v1120
    %v1122 = vmul.f32 %v1119, 1.442695
    %v1123 = vpow.pop %v1122
    %v1124 = vsel %vm614, %v1121, 0.0
    %1125 = vadd.xlane.f32.xlu0 %v1124
    %v1126 = vpop.xlane.xlu0 %1125
    %v1127 = vsel %vm614, %v1123, 0.0
    %1128 = vadd.xlane.f32.xlu0 %v1127
    %v1129 = vpop.xlane.xlu0 %1128
    %v1130 = vrcp.pop %v1126
    %v1131 = vrcp.pop %v1129
    %v1132 = vmul.f32 %v1121, %v1130
    %v1133 = vmul.f32 %v1123, %v1131
    %v1135 = vsel %vm614, %v1132, 0
    %v1138 = vsel %vm614, %v1133, 0
    %1140 = vmatprep.subr.mxu0 0.0
    %1141 = vmatpush1.msra.mxu0 %v997
    %1142 = vmatprep.subr.mxu0 0.0
    %1143 = vmatpush1.msra.mxu0 %v1002
    %1144 = vmatprep.subr.mxu0 0.0
    %1145 = vmatpush1.msra.mxu0 %v1007
    %1146 = vmatprep.subr.mxu0 0.0
    %1147 = vmatpush1.msra.mxu0 %v1012
    %1148 = vmatprep.subr.mxu0 0.0
    %1149 = vmatpush1.msra.mxu0 0.0
    %1150 = vmatprep.subr.mxu0 0.0
    %1151 = vmatpush1.msra.mxu0 0.0
    %1152 = vmatprep.subr.mxu0 0.0
    %1153 = vmatpush1.msra.mxu0 0.0
    %1154 = vmatprep.subr.mxu0 0.0
    %1155 = vmatpush1.msra.mxu0 0.0
    %1156 = vmatprep.subr.mxu0 0.0
    %1157 = vmatpush1.msra.mxu0 0.0
    %1158 = vmatprep.subr.mxu0 0.0
    %1159 = vmatpush1.msra.mxu0 0.0
    %1160 = vmatprep.subr.mxu0 0.0
    %1161 = vmatpush1.msra.mxu0 0.0
    %1162 = vmatprep.subr.mxu0 0.0
    %1163 = vmatpush1.msra.mxu0 0.0
    %1164 = vmatprep.subr.mxu0 0.0
    %1165 = vmatpush1.msra.mxu0 0.0
    %1166 = vmatprep.subr.mxu0 0.0
    %1167 = vmatpush1.msra.mxu0 0.0
    %1168 = vmatprep.subr.mxu0 0.0
    %1169 = vmatpush1.msra.mxu0 0.0
    %1170 = vmatprep.subr.mxu0 0.0
    %1171 = vmatpush1.msra.mxu0 0.0
    %1172 = vmatprep.subr.mxu0 0.0
    %1173 = vmatpush1.msra.mxu0 0.0
    %1174 = vmatprep.subr.mxu0 0.0
    %1175 = vmatpush1.msra.mxu0 0.0
    %1176 = vmatprep.subr.mxu0 0.0
    %1177 = vmatpush1.msra.mxu0 0.0
    %1178 = vmatprep.subr.mxu0 0.0
    %1179 = vmatpush1.msra.mxu0 0.0
    %1180 = vmatprep.subr.mxu0 0.0
    %1181 = vmatpush1.msra.mxu0 0.0
    %1182 = vmatprep.subr.mxu0 0.0
    %1183 = vmatpush1.msra.mxu0 0.0
    %1184 = vmatprep.subr.mxu0 0.0
    %1185 = vmatpush1.msra.mxu0 0.0
    %1186 = vmatprep.subr.mxu0 0.0
    %1187 = vmatpush1.msra.mxu0 0.0
    %1188 = vmatprep.subr.mxu0 0.0
    %1189 = vmatpush1.msra.mxu0 0.0
    %1190 = vmatprep.subr.mxu0 0.0
    %1191 = vmatpush1.msra.mxu0 0.0
    %1192 = vmatprep.subr.mxu0 0.0
    %1193 = vmatpush1.msra.mxu0 0.0
    %1194 = vmatprep.subr.mxu0 0.0
    %1195 = vmatpush1.msra.mxu0 0.0
    %1196 = vmatprep.subr.mxu0 0.0
    %1197 = vmatpush1.msra.mxu0 0.0
    %1198 = vmatprep.subr.mxu0 0.0
    %1199 = vmatpush1.msra.mxu0 0.0
    %1200 = vmatprep.subr.mxu0 0.0
    %1201 = vmatpush1.msra.mxu0 0.0
    %1202 = vmatprep.subr.mxu0 0.0
    %1203 = vmatpush1.msra.mxu0 0.0
    %1204 = vmatprep.mubr.f32.mxu0 0.0
    %1205 = vmatmul.mubr.f32.gmra.mrb[0].mxu0 %v1135
    %v1206 = vpop.f32.mrb[0].mxu0
    %v1207 = vadd.f32 0.0, %v1206
    %v1208 = vpop.f32.mrb[0].mxu0
    %1209 = vmatprep.mubr.f32.mxu0 0.0
    %1210 = vmatmul.mubr.f32.gmra.mrb[0].mxu0 %v1138
    %v1211 = vpop.f32.mrb[0].mxu0
    %v1212 = vadd.f32 0.0, %v1211
    %v1213 = vpop.f32.mrb[0].mxu0
    %1214 = vdwg.mxu0
    %s1215 = scalar_lea.vmem %s8, 8
    %v1216 = vld [vmem:[%s1215] sm:$0xff]
    %v1218 = vsel %vm516, %v1207, 0
    %v1221 = vsel %vm516, %v1212, 0
    %1223 = vmatprep.subr.mxu0 0.0
    %1224 = vmatpush1.msra.mxu0 %v1216
    %1225 = vmatprep.subr.mxu0 0.0
    %1226 = vmatpush1.msra.mxu0 0.0
    %1227 = vmatprep.subr.mxu0 0.0
    %1228 = vmatpush1.msra.mxu0 0.0
    %1229 = vmatprep.subr.mxu0 0.0
    %1230 = vmatpush1.msra.mxu0 0.0
    %1231 = vmatprep.subr.mxu0 0.0
    %1232 = vmatpush1.msra.mxu0 0.0
    %1233 = vmatprep.subr.mxu0 0.0
    %1234 = vmatpush1.msra.mxu0 0.0
    %1235 = vmatprep.subr.mxu0 0.0
    %1236 = vmatpush1.msra.mxu0 0.0
    %1237 = vmatprep.subr.mxu0 0.0
    %1238 = vmatpush1.msra.mxu0 0.0
    %1239 = vmatprep.subr.mxu0 0.0
    %1240 = vmatpush1.msra.mxu0 0.0
    %1241 = vmatprep.subr.mxu0 0.0
    %1242 = vmatpush1.msra.mxu0 0.0
    %1243 = vmatprep.subr.mxu0 0.0
    %1244 = vmatpush1.msra.mxu0 0.0
    %1245 = vmatprep.subr.mxu0 0.0
    %1246 = vmatpush1.msra.mxu0 0.0
    %1247 = vmatprep.subr.mxu0 0.0
    %1248 = vmatpush1.msra.mxu0 0.0
    %1249 = vmatprep.subr.mxu0 0.0
    %1250 = vmatpush1.msra.mxu0 0.0
    %1251 = vmatprep.subr.mxu0 0.0
    %1252 = vmatpush1.msra.mxu0 0.0
    %1253 = vmatprep.subr.mxu0 0.0
    %1254 = vmatpush1.msra.mxu0 0.0
    %1255 = vmatprep.subr.mxu0 0.0
    %1256 = vmatpush1.msra.mxu0 0.0
    %1257 = vmatprep.subr.mxu0 0.0
    %1258 = vmatpush1.msra.mxu0 0.0
    %1259 = vmatprep.subr.mxu0 0.0
    %1260 = vmatpush1.msra.mxu0 0.0
    %1261 = vmatprep.subr.mxu0 0.0
    %1262 = vmatpush1.msra.mxu0 0.0
    %1263 = vmatprep.subr.mxu0 0.0
    %1264 = vmatpush1.msra.mxu0 0.0
    %1265 = vmatprep.subr.mxu0 0.0
    %1266 = vmatpush1.msra.mxu0 0.0
    %1267 = vmatprep.subr.mxu0 0.0
    %1268 = vmatpush1.msra.mxu0 0.0
    %1269 = vmatprep.subr.mxu0 0.0
    %1270 = vmatpush1.msra.mxu0 0.0
    %1271 = vmatprep.subr.mxu0 0.0
    %1272 = vmatpush1.msra.mxu0 0.0
    %1273 = vmatprep.subr.mxu0 0.0
    %1274 = vmatpush1.msra.mxu0 0.0
    %1275 = vmatprep.subr.mxu0 0.0
    %1276 = vmatpush1.msra.mxu0 0.0
    %1277 = vmatprep.subr.mxu0 0.0
    %1278 = vmatpush1.msra.mxu0 0.0
    %1279 = vmatprep.subr.mxu0 0.0
    %1280 = vmatpush1.msra.mxu0 0.0
    %1281 = vmatprep.subr.mxu0 0.0
    %1282 = vmatpush1.msra.mxu0 0.0
    %1283 = vmatprep.subr.mxu0 0.0
    %1284 = vmatpush1.msra.mxu0 0.0
    %1285 = vmatprep.subr.mxu0 0.0
    %1286 = vmatpush1.msra.mxu0 0.0
    %1287 = vmatprep.mubr.f32.mxu0 0.0
    %1288 = vmatmul.mubr.f32.gmra.mrb[0].mxu0 %v1218
    %v1289 = vpop.f32.mrb[0].mxu0
    %v1290 = vadd.f32 0.0, %v1289
    %v1291 = vpop.f32.mrb[0].mxu0
    %1292 = vmatprep.mubr.f32.mxu0 0.0
    %1293 = vmatmul.mubr.f32.gmra.mrb[0].mxu0 %v1221
    %v1294 = vpop.f32.mrb[0].mxu0
    %v1295 = vadd.f32 0.0, %v1294
    %v1296 = vpop.f32.mrb[0].mxu0
    %1297 = vdwg.mxu0
    %v1299 = vsel %vm516, %v710, 0
    %v1302 = vsel %vm516, %v715, 0
    %1304 = vmatprep.subr.mxu0 0.0
    %1305 = vmatpush1.msra.mxu0 %v718
    %1306 = vmatprep.subr.mxu0 0.0
    %1307 = vmatpush1.msra.mxu0 0.0
    %1308 = vmatprep.subr.mxu0 0.0
    %1309 = vmatpush1.msra.mxu0 0.0
    %1310 = vmatprep.subr.mxu0 0.0
    %1311 = vmatpush1.msra.mxu0 0.0
    %1312 = vmatprep.subr.mxu0 0.0
    %1313 = vmatpush1.msra.mxu0 0.0
    %1314 = vmatprep.subr.mxu0 0.0
    %1315 = vmatpush1.msra.mxu0 0.0
    %1316 = vmatprep.subr.mxu0 0.0
    %1317 = vmatpush1.msra.mxu0 0.0
    %1318 = vmatprep.subr.mxu0 0.0
    %1319 = vmatpush1.msra.mxu0 0.0
    %1320 = vmatprep.subr.mxu0 0.0
    %1321 = vmatpush1.msra.mxu0 0.0
    %1322 = vmatprep.subr.mxu0 0.0
    %1323 = vmatpush1.msra.mxu0 0.0
    %1324 = vmatprep.subr.mxu0 0.0
    %1325 = vmatpush1.msra.mxu0 0.0
    %1326 = vmatprep.subr.mxu0 0.0
    %1327 = vmatpush1.msra.mxu0 0.0
    %1328 = vmatprep.subr.mxu0 0.0
    %1329 = vmatpush1.msra.mxu0 0.0
    %1330 = vmatprep.subr.mxu0 0.0
    %1331 = vmatpush1.msra.mxu0 0.0
    %1332 = vmatprep.subr.mxu0 0.0
    %1333 = vmatpush1.msra.mxu0 0.0
    %1334 = vmatprep.subr.mxu0 0.0
    %1335 = vmatpush1.msra.mxu0 0.0
    %1336 = vmatprep.subr.mxu0 0.0
    %1337 = vmatpush1.msra.mxu0 0.0
    %1338 = vmatprep.subr.mxu0 0.0
    %1339 = vmatpush1.msra.mxu0 0.0
    %1340 = vmatprep.subr.mxu0 0.0
    %1341 = vmatpush1.msra.mxu0 0.0
    %1342 = vmatprep.subr.mxu0 0.0
    %1343 = vmatpush1.msra.mxu0 0.0
    %1344 = vmatprep.subr.mxu0 0.0
    %1345 = vmatpush1.msra.mxu0 0.0
    %1346 = vmatprep.subr.mxu0 0.0
    %1347 = vmatpush1.msra.mxu0 0.0
    %1348 = vmatprep.subr.mxu0 0.0
    %1349 = vmatpush1.msra.mxu0 0.0
    %1350 = vmatprep.subr.mxu0 0.0
    %1351 = vmatpush1.msra.mxu0 0.0
    %1352 = vmatprep.subr.mxu0 0.0
    %1353 = vmatpush1.msra.mxu0 0.0
    %1354 = vmatprep.subr.mxu0 0.0
    %1355 = vmatpush1.msra.mxu0 0.0
    %1356 = vmatprep.subr.mxu0 0.0
    %1357 = vmatpush1.msra.mxu0 0.0
    %1358 = vmatprep.subr.mxu0 0.0
    %1359 = vmatpush1.msra.mxu0 0.0
    %1360 = vmatprep.subr.mxu0 0.0
    %1361 = vmatpush1.msra.mxu0 0.0
    %1362 = vmatprep.subr.mxu0 0.0
    %1363 = vmatpush1.msra.mxu0 0.0
    %1364 = vmatprep.subr.mxu0 0.0
    %1365 = vmatpush1.msra.mxu0 0.0
    %1366 = vmatprep.subr.mxu0 0.0
    %1367 = vmatpush1.msra.mxu0 0.0
    %1368 = vmatprep.mubr.f32.mxu0 0.0
    %1369 = vmatmul.mubr.f32.gmra.mrb[0].mxu0 %v1299
    %v1370 = vpop.f32.mrb[0].mxu0
    %v1371 = vadd.f32 %v1290, %v1370
    %v1372 = vpop.f32.mrb[0].mxu0
    %1373 = vmatprep.mubr.f32.mxu0 0.0
    %1374 = vmatmul.mubr.f32.gmra.mrb[0].mxu0 %v1302
    %v1375 = vpop.f32.mrb[0].mxu0
    %v1376 = vadd.f32 %v1295, %v1375
    %v1377 = vpop.f32.mrb[0].mxu0
    %1378 = vdwg.mxu0
    %s1379 = scalar_lea.vmem %s6, 128
    %v1380 = vld [vmem:[%s1379] sm:$0xff]
    %v1381 = vld [vmem:[%s1379 + $0x8] sm:$0xff]
    %v1382 = vld [vmem:[%s1379 + $0x10] sm:$0xff]
    %v1383 = vld [vmem:[%s1379 + $0x18] sm:$0xff]
    %v1384 = vld [vmem:[%s1379 + $0x20] sm:$0xff]
    %v1385 = vld [vmem:[%s1379 + $0x28] sm:$0xff]
    %v1386 = vld [vmem:[%s1379 + $0x30] sm:$0xff]
    %v1387 = vld [vmem:[%s1379 + $0x38] sm:$0xff]
    %s1388 = scalar_lea.vmem %s7, 2
    %v1389 = vld [vmem:[%s1388] sm:$0x1]
    %v1391 = vlaneseq
    %v1392 = vshrl.u32 %v1391, 7
    %v1393 = vsub.s32 0, %v1392
    %v1394 = vrot.slane %v1389, %v1393
    %1396 = vmatprep.subr.mxu0 0.0
    %1397 = vmatpush1.msra.mxu0 %v1380
    %1398 = vmatprep.subr.mxu0 0.0
    %1399 = vmatpush1.msra.mxu0 %v1381
    %1400 = vmatprep.subr.mxu0 0.0
    %1401 = vmatpush1.msra.mxu0 %v1382
    %1402 = vmatprep.subr.mxu0 0.0
    %1403 = vmatpush1.msra.mxu0 %v1383
    %1404 = vmatprep.subr.mxu0 0.0
    %1405 = vmatpush1.msra.mxu0 %v1384
    %1406 = vmatprep.subr.mxu0 0.0
    %1407 = vmatpush1.msra.mxu0 %v1385
    %1408 = vmatprep.subr.mxu0 0.0
    %1409 = vmatpush1.msra.mxu0 %v1386
    %1410 = vmatprep.subr.mxu0 0.0
    %1411 = vmatpush1.msra.mxu0 %v1387
    %1412 = vmatprep.subr.mxu0 0.0
    %1413 = vmatpush1.msra.mxu0 0.0
    %1414 = vmatprep.subr.mxu0 0.0
    %1415 = vmatpush1.msra.mxu0 0.0
    %1416 = vmatprep.subr.mxu0 0.0
    %1417 = vmatpush1.msra.mxu0 0.0
    %1418 = vmatprep.subr.mxu0 0.0
    %1419 = vmatpush1.msra.mxu0 0.0
    %1420 = vmatprep.subr.mxu0 0.0
    %1421 = vmatpush1.msra.mxu0 0.0
    %1422 = vmatprep.subr.mxu0 0.0
    %1423 = vmatpush1.msra.mxu0 0.0
    %1424 = vmatprep.subr.mxu0 0.0
    %1425 = vmatpush1.msra.mxu0 0.0
    %1426 = vmatprep.subr.mxu0 0.0
    %1427 = vmatpush1.msra.mxu0 0.0
    %1428 = vmatprep.subr.mxu0 0.0
    %1429 = vmatpush1.msra.mxu0 0.0
    %1430 = vmatprep.subr.mxu0 0.0
    %1431 = vmatpush1.msra.mxu0 0.0
    %1432 = vmatprep.subr.mxu0 0.0
    %1433 = vmatpush1.msra.mxu0 0.0
    %1434 = vmatprep.subr.mxu0 0.0
    %1435 = vmatpush1.msra.mxu0 0.0
    %1436 = vmatprep.subr.mxu0 0.0
    %1437 = vmatpush1.msra.mxu0 0.0
    %1438 = vmatprep.subr.mxu0 0.0
    %1439 = vmatpush1.msra.mxu0 0.0
    %1440 = vmatprep.subr.mxu0 0.0
    %1441 = vmatpush1.msra.mxu0 0.0
    %1442 = vmatprep.subr.mxu0 0.0
    %1443 = vmatpush1.msra.mxu0 0.0
    %1444 = vmatprep.subr.mxu0 0.0
    %1445 = vmatpush1.msra.mxu0 0.0
    %1446 = vmatprep.subr.mxu0 0.0
    %1447 = vmatpush1.msra.mxu0 0.0
    %1448 = vmatprep.subr.mxu0 0.0
    %1449 = vmatpush1.msra.mxu0 0.0
    %1450 = vmatprep.subr.mxu0 0.0
    %1451 = vmatpush1.msra.mxu0 0.0
    %1452 = vmatprep.subr.mxu0 0.0
    %1453 = vmatpush1.msra.mxu0 0.0
    %1454 = vmatprep.subr.mxu0 0.0
    %1455 = vmatpush1.msra.mxu0 0.0
    %1456 = vmatprep.subr.mxu0 0.0
    %1457 = vmatpush1.msra.mxu0 0.0
    %1458 = vmatprep.subr.mxu0 0.0
    %1459 = vmatpush1.msra.mxu0 0.0
    %1460 = vmatprep.mubr.f32.mxu0 0.0
    %1461 = vmatmul.mubr.f32.gmra.mrb[0].mxu0 %v220
    %v1462 = vpop.f32.mrb[0].mxu0
    %v1463 = vadd.f32 %v1394, %v1462
    %v1464 = vpop.f32.mrb[0].mxu0
    %1465 = vmatprep.mubr.f32.mxu0 0.0
    %1466 = vmatmul.mubr.f32.gmra.mrb[0].mxu0 %v223
    %v1467 = vpop.f32.mrb[0].mxu0
    %v1468 = vadd.f32 %v1394, %v1467
    %v1469 = vpop.f32.mrb[0].mxu0
    %1470 = vdwg.mxu0
    %s1471 = scalar_lea.vmem %s6, 640
    %v1472 = vld [vmem:[%s1471] sm:$0xff]
    %v1473 = vld [vmem:[%s1471 + $0x8] sm:$0xff]
    %v1474 = vld [vmem:[%s1471 + $0x10] sm:$0xff]
    %v1475 = vld [vmem:[%s1471 + $0x18] sm:$0xff]
    %v1476 = vld [vmem:[%s1471 + $0x20] sm:$0xff]
    %v1477 = vld [vmem:[%s1471 + $0x28] sm:$0xff]
    %v1478 = vld [vmem:[%s1471 + $0x30] sm:$0xff]
    %v1479 = vld [vmem:[%s1471 + $0x38] sm:$0xff]
    %s1480 = scalar_lea.vmem %s7, 10
    %v1481 = vld [vmem:[%s1480] sm:$0x1]
    %v1483 = vlaneseq
    %v1484 = vshrl.u32 %v1483, 7
    %v1485 = vsub.s32 0, %v1484
    %v1486 = vrot.slane %v1481, %v1485
    %1488 = vmatprep.subr.mxu0 0.0
    %1489 = vmatpush1.msra.mxu0 %v1472
    %1490 = vmatprep.subr.mxu0 0.0
    %1491 = vmatpush1.msra.mxu0 %v1473
    %1492 = vmatprep.subr.mxu0 0.0
    %1493 = vmatpush1.msra.mxu0 %v1474
    %1494 = vmatprep.subr.mxu0 0.0
    %1495 = vmatpush1.msra.mxu0 %v1475
    %1496 = vmatprep.subr.mxu0 0.0
    %1497 = vmatpush1.msra.mxu0 %v1476
    %1498 = vmatprep.subr.mxu0 0.0
    %1499 = vmatpush1.msra.mxu0 %v1477
    %1500 = vmatprep.subr.mxu0 0.0
    %1501 = vmatpush1.msra.mxu0 %v1478
    %1502 = vmatprep.subr.mxu0 0.0
    %1503 = vmatpush1.msra.mxu0 %v1479
    %1504 = vmatprep.subr.mxu0 0.0
    %1505 = vmatpush1.msra.mxu0 0.0
    %1506 = vmatprep.subr.mxu0 0.0
    %1507 = vmatpush1.msra.mxu0 0.0
    %1508 = vmatprep.subr.mxu0 0.0
    %1509 = vmatpush1.msra.mxu0 0.0
    %1510 = vmatprep.subr.mxu0 0.0
    %1511 = vmatpush1.msra.mxu0 0.0
    %1512 = vmatprep.subr.mxu0 0.0
    %1513 = vmatpush1.msra.mxu0 0.0
    %1514 = vmatprep.subr.mxu0 0.0
    %1515 = vmatpush1.msra.mxu0 0.0
    %1516 = vmatprep.subr.mxu0 0.0
    %1517 = vmatpush1.msra.mxu0 0.0
    %1518 = vmatprep.subr.mxu0 0.0
    %1519 = vmatpush1.msra.mxu0 0.0
    %1520 = vmatprep.subr.mxu0 0.0
    %1521 = vmatpush1.msra.mxu0 0.0
    %1522 = vmatprep.subr.mxu0 0.0
    %1523 = vmatpush1.msra.mxu0 0.0
    %1524 = vmatprep.subr.mxu0 0.0
    %1525 = vmatpush1.msra.mxu0 0.0
    %1526 = vmatprep.subr.mxu0 0.0
    %1527 = vmatpush1.msra.mxu0 0.0
    %1528 = vmatprep.subr.mxu0 0.0
    %1529 = vmatpush1.msra.mxu0 0.0
    %1530 = vmatprep.subr.mxu0 0.0
    %1531 = vmatpush1.msra.mxu0 0.0
    %1532 = vmatprep.subr.mxu0 0.0
    %1533 = vmatpush1.msra.mxu0 0.0
    %1534 = vmatprep.subr.mxu0 0.0
    %1535 = vmatpush1.msra.mxu0 0.0
    %1536 = vmatprep.subr.mxu0 0.0
    %1537 = vmatpush1.msra.mxu0 0.0
    %1538 = vmatprep.subr.mxu0 0.0
    %1539 = vmatpush1.msra.mxu0 0.0
    %1540 = vmatprep.subr.mxu0 0.0
    %1541 = vmatpush1.msra.mxu0 0.0
    %1542 = vmatprep.subr.mxu0 0.0
    %1543 = vmatpush1.msra.mxu0 0.0
    %1544 = vmatprep.subr.mxu0 0.0
    %1545 = vmatpush1.msra.mxu0 0.0
    %1546 = vmatprep.subr.mxu0 0.0
    %1547 = vmatpush1.msra.mxu0 0.0
    %1548 = vmatprep.subr.mxu0 0.0
    %1549 = vmatpush1.msra.mxu0 0.0
    %1550 = vmatprep.subr.mxu0 0.0
    %1551 = vmatpush1.msra.mxu0 0.0
    %1552 = vmatprep.mubr.f32.mxu0 0.0
    %1553 = vmatmul.mubr.f32.gmra.mrb[0].mxu0 %v318
    %v1554 = vpop.f32.mrb[0].mxu0
    %v1555 = vadd.f32 %v1486, %v1554
    %v1556 = vpop.f32.mrb[0].mxu0
    %1557 = vmatprep.mubr.f32.mxu0 0.0
    %1558 = vmatmul.mubr.f32.gmra.mrb[0].mxu0 %v321
    %v1559 = vpop.f32.mrb[0].mxu0
    %v1560 = vadd.f32 %v1486, %v1559
    %v1561 = vpop.f32.mrb[0].mxu0
    %1562 = vmatprep.mubr.f32.mxu0 0.0
    %1563 = vmatmul.mubr.f32.gmra.mrb[0].mxu0 %v324
    %v1564 = vpop.f32.mrb[0].mxu0
    %v1565 = vadd.f32 %v1486, %v1564
    %v1566 = vpop.f32.mrb[0].mxu0
    %1567 = vmatprep.mubr.f32.mxu0 0.0
    %1568 = vmatmul.mubr.f32.gmra.mrb[0].mxu0 %v327
    %v1569 = vpop.f32.mrb[0].mxu0
    %v1570 = vadd.f32 %v1486, %v1569
    %v1571 = vpop.f32.mrb[0].mxu0
    %1572 = vdwg.mxu0
    %s1573 = scalar_lea.vmem %s6, 1152
    %v1574 = vld [vmem:[%s1573] sm:$0xff]
    %v1575 = vld [vmem:[%s1573 + $0x8] sm:$0xff]
    %v1576 = vld [vmem:[%s1573 + $0x10] sm:$0xff]
    %v1577 = vld [vmem:[%s1573 + $0x18] sm:$0xff]
    %v1578 = vld [vmem:[%s1573 + $0x20] sm:$0xff]
    %v1579 = vld [vmem:[%s1573 + $0x28] sm:$0xff]
    %v1580 = vld [vmem:[%s1573 + $0x30] sm:$0xff]
    %v1581 = vld [vmem:[%s1573 + $0x38] sm:$0xff]
    %s1582 = scalar_lea.vmem %s7, 18
    %v1583 = vld [vmem:[%s1582] sm:$0x1]
    %v1585 = vlaneseq
    %v1586 = vshrl.u32 %v1585, 7
    %v1587 = vsub.s32 0, %v1586
    %v1588 = vrot.slane %v1583, %v1587
    %1590 = vmatprep.subr.mxu0 0.0
    %1591 = vmatpush1.msra.mxu0 %v1574
    %1592 = vmatprep.subr.mxu0 0.0
    %1593 = vmatpush1.msra.mxu0 %v1575
    %1594 = vmatprep.subr.mxu0 0.0
    %1595 = vmatpush1.msra.mxu0 %v1576
    %1596 = vmatprep.subr.mxu0 0.0
    %1597 = vmatpush1.msra.mxu0 %v1577
    %1598 = vmatprep.subr.mxu0 0.0
    %1599 = vmatpush1.msra.mxu0 %v1578
    %1600 = vmatprep.subr.mxu0 0.0
    %1601 = vmatpush1.msra.mxu0 %v1579
    %1602 = vmatprep.subr.mxu0 0.0
    %1603 = vmatpush1.msra.mxu0 %v1580
    %1604 = vmatprep.subr.mxu0 0.0
    %1605 = vmatpush1.msra.mxu0 %v1581
    %1606 = vmatprep.subr.mxu0 0.0
    %1607 = vmatpush1.msra.mxu0 0.0
    %1608 = vmatprep.subr.mxu0 0.0
    %1609 = vmatpush1.msra.mxu0 0.0
    %1610 = vmatprep.subr.mxu0 0.0
    %1611 = vmatpush1.msra.mxu0 0.0
    %1612 = vmatprep.subr.mxu0 0.0
    %1613 = vmatpush1.msra.mxu0 0.0
    %1614 = vmatprep.subr.mxu0 0.0
    %1615 = vmatpush1.msra.mxu0 0.0
    %1616 = vmatprep.subr.mxu0 0.0
    %1617 = vmatpush1.msra.mxu0 0.0
    %1618 = vmatprep.subr.mxu0 0.0
    %1619 = vmatpush1.msra.mxu0 0.0
    %1620 = vmatprep.subr.mxu0 0.0
    %1621 = vmatpush1.msra.mxu0 0.0
    %1622 = vmatprep.subr.mxu0 0.0
    %1623 = vmatpush1.msra.mxu0 0.0
    %1624 = vmatprep.subr.mxu0 0.0
    %1625 = vmatpush1.msra.mxu0 0.0
    %1626 = vmatprep.subr.mxu0 0.0
    %1627 = vmatpush1.msra.mxu0 0.0
    %1628 = vmatprep.subr.mxu0 0.0
    %1629 = vmatpush1.msra.mxu0 0.0
    %1630 = vmatprep.subr.mxu0 0.0
    %1631 = vmatpush1.msra.mxu0 0.0
    %1632 = vmatprep.subr.mxu0 0.0
    %1633 = vmatpush1.msra.mxu0 0.0
    %1634 = vmatprep.subr.mxu0 0.0
    %1635 = vmatpush1.msra.mxu0 0.0
    %1636 = vmatprep.subr.mxu0 0.0
    %1637 = vmatpush1.msra.mxu0 0.0
    %1638 = vmatprep.subr.mxu0 0.0
    %1639 = vmatpush1.msra.mxu0 0.0
    %1640 = vmatprep.subr.mxu0 0.0
    %1641 = vmatpush1.msra.mxu0 0.0
    %1642 = vmatprep.subr.mxu0 0.0
    %1643 = vmatpush1.msra.mxu0 0.0
    %1644 = vmatprep.subr.mxu0 0.0
    %1645 = vmatpush1.msra.mxu0 0.0
    %1646 = vmatprep.subr.mxu0 0.0
    %1647 = vmatpush1.msra.mxu0 0.0
    %1648 = vmatprep.subr.mxu0 0.0
    %1649 = vmatpush1.msra.mxu0 0.0
    %1650 = vmatprep.subr.mxu0 0.0
    %1651 = vmatpush1.msra.mxu0 0.0
    %1652 = vmatprep.subr.mxu0 0.0
    %1653 = vmatpush1.msra.mxu0 0.0
    %1654 = vmatprep.mubr.f32.mxu0 0.0
    %1655 = vmatmul.mubr.f32.gmra.mrb[0].mxu0 %v318
    %v1656 = vpop.f32.mrb[0].mxu0
    %v1657 = vadd.f32 %v1588, %v1656
    %v1658 = vpop.f32.mrb[0].mxu0
    %1659 = vmatprep.mubr.f32.mxu0 0.0
    %1660 = vmatmul.mubr.f32.gmra.mrb[0].mxu0 %v321
    %v1661 = vpop.f32.mrb[0].mxu0
    %v1662 = vadd.f32 %v1588, %v1661
    %v1663 = vpop.f32.mrb[0].mxu0
    %1664 = vmatprep.mubr.f32.mxu0 0.0
    %1665 = vmatmul.mubr.f32.gmra.mrb[0].mxu0 %v324
    %v1666 = vpop.f32.mrb[0].mxu0
    %v1667 = vadd.f32 %v1588, %v1666
    %v1668 = vpop.f32.mrb[0].mxu0
    %1669 = vmatprep.mubr.f32.mxu0 0.0
    %1670 = vmatmul.mubr.f32.gmra.mrb[0].mxu0 %v327
    %v1671 = vpop.f32.mrb[0].mxu0
    %v1672 = vadd.f32 %v1588, %v1671
    %v1673 = vpop.f32.mrb[0].mxu0
    %1674 = vdwg.mxu0
    %v1676 = vsel %vm516, %v1463, 0
    %v1679 = vsel %vm516, %v1468, 0
    %v1682 = vsel %vm516, %v1555, 0
    %v1685 = vsel %vm516, %v1560, 0
    %v1688 = vsel %vm516, %v1565, 0
    %v1691 = vsel %vm516, %v1570, 0
    %1693 = vmatprep.subr.mxu0 0.0
    %1694 = vmatpush1.xpose.msra.mxu0 %v1682
    %1695 = vmatprep.subr.mxu0 0.0
    %1696 = vmatpush1.xpose.msra.mxu0 %v1685
    %1697 = vmatprep.subr.mxu0 0.0
    %1698 = vmatpush1.xpose.msra.mxu0 %v1688
    %1699 = vmatprep.subr.mxu0 0.0
    %1700 = vmatpush1.xpose.msra.mxu0 %v1691
    %1701 = vmatprep.subr.mxu0 0.0
    %1702 = vmatpush1.xpose.msra.mxu0 0.0
    %1703 = vmatprep.subr.mxu0 0.0
    %1704 = vmatpush1.xpose.msra.mxu0 0.0
    %1705 = vmatprep.subr.mxu0 0.0
    %1706 = vmatpush1.xpose.msra.mxu0 0.0
    %1707 = vmatprep.subr.mxu0 0.0
    %1708 = vmatpush1.xpose.msra.mxu0 0.0
    %1709 = vmatprep.subr.mxu0 0.0
    %1710 = vmatpush1.xpose.msra.mxu0 0.0
    %1711 = vmatprep.subr.mxu0 0.0
    %1712 = vmatpush1.xpose.msra.mxu0 0.0
    %1713 = vmatprep.subr.mxu0 0.0
    %1714 = vmatpush1.xpose.msra.mxu0 0.0
    %1715 = vmatprep.subr.mxu0 0.0
    %1716 = vmatpush1.xpose.msra.mxu0 0.0
    %1717 = vmatprep.subr.mxu0 0.0
    %1718 = vmatpush1.xpose.msra.mxu0 0.0
    %1719 = vmatprep.subr.mxu0 0.0
    %1720 = vmatpush1.xpose.msra.mxu0 0.0
    %1721 = vmatprep.subr.mxu0 0.0
    %1722 = vmatpush1.xpose.msra.mxu0 0.0
    %1723 = vmatprep.subr.mxu0 0.0
    %1724 = vmatpush1.xpose.msra.mxu0 0.0
    %1725 = vmatprep.subr.mxu0 0.0
    %1726 = vmatpush1.xpose.msra.mxu0 0.0
    %1727 = vmatprep.subr.mxu0 0.0
    %1728 = vmatpush1.xpose.msra.mxu0 0.0
    %1729 = vmatprep.subr.mxu0 0.0
    %1730 = vmatpush1.xpose.msra.mxu0 0.0
    %1731 = vmatprep.subr.mxu0 0.0
    %1732 = vmatpush1.xpose.msra.mxu0 0.0
    %1733 = vmatprep.subr.mxu0 0.0
    %1734 = vmatpush1.xpose.msra.mxu0 0.0
    %1735 = vmatprep.subr.mxu0 0.0
    %1736 = vmatpush1.xpose.msra.mxu0 0.0
    %1737 = vmatprep.subr.mxu0 0.0
    %1738 = vmatpush1.xpose.msra.mxu0 0.0
    %1739 = vmatprep.subr.mxu0 0.0
    %1740 = vmatpush1.xpose.msra.mxu0 0.0
    %1741 = vmatprep.subr.mxu0 0.0
    %1742 = vmatpush1.xpose.msra.mxu0 0.0
    %1743 = vmatprep.subr.mxu0 0.0
    %1744 = vmatpush1.xpose.msra.mxu0 0.0
    %1745 = vmatprep.subr.mxu0 0.0
    %1746 = vmatpush1.xpose.msra.mxu0 0.0
    %1747 = vmatprep.subr.mxu0 0.0
    %1748 = vmatpush1.xpose.msra.mxu0 0.0
    %1749 = vmatprep.subr.mxu0 0.0
    %1750 = vmatpush1.xpose.msra.mxu0 0.0
    %1751 = vmatprep.subr.mxu0 0.0
    %1752 = vmatpush1.xpose.msra.mxu0 0.0
    %1753 = vmatprep.subr.mxu0 0.0
    %1754 = vmatpush1.xpose.msra.mxu0 0.0
    %1755 = vmatprep.subr.mxu0 0.0
    %1756 = vmatpush1.xpose.msra.mxu0 0.0
    %1757 = vmatprep.mubr.f32.mxu0 0.0
    %1758 = vmatmul.mubr.f32.gmra.mrb[0].mxu0 %v1676
    %v1759 = vpop.f32.mrb[0].mxu0
    %v1760 = vadd.f32 0.0, %v1759
    %v1761 = vpop.f32.mrb[0].mxu0
    %1762 = vmatprep.mubr.f32.mxu0 0.0
    %1763 = vmatmul.mubr.f32.gmra.mrb[0].mxu0 %v1679
    %v1764 = vpop.f32.mrb[0].mxu0
    %v1765 = vadd.f32 0.0, %v1764
    %v1766 = vpop.f32.mrb[0].mxu0
    %1767 = vdwg.mxu0
    %v1768 = vmul.f32 %v1760, 0.35355338
    %v1769 = vmul.f32 %v1765, 0.35355338
    %v1770 = vadd.f32 %v1768, %v202
    %v1771 = vadd.f32 %v1769, %v203
    %v1772 = vsel %vm614, %v1770, -inf
    %1773 = vmax.xlane.f32.xlu0 %v1772
    %v1774 = vpop.xlane.xlu0 %1773
    %v1775 = vsel %vm614, %v1771, -inf
    %1776 = vmax.xlane.f32.xlu0 %v1775
    %v1777 = vpop.xlane.xlu0 %1776
    %v1778 = vsub.f32 %v1770, %v1774
    %v1779 = vsub.f32 %v1771, %v1777
    %v1780 = vmul.f32 %v1778, 1.442695
    %v1781 = vpow.pop %v1780
    %v1782 = vmul.f32 %v1779, 1.442695
    %v1783 = vpow.pop %v1782
    %v1784 = vsel %vm614, %v1781, 0.0
    %1785 = vadd.xlane.f32.xlu0 %v1784
    %v1786 = vpop.xlane.xlu0 %1785
    %v1787 = vsel %vm614, %v1783, 0.0
    %1788 = vadd.xlane.f32.xlu0 %v1787
    %v1789 = vpop.xlane.xlu0 %1788
    %v1790 = vrcp.pop %v1786
    %v1791 = vrcp.pop %v1789
    %v1792 = vmul.f32 %v1781, %v1790
    %v1793 = vmul.f32 %v1783, %v1791
    %v1795 = vsel %vm614, %v1792, 0
    %v1798 = vsel %vm614, %v1793, 0
    %1800 = vmatprep.subr.mxu0 0.0
    %1801 = vmatpush1.msra.mxu0 %v1657
    %1802 = vmatprep.subr.mxu0 0.0
    %1803 = vmatpush1.msra.mxu0 %v1662
    %1804 = vmatprep.subr.mxu0 0.0
    %1805 = vmatpush1.msra.mxu0 %v1667
    %1806 = vmatprep.subr.mxu0 0.0
    %1807 = vmatpush1.msra.mxu0 %v1672
    %1808 = vmatprep.subr.mxu0 0.0
    %1809 = vmatpush1.msra.mxu0 0.0
    %1810 = vmatprep.subr.mxu0 0.0
    %1811 = vmatpush1.msra.mxu0 0.0
    %1812 = vmatprep.subr.mxu0 0.0
    %1813 = vmatpush1.msra.mxu0 0.0
    %1814 = vmatprep.subr.mxu0 0.0
    %1815 = vmatpush1.msra.mxu0 0.0
    %1816 = vmatprep.subr.mxu0 0.0
    %1817 = vmatpush1.msra.mxu0 0.0
    %1818 = vmatprep.subr.mxu0 0.0
    %1819 = vmatpush1.msra.mxu0 0.0
    %1820 = vmatprep.subr.mxu0 0.0
    %1821 = vmatpush1.msra.mxu0 0.0
    %1822 = vmatprep.subr.mxu0 0.0
    %1823 = vmatpush1.msra.mxu0 0.0
    %1824 = vmatprep.subr.mxu0 0.0
    %1825 = vmatpush1.msra.mxu0 0.0
    %1826 = vmatprep.subr.mxu0 0.0
    %1827 = vmatpush1.msra.mxu0 0.0
    %1828 = vmatprep.subr.mxu0 0.0
    %1829 = vmatpush1.msra.mxu0 0.0
    %1830 = vmatprep.subr.mxu0 0.0
    %1831 = vmatpush1.msra.mxu0 0.0
    %1832 = vmatprep.subr.mxu0 0.0
    %1833 = vmatpush1.msra.mxu0 0.0
    %1834 = vmatprep.subr.mxu0 0.0
    %1835 = vmatpush1.msra.mxu0 0.0
    %1836 = vmatprep.subr.mxu0 0.0
    %1837 = vmatpush1.msra.mxu0 0.0
    %1838 = vmatprep.subr.mxu0 0.0
    %1839 = vmatpush1.msra.mxu0 0.0
    %1840 = vmatprep.subr.mxu0 0.0
    %1841 = vmatpush1.msra.mxu0 0.0
    %1842 = vmatprep.subr.mxu0 0.0
    %1843 = vmatpush1.msra.mxu0 0.0
    %1844 = vmatprep.subr.mxu0 0.0
    %1845 = vmatpush1.msra.mxu0 0.0
    %1846 = vmatprep.subr.mxu0 0.0
    %1847 = vmatpush1.msra.mxu0 0.0
    %1848 = vmatprep.subr.mxu0 0.0
    %1849 = vmatpush1.msra.mxu0 0.0
    %1850 = vmatprep.subr.mxu0 0.0
    %1851 = vmatpush1.msra.mxu0 0.0
    %1852 = vmatprep.subr.mxu0 0.0
    %1853 = vmatpush1.msra.mxu0 0.0
    %1854 = vmatprep.subr.mxu0 0.0
    %1855 = vmatpush1.msra.mxu0 0.0
    %1856 = vmatprep.subr.mxu0 0.0
    %1857 = vmatpush1.msra.mxu0 0.0
    %1858 = vmatprep.subr.mxu0 0.0
    %1859 = vmatpush1.msra.mxu0 0.0
    %1860 = vmatprep.subr.mxu0 0.0
    %1861 = vmatpush1.msra.mxu0 0.0
    %1862 = vmatprep.subr.mxu0 0.0
    %1863 = vmatpush1.msra.mxu0 0.0
    %1864 = vmatprep.mubr.f32.mxu0 0.0
    %1865 = vmatmul.mubr.f32.gmra.mrb[0].mxu0 %v1795
    %v1866 = vpop.f32.mrb[0].mxu0
    %v1867 = vadd.f32 0.0, %v1866
    %v1868 = vpop.f32.mrb[0].mxu0
    %1869 = vmatprep.mubr.f32.mxu0 0.0
    %1870 = vmatmul.mubr.f32.gmra.mrb[0].mxu0 %v1798
    %v1871 = vpop.f32.mrb[0].mxu0
    %v1872 = vadd.f32 0.0, %v1871
    %v1873 = vpop.f32.mrb[0].mxu0
    %1874 = vdwg.mxu0
    %s1875 = scalar_lea.vmem %s8, 16
    %v1876 = vld [vmem:[%s1875] sm:$0xff]
    %v1878 = vsel %vm516, %v1867, 0
    %v1881 = vsel %vm516, %v1872, 0
    %1883 = vmatprep.subr.mxu0 0.0
    %1884 = vmatpush1.msra.mxu0 %v1876
    %1885 = vmatprep.subr.mxu0 0.0
    %1886 = vmatpush1.msra.mxu0 0.0
    %1887 = vmatprep.subr.mxu0 0.0
    %1888 = vmatpush1.msra.mxu0 0.0
    %1889 = vmatprep.subr.mxu0 0.0
    %1890 = vmatpush1.msra.mxu0 0.0
    %1891 = vmatprep.subr.mxu0 0.0
    %1892 = vmatpush1.msra.mxu0 0.0
    %1893 = vmatprep.subr.mxu0 0.0
    %1894 = vmatpush1.msra.mxu0 0.0
    %1895 = vmatprep.subr.mxu0 0.0
    %1896 = vmatpush1.msra.mxu0 0.0
    %1897 = vmatprep.subr.mxu0 0.0
    %1898 = vmatpush1.msra.mxu0 0.0
    %1899 = vmatprep.subr.mxu0 0.0
    %1900 = vmatpush1.msra.mxu0 0.0
    %1901 = vmatprep.subr.mxu0 0.0
    %1902 = vmatpush1.msra.mxu0 0.0
    %1903 = vmatprep.subr.mxu0 0.0
    %1904 = vmatpush1.msra.mxu0 0.0
    %1905 = vmatprep.subr.mxu0 0.0
    %1906 = vmatpush1.msra.mxu0 0.0
    %1907 = vmatprep.subr.mxu0 0.0
    %1908 = vmatpush1.msra.mxu0 0.0
    %1909 = vmatprep.subr.mxu0 0.0
    %1910 = vmatpush1.msra.mxu0 0.0
    %1911 = vmatprep.subr.mxu0 0.0
    %1912 = vmatpush1.msra.mxu0 0.0
    %1913 = vmatprep.subr.mxu0 0.0
    %1914 = vmatpush1.msra.mxu0 0.0
    %1915 = vmatprep.subr.mxu0 0.0
    %1916 = vmatpush1.msra.mxu0 0.0
    %1917 = vmatprep.subr.mxu0 0.0
    %1918 = vmatpush1.msra.mxu0 0.0
    %1919 = vmatprep.subr.mxu0 0.0
    %1920 = vmatpush1.msra.mxu0 0.0
    %1921 = vmatprep.subr.mxu0 0.0
    %1922 = vmatpush1.msra.mxu0 0.0
    %1923 = vmatprep.subr.mxu0 0.0
    %1924 = vmatpush1.msra.mxu0 0.0
    %1925 = vmatprep.subr.mxu0 0.0
    %1926 = vmatpush1.msra.mxu0 0.0
    %1927 = vmatprep.subr.mxu0 0.0
    %1928 = vmatpush1.msra.mxu0 0.0
    %1929 = vmatprep.subr.mxu0 0.0
    %1930 = vmatpush1.msra.mxu0 0.0
    %1931 = vmatprep.subr.mxu0 0.0
    %1932 = vmatpush1.msra.mxu0 0.0
    %1933 = vmatprep.subr.mxu0 0.0
    %1934 = vmatpush1.msra.mxu0 0.0
    %1935 = vmatprep.subr.mxu0 0.0
    %1936 = vmatpush1.msra.mxu0 0.0
    %1937 = vmatprep.subr.mxu0 0.0
    %1938 = vmatpush1.msra.mxu0 0.0
    %1939 = vmatprep.subr.mxu0 0.0
    %1940 = vmatpush1.msra.mxu0 0.0
    %1941 = vmatprep.subr.mxu0 0.0
    %1942 = vmatpush1.msra.mxu0 0.0
    %1943 = vmatprep.subr.mxu0 0.0
    %1944 = vmatpush1.msra.mxu0 0.0
    %1945 = vmatprep.subr.mxu0 0.0
    %1946 = vmatpush1.msra.mxu0 0.0
    %1947 = vmatprep.mubr.f32.mxu0 0.0
    %1948 = vmatmul.mubr.f32.gmra.mrb[0].mxu0 %v1878
    %v1949 = vpop.f32.mrb[0].mxu0
    %v1950 = vadd.f32 0.0, %v1949
    %v1951 = vpop.f32.mrb[0].mxu0
    %1952 = vmatprep.mubr.f32.mxu0 0.0
    %1953 = vmatmul.mubr.f32.gmra.mrb[0].mxu0 %v1881
    %v1954 = vpop.f32.mrb[0].mxu0
    %v1955 = vadd.f32 0.0, %v1954
    %v1956 = vpop.f32.mrb[0].mxu0
    %1957 = vdwg.mxu0
    %v1958 = vadd.f32 %v1371, %v1950
    %v1959 = vadd.f32 %v1376, %v1955
    %s1960 = scalar_lea.vmem %s6, 192
    %v1961 = vld [vmem:[%s1960] sm:$0xff]
    %v1962 = vld [vmem:[%s1960 + $0x8] sm:$0xff]
    %v1963 = vld [vmem:[%s1960 + $0x10] sm:$0xff]
    %v1964 = vld [vmem:[%s1960 + $0x18] sm:$0xff]
    %v1965 = vld [vmem:[%s1960 + $0x20] sm:$0xff]
    %v1966 = vld [vmem:[%s1960 + $0x28] sm:$0xff]
    %v1967 = vld [vmem:[%s1960 + $0x30] sm:$0xff]
    %v1968 = vld [vmem:[%s1960 + $0x38] sm:$0xff]
    %s1969 = scalar_lea.vmem %s7, 3
    %v1970 = vld [vmem:[%s1969] sm:$0x1]
    %v1972 = vlaneseq
    %v1973 = vshrl.u32 %v1972, 7
    %v1974 = vsub.s32 0, %v1973
    %v1975 = vrot.slane %v1970, %v1974
    %1977 = vmatprep.subr.mxu0 0.0
    %1978 = vmatpush1.msra.mxu0 %v1961
    %1979 = vmatprep.subr.mxu0 0.0
    %1980 = vmatpush1.msra.mxu0 %v1962
    %1981 = vmatprep.subr.mxu0 0.0
    %1982 = vmatpush1.msra.mxu0 %v1963
    %1983 = vmatprep.subr.mxu0 0.0
    %1984 = vmatpush1.msra.mxu0 %v1964
    %1985 = vmatprep.subr.mxu0 0.0
    %1986 = vmatpush1.msra.mxu0 %v1965
    %1987 = vmatprep.subr.mxu0 0.0
    %1988 = vmatpush1.msra.mxu0 %v1966
    %1989 = vmatprep.subr.mxu0 0.0
    %1990 = vmatpush1.msra.mxu0 %v1967
    %1991 = vmatprep.subr.mxu0 0.0
    %1992 = vmatpush1.msra.mxu0 %v1968
    %1993 = vmatprep.subr.mxu0 0.0
    %1994 = vmatpush1.msra.mxu0 0.0
    %1995 = vmatprep.subr.mxu0 0.0
    %1996 = vmatpush1.msra.mxu0 0.0
    %1997 = vmatprep.subr.mxu0 0.0
    %1998 = vmatpush1.msra.mxu0 0.0
    %1999 = vmatprep.subr.mxu0 0.0
    %2000 = vmatpush1.msra.mxu0 0.0
    %2001 = vmatprep.subr.mxu0 0.0
    %2002 = vmatpush1.msra.mxu0 0.0
    %2003 = vmatprep.subr.mxu0 0.0
    %2004 = vmatpush1.msra.mxu0 0.0
    %2005 = vmatprep.subr.mxu0 0.0
    %2006 = vmatpush1.msra.mxu0 0.0
    %2007 = vmatprep.subr.mxu0 0.0
    %2008 = vmatpush1.msra.mxu0 0.0
    %2009 = vmatprep.subr.mxu0 0.0
    %2010 = vmatpush1.msra.mxu0 0.0
    %2011 = vmatprep.subr.mxu0 0.0
    %2012 = vmatpush1.msra.mxu0 0.0
    %2013 = vmatprep.subr.mxu0 0.0
    %2014 = vmatpush1.msra.mxu0 0.0
    %2015 = vmatprep.subr.mxu0 0.0
    %2016 = vmatpush1.msra.mxu0 0.0
    %2017 = vmatprep.subr.mxu0 0.0
    %2018 = vmatpush1.msra.mxu0 0.0
    %2019 = vmatprep.subr.mxu0 0.0
    %2020 = vmatpush1.msra.mxu0 0.0
    %2021 = vmatprep.subr.mxu0 0.0
    %2022 = vmatpush1.msra.mxu0 0.0
    %2023 = vmatprep.subr.mxu0 0.0
    %2024 = vmatpush1.msra.mxu0 0.0
    %2025 = vmatprep.subr.mxu0 0.0
    %2026 = vmatpush1.msra.mxu0 0.0
    %2027 = vmatprep.subr.mxu0 0.0
    %2028 = vmatpush1.msra.mxu0 0.0
    %2029 = vmatprep.subr.mxu0 0.0
    %2030 = vmatpush1.msra.mxu0 0.0
    %2031 = vmatprep.subr.mxu0 0.0
    %2032 = vmatpush1.msra.mxu0 0.0
    %2033 = vmatprep.subr.mxu0 0.0
    %2034 = vmatpush1.msra.mxu0 0.0
    %2035 = vmatprep.subr.mxu0 0.0
    %2036 = vmatpush1.msra.mxu0 0.0
    %2037 = vmatprep.subr.mxu0 0.0
    %2038 = vmatpush1.msra.mxu0 0.0
    %2039 = vmatprep.subr.mxu0 0.0
    %2040 = vmatpush1.msra.mxu0 0.0
    %2041 = vmatprep.mubr.f32.mxu0 0.0
    %2042 = vmatmul.mubr.f32.gmra.mrb[0].mxu0 %v220
    %v2043 = vpop.f32.mrb[0].mxu0
    %v2044 = vadd.f32 %v1975, %v2043
    %v2045 = vpop.f32.mrb[0].mxu0
    %2046 = vmatprep.mubr.f32.mxu0 0.0
    %2047 = vmatmul.mubr.f32.gmra.mrb[0].mxu0 %v223
    %v2048 = vpop.f32.mrb[0].mxu0
    %v2049 = vadd.f32 %v1975, %v2048
    %v2050 = vpop.f32.mrb[0].mxu0
    %2051 = vdwg.mxu0
    %s2052 = scalar_lea.vmem %s6, 704
    %v2053 = vld [vmem:[%s2052] sm:$0xff]
    %v2054 = vld [vmem:[%s2052 + $0x8] sm:$0xff]
    %v2055 = vld [vmem:[%s2052 + $0x10] sm:$0xff]
    %v2056 = vld [vmem:[%s2052 + $0x18] sm:$0xff]
    %v2057 = vld [vmem:[%s2052 + $0x20] sm:$0xff]
    %v2058 = vld [vmem:[%s2052 + $0x28] sm:$0xff]
    %v2059 = vld [vmem:[%s2052 + $0x30] sm:$0xff]
    %v2060 = vld [vmem:[%s2052 + $0x38] sm:$0xff]
    %s2061 = scalar_lea.vmem %s7, 11
    %v2062 = vld [vmem:[%s2061] sm:$0x1]
    %v2064 = vlaneseq
    %v2065 = vshrl.u32 %v2064, 7
    %v2066 = vsub.s32 0, %v2065
    %v2067 = vrot.slane %v2062, %v2066
    %2069 = vmatprep.subr.mxu0 0.0
    %2070 = vmatpush1.msra.mxu0 %v2053
    %2071 = vmatprep.subr.mxu0 0.0
    %2072 = vmatpush1.msra.mxu0 %v2054
    %2073 = vmatprep.subr.mxu0 0.0
    %2074 = vmatpush1.msra.mxu0 %v2055
    %2075 = vmatprep.subr.mxu0 0.0
    %2076 = vmatpush1.msra.mxu0 %v2056
    %2077 = vmatprep.subr.mxu0 0.0
    %2078 = vmatpush1.msra.mxu0 %v2057
    %2079 = vmatprep.subr.mxu0 0.0
    %2080 = vmatpush1.msra.mxu0 %v2058
    %2081 = vmatprep.subr.mxu0 0.0
    %2082 = vmatpush1.msra.mxu0 %v2059
    %2083 = vmatprep.subr.mxu0 0.0
    %2084 = vmatpush1.msra.mxu0 %v2060
    %2085 = vmatprep.subr.mxu0 0.0
    %2086 = vmatpush1.msra.mxu0 0.0
    %2087 = vmatprep.subr.mxu0 0.0
    %2088 = vmatpush1.msra.mxu0 0.0
    %2089 = vmatprep.subr.mxu0 0.0
    %2090 = vmatpush1.msra.mxu0 0.0
    %2091 = vmatprep.subr.mxu0 0.0
    %2092 = vmatpush1.msra.mxu0 0.0
    %2093 = vmatprep.subr.mxu0 0.0
    %2094 = vmatpush1.msra.mxu0 0.0
    %2095 = vmatprep.subr.mxu0 0.0
    %2096 = vmatpush1.msra.mxu0 0.0
    %2097 = vmatprep.subr.mxu0 0.0
    %2098 = vmatpush1.msra.mxu0 0.0
    %2099 = vmatprep.subr.mxu0 0.0
    %2100 = vmatpush1.msra.mxu0 0.0
    %2101 = vmatprep.subr.mxu0 0.0
    %2102 = vmatpush1.msra.mxu0 0.0
    %2103 = vmatprep.subr.mxu0 0.0
    %2104 = vmatpush1.msra.mxu0 0.0
    %2105 = vmatprep.subr.mxu0 0.0
    %2106 = vmatpush1.msra.mxu0 0.0
    %2107 = vmatprep.subr.mxu0 0.0
    %2108 = vmatpush1.msra.mxu0 0.0
    %2109 = vmatprep.subr.mxu0 0.0
    %2110 = vmatpush1.msra.mxu0 0.0
    %2111 = vmatprep.subr.mxu0 0.0
    %2112 = vmatpush1.msra.mxu0 0.0
    %2113 = vmatprep.subr.mxu0 0.0
    %2114 = vmatpush1.msra.mxu0 0.0
    %2115 = vmatprep.subr.mxu0 0.0
    %2116 = vmatpush1.msra.mxu0 0.0
    %2117 = vmatprep.subr.mxu0 0.0
    %2118 = vmatpush1.msra.mxu0 0.0
    %2119 = vmatprep.subr.mxu0 0.0
    %2120 = vmatpush1.msra.mxu0 0.0
    %2121 = vmatprep.subr.mxu0 0.0
    %2122 = vmatpush1.msra.mxu0 0.0
    %2123 = vmatprep.subr.mxu0 0.0
    %2124 = vmatpush1.msra.mxu0 0.0
    %2125 = vmatprep.subr.mxu0 0.0
    %2126 = vmatpush1.msra.mxu0 0.0
    %2127 = vmatprep.subr.mxu0 0.0
    %2128 = vmatpush1.msra.mxu0 0.0
    %2129 = vmatprep.subr.mxu0 0.0
    %2130 = vmatpush1.msra.mxu0 0.0
    %2131 = vmatprep.subr.mxu0 0.0
    %2132 = vmatpush1.msra.mxu0 0.0
    %2133 = vmatprep.mubr.f32.mxu0 0.0
    %2134 = vmatmul.mubr.f32.gmra.mrb[0].mxu0 %v318
    %v2135 = vpop.f32.mrb[0].mxu0
    %v2136 = vadd.f32 %v2067, %v2135
    %v2137 = vpop.f32.mrb[0].mxu0
    %2138 = vmatprep.mubr.f32.mxu0 0.0
    %2139 = vmatmul.mubr.f32.gmra.mrb[0].mxu0 %v321
    %v2140 = vpop.f32.mrb[0].mxu0
    %v2141 = vadd.f32 %v2067, %v2140
    %v2142 = vpop.f32.mrb[0].mxu0
    %2143 = vmatprep.mubr.f32.mxu0 0.0
    %2144 = vmatmul.mubr.f32.gmra.mrb[0].mxu0 %v324
    %v2145 = vpop.f32.mrb[0].mxu0
    %v2146 = vadd.f32 %v2067, %v2145
    %v2147 = vpop.f32.mrb[0].mxu0
    %2148 = vmatprep.mubr.f32.mxu0 0.0
    %2149 = vmatmul.mubr.f32.gmra.mrb[0].mxu0 %v327
    %v2150 = vpop.f32.mrb[0].mxu0
    %v2151 = vadd.f32 %v2067, %v2150
    %v2152 = vpop.f32.mrb[0].mxu0
    %2153 = vdwg.mxu0
    %s2154 = scalar_lea.vmem %s6, 1216
    %v2155 = vld [vmem:[%s2154] sm:$0xff]
    %v2156 = vld [vmem:[%s2154 + $0x8] sm:$0xff]
    %v2157 = vld [vmem:[%s2154 + $0x10] sm:$0xff]
    %v2158 = vld [vmem:[%s2154 + $0x18] sm:$0xff]
    %v2159 = vld [vmem:[%s2154 + $0x20] sm:$0xff]
    %v2160 = vld [vmem:[%s2154 + $0x28] sm:$0xff]
    %v2161 = vld [vmem:[%s2154 + $0x30] sm:$0xff]
    %v2162 = vld [vmem:[%s2154 + $0x38] sm:$0xff]
    %s2163 = scalar_lea.vmem %s7, 19
    %v2164 = vld [vmem:[%s2163] sm:$0x1]
    %v2166 = vlaneseq
    %v2167 = vshrl.u32 %v2166, 7
    %v2168 = vsub.s32 0, %v2167
    %v2169 = vrot.slane %v2164, %v2168
    %2171 = vmatprep.subr.mxu0 0.0
    %2172 = vmatpush1.msra.mxu0 %v2155
    %2173 = vmatprep.subr.mxu0 0.0
    %2174 = vmatpush1.msra.mxu0 %v2156
    %2175 = vmatprep.subr.mxu0 0.0
    %2176 = vmatpush1.msra.mxu0 %v2157
    %2177 = vmatprep.subr.mxu0 0.0
    %2178 = vmatpush1.msra.mxu0 %v2158
    %2179 = vmatprep.subr.mxu0 0.0
    %2180 = vmatpush1.msra.mxu0 %v2159
    %2181 = vmatprep.subr.mxu0 0.0
    %2182 = vmatpush1.msra.mxu0 %v2160
    %2183 = vmatprep.subr.mxu0 0.0
    %2184 = vmatpush1.msra.mxu0 %v2161
    %2185 = vmatprep.subr.mxu0 0.0
    %2186 = vmatpush1.msra.mxu0 %v2162
    %2187 = vmatprep.subr.mxu0 0.0
    %2188 = vmatpush1.msra.mxu0 0.0
    %2189 = vmatprep.subr.mxu0 0.0
    %2190 = vmatpush1.msra.mxu0 0.0
    %2191 = vmatprep.subr.mxu0 0.0
    %2192 = vmatpush1.msra.mxu0 0.0
    %2193 = vmatprep.subr.mxu0 0.0
    %2194 = vmatpush1.msra.mxu0 0.0
    %2195 = vmatprep.subr.mxu0 0.0
    %2196 = vmatpush1.msra.mxu0 0.0
    %2197 = vmatprep.subr.mxu0 0.0
    %2198 = vmatpush1.msra.mxu0 0.0
    %2199 = vmatprep.subr.mxu0 0.0
    %2200 = vmatpush1.msra.mxu0 0.0
    %2201 = vmatprep.subr.mxu0 0.0
    %2202 = vmatpush1.msra.mxu0 0.0
    %2203 = vmatprep.subr.mxu0 0.0
    %2204 = vmatpush1.msra.mxu0 0.0
    %2205 = vmatprep.subr.mxu0 0.0
    %2206 = vmatpush1.msra.mxu0 0.0
    %2207 = vmatprep.subr.mxu0 0.0
    %2208 = vmatpush1.msra.mxu0 0.0
    %2209 = vmatprep.subr.mxu0 0.0
    %2210 = vmatpush1.msra.mxu0 0.0
    %2211 = vmatprep.subr.mxu0 0.0
    %2212 = vmatpush1.msra.mxu0 0.0
    %2213 = vmatprep.subr.mxu0 0.0
    %2214 = vmatpush1.msra.mxu0 0.0
    %2215 = vmatprep.subr.mxu0 0.0
    %2216 = vmatpush1.msra.mxu0 0.0
    %2217 = vmatprep.subr.mxu0 0.0
    %2218 = vmatpush1.msra.mxu0 0.0
    %2219 = vmatprep.subr.mxu0 0.0
    %2220 = vmatpush1.msra.mxu0 0.0
    %2221 = vmatprep.subr.mxu0 0.0
    %2222 = vmatpush1.msra.mxu0 0.0
    %2223 = vmatprep.subr.mxu0 0.0
    %2224 = vmatpush1.msra.mxu0 0.0
    %2225 = vmatprep.subr.mxu0 0.0
    %2226 = vmatpush1.msra.mxu0 0.0
    %2227 = vmatprep.subr.mxu0 0.0
    %2228 = vmatpush1.msra.mxu0 0.0
    %2229 = vmatprep.subr.mxu0 0.0
    %2230 = vmatpush1.msra.mxu0 0.0
    %2231 = vmatprep.subr.mxu0 0.0
    %2232 = vmatpush1.msra.mxu0 0.0
    %2233 = vmatprep.subr.mxu0 0.0
    %2234 = vmatpush1.msra.mxu0 0.0
    %2235 = vmatprep.mubr.f32.mxu0 0.0
    %2236 = vmatmul.mubr.f32.gmra.mrb[0].mxu0 %v318
    %v2237 = vpop.f32.mrb[0].mxu0
    %v2238 = vadd.f32 %v2169, %v2237
    %v2239 = vpop.f32.mrb[0].mxu0
    %2240 = vmatprep.mubr.f32.mxu0 0.0
    %2241 = vmatmul.mubr.f32.gmra.mrb[0].mxu0 %v321
    %v2242 = vpop.f32.mrb[0].mxu0
    %v2243 = vadd.f32 %v2169, %v2242
    %v2244 = vpop.f32.mrb[0].mxu0
    %2245 = vmatprep.mubr.f32.mxu0 0.0
    %2246 = vmatmul.mubr.f32.gmra.mrb[0].mxu0 %v324
    %v2247 = vpop.f32.mrb[0].mxu0
    %v2248 = vadd.f32 %v2169, %v2247
    %v2249 = vpop.f32.mrb[0].mxu0
    %2250 = vmatprep.mubr.f32.mxu0 0.0
    %2251 = vmatmul.mubr.f32.gmra.mrb[0].mxu0 %v327
    %v2252 = vpop.f32.mrb[0].mxu0
    %v2253 = vadd.f32 %v2169, %v2252
    %v2254 = vpop.f32.mrb[0].mxu0
    %2255 = vdwg.mxu0
    %v2257 = vsel %vm516, %v2044, 0
    %v2260 = vsel %vm516, %v2049, 0
    %v2263 = vsel %vm516, %v2136, 0
    %v2266 = vsel %vm516, %v2141, 0
    %v2269 = vsel %vm516, %v2146, 0
    %v2272 = vsel %vm516, %v2151, 0
    %2274 = vmatprep.subr.mxu0 0.0
    %2275 = vmatpush1.xpose.msra.mxu0 %v2263
    %2276 = vmatprep.subr.mxu0 0.0
    %2277 = vmatpush1.xpose.msra.mxu0 %v2266
    %2278 = vmatprep.subr.mxu0 0.0
    %2279 = vmatpush1.xpose.msra.mxu0 %v2269
    %2280 = vmatprep.subr.mxu0 0.0
    %2281 = vmatpush1.xpose.msra.mxu0 %v2272
    %2282 = vmatprep.subr.mxu0 0.0
    %2283 = vmatpush1.xpose.msra.mxu0 0.0
    %2284 = vmatprep.subr.mxu0 0.0
    %2285 = vmatpush1.xpose.msra.mxu0 0.0
    %2286 = vmatprep.subr.mxu0 0.0
    %2287 = vmatpush1.xpose.msra.mxu0 0.0
    %2288 = vmatprep.subr.mxu0 0.0
    %2289 = vmatpush1.xpose.msra.mxu0 0.0
    %2290 = vmatprep.subr.mxu0 0.0
    %2291 = vmatpush1.xpose.msra.mxu0 0.0
    %2292 = vmatprep.subr.mxu0 0.0
    %2293 = vmatpush1.xpose.msra.mxu0 0.0
    %2294 = vmatprep.subr.mxu0 0.0
    %2295 = vmatpush1.xpose.msra.mxu0 0.0
    %2296 = vmatprep.subr.mxu0 0.0
    %2297 = vmatpush1.xpose.msra.mxu0 0.0
    %2298 = vmatprep.subr.mxu0 0.0
    %2299 = vmatpush1.xpose.msra.mxu0 0.0
    %2300 = vmatprep.subr.mxu0 0.0
    %2301 = vmatpush1.xpose.msra.mxu0 0.0
    %2302 = vmatprep.subr.mxu0 0.0
    %2303 = vmatpush1.xpose.msra.mxu0 0.0
    %2304 = vmatprep.subr.mxu0 0.0
    %2305 = vmatpush1.xpose.msra.mxu0 0.0
    %2306 = vmatprep.subr.mxu0 0.0
    %2307 = vmatpush1.xpose.msra.mxu0 0.0
    %2308 = vmatprep.subr.mxu0 0.0
    %2309 = vmatpush1.xpose.msra.mxu0 0.0
    %2310 = vmatprep.subr.mxu0 0.0
    %2311 = vmatpush1.xpose.msra.mxu0 0.0
    %2312 = vmatprep.subr.mxu0 0.0
    %2313 = vmatpush1.xpose.msra.mxu0 0.0
    %2314 = vmatprep.subr.mxu0 0.0
    %2315 = vmatpush1.xpose.msra.mxu0 0.0
    %2316 = vmatprep.subr.mxu0 0.0
    %2317 = vmatpush1.xpose.msra.mxu0 0.0
    %2318 = vmatprep.subr.mxu0 0.0
    %2319 = vmatpush1.xpose.msra.mxu0 0.0
    %2320 = vmatprep.subr.mxu0 0.0
    %2321 = vmatpush1.xpose.msra.mxu0 0.0
    %2322 = vmatprep.subr.mxu0 0.0
    %2323 = vmatpush1.xpose.msra.mxu0 0.0
    %2324 = vmatprep.subr.mxu0 0.0
    %2325 = vmatpush1.xpose.msra.mxu0 0.0
    %2326 = vmatprep.subr.mxu0 0.0
    %2327 = vmatpush1.xpose.msra.mxu0 0.0
    %2328 = vmatprep.subr.mxu0 0.0
    %2329 = vmatpush1.xpose.msra.mxu0 0.0
    %2330 = vmatprep.subr.mxu0 0.0
    %2331 = vmatpush1.xpose.msra.mxu0 0.0
    %2332 = vmatprep.subr.mxu0 0.0
    %2333 = vmatpush1.xpose.msra.mxu0 0.0
    %2334 = vmatprep.subr.mxu0 0.0
    %2335 = vmatpush1.xpose.msra.mxu0 0.0
    %2336 = vmatprep.subr.mxu0 0.0
    %2337 = vmatpush1.xpose.msra.mxu0 0.0
    %2338 = vmatprep.mubr.f32.mxu0 0.0
    %2339 = vmatmul.mubr.f32.gmra.mrb[0].mxu0 %v2257
    %v2340 = vpop.f32.mrb[0].mxu0
    %v2341 = vadd.f32 0.0, %v2340
    %v2342 = vpop.f32.mrb[0].mxu0
    %2343 = vmatprep.mubr.f32.mxu0 0.0
    %2344 = vmatmul.mubr.f32.gmra.mrb[0].mxu0 %v2260
    %v2345 = vpop.f32.mrb[0].mxu0
    %v2346 = vadd.f32 0.0, %v2345
    %v2347 = vpop.f32.mrb[0].mxu0
    %2348 = vdwg.mxu0
    %v2349 = vmul.f32 %v2341, 0.35355338
    %v2350 = vmul.f32 %v2346, 0.35355338
    %v2351 = vadd.f32 %v2349, %v202
    %v2352 = vadd.f32 %v2350, %v203
    %v2353 = vsel %vm614, %v2351, -inf
    %2354 = vmax.xlane.f32.xlu0 %v2353
    %v2355 = vpop.xlane.xlu0 %2354
    %v2356 = vsel %vm614, %v2352, -inf
    %2357 = vmax.xlane.f32.xlu0 %v2356
    %v2358 = vpop.xlane.xlu0 %2357
    %v2359 = vsub.f32 %v2351, %v2355
    %v2360 = vsub.f32 %v2352, %v2358
    %v2361 = vmul.f32 %v2359, 1.442695
    %v2362 = vpow.pop %v2361
    %v2363 = vmul.f32 %v2360, 1.442695
    %v2364 = vpow.pop %v2363
    %v2365 = vsel %vm614, %v2362, 0.0
    %2366 = vadd.xlane.f32.xlu0 %v2365
    %v2367 = vpop.xlane.xlu0 %2366
    %v2368 = vsel %vm614, %v2364, 0.0
    %2369 = vadd.xlane.f32.xlu0 %v2368
    %v2370 = vpop.xlane.xlu0 %2369
    %v2371 = vrcp.pop %v2367
    %v2372 = vrcp.pop %v2370
    %v2373 = vmul.f32 %v2362, %v2371
    %v2374 = vmul.f32 %v2364, %v2372
    %v2376 = vsel %vm614, %v2373, 0
    %v2379 = vsel %vm614, %v2374, 0
    %2381 = vmatprep.subr.mxu0 0.0
    %2382 = vmatpush1.msra.mxu0 %v2238
    %2383 = vmatprep.subr.mxu0 0.0
    %2384 = vmatpush1.msra.mxu0 %v2243
    %2385 = vmatprep.subr.mxu0 0.0
    %2386 = vmatpush1.msra.mxu0 %v2248
    %2387 = vmatprep.subr.mxu0 0.0
    %2388 = vmatpush1.msra.mxu0 %v2253
    %2389 = vmatprep.subr.mxu0 0.0
    %2390 = vmatpush1.msra.mxu0 0.0
    %2391 = vmatprep.subr.mxu0 0.0
    %2392 = vmatpush1.msra.mxu0 0.0
    %2393 = vmatprep.subr.mxu0 0.0
    %2394 = vmatpush1.msra.mxu0 0.0
    %2395 = vmatprep.subr.mxu0 0.0
    %2396 = vmatpush1.msra.mxu0 0.0
    %2397 = vmatprep.subr.mxu0 0.0
    %2398 = vmatpush1.msra.mxu0 0.0
    %2399 = vmatprep.subr.mxu0 0.0
    %2400 = vmatpush1.msra.mxu0 0.0
    %2401 = vmatprep.subr.mxu0 0.0
    %2402 = vmatpush1.msra.mxu0 0.0
    %2403 = vmatprep.subr.mxu0 0.0
    %2404 = vmatpush1.msra.mxu0 0.0
    %2405 = vmatprep.subr.mxu0 0.0
    %2406 = vmatpush1.msra.mxu0 0.0
    %2407 = vmatprep.subr.mxu0 0.0
    %2408 = vmatpush1.msra.mxu0 0.0
    %2409 = vmatprep.subr.mxu0 0.0
    %2410 = vmatpush1.msra.mxu0 0.0
    %2411 = vmatprep.subr.mxu0 0.0
    %2412 = vmatpush1.msra.mxu0 0.0
    %2413 = vmatprep.subr.mxu0 0.0
    %2414 = vmatpush1.msra.mxu0 0.0
    %2415 = vmatprep.subr.mxu0 0.0
    %2416 = vmatpush1.msra.mxu0 0.0
    %2417 = vmatprep.subr.mxu0 0.0
    %2418 = vmatpush1.msra.mxu0 0.0
    %2419 = vmatprep.subr.mxu0 0.0
    %2420 = vmatpush1.msra.mxu0 0.0
    %2421 = vmatprep.subr.mxu0 0.0
    %2422 = vmatpush1.msra.mxu0 0.0
    %2423 = vmatprep.subr.mxu0 0.0
    %2424 = vmatpush1.msra.mxu0 0.0
    %2425 = vmatprep.subr.mxu0 0.0
    %2426 = vmatpush1.msra.mxu0 0.0
    %2427 = vmatprep.subr.mxu0 0.0
    %2428 = vmatpush1.msra.mxu0 0.0
    %2429 = vmatprep.subr.mxu0 0.0
    %2430 = vmatpush1.msra.mxu0 0.0
    %2431 = vmatprep.subr.mxu0 0.0
    %2432 = vmatpush1.msra.mxu0 0.0
    %2433 = vmatprep.subr.mxu0 0.0
    %2434 = vmatpush1.msra.mxu0 0.0
    %2435 = vmatprep.subr.mxu0 0.0
    %2436 = vmatpush1.msra.mxu0 0.0
    %2437 = vmatprep.subr.mxu0 0.0
    %2438 = vmatpush1.msra.mxu0 0.0
    %2439 = vmatprep.subr.mxu0 0.0
    %2440 = vmatpush1.msra.mxu0 0.0
    %2441 = vmatprep.subr.mxu0 0.0
    %2442 = vmatpush1.msra.mxu0 0.0
    %2443 = vmatprep.subr.mxu0 0.0
    %2444 = vmatpush1.msra.mxu0 0.0
    %2445 = vmatprep.mubr.f32.mxu0 0.0
    %2446 = vmatmul.mubr.f32.gmra.mrb[0].mxu0 %v2376
    %v2447 = vpop.f32.mrb[0].mxu0
    %v2448 = vadd.f32 0.0, %v2447
    %v2449 = vpop.f32.mrb[0].mxu0
    %2450 = vmatprep.mubr.f32.mxu0 0.0
    %2451 = vmatmul.mubr.f32.gmra.mrb[0].mxu0 %v2379
    %v2452 = vpop.f32.mrb[0].mxu0
    %v2453 = vadd.f32 0.0, %v2452
    %v2454 = vpop.f32.mrb[0].mxu0
    %2455 = vdwg.mxu0
    %s2456 = scalar_lea.vmem %s8, 24
    %v2457 = vld [vmem:[%s2456] sm:$0xff]
    %v2459 = vsel %vm516, %v2448, 0
    %v2462 = vsel %vm516, %v2453, 0
    %2464 = vmatprep.subr.mxu0 0.0
    %2465 = vmatpush1.msra.mxu0 %v2457
    %2466 = vmatprep.subr.mxu0 0.0
    %2467 = vmatpush1.msra.mxu0 0.0
    %2468 = vmatprep.subr.mxu0 0.0
    %2469 = vmatpush1.msra.mxu0 0.0
    %2470 = vmatprep.subr.mxu0 0.0
    %2471 = vmatpush1.msra.mxu0 0.0
    %2472 = vmatprep.subr.mxu0 0.0
    %2473 = vmatpush1.msra.mxu0 0.0
    %2474 = vmatprep.subr.mxu0 0.0
    %2475 = vmatpush1.msra.mxu0 0.0
    %2476 = vmatprep.subr.mxu0 0.0
    %2477 = vmatpush1.msra.mxu0 0.0
    %2478 = vmatprep.subr.mxu0 0.0
    %2479 = vmatpush1.msra.mxu0 0.0
    %2480 = vmatprep.subr.mxu0 0.0
    %2481 = vmatpush1.msra.mxu0 0.0
    %2482 = vmatprep.subr.mxu0 0.0
    %2483 = vmatpush1.msra.mxu0 0.0
    %2484 = vmatprep.subr.mxu0 0.0
    %2485 = vmatpush1.msra.mxu0 0.0
    %2486 = vmatprep.subr.mxu0 0.0
    %2487 = vmatpush1.msra.mxu0 0.0
    %2488 = vmatprep.subr.mxu0 0.0
    %2489 = vmatpush1.msra.mxu0 0.0
    %2490 = vmatprep.subr.mxu0 0.0
    %2491 = vmatpush1.msra.mxu0 0.0
    %2492 = vmatprep.subr.mxu0 0.0
    %2493 = vmatpush1.msra.mxu0 0.0
    %2494 = vmatprep.subr.mxu0 0.0
    %2495 = vmatpush1.msra.mxu0 0.0
    %2496 = vmatprep.subr.mxu0 0.0
    %2497 = vmatpush1.msra.mxu0 0.0
    %2498 = vmatprep.subr.mxu0 0.0
    %2499 = vmatpush1.msra.mxu0 0.0
    %2500 = vmatprep.subr.mxu0 0.0
    %2501 = vmatpush1.msra.mxu0 0.0
    %2502 = vmatprep.subr.mxu0 0.0
    %2503 = vmatpush1.msra.mxu0 0.0
    %2504 = vmatprep.subr.mxu0 0.0
    %2505 = vmatpush1.msra.mxu0 0.0
    %2506 = vmatprep.subr.mxu0 0.0
    %2507 = vmatpush1.msra.mxu0 0.0
    %2508 = vmatprep.subr.mxu0 0.0
    %2509 = vmatpush1.msra.mxu0 0.0
    %2510 = vmatprep.subr.mxu0 0.0
    %2511 = vmatpush1.msra.mxu0 0.0
    %2512 = vmatprep.subr.mxu0 0.0
    %2513 = vmatpush1.msra.mxu0 0.0
    %2514 = vmatprep.subr.mxu0 0.0
    %2515 = vmatpush1.msra.mxu0 0.0
    %2516 = vmatprep.subr.mxu0 0.0
    %2517 = vmatpush1.msra.mxu0 0.0
    %2518 = vmatprep.subr.mxu0 0.0
    %2519 = vmatpush1.msra.mxu0 0.0
    %2520 = vmatprep.subr.mxu0 0.0
    %2521 = vmatpush1.msra.mxu0 0.0
    %2522 = vmatprep.subr.mxu0 0.0
    %2523 = vmatpush1.msra.mxu0 0.0
    %2524 = vmatprep.subr.mxu0 0.0
    %2525 = vmatpush1.msra.mxu0 0.0
    %2526 = vmatprep.subr.mxu0 0.0
    %2527 = vmatpush1.msra.mxu0 0.0
    %2528 = vmatprep.mubr.f32.mxu0 0.0
    %2529 = vmatmul.mubr.f32.gmra.mrb[0].mxu0 %v2459
    %v2530 = vpop.f32.mrb[0].mxu0
    %v2531 = vadd.f32 0.0, %v2530
    %v2532 = vpop.f32.mrb[0].mxu0
    %2533 = vmatprep.mubr.f32.mxu0 0.0
    %2534 = vmatmul.mubr.f32.gmra.mrb[0].mxu0 %v2462
    %v2535 = vpop.f32.mrb[0].mxu0
    %v2536 = vadd.f32 0.0, %v2535
    %v2537 = vpop.f32.mrb[0].mxu0
    %2538 = vdwg.mxu0
    %v2539 = vadd.f32 %v1958, %v2531
    %v2540 = vadd.f32 %v1959, %v2536
    %s2541 = scalar_lea.vmem %s6, 256
    %v2542 = vld [vmem:[%s2541] sm:$0xff]
    %v2543 = vld [vmem:[%s2541 + $0x8] sm:$0xff]
    %v2544 = vld [vmem:[%s2541 + $0x10] sm:$0xff]
    %v2545 = vld [vmem:[%s2541 + $0x18] sm:$0xff]
    %v2546 = vld [vmem:[%s2541 + $0x20] sm:$0xff]
    %v2547 = vld [vmem:[%s2541 + $0x28] sm:$0xff]
    %v2548 = vld [vmem:[%s2541 + $0x30] sm:$0xff]
    %v2549 = vld [vmem:[%s2541 + $0x38] sm:$0xff]
    %s2550 = scalar_lea.vmem %s7, 4
    %v2551 = vld [vmem:[%s2550] sm:$0x1]
    %v2553 = vlaneseq
    %v2554 = vshrl.u32 %v2553, 7
    %v2555 = vsub.s32 0, %v2554
    %v2556 = vrot.slane %v2551, %v2555
    %2558 = vmatprep.subr.mxu0 0.0
    %2559 = vmatpush1.msra.mxu0 %v2542
    %2560 = vmatprep.subr.mxu0 0.0
    %2561 = vmatpush1.msra.mxu0 %v2543
    %2562 = vmatprep.subr.mxu0 0.0
    %2563 = vmatpush1.msra.mxu0 %v2544
    %2564 = vmatprep.subr.mxu0 0.0
    %2565 = vmatpush1.msra.mxu0 %v2545
    %2566 = vmatprep.subr.mxu0 0.0
    %2567 = vmatpush1.msra.mxu0 %v2546
    %2568 = vmatprep.subr.mxu0 0.0
    %2569 = vmatpush1.msra.mxu0 %v2547
    %2570 = vmatprep.subr.mxu0 0.0
    %2571 = vmatpush1.msra.mxu0 %v2548
    %2572 = vmatprep.subr.mxu0 0.0
    %2573 = vmatpush1.msra.mxu0 %v2549
    %2574 = vmatprep.subr.mxu0 0.0
    %2575 = vmatpush1.msra.mxu0 0.0
    %2576 = vmatprep.subr.mxu0 0.0
    %2577 = vmatpush1.msra.mxu0 0.0
    %2578 = vmatprep.subr.mxu0 0.0
    %2579 = vmatpush1.msra.mxu0 0.0
    %2580 = vmatprep.subr.mxu0 0.0
    %2581 = vmatpush1.msra.mxu0 0.0
    %2582 = vmatprep.subr.mxu0 0.0
    %2583 = vmatpush1.msra.mxu0 0.0
    %2584 = vmatprep.subr.mxu0 0.0
    %2585 = vmatpush1.msra.mxu0 0.0
    %2586 = vmatprep.subr.mxu0 0.0
    %2587 = vmatpush1.msra.mxu0 0.0
    %2588 = vmatprep.subr.mxu0 0.0
    %2589 = vmatpush1.msra.mxu0 0.0
    %2590 = vmatprep.subr.mxu0 0.0
    %2591 = vmatpush1.msra.mxu0 0.0
    %2592 = vmatprep.subr.mxu0 0.0
    %2593 = vmatpush1.msra.mxu0 0.0
    %2594 = vmatprep.subr.mxu0 0.0
    %2595 = vmatpush1.msra.mxu0 0.0
    %2596 = vmatprep.subr.mxu0 0.0
    %2597 = vmatpush1.msra.mxu0 0.0
    %2598 = vmatprep.subr.mxu0 0.0
    %2599 = vmatpush1.msra.mxu0 0.0
    %2600 = vmatprep.subr.mxu0 0.0
    %2601 = vmatpush1.msra.mxu0 0.0
    %2602 = vmatprep.subr.mxu0 0.0
    %2603 = vmatpush1.msra.mxu0 0.0
    %2604 = vmatprep.subr.mxu0 0.0
    %2605 = vmatpush1.msra.mxu0 0.0
    %2606 = vmatprep.subr.mxu0 0.0
    %2607 = vmatpush1.msra.mxu0 0.0
    %2608 = vmatprep.subr.mxu0 0.0
    %2609 = vmatpush1.msra.mxu0 0.0
    %2610 = vmatprep.subr.mxu0 0.0
    %2611 = vmatpush1.msra.mxu0 0.0
    %2612 = vmatprep.subr.mxu0 0.0
    %2613 = vmatpush1.msra.mxu0 0.0
    %2614 = vmatprep.subr.mxu0 0.0
    %2615 = vmatpush1.msra.mxu0 0.0
    %2616 = vmatprep.subr.mxu0 0.0
    %2617 = vmatpush1.msra.mxu0 0.0
    %2618 = vmatprep.subr.mxu0 0.0
    %2619 = vmatpush1.msra.mxu0 0.0
    %2620 = vmatprep.subr.mxu0 0.0
    %2621 = vmatpush1.msra.mxu0 0.0
    %2622 = vmatprep.mubr.f32.mxu0 0.0
    %2623 = vmatmul.mubr.f32.gmra.mrb[0].mxu0 %v220
    %v2624 = vpop.f32.mrb[0].mxu0
    %v2625 = vadd.f32 %v2556, %v2624
    %v2626 = vpop.f32.mrb[0].mxu0
    %2627 = vmatprep.mubr.f32.mxu0 0.0
    %2628 = vmatmul.mubr.f32.gmra.mrb[0].mxu0 %v223
    %v2629 = vpop.f32.mrb[0].mxu0
    %v2630 = vadd.f32 %v2556, %v2629
    %v2631 = vpop.f32.mrb[0].mxu0
    %2632 = vdwg.mxu0
    %s2633 = scalar_lea.vmem %s6, 768
    %v2634 = vld [vmem:[%s2633] sm:$0xff]
    %v2635 = vld [vmem:[%s2633 + $0x8] sm:$0xff]
    %v2636 = vld [vmem:[%s2633 + $0x10] sm:$0xff]
    %v2637 = vld [vmem:[%s2633 + $0x18] sm:$0xff]
    %v2638 = vld [vmem:[%s2633 + $0x20] sm:$0xff]
    %v2639 = vld [vmem:[%s2633 + $0x28] sm:$0xff]
    %v2640 = vld [vmem:[%s2633 + $0x30] sm:$0xff]
    %v2641 = vld [vmem:[%s2633 + $0x38] sm:$0xff]
    %s2642 = scalar_lea.vmem %s7, 12
    %v2643 = vld [vmem:[%s2642] sm:$0x1]
    %v2645 = vlaneseq
    %v2646 = vshrl.u32 %v2645, 7
    %v2647 = vsub.s32 0, %v2646
    %v2648 = vrot.slane %v2643, %v2647
    %2650 = vmatprep.subr.mxu0 0.0
    %2651 = vmatpush1.msra.mxu0 %v2634
    %2652 = vmatprep.subr.mxu0 0.0
    %2653 = vmatpush1.msra.mxu0 %v2635
    %2654 = vmatprep.subr.mxu0 0.0
    %2655 = vmatpush1.msra.mxu0 %v2636
    %2656 = vmatprep.subr.mxu0 0.0
    %2657 = vmatpush1.msra.mxu0 %v2637
    %2658 = vmatprep.subr.mxu0 0.0
    %2659 = vmatpush1.msra.mxu0 %v2638
    %2660 = vmatprep.subr.mxu0 0.0
    %2661 = vmatpush1.msra.mxu0 %v2639
    %2662 = vmatprep.subr.mxu0 0.0
    %2663 = vmatpush1.msra.mxu0 %v2640
    %2664 = vmatprep.subr.mxu0 0.0
    %2665 = vmatpush1.msra.mxu0 %v2641
    %2666 = vmatprep.subr.mxu0 0.0
    %2667 = vmatpush1.msra.mxu0 0.0
    %2668 = vmatprep.subr.mxu0 0.0
    %2669 = vmatpush1.msra.mxu0 0.0
    %2670 = vmatprep.subr.mxu0 0.0
    %2671 = vmatpush1.msra.mxu0 0.0
    %2672 = vmatprep.subr.mxu0 0.0
    %2673 = vmatpush1.msra.mxu0 0.0
    %2674 = vmatprep.subr.mxu0 0.0
    %2675 = vmatpush1.msra.mxu0 0.0
    %2676 = vmatprep.subr.mxu0 0.0
    %2677 = vmatpush1.msra.mxu0 0.0
    %2678 = vmatprep.subr.mxu0 0.0
    %2679 = vmatpush1.msra.mxu0 0.0
    %2680 = vmatprep.subr.mxu0 0.0
    %2681 = vmatpush1.msra.mxu0 0.0
    %2682 = vmatprep.subr.mxu0 0.0
    %2683 = vmatpush1.msra.mxu0 0.0
    %2684 = vmatprep.subr.mxu0 0.0
    %2685 = vmatpush1.msra.mxu0 0.0
    %2686 = vmatprep.subr.mxu0 0.0
    %2687 = vmatpush1.msra.mxu0 0.0
    %2688 = vmatprep.subr.mxu0 0.0
    %2689 = vmatpush1.msra.mxu0 0.0
    %2690 = vmatprep.subr.mxu0 0.0
    %2691 = vmatpush1.msra.mxu0 0.0
    %2692 = vmatprep.subr.mxu0 0.0
    %2693 = vmatpush1.msra.mxu0 0.0
    %2694 = vmatprep.subr.mxu0 0.0
    %2695 = vmatpush1.msra.mxu0 0.0
    %2696 = vmatprep.subr.mxu0 0.0
    %2697 = vmatpush1.msra.mxu0 0.0
    %2698 = vmatprep.subr.mxu0 0.0
    %2699 = vmatpush1.msra.mxu0 0.0
    %2700 = vmatprep.subr.mxu0 0.0
    %2701 = vmatpush1.msra.mxu0 0.0
    %2702 = vmatprep.subr.mxu0 0.0
    %2703 = vmatpush1.msra.mxu0 0.0
    %2704 = vmatprep.subr.mxu0 0.0
    %2705 = vmatpush1.msra.mxu0 0.0
    %2706 = vmatprep.subr.mxu0 0.0
    %2707 = vmatpush1.msra.mxu0 0.0
    %2708 = vmatprep.subr.mxu0 0.0
    %2709 = vmatpush1.msra.mxu0 0.0
    %2710 = vmatprep.subr.mxu0 0.0
    %2711 = vmatpush1.msra.mxu0 0.0
    %2712 = vmatprep.subr.mxu0 0.0
    %2713 = vmatpush1.msra.mxu0 0.0
    %2714 = vmatprep.mubr.f32.mxu0 0.0
    %2715 = vmatmul.mubr.f32.gmra.mrb[0].mxu0 %v318
    %v2716 = vpop.f32.mrb[0].mxu0
    %v2717 = vadd.f32 %v2648, %v2716
    %v2718 = vpop.f32.mrb[0].mxu0
    %2719 = vmatprep.mubr.f32.mxu0 0.0
    %2720 = vmatmul.mubr.f32.gmra.mrb[0].mxu0 %v321
    %v2721 = vpop.f32.mrb[0].mxu0
    %v2722 = vadd.f32 %v2648, %v2721
    %v2723 = vpop.f32.mrb[0].mxu0
    %2724 = vmatprep.mubr.f32.mxu0 0.0
    %2725 = vmatmul.mubr.f32.gmra.mrb[0].mxu0 %v324
    %v2726 = vpop.f32.mrb[0].mxu0
    %v2727 = vadd.f32 %v2648, %v2726
    %v2728 = vpop.f32.mrb[0].mxu0
    %2729 = vmatprep.mubr.f32.mxu0 0.0
    %2730 = vmatmul.mubr.f32.gmra.mrb[0].mxu0 %v327
    %v2731 = vpop.f32.mrb[0].mxu0
    %v2732 = vadd.f32 %v2648, %v2731
    %v2733 = vpop.f32.mrb[0].mxu0
    %2734 = vdwg.mxu0
    %s2735 = scalar_lea.vmem %s6, 1280
    %v2736 = vld [vmem:[%s2735] sm:$0xff]
    %v2737 = vld [vmem:[%s2735 + $0x8] sm:$0xff]
    %v2738 = vld [vmem:[%s2735 + $0x10] sm:$0xff]
    %v2739 = vld [vmem:[%s2735 + $0x18] sm:$0xff]
    %v2740 = vld [vmem:[%s2735 + $0x20] sm:$0xff]
    %v2741 = vld [vmem:[%s2735 + $0x28] sm:$0xff]
    %v2742 = vld [vmem:[%s2735 + $0x30] sm:$0xff]
    %v2743 = vld [vmem:[%s2735 + $0x38] sm:$0xff]
    %s2744 = scalar_lea.vmem %s7, 20
    %v2745 = vld [vmem:[%s2744] sm:$0x1]
    %v2747 = vlaneseq
    %v2748 = vshrl.u32 %v2747, 7
    %v2749 = vsub.s32 0, %v2748
    %v2750 = vrot.slane %v2745, %v2749
    %2752 = vmatprep.subr.mxu0 0.0
    %2753 = vmatpush1.msra.mxu0 %v2736
    %2754 = vmatprep.subr.mxu0 0.0
    %2755 = vmatpush1.msra.mxu0 %v2737
    %2756 = vmatprep.subr.mxu0 0.0
    %2757 = vmatpush1.msra.mxu0 %v2738
    %2758 = vmatprep.subr.mxu0 0.0
    %2759 = vmatpush1.msra.mxu0 %v2739
    %2760 = vmatprep.subr.mxu0 0.0
    %2761 = vmatpush1.msra.mxu0 %v2740
    %2762 = vmatprep.subr.mxu0 0.0
    %2763 = vmatpush1.msra.mxu0 %v2741
    %2764 = vmatprep.subr.mxu0 0.0
    %2765 = vmatpush1.msra.mxu0 %v2742
    %2766 = vmatprep.subr.mxu0 0.0
    %2767 = vmatpush1.msra.mxu0 %v2743
    %2768 = vmatprep.subr.mxu0 0.0
    %2769 = vmatpush1.msra.mxu0 0.0
    %2770 = vmatprep.subr.mxu0 0.0
    %2771 = vmatpush1.msra.mxu0 0.0
    %2772 = vmatprep.subr.mxu0 0.0
    %2773 = vmatpush1.msra.mxu0 0.0
    %2774 = vmatprep.subr.mxu0 0.0
    %2775 = vmatpush1.msra.mxu0 0.0
    %2776 = vmatprep.subr.mxu0 0.0
    %2777 = vmatpush1.msra.mxu0 0.0
    %2778 = vmatprep.subr.mxu0 0.0
    %2779 = vmatpush1.msra.mxu0 0.0
    %2780 = vmatprep.subr.mxu0 0.0
    %2781 = vmatpush1.msra.mxu0 0.0
    %2782 = vmatprep.subr.mxu0 0.0
    %2783 = vmatpush1.msra.mxu0 0.0
    %2784 = vmatprep.subr.mxu0 0.0
    %2785 = vmatpush1.msra.mxu0 0.0
    %2786 = vmatprep.subr.mxu0 0.0
    %2787 = vmatpush1.msra.mxu0 0.0
    %2788 = vmatprep.subr.mxu0 0.0
    %2789 = vmatpush1.msra.mxu0 0.0
    %2790 = vmatprep.subr.mxu0 0.0
    %2791 = vmatpush1.msra.mxu0 0.0
    %2792 = vmatprep.subr.mxu0 0.0
    %2793 = vmatpush1.msra.mxu0 0.0
    %2794 = vmatprep.subr.mxu0 0.0
    %2795 = vmatpush1.msra.mxu0 0.0
    %2796 = vmatprep.subr.mxu0 0.0
    %2797 = vmatpush1.msra.mxu0 0.0
    %2798 = vmatprep.subr.mxu0 0.0
    %2799 = vmatpush1.msra.mxu0 0.0
    %2800 = vmatprep.subr.mxu0 0.0
    %2801 = vmatpush1.msra.mxu0 0.0
    %2802 = vmatprep.subr.mxu0 0.0
    %2803 = vmatpush1.msra.mxu0 0.0
    %2804 = vmatprep.subr.mxu0 0.0
    %2805 = vmatpush1.msra.mxu0 0.0
    %2806 = vmatprep.subr.mxu0 0.0
    %2807 = vmatpush1.msra.mxu0 0.0
    %2808 = vmatprep.subr.mxu0 0.0
    %2809 = vmatpush1.msra.mxu0 0.0
    %2810 = vmatprep.subr.mxu0 0.0
    %2811 = vmatpush1.msra.mxu0 0.0
    %2812 = vmatprep.subr.mxu0 0.0
    %2813 = vmatpush1.msra.mxu0 0.0
    %2814 = vmatprep.subr.mxu0 0.0
    %2815 = vmatpush1.msra.mxu0 0.0
    %2816 = vmatprep.mubr.f32.mxu0 0.0
    %2817 = vmatmul.mubr.f32.gmra.mrb[0].mxu0 %v318
    %v2818 = vpop.f32.mrb[0].mxu0
    %v2819 = vadd.f32 %v2750, %v2818
    %v2820 = vpop.f32.mrb[0].mxu0
    %2821 = vmatprep.mubr.f32.mxu0 0.0
    %2822 = vmatmul.mubr.f32.gmra.mrb[0].mxu0 %v321
    %v2823 = vpop.f32.mrb[0].mxu0
    %v2824 = vadd.f32 %v2750, %v2823
    %v2825 = vpop.f32.mrb[0].mxu0
    %2826 = vmatprep.mubr.f32.mxu0 0.0
    %2827 = vmatmul.mubr.f32.gmra.mrb[0].mxu0 %v324
    %v2828 = vpop.f32.mrb[0].mxu0
    %v2829 = vadd.f32 %v2750, %v2828
    %v2830 = vpop.f32.mrb[0].mxu0
    %2831 = vmatprep.mubr.f32.mxu0 0.0
    %2832 = vmatmul.mubr.f32.gmra.mrb[0].mxu0 %v327
    %v2833 = vpop.f32.mrb[0].mxu0
    %v2834 = vadd.f32 %v2750, %v2833
    %v2835 = vpop.f32.mrb[0].mxu0
    %2836 = vdwg.mxu0
    %v2838 = vsel %vm516, %v2625, 0
    %v2841 = vsel %vm516, %v2630, 0
    %v2844 = vsel %vm516, %v2717, 0
    %v2847 = vsel %vm516, %v2722, 0
    %v2850 = vsel %vm516, %v2727, 0
    %v2853 = vsel %vm516, %v2732, 0
    %2855 = vmatprep.subr.mxu0 0.0
    %2856 = vmatpush1.xpose.msra.mxu0 %v2844
    %2857 = vmatprep.subr.mxu0 0.0
    %2858 = vmatpush1.xpose.msra.mxu0 %v2847
    %2859 = vmatprep.subr.mxu0 0.0
    %2860 = vmatpush1.xpose.msra.mxu0 %v2850
    %2861 = vmatprep.subr.mxu0 0.0
    %2862 = vmatpush1.xpose.msra.mxu0 %v2853
    %2863 = vmatprep.subr.mxu0 0.0
    %2864 = vmatpush1.xpose.msra.mxu0 0.0
    %2865 = vmatprep.subr.mxu0 0.0
    %2866 = vmatpush1.xpose.msra.mxu0 0.0
    %2867 = vmatprep.subr.mxu0 0.0
    %2868 = vmatpush1.xpose.msra.mxu0 0.0
    %2869 = vmatprep.subr.mxu0 0.0
    %2870 = vmatpush1.xpose.msra.mxu0 0.0
    %2871 = vmatprep.subr.mxu0 0.0
    %2872 = vmatpush1.xpose.msra.mxu0 0.0
    %2873 = vmatprep.subr.mxu0 0.0
    %2874 = vmatpush1.xpose.msra.mxu0 0.0
    %2875 = vmatprep.subr.mxu0 0.0
    %2876 = vmatpush1.xpose.msra.mxu0 0.0
    %2877 = vmatprep.subr.mxu0 0.0
    %2878 = vmatpush1.xpose.msra.mxu0 0.0
    %2879 = vmatprep.subr.mxu0 0.0
    %2880 = vmatpush1.xpose.msra.mxu0 0.0
    %2881 = vmatprep.subr.mxu0 0.0
    %2882 = vmatpush1.xpose.msra.mxu0 0.0
    %2883 = vmatprep.subr.mxu0 0.0
    %2884 = vmatpush1.xpose.msra.mxu0 0.0
    %2885 = vmatprep.subr.mxu0 0.0
    %2886 = vmatpush1.xpose.msra.mxu0 0.0
    %2887 = vmatprep.subr.mxu0 0.0
    %2888 = vmatpush1.xpose.msra.mxu0 0.0
    %2889 = vmatprep.subr.mxu0 0.0
    %2890 = vmatpush1.xpose.msra.mxu0 0.0
    %2891 = vmatprep.subr.mxu0 0.0
    %2892 = vmatpush1.xpose.msra.mxu0 0.0
    %2893 = vmatprep.subr.mxu0 0.0
    %2894 = vmatpush1.xpose.msra.mxu0 0.0
    %2895 = vmatprep.subr.mxu0 0.0
    %2896 = vmatpush1.xpose.msra.mxu0 0.0
    %2897 = vmatprep.subr.mxu0 0.0
    %2898 = vmatpush1.xpose.msra.mxu0 0.0
    %2899 = vmatprep.subr.mxu0 0.0
    %2900 = vmatpush1.xpose.msra.mxu0 0.0
    %2901 = vmatprep.subr.mxu0 0.0
    %2902 = vmatpush1.xpose.msra.mxu0 0.0
    %2903 = vmatprep.subr.mxu0 0.0
    %2904 = vmatpush1.xpose.msra.mxu0 0.0
    %2905 = vmatprep.subr.mxu0 0.0
    %2906 = vmatpush1.xpose.msra.mxu0 0.0
    %2907 = vmatprep.subr.mxu0 0.0
    %2908 = vmatpush1.xpose.msra.mxu0 0.0
    %2909 = vmatprep.subr.mxu0 0.0
    %2910 = vmatpush1.xpose.msra.mxu0 0.0
    %2911 = vmatprep.subr.mxu0 0.0
    %2912 = vmatpush1.xpose.msra.mxu0 0.0
    %2913 = vmatprep.subr.mxu0 0.0
    %2914 = vmatpush1.xpose.msra.mxu0 0.0
    %2915 = vmatprep.subr.mxu0 0.0
    %2916 = vmatpush1.xpose.msra.mxu0 0.0
    %2917 = vmatprep.subr.mxu0 0.0
    %2918 = vmatpush1.xpose.msra.mxu0 0.0
    %2919 = vmatprep.mubr.f32.mxu0 0.0
    %2920 = vmatmul.mubr.f32.gmra.mrb[0].mxu0 %v2838
    %v2921 = vpop.f32.mrb[0].mxu0
    %v2922 = vadd.f32 0.0, %v2921
    %v2923 = vpop.f32.mrb[0].mxu0
    %2924 = vmatprep.mubr.f32.mxu0 0.0
    %2925 = vmatmul.mubr.f32.gmra.mrb[0].mxu0 %v2841
    %v2926 = vpop.f32.mrb[0].mxu0
    %v2927 = vadd.f32 0.0, %v2926
    %v2928 = vpop.f32.mrb[0].mxu0
    %2929 = vdwg.mxu0
    %v2930 = vmul.f32 %v2922, 0.35355338
    %v2931 = vmul.f32 %v2927, 0.35355338
    %v2932 = vadd.f32 %v2930, %v202
    %v2933 = vadd.f32 %v2931, %v203
    %v2934 = vsel %vm614, %v2932, -inf
    %2935 = vmax.xlane.f32.xlu0 %v2934
    %v2936 = vpop.xlane.xlu0 %2935
    %v2937 = vsel %vm614, %v2933, -inf
    %2938 = vmax.xlane.f32.xlu0 %v2937
    %v2939 = vpop.xlane.xlu0 %2938
    %v2940 = vsub.f32 %v2932, %v2936
    %v2941 = vsub.f32 %v2933, %v2939
    %v2942 = vmul.f32 %v2940, 1.442695
    %v2943 = vpow.pop %v2942
    %v2944 = vmul.f32 %v2941, 1.442695
    %v2945 = vpow.pop %v2944
    %v2946 = vsel %vm614, %v2943, 0.0
    %2947 = vadd.xlane.f32.xlu0 %v2946
    %v2948 = vpop.xlane.xlu0 %2947
    %v2949 = vsel %vm614, %v2945, 0.0
    %2950 = vadd.xlane.f32.xlu0 %v2949
    %v2951 = vpop.xlane.xlu0 %2950
    %v2952 = vrcp.pop %v2948
    %v2953 = vrcp.pop %v2951
    %v2954 = vmul.f32 %v2943, %v2952
    %v2955 = vmul.f32 %v2945, %v2953
    %v2957 = vsel %vm614, %v2954, 0
    %v2960 = vsel %vm614, %v2955, 0
    %2962 = vmatprep.subr.mxu0 0.0
    %2963 = vmatpush1.msra.mxu0 %v2819
    %2964 = vmatprep.subr.mxu0 0.0
    %2965 = vmatpush1.msra.mxu0 %v2824
    %2966 = vmatprep.subr.mxu0 0.0
    %2967 = vmatpush1.msra.mxu0 %v2829
    %2968 = vmatprep.subr.mxu0 0.0
    %2969 = vmatpush1.msra.mxu0 %v2834
    %2970 = vmatprep.subr.mxu0 0.0
    %2971 = vmatpush1.msra.mxu0 0.0
    %2972 = vmatprep.subr.mxu0 0.0
    %2973 = vmatpush1.msra.mxu0 0.0
    %2974 = vmatprep.subr.mxu0 0.0
    %2975 = vmatpush1.msra.mxu0 0.0
    %2976 = vmatprep.subr.mxu0 0.0
    %2977 = vmatpush1.msra.mxu0 0.0
    %2978 = vmatprep.subr.mxu0 0.0
    %2979 = vmatpush1.msra.mxu0 0.0
    %2980 = vmatprep.subr.mxu0 0.0
    %2981 = vmatpush1.msra.mxu0 0.0
    %2982 = vmatprep.subr.mxu0 0.0
    %2983 = vmatpush1.msra.mxu0 0.0
    %2984 = vmatprep.subr.mxu0 0.0
    %2985 = vmatpush1.msra.mxu0 0.0
    %2986 = vmatprep.subr.mxu0 0.0
    %2987 = vmatpush1.msra.mxu0 0.0
    %2988 = vmatprep.subr.mxu0 0.0
    %2989 = vmatpush1.msra.mxu0 0.0
    %2990 = vmatprep.subr.mxu0 0.0
    %2991 = vmatpush1.msra.mxu0 0.0
    %2992 = vmatprep.subr.mxu0 0.0
    %2993 = vmatpush1.msra.mxu0 0.0
    %2994 = vmatprep.subr.mxu0 0.0
    %2995 = vmatpush1.msra.mxu0 0.0
    %2996 = vmatprep.subr.mxu0 0.0
    %2997 = vmatpush1.msra.mxu0 0.0
    %2998 = vmatprep.subr.mxu0 0.0
    %2999 = vmatpush1.msra.mxu0 0.0
    %3000 = vmatprep.subr.mxu0 0.0
    %3001 = vmatpush1.msra.mxu0 0.0
    %3002 = vmatprep.subr.mxu0 0.0
    %3003 = vmatpush1.msra.mxu0 0.0
    %3004 = vmatprep.subr.mxu0 0.0
    %3005 = vmatpush1.msra.mxu0 0.0
    %3006 = vmatprep.subr.mxu0 0.0
    %3007 = vmatpush1.msra.mxu0 0.0
    %3008 = vmatprep.subr.mxu0 0.0
    %3009 = vmatpush1.msra.mxu0 0.0
    %3010 = vmatprep.subr.mxu0 0.0
    %3011 = vmatpush1.msra.mxu0 0.0
    %3012 = vmatprep.subr.mxu0 0.0
    %3013 = vmatpush1.msra.mxu0 0.0
    %3014 = vmatprep.subr.mxu0 0.0
    %3015 = vmatpush1.msra.mxu0 0.0
    %3016 = vmatprep.subr.mxu0 0.0
    %3017 = vmatpush1.msra.mxu0 0.0
    %3018 = vmatprep.subr.mxu0 0.0
    %3019 = vmatpush1.msra.mxu0 0.0
    %3020 = vmatprep.subr.mxu0 0.0
    %3021 = vmatpush1.msra.mxu0 0.0
    %3022 = vmatprep.subr.mxu0 0.0
    %3023 = vmatpush1.msra.mxu0 0.0
    %3024 = vmatprep.subr.mxu0 0.0
    %3025 = vmatpush1.msra.mxu0 0.0
    %3026 = vmatprep.mubr.f32.mxu0 0.0
    %3027 = vmatmul.mubr.f32.gmra.mrb[0].mxu0 %v2957
    %v3028 = vpop.f32.mrb[0].mxu0
    %v3029 = vadd.f32 0.0, %v3028
    %v3030 = vpop.f32.mrb[0].mxu0
    %3031 = vmatprep.mubr.f32.mxu0 0.0
    %3032 = vmatmul.mubr.f32.gmra.mrb[0].mxu0 %v2960
    %v3033 = vpop.f32.mrb[0].mxu0
    %v3034 = vadd.f32 0.0, %v3033
    %v3035 = vpop.f32.mrb[0].mxu0
    %3036 = vdwg.mxu0
    %s3037 = scalar_lea.vmem %s8, 32
    %v3038 = vld [vmem:[%s3037] sm:$0xff]
    %v3040 = vsel %vm516, %v3029, 0
    %v3043 = vsel %vm516, %v3034, 0
    %3045 = vmatprep.subr.mxu0 0.0
    %3046 = vmatpush1.msra.mxu0 %v3038
    %3047 = vmatprep.subr.mxu0 0.0
    %3048 = vmatpush1.msra.mxu0 0.0
    %3049 = vmatprep.subr.mxu0 0.0
    %3050 = vmatpush1.msra.mxu0 0.0
    %3051 = vmatprep.subr.mxu0 0.0
    %3052 = vmatpush1.msra.mxu0 0.0
    %3053 = vmatprep.subr.mxu0 0.0
    %3054 = vmatpush1.msra.mxu0 0.0
    %3055 = vmatprep.subr.mxu0 0.0
    %3056 = vmatpush1.msra.mxu0 0.0
    %3057 = vmatprep.subr.mxu0 0.0
    %3058 = vmatpush1.msra.mxu0 0.0
    %3059 = vmatprep.subr.mxu0 0.0
    %3060 = vmatpush1.msra.mxu0 0.0
    %3061 = vmatprep.subr.mxu0 0.0
    %3062 = vmatpush1.msra.mxu0 0.0
    %3063 = vmatprep.subr.mxu0 0.0
    %3064 = vmatpush1.msra.mxu0 0.0
    %3065 = vmatprep.subr.mxu0 0.0
    %3066 = vmatpush1.msra.mxu0 0.0
    %3067 = vmatprep.subr.mxu0 0.0
    %3068 = vmatpush1.msra.mxu0 0.0
    %3069 = vmatprep.subr.mxu0 0.0
    %3070 = vmatpush1.msra.mxu0 0.0
    %3071 = vmatprep.subr.mxu0 0.0
    %3072 = vmatpush1.msra.mxu0 0.0
    %3073 = vmatprep.subr.mxu0 0.0
    %3074 = vmatpush1.msra.mxu0 0.0
    %3075 = vmatprep.subr.mxu0 0.0
    %3076 = vmatpush1.msra.mxu0 0.0
    %3077 = vmatprep.subr.mxu0 0.0
    %3078 = vmatpush1.msra.mxu0 0.0
    %3079 = vmatprep.subr.mxu0 0.0
    %3080 = vmatpush1.msra.mxu0 0.0
    %3081 = vmatprep.subr.mxu0 0.0
    %3082 = vmatpush1.msra.mxu0 0.0
    %3083 = vmatprep.subr.mxu0 0.0
    %3084 = vmatpush1.msra.mxu0 0.0
    %3085 = vmatprep.subr.mxu0 0.0
    %3086 = vmatpush1.msra.mxu0 0.0
    %3087 = vmatprep.subr.mxu0 0.0
    %3088 = vmatpush1.msra.mxu0 0.0
    %3089 = vmatprep.subr.mxu0 0.0
    %3090 = vmatpush1.msra.mxu0 0.0
    %3091 = vmatprep.subr.mxu0 0.0
    %3092 = vmatpush1.msra.mxu0 0.0
    %3093 = vmatprep.subr.mxu0 0.0
    %3094 = vmatpush1.msra.mxu0 0.0
    %3095 = vmatprep.subr.mxu0 0.0
    %3096 = vmatpush1.msra.mxu0 0.0
    %3097 = vmatprep.subr.mxu0 0.0
    %3098 = vmatpush1.msra.mxu0 0.0
    %3099 = vmatprep.subr.mxu0 0.0
    %3100 = vmatpush1.msra.mxu0 0.0
    %3101 = vmatprep.subr.mxu0 0.0
    %3102 = vmatpush1.msra.mxu0 0.0
    %3103 = vmatprep.subr.mxu0 0.0
    %3104 = vmatpush1.msra.mxu0 0.0
    %3105 = vmatprep.subr.mxu0 0.0
    %3106 = vmatpush1.msra.mxu0 0.0
    %3107 = vmatprep.subr.mxu0 0.0
    %3108 = vmatpush1.msra.mxu0 0.0
    %3109 = vmatprep.mubr.f32.mxu0 0.0
    %3110 = vmatmul.mubr.f32.gmra.mrb[0].mxu0 %v3040
    %v3111 = vpop.f32.mrb[0].mxu0
    %v3112 = vadd.f32 0.0, %v3111
    %v3113 = vpop.f32.mrb[0].mxu0
    %3114 = vmatprep.mubr.f32.mxu0 0.0
    %3115 = vmatmul.mubr.f32.gmra.mrb[0].mxu0 %v3043
    %v3116 = vpop.f32.mrb[0].mxu0
    %v3117 = vadd.f32 0.0, %v3116
    %v3118 = vpop.f32.mrb[0].mxu0
    %3119 = vdwg.mxu0
    %v3120 = vadd.f32 %v2539, %v3112
    %v3121 = vadd.f32 %v2540, %v3117
    %s3122 = scalar_lea.vmem %s6, 320
    %v3123 = vld [vmem:[%s3122] sm:$0xff]
    %v3124 = vld [vmem:[%s3122 + $0x8] sm:$0xff]
    %v3125 = vld [vmem:[%s3122 + $0x10] sm:$0xff]
    %v3126 = vld [vmem:[%s3122 + $0x18] sm:$0xff]
    %v3127 = vld [vmem:[%s3122 + $0x20] sm:$0xff]
    %v3128 = vld [vmem:[%s3122 + $0x28] sm:$0xff]
    %v3129 = vld [vmem:[%s3122 + $0x30] sm:$0xff]
    %v3130 = vld [vmem:[%s3122 + $0x38] sm:$0xff]
    %s3131 = scalar_lea.vmem %s7, 5
    %v3132 = vld [vmem:[%s3131] sm:$0x1]
    %v3134 = vlaneseq
    %v3135 = vshrl.u32 %v3134, 7
    %v3136 = vsub.s32 0, %v3135
    %v3137 = vrot.slane %v3132, %v3136
    %3139 = vmatprep.subr.mxu0 0.0
    %3140 = vmatpush1.msra.mxu0 %v3123
    %3141 = vmatprep.subr.mxu0 0.0
    %3142 = vmatpush1.msra.mxu0 %v3124
    %3143 = vmatprep.subr.mxu0 0.0
    %3144 = vmatpush1.msra.mxu0 %v3125
    %3145 = vmatprep.subr.mxu0 0.0
    %3146 = vmatpush1.msra.mxu0 %v3126
    %3147 = vmatprep.subr.mxu0 0.0
    %3148 = vmatpush1.msra.mxu0 %v3127
    %3149 = vmatprep.subr.mxu0 0.0
    %3150 = vmatpush1.msra.mxu0 %v3128
    %3151 = vmatprep.subr.mxu0 0.0
    %3152 = vmatpush1.msra.mxu0 %v3129
    %3153 = vmatprep.subr.mxu0 0.0
    %3154 = vmatpush1.msra.mxu0 %v3130
    %3155 = vmatprep.subr.mxu0 0.0
    %3156 = vmatpush1.msra.mxu0 0.0
    %3157 = vmatprep.subr.mxu0 0.0
    %3158 = vmatpush1.msra.mxu0 0.0
    %3159 = vmatprep.subr.mxu0 0.0
    %3160 = vmatpush1.msra.mxu0 0.0
    %3161 = vmatprep.subr.mxu0 0.0
    %3162 = vmatpush1.msra.mxu0 0.0
    %3163 = vmatprep.subr.mxu0 0.0
    %3164 = vmatpush1.msra.mxu0 0.0
    %3165 = vmatprep.subr.mxu0 0.0
    %3166 = vmatpush1.msra.mxu0 0.0
    %3167 = vmatprep.subr.mxu0 0.0
    %3168 = vmatpush1.msra.mxu0 0.0
    %3169 = vmatprep.subr.mxu0 0.0
    %3170 = vmatpush1.msra.mxu0 0.0
    %3171 = vmatprep.subr.mxu0 0.0
    %3172 = vmatpush1.msra.mxu0 0.0
    %3173 = vmatprep.subr.mxu0 0.0
    %3174 = vmatpush1.msra.mxu0 0.0
    %3175 = vmatprep.subr.mxu0 0.0
    %3176 = vmatpush1.msra.mxu0 0.0
    %3177 = vmatprep.subr.mxu0 0.0
    %3178 = vmatpush1.msra.mxu0 0.0
    %3179 = vmatprep.subr.mxu0 0.0
    %3180 = vmatpush1.msra.mxu0 0.0
    %3181 = vmatprep.subr.mxu0 0.0
    %3182 = vmatpush1.msra.mxu0 0.0
    %3183 = vmatprep.subr.mxu0 0.0
    %3184 = vmatpush1.msra.mxu0 0.0
    %3185 = vmatprep.subr.mxu0 0.0
    %3186 = vmatpush1.msra.mxu0 0.0
    %3187 = vmatprep.subr.mxu0 0.0
    %3188 = vmatpush1.msra.mxu0 0.0
    %3189 = vmatprep.subr.mxu0 0.0
    %3190 = vmatpush1.msra.mxu0 0.0
    %3191 = vmatprep.subr.mxu0 0.0
    %3192 = vmatpush1.msra.mxu0 0.0
    %3193 = vmatprep.subr.mxu0 0.0
    %3194 = vmatpush1.msra.mxu0 0.0
    %3195 = vmatprep.subr.mxu0 0.0
    %3196 = vmatpush1.msra.mxu0 0.0
    %3197 = vmatprep.subr.mxu0 0.0
    %3198 = vmatpush1.msra.mxu0 0.0
    %3199 = vmatprep.subr.mxu0 0.0
    %3200 = vmatpush1.msra.mxu0 0.0
    %3201 = vmatprep.subr.mxu0 0.0
    %3202 = vmatpush1.msra.mxu0 0.0
    %3203 = vmatprep.mubr.f32.mxu0 0.0
    %3204 = vmatmul.mubr.f32.gmra.mrb[0].mxu0 %v220
    %v3205 = vpop.f32.mrb[0].mxu0
    %v3206 = vadd.f32 %v3137, %v3205
    %v3207 = vpop.f32.mrb[0].mxu0
    %3208 = vmatprep.mubr.f32.mxu0 0.0
    %3209 = vmatmul.mubr.f32.gmra.mrb[0].mxu0 %v223
    %v3210 = vpop.f32.mrb[0].mxu0
    %v3211 = vadd.f32 %v3137, %v3210
    %v3212 = vpop.f32.mrb[0].mxu0
    %3213 = vdwg.mxu0
    %s3214 = scalar_lea.vmem %s6, 832
    %v3215 = vld [vmem:[%s3214] sm:$0xff]
    %v3216 = vld [vmem:[%s3214 + $0x8] sm:$0xff]
    %v3217 = vld [vmem:[%s3214 + $0x10] sm:$0xff]
    %v3218 = vld [vmem:[%s3214 + $0x18] sm:$0xff]
    %v3219 = vld [vmem:[%s3214 + $0x20] sm:$0xff]
    %v3220 = vld [vmem:[%s3214 + $0x28] sm:$0xff]
    %v3221 = vld [vmem:[%s3214 + $0x30] sm:$0xff]
    %v3222 = vld [vmem:[%s3214 + $0x38] sm:$0xff]
    %s3223 = scalar_lea.vmem %s7, 13
    %v3224 = vld [vmem:[%s3223] sm:$0x1]
    %v3226 = vlaneseq
    %v3227 = vshrl.u32 %v3226, 7
    %v3228 = vsub.s32 0, %v3227
    %v3229 = vrot.slane %v3224, %v3228
    %3231 = vmatprep.subr.mxu0 0.0
    %3232 = vmatpush1.msra.mxu0 %v3215
    %3233 = vmatprep.subr.mxu0 0.0
    %3234 = vmatpush1.msra.mxu0 %v3216
    %3235 = vmatprep.subr.mxu0 0.0
    %3236 = vmatpush1.msra.mxu0 %v3217
    %3237 = vmatprep.subr.mxu0 0.0
    %3238 = vmatpush1.msra.mxu0 %v3218
    %3239 = vmatprep.subr.mxu0 0.0
    %3240 = vmatpush1.msra.mxu0 %v3219
    %3241 = vmatprep.subr.mxu0 0.0
    %3242 = vmatpush1.msra.mxu0 %v3220
    %3243 = vmatprep.subr.mxu0 0.0
    %3244 = vmatpush1.msra.mxu0 %v3221
    %3245 = vmatprep.subr.mxu0 0.0
    %3246 = vmatpush1.msra.mxu0 %v3222
    %3247 = vmatprep.subr.mxu0 0.0
    %3248 = vmatpush1.msra.mxu0 0.0
    %3249 = vmatprep.subr.mxu0 0.0
    %3250 = vmatpush1.msra.mxu0 0.0
    %3251 = vmatprep.subr.mxu0 0.0
    %3252 = vmatpush1.msra.mxu0 0.0
    %3253 = vmatprep.subr.mxu0 0.0
    %3254 = vmatpush1.msra.mxu0 0.0
    %3255 = vmatprep.subr.mxu0 0.0
    %3256 = vmatpush1.msra.mxu0 0.0
    %3257 = vmatprep.subr.mxu0 0.0
    %3258 = vmatpush1.msra.mxu0 0.0
    %3259 = vmatprep.subr.mxu0 0.0
    %3260 = vmatpush1.msra.mxu0 0.0
    %3261 = vmatprep.subr.mxu0 0.0
    %3262 = vmatpush1.msra.mxu0 0.0
    %3263 = vmatprep.subr.mxu0 0.0
    %3264 = vmatpush1.msra.mxu0 0.0
    %3265 = vmatprep.subr.mxu0 0.0
    %3266 = vmatpush1.msra.mxu0 0.0
    %3267 = vmatprep.subr.mxu0 0.0
    %3268 = vmatpush1.msra.mxu0 0.0
    %3269 = vmatprep.subr.mxu0 0.0
    %3270 = vmatpush1.msra.mxu0 0.0
    %3271 = vmatprep.subr.mxu0 0.0
    %3272 = vmatpush1.msra.mxu0 0.0
    %3273 = vmatprep.subr.mxu0 0.0
    %3274 = vmatpush1.msra.mxu0 0.0
    %3275 = vmatprep.subr.mxu0 0.0
    %3276 = vmatpush1.msra.mxu0 0.0
    %3277 = vmatprep.subr.mxu0 0.0
    %3278 = vmatpush1.msra.mxu0 0.0
    %3279 = vmatprep.subr.mxu0 0.0
    %3280 = vmatpush1.msra.mxu0 0.0
    %3281 = vmatprep.subr.mxu0 0.0
    %3282 = vmatpush1.msra.mxu0 0.0
    %3283 = vmatprep.subr.mxu0 0.0
    %3284 = vmatpush1.msra.mxu0 0.0
    %3285 = vmatprep.subr.mxu0 0.0
    %3286 = vmatpush1.msra.mxu0 0.0
    %3287 = vmatprep.subr.mxu0 0.0
    %3288 = vmatpush1.msra.mxu0 0.0
    %3289 = vmatprep.subr.mxu0 0.0
    %3290 = vmatpush1.msra.mxu0 0.0
    %3291 = vmatprep.subr.mxu0 0.0
    %3292 = vmatpush1.msra.mxu0 0.0
    %3293 = vmatprep.subr.mxu0 0.0
    %3294 = vmatpush1.msra.mxu0 0.0
    %3295 = vmatprep.mubr.f32.mxu0 0.0
    %3296 = vmatmul.mubr.f32.gmra.mrb[0].mxu0 %v318
    %v3297 = vpop.f32.mrb[0].mxu0
    %v3298 = vadd.f32 %v3229, %v3297
    %v3299 = vpop.f32.mrb[0].mxu0
    %3300 = vmatprep.mubr.f32.mxu0 0.0
    %3301 = vmatmul.mubr.f32.gmra.mrb[0].mxu0 %v321
    %v3302 = vpop.f32.mrb[0].mxu0
    %v3303 = vadd.f32 %v3229, %v3302
    %v3304 = vpop.f32.mrb[0].mxu0
    %3305 = vmatprep.mubr.f32.mxu0 0.0
    %3306 = vmatmul.mubr.f32.gmra.mrb[0].mxu0 %v324
    %v3307 = vpop.f32.mrb[0].mxu0
    %v3308 = vadd.f32 %v3229, %v3307
    %v3309 = vpop.f32.mrb[0].mxu0
    %3310 = vmatprep.mubr.f32.mxu0 0.0
    %3311 = vmatmul.mubr.f32.gmra.mrb[0].mxu0 %v327
    %v3312 = vpop.f32.mrb[0].mxu0
    %v3313 = vadd.f32 %v3229, %v3312
    %v3314 = vpop.f32.mrb[0].mxu0
    %3315 = vdwg.mxu0
    %s3316 = scalar_lea.vmem %s6, 1344
    %v3317 = vld [vmem:[%s3316] sm:$0xff]
    %v3318 = vld [vmem:[%s3316 + $0x8] sm:$0xff]
    %v3319 = vld [vmem:[%s3316 + $0x10] sm:$0xff]
    %v3320 = vld [vmem:[%s3316 + $0x18] sm:$0xff]
    %v3321 = vld [vmem:[%s3316 + $0x20] sm:$0xff]
    %v3322 = vld [vmem:[%s3316 + $0x28] sm:$0xff]
    %v3323 = vld [vmem:[%s3316 + $0x30] sm:$0xff]
    %v3324 = vld [vmem:[%s3316 + $0x38] sm:$0xff]
    %s3325 = scalar_lea.vmem %s7, 21
    %v3326 = vld [vmem:[%s3325] sm:$0x1]
    %v3328 = vlaneseq
    %v3329 = vshrl.u32 %v3328, 7
    %v3330 = vsub.s32 0, %v3329
    %v3331 = vrot.slane %v3326, %v3330
    %3333 = vmatprep.subr.mxu0 0.0
    %3334 = vmatpush1.msra.mxu0 %v3317
    %3335 = vmatprep.subr.mxu0 0.0
    %3336 = vmatpush1.msra.mxu0 %v3318
    %3337 = vmatprep.subr.mxu0 0.0
    %3338 = vmatpush1.msra.mxu0 %v3319
    %3339 = vmatprep.subr.mxu0 0.0
    %3340 = vmatpush1.msra.mxu0 %v3320
    %3341 = vmatprep.subr.mxu0 0.0
    %3342 = vmatpush1.msra.mxu0 %v3321
    %3343 = vmatprep.subr.mxu0 0.0
    %3344 = vmatpush1.msra.mxu0 %v3322
    %3345 = vmatprep.subr.mxu0 0.0
    %3346 = vmatpush1.msra.mxu0 %v3323
    %3347 = vmatprep.subr.mxu0 0.0
    %3348 = vmatpush1.msra.mxu0 %v3324
    %3349 = vmatprep.subr.mxu0 0.0
    %3350 = vmatpush1.msra.mxu0 0.0
    %3351 = vmatprep.subr.mxu0 0.0
    %3352 = vmatpush1.msra.mxu0 0.0
    %3353 = vmatprep.subr.mxu0 0.0
    %3354 = vmatpush1.msra.mxu0 0.0
    %3355 = vmatprep.subr.mxu0 0.0
    %3356 = vmatpush1.msra.mxu0 0.0
    %3357 = vmatprep.subr.mxu0 0.0
    %3358 = vmatpush1.msra.mxu0 0.0
    %3359 = vmatprep.subr.mxu0 0.0
    %3360 = vmatpush1.msra.mxu0 0.0
    %3361 = vmatprep.subr.mxu0 0.0
    %3362 = vmatpush1.msra.mxu0 0.0
    %3363 = vmatprep.subr.mxu0 0.0
    %3364 = vmatpush1.msra.mxu0 0.0
    %3365 = vmatprep.subr.mxu0 0.0
    %3366 = vmatpush1.msra.mxu0 0.0
    %3367 = vmatprep.subr.mxu0 0.0
    %3368 = vmatpush1.msra.mxu0 0.0
    %3369 = vmatprep.subr.mxu0 0.0
    %3370 = vmatpush1.msra.mxu0 0.0
    %3371 = vmatprep.subr.mxu0 0.0
    %3372 = vmatpush1.msra.mxu0 0.0
    %3373 = vmatprep.subr.mxu0 0.0
    %3374 = vmatpush1.msra.mxu0 0.0
    %3375 = vmatprep.subr.mxu0 0.0
    %3376 = vmatpush1.msra.mxu0 0.0
    %3377 = vmatprep.subr.mxu0 0.0
    %3378 = vmatpush1.msra.mxu0 0.0
    %3379 = vmatprep.subr.mxu0 0.0
    %3380 = vmatpush1.msra.mxu0 0.0
    %3381 = vmatprep.subr.mxu0 0.0
    %3382 = vmatpush1.msra.mxu0 0.0
    %3383 = vmatprep.subr.mxu0 0.0
    %3384 = vmatpush1.msra.mxu0 0.0
    %3385 = vmatprep.subr.mxu0 0.0
    %3386 = vmatpush1.msra.mxu0 0.0
    %3387 = vmatprep.subr.mxu0 0.0
    %3388 = vmatpush1.msra.mxu0 0.0
    %3389 = vmatprep.subr.mxu0 0.0
    %3390 = vmatpush1.msra.mxu0 0.0
    %3391 = vmatprep.subr.mxu0 0.0
    %3392 = vmatpush1.msra.mxu0 0.0
    %3393 = vmatprep.subr.mxu0 0.0
    %3394 = vmatpush1.msra.mxu0 0.0
    %3395 = vmatprep.subr.mxu0 0.0
    %3396 = vmatpush1.msra.mxu0 0.0
    %3397 = vmatprep.mubr.f32.mxu0 0.0
    %3398 = vmatmul.mubr.f32.gmra.mrb[0].mxu0 %v318
    %v3399 = vpop.f32.mrb[0].mxu0
    %v3400 = vadd.f32 %v3331, %v3399
    %v3401 = vpop.f32.mrb[0].mxu0
    %3402 = vmatprep.mubr.f32.mxu0 0.0
    %3403 = vmatmul.mubr.f32.gmra.mrb[0].mxu0 %v321
    %v3404 = vpop.f32.mrb[0].mxu0
    %v3405 = vadd.f32 %v3331, %v3404
    %v3406 = vpop.f32.mrb[0].mxu0
    %3407 = vmatprep.mubr.f32.mxu0 0.0
    %3408 = vmatmul.mubr.f32.gmra.mrb[0].mxu0 %v324
    %v3409 = vpop.f32.mrb[0].mxu0
    %v3410 = vadd.f32 %v3331, %v3409
    %v3411 = vpop.f32.mrb[0].mxu0
    %3412 = vmatprep.mubr.f32.mxu0 0.0
    %3413 = vmatmul.mubr.f32.gmra.mrb[0].mxu0 %v327
    %v3414 = vpop.f32.mrb[0].mxu0
    %v3415 = vadd.f32 %v3331, %v3414
    %v3416 = vpop.f32.mrb[0].mxu0
    %3417 = vdwg.mxu0
    %v3419 = vsel %vm516, %v3206, 0
    %v3422 = vsel %vm516, %v3211, 0
    %v3425 = vsel %vm516, %v3298, 0
    %v3428 = vsel %vm516, %v3303, 0
    %v3431 = vsel %vm516, %v3308, 0
    %v3434 = vsel %vm516, %v3313, 0
    %3436 = vmatprep.subr.mxu0 0.0
    %3437 = vmatpush1.xpose.msra.mxu0 %v3425
    %3438 = vmatprep.subr.mxu0 0.0
    %3439 = vmatpush1.xpose.msra.mxu0 %v3428
    %3440 = vmatprep.subr.mxu0 0.0
    %3441 = vmatpush1.xpose.msra.mxu0 %v3431
    %3442 = vmatprep.subr.mxu0 0.0
    %3443 = vmatpush1.xpose.msra.mxu0 %v3434
    %3444 = vmatprep.subr.mxu0 0.0
    %3445 = vmatpush1.xpose.msra.mxu0 0.0
    %3446 = vmatprep.subr.mxu0 0.0
    %3447 = vmatpush1.xpose.msra.mxu0 0.0
    %3448 = vmatprep.subr.mxu0 0.0
    %3449 = vmatpush1.xpose.msra.mxu0 0.0
    %3450 = vmatprep.subr.mxu0 0.0
    %3451 = vmatpush1.xpose.msra.mxu0 0.0
    %3452 = vmatprep.subr.mxu0 0.0
    %3453 = vmatpush1.xpose.msra.mxu0 0.0
    %3454 = vmatprep.subr.mxu0 0.0
    %3455 = vmatpush1.xpose.msra.mxu0 0.0
    %3456 = vmatprep.subr.mxu0 0.0
    %3457 = vmatpush1.xpose.msra.mxu0 0.0
    %3458 = vmatprep.subr.mxu0 0.0
    %3459 = vmatpush1.xpose.msra.mxu0 0.0
    %3460 = vmatprep.subr.mxu0 0.0
    %3461 = vmatpush1.xpose.msra.mxu0 0.0
    %3462 = vmatprep.subr.mxu0 0.0
    %3463 = vmatpush1.xpose.msra.mxu0 0.0
    %3464 = vmatprep.subr.mxu0 0.0
    %3465 = vmatpush1.xpose.msra.mxu0 0.0
    %3466 = vmatprep.subr.mxu0 0.0
    %3467 = vmatpush1.xpose.msra.mxu0 0.0
    %3468 = vmatprep.subr.mxu0 0.0
    %3469 = vmatpush1.xpose.msra.mxu0 0.0
    %3470 = vmatprep.subr.mxu0 0.0
    %3471 = vmatpush1.xpose.msra.mxu0 0.0
    %3472 = vmatprep.subr.mxu0 0.0
    %3473 = vmatpush1.xpose.msra.mxu0 0.0
    %3474 = vmatprep.subr.mxu0 0.0
    %3475 = vmatpush1.xpose.msra.mxu0 0.0
    %3476 = vmatprep.subr.mxu0 0.0
    %3477 = vmatpush1.xpose.msra.mxu0 0.0
    %3478 = vmatprep.subr.mxu0 0.0
    %3479 = vmatpush1.xpose.msra.mxu0 0.0
    %3480 = vmatprep.subr.mxu0 0.0
    %3481 = vmatpush1.xpose.msra.mxu0 0.0
    %3482 = vmatprep.subr.mxu0 0.0
    %3483 = vmatpush1.xpose.msra.mxu0 0.0
    %3484 = vmatprep.subr.mxu0 0.0
    %3485 = vmatpush1.xpose.msra.mxu0 0.0
    %3486 = vmatprep.subr.mxu0 0.0
    %3487 = vmatpush1.xpose.msra.mxu0 0.0
    %3488 = vmatprep.subr.mxu0 0.0
    %3489 = vmatpush1.xpose.msra.mxu0 0.0
    %3490 = vmatprep.subr.mxu0 0.0
    %3491 = vmatpush1.xpose.msra.mxu0 0.0
    %3492 = vmatprep.subr.mxu0 0.0
    %3493 = vmatpush1.xpose.msra.mxu0 0.0
    %3494 = vmatprep.subr.mxu0 0.0
    %3495 = vmatpush1.xpose.msra.mxu0 0.0
    %3496 = vmatprep.subr.mxu0 0.0
    %3497 = vmatpush1.xpose.msra.mxu0 0.0
    %3498 = vmatprep.subr.mxu0 0.0
    %3499 = vmatpush1.xpose.msra.mxu0 0.0
    %3500 = vmatprep.mubr.f32.mxu0 0.0
    %3501 = vmatmul.mubr.f32.gmra.mrb[0].mxu0 %v3419
    %v3502 = vpop.f32.mrb[0].mxu0
    %v3503 = vadd.f32 0.0, %v3502
    %v3504 = vpop.f32.mrb[0].mxu0
    %3505 = vmatprep.mubr.f32.mxu0 0.0
    %3506 = vmatmul.mubr.f32.gmra.mrb[0].mxu0 %v3422
    %v3507 = vpop.f32.mrb[0].mxu0
    %v3508 = vadd.f32 0.0, %v3507
    %v3509 = vpop.f32.mrb[0].mxu0
    %3510 = vdwg.mxu0
    %v3511 = vmul.f32 %v3503, 0.35355338
    %v3512 = vmul.f32 %v3508, 0.35355338
    %v3513 = vadd.f32 %v3511, %v202
    %v3514 = vadd.f32 %v3512, %v203
    %v3515 = vsel %vm614, %v3513, -inf
    %3516 = vmax.xlane.f32.xlu0 %v3515
    %v3517 = vpop.xlane.xlu0 %3516
    %v3518 = vsel %vm614, %v3514, -inf
    %3519 = vmax.xlane.f32.xlu0 %v3518
    %v3520 = vpop.xlane.xlu0 %3519
    %v3521 = vsub.f32 %v3513, %v3517
    %v3522 = vsub.f32 %v3514, %v3520
    %v3523 = vmul.f32 %v3521, 1.442695
    %v3524 = vpow.pop %v3523
    %v3525 = vmul.f32 %v3522, 1.442695
    %v3526 = vpow.pop %v3525
    %v3527 = vsel %vm614, %v3524, 0.0
    %3528 = vadd.xlane.f32.xlu0 %v3527
    %v3529 = vpop.xlane.xlu0 %3528
    %v3530 = vsel %vm614, %v3526, 0.0
    %3531 = vadd.xlane.f32.xlu0 %v3530
    %v3532 = vpop.xlane.xlu0 %3531
    %v3533 = vrcp.pop %v3529
    %v3534 = vrcp.pop %v3532
    %v3535 = vmul.f32 %v3524, %v3533
    %v3536 = vmul.f32 %v3526, %v3534
    %v3538 = vsel %vm614, %v3535, 0
    %v3541 = vsel %vm614, %v3536, 0
    %3543 = vmatprep.subr.mxu0 0.0
    %3544 = vmatpush1.msra.mxu0 %v3400
    %3545 = vmatprep.subr.mxu0 0.0
    %3546 = vmatpush1.msra.mxu0 %v3405
    %3547 = vmatprep.subr.mxu0 0.0
    %3548 = vmatpush1.msra.mxu0 %v3410
    %3549 = vmatprep.subr.mxu0 0.0
    %3550 = vmatpush1.msra.mxu0 %v3415
    %3551 = vmatprep.subr.mxu0 0.0
    %3552 = vmatpush1.msra.mxu0 0.0
    %3553 = vmatprep.subr.mxu0 0.0
    %3554 = vmatpush1.msra.mxu0 0.0
    %3555 = vmatprep.subr.mxu0 0.0
    %3556 = vmatpush1.msra.mxu0 0.0
    %3557 = vmatprep.subr.mxu0 0.0
    %3558 = vmatpush1.msra.mxu0 0.0
    %3559 = vmatprep.subr.mxu0 0.0
    %3560 = vmatpush1.msra.mxu0 0.0
    %3561 = vmatprep.subr.mxu0 0.0
    %3562 = vmatpush1.msra.mxu0 0.0
    %3563 = vmatprep.subr.mxu0 0.0
    %3564 = vmatpush1.msra.mxu0 0.0
    %3565 = vmatprep.subr.mxu0 0.0
    %3566 = vmatpush1.msra.mxu0 0.0
    %3567 = vmatprep.subr.mxu0 0.0
    %3568 = vmatpush1.msra.mxu0 0.0
    %3569 = vmatprep.subr.mxu0 0.0
    %3570 = vmatpush1.msra.mxu0 0.0
    %3571 = vmatprep.subr.mxu0 0.0
    %3572 = vmatpush1.msra.mxu0 0.0
    %3573 = vmatprep.subr.mxu0 0.0
    %3574 = vmatpush1.msra.mxu0 0.0
    %3575 = vmatprep.subr.mxu0 0.0
    %3576 = vmatpush1.msra.mxu0 0.0
    %3577 = vmatprep.subr.mxu0 0.0
    %3578 = vmatpush1.msra.mxu0 0.0
    %3579 = vmatprep.subr.mxu0 0.0
    %3580 = vmatpush1.msra.mxu0 0.0
    %3581 = vmatprep.subr.mxu0 0.0
    %3582 = vmatpush1.msra.mxu0 0.0
    %3583 = vmatprep.subr.mxu0 0.0
    %3584 = vmatpush1.msra.mxu0 0.0
    %3585 = vmatprep.subr.mxu0 0.0
    %3586 = vmatpush1.msra.mxu0 0.0
    %3587 = vmatprep.subr.mxu0 0.0
    %3588 = vmatpush1.msra.mxu0 0.0
    %3589 = vmatprep.subr.mxu0 0.0
    %3590 = vmatpush1.msra.mxu0 0.0
    %3591 = vmatprep.subr.mxu0 0.0
    %3592 = vmatpush1.msra.mxu0 0.0
    %3593 = vmatprep.subr.mxu0 0.0
    %3594 = vmatpush1.msra.mxu0 0.0
    %3595 = vmatprep.subr.mxu0 0.0
    %3596 = vmatpush1.msra.mxu0 0.0
    %3597 = vmatprep.subr.mxu0 0.0
    %3598 = vmatpush1.msra.mxu0 0.0
    %3599 = vmatprep.subr.mxu0 0.0
    %3600 = vmatpush1.msra.mxu0 0.0
    %3601 = vmatprep.subr.mxu0 0.0
    %3602 = vmatpush1.msra.mxu0 0.0
    %3603 = vmatprep.subr.mxu0 0.0
    %3604 = vmatpush1.msra.mxu0 0.0
    %3605 = vmatprep.subr.mxu0 0.0
    %3606 = vmatpush1.msra.mxu0 0.0
    %3607 = vmatprep.mubr.f32.mxu0 0.0
    %3608 = vmatmul.mubr.f32.gmra.mrb[0].mxu0 %v3538
    %v3609 = vpop.f32.mrb[0].mxu0
    %v3610 = vadd.f32 0.0, %v3609
    %v3611 = vpop.f32.mrb[0].mxu0
    %3612 = vmatprep.mubr.f32.mxu0 0.0
    %3613 = vmatmul.mubr.f32.gmra.mrb[0].mxu0 %v3541
    %v3614 = vpop.f32.mrb[0].mxu0
    %v3615 = vadd.f32 0.0, %v3614
    %v3616 = vpop.f32.mrb[0].mxu0
    %3617 = vdwg.mxu0
    %s3618 = scalar_lea.vmem %s8, 40
    %v3619 = vld [vmem:[%s3618] sm:$0xff]
    %v3621 = vsel %vm516, %v3610, 0
    %v3624 = vsel %vm516, %v3615, 0
    %3626 = vmatprep.subr.mxu0 0.0
    %3627 = vmatpush1.msra.mxu0 %v3619
    %3628 = vmatprep.subr.mxu0 0.0
    %3629 = vmatpush1.msra.mxu0 0.0
    %3630 = vmatprep.subr.mxu0 0.0
    %3631 = vmatpush1.msra.mxu0 0.0
    %3632 = vmatprep.subr.mxu0 0.0
    %3633 = vmatpush1.msra.mxu0 0.0
    %3634 = vmatprep.subr.mxu0 0.0
    %3635 = vmatpush1.msra.mxu0 0.0
    %3636 = vmatprep.subr.mxu0 0.0
    %3637 = vmatpush1.msra.mxu0 0.0
    %3638 = vmatprep.subr.mxu0 0.0
    %3639 = vmatpush1.msra.mxu0 0.0
    %3640 = vmatprep.subr.mxu0 0.0
    %3641 = vmatpush1.msra.mxu0 0.0
    %3642 = vmatprep.subr.mxu0 0.0
    %3643 = vmatpush1.msra.mxu0 0.0
    %3644 = vmatprep.subr.mxu0 0.0
    %3645 = vmatpush1.msra.mxu0 0.0
    %3646 = vmatprep.subr.mxu0 0.0
    %3647 = vmatpush1.msra.mxu0 0.0
    %3648 = vmatprep.subr.mxu0 0.0
    %3649 = vmatpush1.msra.mxu0 0.0
    %3650 = vmatprep.subr.mxu0 0.0
    %3651 = vmatpush1.msra.mxu0 0.0
    %3652 = vmatprep.subr.mxu0 0.0
    %3653 = vmatpush1.msra.mxu0 0.0
    %3654 = vmatprep.subr.mxu0 0.0
    %3655 = vmatpush1.msra.mxu0 0.0
    %3656 = vmatprep.subr.mxu0 0.0
    %3657 = vmatpush1.msra.mxu0 0.0
    %3658 = vmatprep.subr.mxu0 0.0
    %3659 = vmatpush1.msra.mxu0 0.0
    %3660 = vmatprep.subr.mxu0 0.0
    %3661 = vmatpush1.msra.mxu0 0.0
    %3662 = vmatprep.subr.mxu0 0.0
    %3663 = vmatpush1.msra.mxu0 0.0
    %3664 = vmatprep.subr.mxu0 0.0
    %3665 = vmatpush1.msra.mxu0 0.0
    %3666 = vmatprep.subr.mxu0 0.0
    %3667 = vmatpush1.msra.mxu0 0.0
    %3668 = vmatprep.subr.mxu0 0.0
    %3669 = vmatpush1.msra.mxu0 0.0
    %3670 = vmatprep.subr.mxu0 0.0
    %3671 = vmatpush1.msra.mxu0 0.0
    %3672 = vmatprep.subr.mxu0 0.0
    %3673 = vmatpush1.msra.mxu0 0.0
    %3674 = vmatprep.subr.mxu0 0.0
    %3675 = vmatpush1.msra.mxu0 0.0
    %3676 = vmatprep.subr.mxu0 0.0
    %3677 = vmatpush1.msra.mxu0 0.0
    %3678 = vmatprep.subr.mxu0 0.0
    %3679 = vmatpush1.msra.mxu0 0.0
    %3680 = vmatprep.subr.mxu0 0.0
    %3681 = vmatpush1.msra.mxu0 0.0
    %3682 = vmatprep.subr.mxu0 0.0
    %3683 = vmatpush1.msra.mxu0 0.0
    %3684 = vmatprep.subr.mxu0 0.0
    %3685 = vmatpush1.msra.mxu0 0.0
    %3686 = vmatprep.subr.mxu0 0.0
    %3687 = vmatpush1.msra.mxu0 0.0
    %3688 = vmatprep.subr.mxu0 0.0
    %3689 = vmatpush1.msra.mxu0 0.0
    %3690 = vmatprep.mubr.f32.mxu0 0.0
    %3691 = vmatmul.mubr.f32.gmra.mrb[0].mxu0 %v3621
    %v3692 = vpop.f32.mrb[0].mxu0
    %v3693 = vadd.f32 0.0, %v3692
    %v3694 = vpop.f32.mrb[0].mxu0
    %3695 = vmatprep.mubr.f32.mxu0 0.0
    %3696 = vmatmul.mubr.f32.gmra.mrb[0].mxu0 %v3624
    %v3697 = vpop.f32.mrb[0].mxu0
    %v3698 = vadd.f32 0.0, %v3697
    %v3699 = vpop.f32.mrb[0].mxu0
    %3700 = vdwg.mxu0
    %v3701 = vadd.f32 %v3120, %v3693
    %v3702 = vadd.f32 %v3121, %v3698
    %s3703 = scalar_lea.vmem %s6, 384
    %v3704 = vld [vmem:[%s3703] sm:$0xff]
    %v3705 = vld [vmem:[%s3703 + $0x8] sm:$0xff]
    %v3706 = vld [vmem:[%s3703 + $0x10] sm:$0xff]
    %v3707 = vld [vmem:[%s3703 + $0x18] sm:$0xff]
    %v3708 = vld [vmem:[%s3703 + $0x20] sm:$0xff]
    %v3709 = vld [vmem:[%s3703 + $0x28] sm:$0xff]
    %v3710 = vld [vmem:[%s3703 + $0x30] sm:$0xff]
    %v3711 = vld [vmem:[%s3703 + $0x38] sm:$0xff]
    %s3712 = scalar_lea.vmem %s7, 6
    %v3713 = vld [vmem:[%s3712] sm:$0x1]
    %v3715 = vlaneseq
    %v3716 = vshrl.u32 %v3715, 7
    %v3717 = vsub.s32 0, %v3716
    %v3718 = vrot.slane %v3713, %v3717
    %3720 = vmatprep.subr.mxu0 0.0
    %3721 = vmatpush1.msra.mxu0 %v3704
    %3722 = vmatprep.subr.mxu0 0.0
    %3723 = vmatpush1.msra.mxu0 %v3705
    %3724 = vmatprep.subr.mxu0 0.0
    %3725 = vmatpush1.msra.mxu0 %v3706
    %3726 = vmatprep.subr.mxu0 0.0
    %3727 = vmatpush1.msra.mxu0 %v3707
    %3728 = vmatprep.subr.mxu0 0.0
    %3729 = vmatpush1.msra.mxu0 %v3708
    %3730 = vmatprep.subr.mxu0 0.0
    %3731 = vmatpush1.msra.mxu0 %v3709
    %3732 = vmatprep.subr.mxu0 0.0
    %3733 = vmatpush1.msra.mxu0 %v3710
    %3734 = vmatprep.subr.mxu0 0.0
    %3735 = vmatpush1.msra.mxu0 %v3711
    %3736 = vmatprep.subr.mxu0 0.0
    %3737 = vmatpush1.msra.mxu0 0.0
    %3738 = vmatprep.subr.mxu0 0.0
    %3739 = vmatpush1.msra.mxu0 0.0
    %3740 = vmatprep.subr.mxu0 0.0
    %3741 = vmatpush1.msra.mxu0 0.0
    %3742 = vmatprep.subr.mxu0 0.0
    %3743 = vmatpush1.msra.mxu0 0.0
    %3744 = vmatprep.subr.mxu0 0.0
    %3745 = vmatpush1.msra.mxu0 0.0
    %3746 = vmatprep.subr.mxu0 0.0
    %3747 = vmatpush1.msra.mxu0 0.0
    %3748 = vmatprep.subr.mxu0 0.0
    %3749 = vmatpush1.msra.mxu0 0.0
    %3750 = vmatprep.subr.mxu0 0.0
    %3751 = vmatpush1.msra.mxu0 0.0
    %3752 = vmatprep.subr.mxu0 0.0
    %3753 = vmatpush1.msra.mxu0 0.0
    %3754 = vmatprep.subr.mxu0 0.0
    %3755 = vmatpush1.msra.mxu0 0.0
    %3756 = vmatprep.subr.mxu0 0.0
    %3757 = vmatpush1.msra.mxu0 0.0
    %3758 = vmatprep.subr.mxu0 0.0
    %3759 = vmatpush1.msra.mxu0 0.0
    %3760 = vmatprep.subr.mxu0 0.0
    %3761 = vmatpush1.msra.mxu0 0.0
    %3762 = vmatprep.subr.mxu0 0.0
    %3763 = vmatpush1.msra.mxu0 0.0
    %3764 = vmatprep.subr.mxu0 0.0
    %3765 = vmatpush1.msra.mxu0 0.0
    %3766 = vmatprep.subr.mxu0 0.0
    %3767 = vmatpush1.msra.mxu0 0.0
    %3768 = vmatprep.subr.mxu0 0.0
    %3769 = vmatpush1.msra.mxu0 0.0
    %3770 = vmatprep.subr.mxu0 0.0
    %3771 = vmatpush1.msra.mxu0 0.0
    %3772 = vmatprep.subr.mxu0 0.0
    %3773 = vmatpush1.msra.mxu0 0.0
    %3774 = vmatprep.subr.mxu0 0.0
    %3775 = vmatpush1.msra.mxu0 0.0
    %3776 = vmatprep.subr.mxu0 0.0
    %3777 = vmatpush1.msra.mxu0 0.0
    %3778 = vmatprep.subr.mxu0 0.0
    %3779 = vmatpush1.msra.mxu0 0.0
    %3780 = vmatprep.subr.mxu0 0.0
    %3781 = vmatpush1.msra.mxu0 0.0
    %3782 = vmatprep.subr.mxu0 0.0
    %3783 = vmatpush1.msra.mxu0 0.0
    %3784 = vmatprep.mubr.f32.mxu0 0.0
    %3785 = vmatmul.mubr.f32.gmra.mrb[0].mxu0 %v220
    %v3786 = vpop.f32.mrb[0].mxu0
    %v3787 = vadd.f32 %v3718, %v3786
    %v3788 = vpop.f32.mrb[0].mxu0
    %3789 = vmatprep.mubr.f32.mxu0 0.0
    %3790 = vmatmul.mubr.f32.gmra.mrb[0].mxu0 %v223
    %v3791 = vpop.f32.mrb[0].mxu0
    %v3792 = vadd.f32 %v3718, %v3791
    %v3793 = vpop.f32.mrb[0].mxu0
    %3794 = vdwg.mxu0
    %s3795 = scalar_lea.vmem %s6, 896
    %v3796 = vld [vmem:[%s3795] sm:$0xff]
    %v3797 = vld [vmem:[%s3795 + $0x8] sm:$0xff]
    %v3798 = vld [vmem:[%s3795 + $0x10] sm:$0xff]
    %v3799 = vld [vmem:[%s3795 + $0x18] sm:$0xff]
    %v3800 = vld [vmem:[%s3795 + $0x20] sm:$0xff]
    %v3801 = vld [vmem:[%s3795 + $0x28] sm:$0xff]
    %v3802 = vld [vmem:[%s3795 + $0x30] sm:$0xff]
    %v3803 = vld [vmem:[%s3795 + $0x38] sm:$0xff]
    %s3804 = scalar_lea.vmem %s7, 14
    %v3805 = vld [vmem:[%s3804] sm:$0x1]
    %v3807 = vlaneseq
    %v3808 = vshrl.u32 %v3807, 7
    %v3809 = vsub.s32 0, %v3808
    %v3810 = vrot.slane %v3805, %v3809
    %3812 = vmatprep.subr.mxu0 0.0
    %3813 = vmatpush1.msra.mxu0 %v3796
    %3814 = vmatprep.subr.mxu0 0.0
    %3815 = vmatpush1.msra.mxu0 %v3797
    %3816 = vmatprep.subr.mxu0 0.0
    %3817 = vmatpush1.msra.mxu0 %v3798
    %3818 = vmatprep.subr.mxu0 0.0
    %3819 = vmatpush1.msra.mxu0 %v3799
    %3820 = vmatprep.subr.mxu0 0.0
    %3821 = vmatpush1.msra.mxu0 %v3800
    %3822 = vmatprep.subr.mxu0 0.0
    %3823 = vmatpush1.msra.mxu0 %v3801
    %3824 = vmatprep.subr.mxu0 0.0
    %3825 = vmatpush1.msra.mxu0 %v3802
    %3826 = vmatprep.subr.mxu0 0.0
    %3827 = vmatpush1.msra.mxu0 %v3803
    %3828 = vmatprep.subr.mxu0 0.0
    %3829 = vmatpush1.msra.mxu0 0.0
    %3830 = vmatprep.subr.mxu0 0.0
    %3831 = vmatpush1.msra.mxu0 0.0
    %3832 = vmatprep.subr.mxu0 0.0
    %3833 = vmatpush1.msra.mxu0 0.0
    %3834 = vmatprep.subr.mxu0 0.0
    %3835 = vmatpush1.msra.mxu0 0.0
    %3836 = vmatprep.subr.mxu0 0.0
    %3837 = vmatpush1.msra.mxu0 0.0
    %3838 = vmatprep.subr.mxu0 0.0
    %3839 = vmatpush1.msra.mxu0 0.0
    %3840 = vmatprep.subr.mxu0 0.0
    %3841 = vmatpush1.msra.mxu0 0.0
    %3842 = vmatprep.subr.mxu0 0.0
    %3843 = vmatpush1.msra.mxu0 0.0
    %3844 = vmatprep.subr.mxu0 0.0
    %3845 = vmatpush1.msra.mxu0 0.0
    %3846 = vmatprep.subr.mxu0 0.0
    %3847 = vmatpush1.msra.mxu0 0.0
    %3848 = vmatprep.subr.mxu0 0.0
    %3849 = vmatpush1.msra.mxu0 0.0
    %3850 = vmatprep.subr.mxu0 0.0
    %3851 = vmatpush1.msra.mxu0 0.0
    %3852 = vmatprep.subr.mxu0 0.0
    %3853 = vmatpush1.msra.mxu0 0.0
    %3854 = vmatprep.subr.mxu0 0.0
    %3855 = vmatpush1.msra.mxu0 0.0
    %3856 = vmatprep.subr.mxu0 0.0
    %3857 = vmatpush1.msra.mxu0 0.0
    %3858 = vmatprep.subr.mxu0 0.0
    %3859 = vmatpush1.msra.mxu0 0.0
    %3860 = vmatprep.subr.mxu0 0.0
    %3861 = vmatpush1.msra.mxu0 0.0
    %3862 = vmatprep.subr.mxu0 0.0
    %3863 = vmatpush1.msra.mxu0 0.0
    %3864 = vmatprep.subr.mxu0 0.0
    %3865 = vmatpush1.msra.mxu0 0.0
    %3866 = vmatprep.subr.mxu0 0.0
    %3867 = vmatpush1.msra.mxu0 0.0
    %3868 = vmatprep.subr.mxu0 0.0
    %3869 = vmatpush1.msra.mxu0 0.0
    %3870 = vmatprep.subr.mxu0 0.0
    %3871 = vmatpush1.msra.mxu0 0.0
    %3872 = vmatprep.subr.mxu0 0.0
    %3873 = vmatpush1.msra.mxu0 0.0
    %3874 = vmatprep.subr.mxu0 0.0
    %3875 = vmatpush1.msra.mxu0 0.0
    %3876 = vmatprep.mubr.f32.mxu0 0.0
    %3877 = vmatmul.mubr.f32.gmra.mrb[0].mxu0 %v318
    %v3878 = vpop.f32.mrb[0].mxu0
    %v3879 = vadd.f32 %v3810, %v3878
    %v3880 = vpop.f32.mrb[0].mxu0
    %3881 = vmatprep.mubr.f32.mxu0 0.0
    %3882 = vmatmul.mubr.f32.gmra.mrb[0].mxu0 %v321
    %v3883 = vpop.f32.mrb[0].mxu0
    %v3884 = vadd.f32 %v3810, %v3883
    %v3885 = vpop.f32.mrb[0].mxu0
    %3886 = vmatprep.mubr.f32.mxu0 0.0
    %3887 = vmatmul.mubr.f32.gmra.mrb[0].mxu0 %v324
    %v3888 = vpop.f32.mrb[0].mxu0
    %v3889 = vadd.f32 %v3810, %v3888
    %v3890 = vpop.f32.mrb[0].mxu0
    %3891 = vmatprep.mubr.f32.mxu0 0.0
    %3892 = vmatmul.mubr.f32.gmra.mrb[0].mxu0 %v327
    %v3893 = vpop.f32.mrb[0].mxu0
    %v3894 = vadd.f32 %v3810, %v3893
    %v3895 = vpop.f32.mrb[0].mxu0
    %3896 = vdwg.mxu0
    %s3897 = scalar_lea.vmem %s6, 1408
    %v3898 = vld [vmem:[%s3897] sm:$0xff]
    %v3899 = vld [vmem:[%s3897 + $0x8] sm:$0xff]
    %v3900 = vld [vmem:[%s3897 + $0x10] sm:$0xff]
    %v3901 = vld [vmem:[%s3897 + $0x18] sm:$0xff]
    %v3902 = vld [vmem:[%s3897 + $0x20] sm:$0xff]
    %v3903 = vld [vmem:[%s3897 + $0x28] sm:$0xff]
    %v3904 = vld [vmem:[%s3897 + $0x30] sm:$0xff]
    %v3905 = vld [vmem:[%s3897 + $0x38] sm:$0xff]
    %s3906 = scalar_lea.vmem %s7, 22
    %v3907 = vld [vmem:[%s3906] sm:$0x1]
    %v3909 = vlaneseq
    %v3910 = vshrl.u32 %v3909, 7
    %v3911 = vsub.s32 0, %v3910
    %v3912 = vrot.slane %v3907, %v3911
    %3914 = vmatprep.subr.mxu0 0.0
    %3915 = vmatpush1.msra.mxu0 %v3898
    %3916 = vmatprep.subr.mxu0 0.0
    %3917 = vmatpush1.msra.mxu0 %v3899
    %3918 = vmatprep.subr.mxu0 0.0
    %3919 = vmatpush1.msra.mxu0 %v3900
    %3920 = vmatprep.subr.mxu0 0.0
    %3921 = vmatpush1.msra.mxu0 %v3901
    %3922 = vmatprep.subr.mxu0 0.0
    %3923 = vmatpush1.msra.mxu0 %v3902
    %3924 = vmatprep.subr.mxu0 0.0
    %3925 = vmatpush1.msra.mxu0 %v3903
    %3926 = vmatprep.subr.mxu0 0.0
    %3927 = vmatpush1.msra.mxu0 %v3904
    %3928 = vmatprep.subr.mxu0 0.0
    %3929 = vmatpush1.msra.mxu0 %v3905
    %3930 = vmatprep.subr.mxu0 0.0
    %3931 = vmatpush1.msra.mxu0 0.0
    %3932 = vmatprep.subr.mxu0 0.0
    %3933 = vmatpush1.msra.mxu0 0.0
    %3934 = vmatprep.subr.mxu0 0.0
    %3935 = vmatpush1.msra.mxu0 0.0
    %3936 = vmatprep.subr.mxu0 0.0
    %3937 = vmatpush1.msra.mxu0 0.0
    %3938 = vmatprep.subr.mxu0 0.0
    %3939 = vmatpush1.msra.mxu0 0.0
    %3940 = vmatprep.subr.mxu0 0.0
    %3941 = vmatpush1.msra.mxu0 0.0
    %3942 = vmatprep.subr.mxu0 0.0
    %3943 = vmatpush1.msra.mxu0 0.0
    %3944 = vmatprep.subr.mxu0 0.0
    %3945 = vmatpush1.msra.mxu0 0.0
    %3946 = vmatprep.subr.mxu0 0.0
    %3947 = vmatpush1.msra.mxu0 0.0
    %3948 = vmatprep.subr.mxu0 0.0
    %3949 = vmatpush1.msra.mxu0 0.0
    %3950 = vmatprep.subr.mxu0 0.0
    %3951 = vmatpush1.msra.mxu0 0.0
    %3952 = vmatprep.subr.mxu0 0.0
    %3953 = vmatpush1.msra.mxu0 0.0
    %3954 = vmatprep.subr.mxu0 0.0
    %3955 = vmatpush1.msra.mxu0 0.0
    %3956 = vmatprep.subr.mxu0 0.0
    %3957 = vmatpush1.msra.mxu0 0.0
    %3958 = vmatprep.subr.mxu0 0.0
    %3959 = vmatpush1.msra.mxu0 0.0
    %3960 = vmatprep.subr.mxu0 0.0
    %3961 = vmatpush1.msra.mxu0 0.0
    %3962 = vmatprep.subr.mxu0 0.0
    %3963 = vmatpush1.msra.mxu0 0.0
    %3964 = vmatprep.subr.mxu0 0.0
    %3965 = vmatpush1.msra.mxu0 0.0
    %3966 = vmatprep.subr.mxu0 0.0
    %3967 = vmatpush1.msra.mxu0 0.0
    %3968 = vmatprep.subr.mxu0 0.0
    %3969 = vmatpush1.msra.mxu0 0.0
    %3970 = vmatprep.subr.mxu0 0.0
    %3971 = vmatpush1.msra.mxu0 0.0
    %3972 = vmatprep.subr.mxu0 0.0
    %3973 = vmatpush1.msra.mxu0 0.0
    %3974 = vmatprep.subr.mxu0 0.0
    %3975 = vmatpush1.msra.mxu0 0.0
    %3976 = vmatprep.subr.mxu0 0.0
    %3977 = vmatpush1.msra.mxu0 0.0
    %3978 = vmatprep.mubr.f32.mxu0 0.0
    %3979 = vmatmul.mubr.f32.gmra.mrb[0].mxu0 %v318
    %v3980 = vpop.f32.mrb[0].mxu0
    %v3981 = vadd.f32 %v3912, %v3980
    %v3982 = vpop.f32.mrb[0].mxu0
    %3983 = vmatprep.mubr.f32.mxu0 0.0
    %3984 = vmatmul.mubr.f32.gmra.mrb[0].mxu0 %v321
    %v3985 = vpop.f32.mrb[0].mxu0
    %v3986 = vadd.f32 %v3912, %v3985
    %v3987 = vpop.f32.mrb[0].mxu0
    %3988 = vmatprep.mubr.f32.mxu0 0.0
    %3989 = vmatmul.mubr.f32.gmra.mrb[0].mxu0 %v324
    %v3990 = vpop.f32.mrb[0].mxu0
    %v3991 = vadd.f32 %v3912, %v3990
    %v3992 = vpop.f32.mrb[0].mxu0
    %3993 = vmatprep.mubr.f32.mxu0 0.0
    %3994 = vmatmul.mubr.f32.gmra.mrb[0].mxu0 %v327
    %v3995 = vpop.f32.mrb[0].mxu0
    %v3996 = vadd.f32 %v3912, %v3995
    %v3997 = vpop.f32.mrb[0].mxu0
    %3998 = vdwg.mxu0
    %v4000 = vsel %vm516, %v3787, 0
    %v4003 = vsel %vm516, %v3792, 0
    %v4006 = vsel %vm516, %v3879, 0
    %v4009 = vsel %vm516, %v3884, 0
    %v4012 = vsel %vm516, %v3889, 0
    %v4015 = vsel %vm516, %v3894, 0
    %4017 = vmatprep.subr.mxu0 0.0
    %4018 = vmatpush1.xpose.msra.mxu0 %v4006
    %4019 = vmatprep.subr.mxu0 0.0
    %4020 = vmatpush1.xpose.msra.mxu0 %v4009
    %4021 = vmatprep.subr.mxu0 0.0
    %4022 = vmatpush1.xpose.msra.mxu0 %v4012
    %4023 = vmatprep.subr.mxu0 0.0
    %4024 = vmatpush1.xpose.msra.mxu0 %v4015
    %4025 = vmatprep.subr.mxu0 0.0
    %4026 = vmatpush1.xpose.msra.mxu0 0.0
    %4027 = vmatprep.subr.mxu0 0.0
    %4028 = vmatpush1.xpose.msra.mxu0 0.0
    %4029 = vmatprep.subr.mxu0 0.0
    %4030 = vmatpush1.xpose.msra.mxu0 0.0
    %4031 = vmatprep.subr.mxu0 0.0
    %4032 = vmatpush1.xpose.msra.mxu0 0.0
    %4033 = vmatprep.subr.mxu0 0.0
    %4034 = vmatpush1.xpose.msra.mxu0 0.0
    %4035 = vmatprep.subr.mxu0 0.0
    %4036 = vmatpush1.xpose.msra.mxu0 0.0
    %4037 = vmatprep.subr.mxu0 0.0
    %4038 = vmatpush1.xpose.msra.mxu0 0.0
    %4039 = vmatprep.subr.mxu0 0.0
    %4040 = vmatpush1.xpose.msra.mxu0 0.0
    %4041 = vmatprep.subr.mxu0 0.0
    %4042 = vmatpush1.xpose.msra.mxu0 0.0
    %4043 = vmatprep.subr.mxu0 0.0
    %4044 = vmatpush1.xpose.msra.mxu0 0.0
    %4045 = vmatprep.subr.mxu0 0.0
    %4046 = vmatpush1.xpose.msra.mxu0 0.0
    %4047 = vmatprep.subr.mxu0 0.0
    %4048 = vmatpush1.xpose.msra.mxu0 0.0
    %4049 = vmatprep.subr.mxu0 0.0
    %4050 = vmatpush1.xpose.msra.mxu0 0.0
    %4051 = vmatprep.subr.mxu0 0.0
    %4052 = vmatpush1.xpose.msra.mxu0 0.0
    %4053 = vmatprep.subr.mxu0 0.0
    %4054 = vmatpush1.xpose.msra.mxu0 0.0
    %4055 = vmatprep.subr.mxu0 0.0
    %4056 = vmatpush1.xpose.msra.mxu0 0.0
    %4057 = vmatprep.subr.mxu0 0.0
    %4058 = vmatpush1.xpose.msra.mxu0 0.0
    %4059 = vmatprep.subr.mxu0 0.0
    %4060 = vmatpush1.xpose.msra.mxu0 0.0
    %4061 = vmatprep.subr.mxu0 0.0
    %4062 = vmatpush1.xpose.msra.mxu0 0.0
    %4063 = vmatprep.subr.mxu0 0.0
    %4064 = vmatpush1.xpose.msra.mxu0 0.0
    %4065 = vmatprep.subr.mxu0 0.0
    %4066 = vmatpush1.xpose.msra.mxu0 0.0
    %4067 = vmatprep.subr.mxu0 0.0
    %4068 = vmatpush1.xpose.msra.mxu0 0.0
    %4069 = vmatprep.subr.mxu0 0.0
    %4070 = vmatpush1.xpose.msra.mxu0 0.0
    %4071 = vmatprep.subr.mxu0 0.0
    %4072 = vmatpush1.xpose.msra.mxu0 0.0
    %4073 = vmatprep.subr.mxu0 0.0
    %4074 = vmatpush1.xpose.msra.mxu0 0.0
    %4075 = vmatprep.subr.mxu0 0.0
    %4076 = vmatpush1.xpose.msra.mxu0 0.0
    %4077 = vmatprep.subr.mxu0 0.0
    %4078 = vmatpush1.xpose.msra.mxu0 0.0
    %4079 = vmatprep.subr.mxu0 0.0
    %4080 = vmatpush1.xpose.msra.mxu0 0.0
    %4081 = vmatprep.mubr.f32.mxu0 0.0
    %4082 = vmatmul.mubr.f32.gmra.mrb[0].mxu0 %v4000
    %v4083 = vpop.f32.mrb[0].mxu0
    %v4084 = vadd.f32 0.0, %v4083
    %v4085 = vpop.f32.mrb[0].mxu0
    %4086 = vmatprep.mubr.f32.mxu0 0.0
    %4087 = vmatmul.mubr.f32.gmra.mrb[0].mxu0 %v4003
    %v4088 = vpop.f32.mrb[0].mxu0
    %v4089 = vadd.f32 0.0, %v4088
    %v4090 = vpop.f32.mrb[0].mxu0
    %4091 = vdwg.mxu0
    %v4092 = vmul.f32 %v4084, 0.35355338
    %v4093 = vmul.f32 %v4089, 0.35355338
    %v4094 = vadd.f32 %v4092, %v202
    %v4095 = vadd.f32 %v4093, %v203
    %v4096 = vsel %vm614, %v4094, -inf
    %4097 = vmax.xlane.f32.xlu0 %v4096
    %v4098 = vpop.xlane.xlu0 %4097
    %v4099 = vsel %vm614, %v4095, -inf
    %4100 = vmax.xlane.f32.xlu0 %v4099
    %v4101 = vpop.xlane.xlu0 %4100
    %v4102 = vsub.f32 %v4094, %v4098
    %v4103 = vsub.f32 %v4095, %v4101
    %v4104 = vmul.f32 %v4102, 1.442695
    %v4105 = vpow.pop %v4104
    %v4106 = vmul.f32 %v4103, 1.442695
    %v4107 = vpow.pop %v4106
    %v4108 = vsel %vm614, %v4105, 0.0
    %4109 = vadd.xlane.f32.xlu0 %v4108
    %v4110 = vpop.xlane.xlu0 %4109
    %v4111 = vsel %vm614, %v4107, 0.0
    %4112 = vadd.xlane.f32.xlu0 %v4111
    %v4113 = vpop.xlane.xlu0 %4112
    %v4114 = vrcp.pop %v4110
    %v4115 = vrcp.pop %v4113
    %v4116 = vmul.f32 %v4105, %v4114
    %v4117 = vmul.f32 %v4107, %v4115
    %v4119 = vsel %vm614, %v4116, 0
    %v4122 = vsel %vm614, %v4117, 0
    %4124 = vmatprep.subr.mxu0 0.0
    %4125 = vmatpush1.msra.mxu0 %v3981
    %4126 = vmatprep.subr.mxu0 0.0
    %4127 = vmatpush1.msra.mxu0 %v3986
    %4128 = vmatprep.subr.mxu0 0.0
    %4129 = vmatpush1.msra.mxu0 %v3991
    %4130 = vmatprep.subr.mxu0 0.0
    %4131 = vmatpush1.msra.mxu0 %v3996
    %4132 = vmatprep.subr.mxu0 0.0
    %4133 = vmatpush1.msra.mxu0 0.0
    %4134 = vmatprep.subr.mxu0 0.0
    %4135 = vmatpush1.msra.mxu0 0.0
    %4136 = vmatprep.subr.mxu0 0.0
    %4137 = vmatpush1.msra.mxu0 0.0
    %4138 = vmatprep.subr.mxu0 0.0
    %4139 = vmatpush1.msra.mxu0 0.0
    %4140 = vmatprep.subr.mxu0 0.0
    %4141 = vmatpush1.msra.mxu0 0.0
    %4142 = vmatprep.subr.mxu0 0.0
    %4143 = vmatpush1.msra.mxu0 0.0
    %4144 = vmatprep.subr.mxu0 0.0
    %4145 = vmatpush1.msra.mxu0 0.0
    %4146 = vmatprep.subr.mxu0 0.0
    %4147 = vmatpush1.msra.mxu0 0.0
    %4148 = vmatprep.subr.mxu0 0.0
    %4149 = vmatpush1.msra.mxu0 0.0
    %4150 = vmatprep.subr.mxu0 0.0
    %4151 = vmatpush1.msra.mxu0 0.0
    %4152 = vmatprep.subr.mxu0 0.0
    %4153 = vmatpush1.msra.mxu0 0.0
    %4154 = vmatprep.subr.mxu0 0.0
    %4155 = vmatpush1.msra.mxu0 0.0
    %4156 = vmatprep.subr.mxu0 0.0
    %4157 = vmatpush1.msra.mxu0 0.0
    %4158 = vmatprep.subr.mxu0 0.0
    %4159 = vmatpush1.msra.mxu0 0.0
    %4160 = vmatprep.subr.mxu0 0.0
    %4161 = vmatpush1.msra.mxu0 0.0
    %4162 = vmatprep.subr.mxu0 0.0
    %4163 = vmatpush1.msra.mxu0 0.0
    %4164 = vmatprep.subr.mxu0 0.0
    %4165 = vmatpush1.msra.mxu0 0.0
    %4166 = vmatprep.subr.mxu0 0.0
    %4167 = vmatpush1.msra.mxu0 0.0
    %4168 = vmatprep.subr.mxu0 0.0
    %4169 = vmatpush1.msra.mxu0 0.0
    %4170 = vmatprep.subr.mxu0 0.0
    %4171 = vmatpush1.msra.mxu0 0.0
    %4172 = vmatprep.subr.mxu0 0.0
    %4173 = vmatpush1.msra.mxu0 0.0
    %4174 = vmatprep.subr.mxu0 0.0
    %4175 = vmatpush1.msra.mxu0 0.0
    %4176 = vmatprep.subr.mxu0 0.0
    %4177 = vmatpush1.msra.mxu0 0.0
    %4178 = vmatprep.subr.mxu0 0.0
    %4179 = vmatpush1.msra.mxu0 0.0
    %4180 = vmatprep.subr.mxu0 0.0
    %4181 = vmatpush1.msra.mxu0 0.0
    %4182 = vmatprep.subr.mxu0 0.0
    %4183 = vmatpush1.msra.mxu0 0.0
    %4184 = vmatprep.subr.mxu0 0.0
    %4185 = vmatpush1.msra.mxu0 0.0
    %4186 = vmatprep.subr.mxu0 0.0
    %4187 = vmatpush1.msra.mxu0 0.0
    %4188 = vmatprep.mubr.f32.mxu0 0.0
    %4189 = vmatmul.mubr.f32.gmra.mrb[0].mxu0 %v4119
    %v4190 = vpop.f32.mrb[0].mxu0
    %v4191 = vadd.f32 0.0, %v4190
    %v4192 = vpop.f32.mrb[0].mxu0
    %4193 = vmatprep.mubr.f32.mxu0 0.0
    %4194 = vmatmul.mubr.f32.gmra.mrb[0].mxu0 %v4122
    %v4195 = vpop.f32.mrb[0].mxu0
    %v4196 = vadd.f32 0.0, %v4195
    %v4197 = vpop.f32.mrb[0].mxu0
    %4198 = vdwg.mxu0
    %s4199 = scalar_lea.vmem %s8, 48
    %v4200 = vld [vmem:[%s4199] sm:$0xff]
    %v4202 = vsel %vm516, %v4191, 0
    %v4205 = vsel %vm516, %v4196, 0
    %4207 = vmatprep.subr.mxu0 0.0
    %4208 = vmatpush1.msra.mxu0 %v4200
    %4209 = vmatprep.subr.mxu0 0.0
    %4210 = vmatpush1.msra.mxu0 0.0
    %4211 = vmatprep.subr.mxu0 0.0
    %4212 = vmatpush1.msra.mxu0 0.0
    %4213 = vmatprep.subr.mxu0 0.0
    %4214 = vmatpush1.msra.mxu0 0.0
    %4215 = vmatprep.subr.mxu0 0.0
    %4216 = vmatpush1.msra.mxu0 0.0
    %4217 = vmatprep.subr.mxu0 0.0
    %4218 = vmatpush1.msra.mxu0 0.0
    %4219 = vmatprep.subr.mxu0 0.0
    %4220 = vmatpush1.msra.mxu0 0.0
    %4221 = vmatprep.subr.mxu0 0.0
    %4222 = vmatpush1.msra.mxu0 0.0
    %4223 = vmatprep.subr.mxu0 0.0
    %4224 = vmatpush1.msra.mxu0 0.0
    %4225 = vmatprep.subr.mxu0 0.0
    %4226 = vmatpush1.msra.mxu0 0.0
    %4227 = vmatprep.subr.mxu0 0.0
    %4228 = vmatpush1.msra.mxu0 0.0
    %4229 = vmatprep.subr.mxu0 0.0
    %4230 = vmatpush1.msra.mxu0 0.0
    %4231 = vmatprep.subr.mxu0 0.0
    %4232 = vmatpush1.msra.mxu0 0.0
    %4233 = vmatprep.subr.mxu0 0.0
    %4234 = vmatpush1.msra.mxu0 0.0
    %4235 = vmatprep.subr.mxu0 0.0
    %4236 = vmatpush1.msra.mxu0 0.0
    %4237 = vmatprep.subr.mxu0 0.0
    %4238 = vmatpush1.msra.mxu0 0.0
    %4239 = vmatprep.subr.mxu0 0.0
    %4240 = vmatpush1.msra.mxu0 0.0
    %4241 = vmatprep.subr.mxu0 0.0
    %4242 = vmatpush1.msra.mxu0 0.0
    %4243 = vmatprep.subr.mxu0 0.0
    %4244 = vmatpush1.msra.mxu0 0.0
    %4245 = vmatprep.subr.mxu0 0.0
    %4246 = vmatpush1.msra.mxu0 0.0
    %4247 = vmatprep.subr.mxu0 0.0
    %4248 = vmatpush1.msra.mxu0 0.0
    %4249 = vmatprep.subr.mxu0 0.0
    %4250 = vmatpush1.msra.mxu0 0.0
    %4251 = vmatprep.subr.mxu0 0.0
    %4252 = vmatpush1.msra.mxu0 0.0
    %4253 = vmatprep.subr.mxu0 0.0
    %4254 = vmatpush1.msra.mxu0 0.0
    %4255 = vmatprep.subr.mxu0 0.0
    %4256 = vmatpush1.msra.mxu0 0.0
    %4257 = vmatprep.subr.mxu0 0.0
    %4258 = vmatpush1.msra.mxu0 0.0
    %4259 = vmatprep.subr.mxu0 0.0
    %4260 = vmatpush1.msra.mxu0 0.0
    %4261 = vmatprep.subr.mxu0 0.0
    %4262 = vmatpush1.msra.mxu0 0.0
    %4263 = vmatprep.subr.mxu0 0.0
    %4264 = vmatpush1.msra.mxu0 0.0
    %4265 = vmatprep.subr.mxu0 0.0
    %4266 = vmatpush1.msra.mxu0 0.0
    %4267 = vmatprep.subr.mxu0 0.0
    %4268 = vmatpush1.msra.mxu0 0.0
    %4269 = vmatprep.subr.mxu0 0.0
    %4270 = vmatpush1.msra.mxu0 0.0
    %4271 = vmatprep.mubr.f32.mxu0 0.0
    %4272 = vmatmul.mubr.f32.gmra.mrb[0].mxu0 %v4202
    %v4273 = vpop.f32.mrb[0].mxu0
    %v4274 = vadd.f32 0.0, %v4273
    %v4275 = vpop.f32.mrb[0].mxu0
    %4276 = vmatprep.mubr.f32.mxu0 0.0
    %4277 = vmatmul.mubr.f32.gmra.mrb[0].mxu0 %v4205
    %v4278 = vpop.f32.mrb[0].mxu0
    %v4279 = vadd.f32 0.0, %v4278
    %v4280 = vpop.f32.mrb[0].mxu0
    %4281 = vdwg.mxu0
    %v4282 = vadd.f32 %v3701, %v4274
    %v4283 = vadd.f32 %v3702, %v4279
    %s4284 = scalar_lea.vmem %s6, 448
    %v4285 = vld [vmem:[%s4284] sm:$0xff]
    %v4286 = vld [vmem:[%s4284 + $0x8] sm:$0xff]
    %v4287 = vld [vmem:[%s4284 + $0x10] sm:$0xff]
    %v4288 = vld [vmem:[%s4284 + $0x18] sm:$0xff]
    %v4289 = vld [vmem:[%s4284 + $0x20] sm:$0xff]
    %v4290 = vld [vmem:[%s4284 + $0x28] sm:$0xff]
    %v4291 = vld [vmem:[%s4284 + $0x30] sm:$0xff]
    %v4292 = vld [vmem:[%s4284 + $0x38] sm:$0xff]
    %s4293 = scalar_lea.vmem %s7, 7
    %v4294 = vld [vmem:[%s4293] sm:$0x1]
    %v4296 = vlaneseq
    %v4297 = vshrl.u32 %v4296, 7
    %v4298 = vsub.s32 0, %v4297
    %v4299 = vrot.slane %v4294, %v4298
    %4301 = vmatprep.subr.mxu0 0.0
    %4302 = vmatpush1.msra.mxu0 %v4285
    %4303 = vmatprep.subr.mxu0 0.0
    %4304 = vmatpush1.msra.mxu0 %v4286
    %4305 = vmatprep.subr.mxu0 0.0
    %4306 = vmatpush1.msra.mxu0 %v4287
    %4307 = vmatprep.subr.mxu0 0.0
    %4308 = vmatpush1.msra.mxu0 %v4288
    %4309 = vmatprep.subr.mxu0 0.0
    %4310 = vmatpush1.msra.mxu0 %v4289
    %4311 = vmatprep.subr.mxu0 0.0
    %4312 = vmatpush1.msra.mxu0 %v4290
    %4313 = vmatprep.subr.mxu0 0.0
    %4314 = vmatpush1.msra.mxu0 %v4291
    %4315 = vmatprep.subr.mxu0 0.0
    %4316 = vmatpush1.msra.mxu0 %v4292
    %4317 = vmatprep.subr.mxu0 0.0
    %4318 = vmatpush1.msra.mxu0 0.0
    %4319 = vmatprep.subr.mxu0 0.0
    %4320 = vmatpush1.msra.mxu0 0.0
    %4321 = vmatprep.subr.mxu0 0.0
    %4322 = vmatpush1.msra.mxu0 0.0
    %4323 = vmatprep.subr.mxu0 0.0
    %4324 = vmatpush1.msra.mxu0 0.0
    %4325 = vmatprep.subr.mxu0 0.0
    %4326 = vmatpush1.msra.mxu0 0.0
    %4327 = vmatprep.subr.mxu0 0.0
    %4328 = vmatpush1.msra.mxu0 0.0
    %4329 = vmatprep.subr.mxu0 0.0
    %4330 = vmatpush1.msra.mxu0 0.0
    %4331 = vmatprep.subr.mxu0 0.0
    %4332 = vmatpush1.msra.mxu0 0.0
    %4333 = vmatprep.subr.mxu0 0.0
    %4334 = vmatpush1.msra.mxu0 0.0
    %4335 = vmatprep.subr.mxu0 0.0
    %4336 = vmatpush1.msra.mxu0 0.0
    %4337 = vmatprep.subr.mxu0 0.0
    %4338 = vmatpush1.msra.mxu0 0.0
    %4339 = vmatprep.subr.mxu0 0.0
    %4340 = vmatpush1.msra.mxu0 0.0
    %4341 = vmatprep.subr.mxu0 0.0
    %4342 = vmatpush1.msra.mxu0 0.0
    %4343 = vmatprep.subr.mxu0 0.0
    %4344 = vmatpush1.msra.mxu0 0.0
    %4345 = vmatprep.subr.mxu0 0.0
    %4346 = vmatpush1.msra.mxu0 0.0
    %4347 = vmatprep.subr.mxu0 0.0
    %4348 = vmatpush1.msra.mxu0 0.0
    %4349 = vmatprep.subr.mxu0 0.0
    %4350 = vmatpush1.msra.mxu0 0.0
    %4351 = vmatprep.subr.mxu0 0.0
    %4352 = vmatpush1.msra.mxu0 0.0
    %4353 = vmatprep.subr.mxu0 0.0
    %4354 = vmatpush1.msra.mxu0 0.0
    %4355 = vmatprep.subr.mxu0 0.0
    %4356 = vmatpush1.msra.mxu0 0.0
    %4357 = vmatprep.subr.mxu0 0.0
    %4358 = vmatpush1.msra.mxu0 0.0
    %4359 = vmatprep.subr.mxu0 0.0
    %4360 = vmatpush1.msra.mxu0 0.0
    %4361 = vmatprep.subr.mxu0 0.0
    %4362 = vmatpush1.msra.mxu0 0.0
    %4363 = vmatprep.subr.mxu0 0.0
    %4364 = vmatpush1.msra.mxu0 0.0
    %4365 = vmatprep.mubr.f32.mxu0 0.0
    %4366 = vmatmul.mubr.f32.gmra.mrb[0].mxu0 %v220
    %v4367 = vpop.f32.mrb[0].mxu0
    %v4368 = vadd.f32 %v4299, %v4367
    %v4369 = vpop.f32.mrb[0].mxu0
    %4370 = vmatprep.mubr.f32.mxu0 0.0
    %4371 = vmatmul.mubr.f32.gmra.mrb[0].mxu0 %v223
    %v4372 = vpop.f32.mrb[0].mxu0
    %v4373 = vadd.f32 %v4299, %v4372
    %v4374 = vpop.f32.mrb[0].mxu0
    %4375 = vdwg.mxu0
    %s4376 = scalar_lea.vmem %s6, 960
    %v4377 = vld [vmem:[%s4376] sm:$0xff]
    %v4378 = vld [vmem:[%s4376 + $0x8] sm:$0xff]
    %v4379 = vld [vmem:[%s4376 + $0x10] sm:$0xff]
    %v4380 = vld [vmem:[%s4376 + $0x18] sm:$0xff]
    %v4381 = vld [vmem:[%s4376 + $0x20] sm:$0xff]
    %v4382 = vld [vmem:[%s4376 + $0x28] sm:$0xff]
    %v4383 = vld [vmem:[%s4376 + $0x30] sm:$0xff]
    %v4384 = vld [vmem:[%s4376 + $0x38] sm:$0xff]
    %s4385 = scalar_lea.vmem %s7, 15
    %v4386 = vld [vmem:[%s4385] sm:$0x1]
    %v4388 = vlaneseq
    %v4389 = vshrl.u32 %v4388, 7
    %v4390 = vsub.s32 0, %v4389
    %v4391 = vrot.slane %v4386, %v4390
    %4393 = vmatprep.subr.mxu0 0.0
    %4394 = vmatpush1.msra.mxu0 %v4377
    %4395 = vmatprep.subr.mxu0 0.0
    %4396 = vmatpush1.msra.mxu0 %v4378
    %4397 = vmatprep.subr.mxu0 0.0
    %4398 = vmatpush1.msra.mxu0 %v4379
    %4399 = vmatprep.subr.mxu0 0.0
    %4400 = vmatpush1.msra.mxu0 %v4380
    %4401 = vmatprep.subr.mxu0 0.0
    %4402 = vmatpush1.msra.mxu0 %v4381
    %4403 = vmatprep.subr.mxu0 0.0
    %4404 = vmatpush1.msra.mxu0 %v4382
    %4405 = vmatprep.subr.mxu0 0.0
    %4406 = vmatpush1.msra.mxu0 %v4383
    %4407 = vmatprep.subr.mxu0 0.0
    %4408 = vmatpush1.msra.mxu0 %v4384
    %4409 = vmatprep.subr.mxu0 0.0
    %4410 = vmatpush1.msra.mxu0 0.0
    %4411 = vmatprep.subr.mxu0 0.0
    %4412 = vmatpush1.msra.mxu0 0.0
    %4413 = vmatprep.subr.mxu0 0.0
    %4414 = vmatpush1.msra.mxu0 0.0
    %4415 = vmatprep.subr.mxu0 0.0
    %4416 = vmatpush1.msra.mxu0 0.0
    %4417 = vmatprep.subr.mxu0 0.0
    %4418 = vmatpush1.msra.mxu0 0.0
    %4419 = vmatprep.subr.mxu0 0.0
    %4420 = vmatpush1.msra.mxu0 0.0
    %4421 = vmatprep.subr.mxu0 0.0
    %4422 = vmatpush1.msra.mxu0 0.0
    %4423 = vmatprep.subr.mxu0 0.0
    %4424 = vmatpush1.msra.mxu0 0.0
    %4425 = vmatprep.subr.mxu0 0.0
    %4426 = vmatpush1.msra.mxu0 0.0
    %4427 = vmatprep.subr.mxu0 0.0
    %4428 = vmatpush1.msra.mxu0 0.0
    %4429 = vmatprep.subr.mxu0 0.0
    %4430 = vmatpush1.msra.mxu0 0.0
    %4431 = vmatprep.subr.mxu0 0.0
    %4432 = vmatpush1.msra.mxu0 0.0
    %4433 = vmatprep.subr.mxu0 0.0
    %4434 = vmatpush1.msra.mxu0 0.0
    %4435 = vmatprep.subr.mxu0 0.0
    %4436 = vmatpush1.msra.mxu0 0.0
    %4437 = vmatprep.subr.mxu0 0.0
    %4438 = vmatpush1.msra.mxu0 0.0
    %4439 = vmatprep.subr.mxu0 0.0
    %4440 = vmatpush1.msra.mxu0 0.0
    %4441 = vmatprep.subr.mxu0 0.0
    %4442 = vmatpush1.msra.mxu0 0.0
    %4443 = vmatprep.subr.mxu0 0.0
    %4444 = vmatpush1.msra.mxu0 0.0
    %4445 = vmatprep.subr.mxu0 0.0
    %4446 = vmatpush1.msra.mxu0 0.0
    %4447 = vmatprep.subr.mxu0 0.0
    %4448 = vmatpush1.msra.mxu0 0.0
    %4449 = vmatprep.subr.mxu0 0.0
    %4450 = vmatpush1.msra.mxu0 0.0
    %4451 = vmatprep.subr.mxu0 0.0
    %4452 = vmatpush1.msra.mxu0 0.0
    %4453 = vmatprep.subr.mxu0 0.0
    %4454 = vmatpush1.msra.mxu0 0.0
    %4455 = vmatprep.subr.mxu0 0.0
    %4456 = vmatpush1.msra.mxu0 0.0
    %4457 = vmatprep.mubr.f32.mxu0 0.0
    %4458 = vmatmul.mubr.f32.gmra.mrb[0].mxu0 %v318
    %v4459 = vpop.f32.mrb[0].mxu0
    %v4460 = vadd.f32 %v4391, %v4459
    %v4461 = vpop.f32.mrb[0].mxu0
    %4462 = vmatprep.mubr.f32.mxu0 0.0
    %4463 = vmatmul.mubr.f32.gmra.mrb[0].mxu0 %v321
    %v4464 = vpop.f32.mrb[0].mxu0
    %v4465 = vadd.f32 %v4391, %v4464
    %v4466 = vpop.f32.mrb[0].mxu0
    %4467 = vmatprep.mubr.f32.mxu0 0.0
    %4468 = vmatmul.mubr.f32.gmra.mrb[0].mxu0 %v324
    %v4469 = vpop.f32.mrb[0].mxu0
    %v4470 = vadd.f32 %v4391, %v4469
    %v4471 = vpop.f32.mrb[0].mxu0
    %4472 = vmatprep.mubr.f32.mxu0 0.0
    %4473 = vmatmul.mubr.f32.gmra.mrb[0].mxu0 %v327
    %v4474 = vpop.f32.mrb[0].mxu0
    %v4475 = vadd.f32 %v4391, %v4474
    %v4476 = vpop.f32.mrb[0].mxu0
    %4477 = vdwg.mxu0
    %s4478 = scalar_lea.vmem %s6, 1472
    %v4479 = vld [vmem:[%s4478] sm:$0xff]
    %v4480 = vld [vmem:[%s4478 + $0x8] sm:$0xff]
    %v4481 = vld [vmem:[%s4478 + $0x10] sm:$0xff]
    %v4482 = vld [vmem:[%s4478 + $0x18] sm:$0xff]
    %v4483 = vld [vmem:[%s4478 + $0x20] sm:$0xff]
    %v4484 = vld [vmem:[%s4478 + $0x28] sm:$0xff]
    %v4485 = vld [vmem:[%s4478 + $0x30] sm:$0xff]
    %v4486 = vld [vmem:[%s4478 + $0x38] sm:$0xff]
    %s4487 = scalar_lea.vmem %s7, 23
    %v4488 = vld [vmem:[%s4487] sm:$0x1]
    %v4490 = vlaneseq
    %v4491 = vshrl.u32 %v4490, 7
    %v4492 = vsub.s32 0, %v4491
    %v4493 = vrot.slane %v4488, %v4492
    %4495 = vmatprep.subr.mxu0 0.0
    %4496 = vmatpush1.msra.mxu0 %v4479
    %4497 = vmatprep.subr.mxu0 0.0
    %4498 = vmatpush1.msra.mxu0 %v4480
    %4499 = vmatprep.subr.mxu0 0.0
    %4500 = vmatpush1.msra.mxu0 %v4481
    %4501 = vmatprep.subr.mxu0 0.0
    %4502 = vmatpush1.msra.mxu0 %v4482
    %4503 = vmatprep.subr.mxu0 0.0
    %4504 = vmatpush1.msra.mxu0 %v4483
    %4505 = vmatprep.subr.mxu0 0.0
    %4506 = vmatpush1.msra.mxu0 %v4484
    %4507 = vmatprep.subr.mxu0 0.0
    %4508 = vmatpush1.msra.mxu0 %v4485
    %4509 = vmatprep.subr.mxu0 0.0
    %4510 = vmatpush1.msra.mxu0 %v4486
    %4511 = vmatprep.subr.mxu0 0.0
    %4512 = vmatpush1.msra.mxu0 0.0
    %4513 = vmatprep.subr.mxu0 0.0
    %4514 = vmatpush1.msra.mxu0 0.0
    %4515 = vmatprep.subr.mxu0 0.0
    %4516 = vmatpush1.msra.mxu0 0.0
    %4517 = vmatprep.subr.mxu0 0.0
    %4518 = vmatpush1.msra.mxu0 0.0
    %4519 = vmatprep.subr.mxu0 0.0
    %4520 = vmatpush1.msra.mxu0 0.0
    %4521 = vmatprep.subr.mxu0 0.0
    %4522 = vmatpush1.msra.mxu0 0.0
    %4523 = vmatprep.subr.mxu0 0.0
    %4524 = vmatpush1.msra.mxu0 0.0
    %4525 = vmatprep.subr.mxu0 0.0
    %4526 = vmatpush1.msra.mxu0 0.0
    %4527 = vmatprep.subr.mxu0 0.0
    %4528 = vmatpush1.msra.mxu0 0.0
    %4529 = vmatprep.subr.mxu0 0.0
    %4530 = vmatpush1.msra.mxu0 0.0
    %4531 = vmatprep.subr.mxu0 0.0
    %4532 = vmatpush1.msra.mxu0 0.0
    %4533 = vmatprep.subr.mxu0 0.0
    %4534 = vmatpush1.msra.mxu0 0.0
    %4535 = vmatprep.subr.mxu0 0.0
    %4536 = vmatpush1.msra.mxu0 0.0
    %4537 = vmatprep.subr.mxu0 0.0
    %4538 = vmatpush1.msra.mxu0 0.0
    %4539 = vmatprep.subr.mxu0 0.0
    %4540 = vmatpush1.msra.mxu0 0.0
    %4541 = vmatprep.subr.mxu0 0.0
    %4542 = vmatpush1.msra.mxu0 0.0
    %4543 = vmatprep.subr.mxu0 0.0
    %4544 = vmatpush1.msra.mxu0 0.0
    %4545 = vmatprep.subr.mxu0 0.0
    %4546 = vmatpush1.msra.mxu0 0.0
    %4547 = vmatprep.subr.mxu0 0.0
    %4548 = vmatpush1.msra.mxu0 0.0
    %4549 = vmatprep.subr.mxu0 0.0
    %4550 = vmatpush1.msra.mxu0 0.0
    %4551 = vmatprep.subr.mxu0 0.0
    %4552 = vmatpush1.msra.mxu0 0.0
    %4553 = vmatprep.subr.mxu0 0.0
    %4554 = vmatpush1.msra.mxu0 0.0
    %4555 = vmatprep.subr.mxu0 0.0
    %4556 = vmatpush1.msra.mxu0 0.0
    %4557 = vmatprep.subr.mxu0 0.0
    %4558 = vmatpush1.msra.mxu0 0.0
    %4559 = vmatprep.mubr.f32.mxu0 0.0
    %4560 = vmatmul.mubr.f32.gmra.mrb[0].mxu0 %v318
    %v4561 = vpop.f32.mrb[0].mxu0
    %v4562 = vadd.f32 %v4493, %v4561
    %v4563 = vpop.f32.mrb[0].mxu0
    %4564 = vmatprep.mubr.f32.mxu0 0.0
    %4565 = vmatmul.mubr.f32.gmra.mrb[0].mxu0 %v321
    %v4566 = vpop.f32.mrb[0].mxu0
    %v4567 = vadd.f32 %v4493, %v4566
    %v4568 = vpop.f32.mrb[0].mxu0
    %4569 = vmatprep.mubr.f32.mxu0 0.0
    %4570 = vmatmul.mubr.f32.gmra.mrb[0].mxu0 %v324
    %v4571 = vpop.f32.mrb[0].mxu0
    %v4572 = vadd.f32 %v4493, %v4571
    %v4573 = vpop.f32.mrb[0].mxu0
    %4574 = vmatprep.mubr.f32.mxu0 0.0
    %4575 = vmatmul.mubr.f32.gmra.mrb[0].mxu0 %v327
    %v4576 = vpop.f32.mrb[0].mxu0
    %v4577 = vadd.f32 %v4493, %v4576
    %v4578 = vpop.f32.mrb[0].mxu0
    %4579 = vdwg.mxu0
    %v4581 = vsel %vm516, %v4368, 0
    %v4584 = vsel %vm516, %v4373, 0
    %v4587 = vsel %vm516, %v4460, 0
    %v4590 = vsel %vm516, %v4465, 0
    %v4593 = vsel %vm516, %v4470, 0
    %v4596 = vsel %vm516, %v4475, 0
    %4598 = vmatprep.subr.mxu0 0.0
    %4599 = vmatpush1.xpose.msra.mxu0 %v4587
    %4600 = vmatprep.subr.mxu0 0.0
    %4601 = vmatpush1.xpose.msra.mxu0 %v4590
    %4602 = vmatprep.subr.mxu0 0.0
    %4603 = vmatpush1.xpose.msra.mxu0 %v4593
    %4604 = vmatprep.subr.mxu0 0.0
    %4605 = vmatpush1.xpose.msra.mxu0 %v4596
    %4606 = vmatprep.subr.mxu0 0.0
    %4607 = vmatpush1.xpose.msra.mxu0 0.0
    %4608 = vmatprep.subr.mxu0 0.0
    %4609 = vmatpush1.xpose.msra.mxu0 0.0
    %4610 = vmatprep.subr.mxu0 0.0
    %4611 = vmatpush1.xpose.msra.mxu0 0.0
    %4612 = vmatprep.subr.mxu0 0.0
    %4613 = vmatpush1.xpose.msra.mxu0 0.0
    %4614 = vmatprep.subr.mxu0 0.0
    %4615 = vmatpush1.xpose.msra.mxu0 0.0
    %4616 = vmatprep.subr.mxu0 0.0
    %4617 = vmatpush1.xpose.msra.mxu0 0.0
    %4618 = vmatprep.subr.mxu0 0.0
    %4619 = vmatpush1.xpose.msra.mxu0 0.0
    %4620 = vmatprep.subr.mxu0 0.0
    %4621 = vmatpush1.xpose.msra.mxu0 0.0
    %4622 = vmatprep.subr.mxu0 0.0
    %4623 = vmatpush1.xpose.msra.mxu0 0.0
    %4624 = vmatprep.subr.mxu0 0.0
    %4625 = vmatpush1.xpose.msra.mxu0 0.0
    %4626 = vmatprep.subr.mxu0 0.0
    %4627 = vmatpush1.xpose.msra.mxu0 0.0
    %4628 = vmatprep.subr.mxu0 0.0
    %4629 = vmatpush1.xpose.msra.mxu0 0.0
    %4630 = vmatprep.subr.mxu0 0.0
    %4631 = vmatpush1.xpose.msra.mxu0 0.0
    %4632 = vmatprep.subr.mxu0 0.0
    %4633 = vmatpush1.xpose.msra.mxu0 0.0
    %4634 = vmatprep.subr.mxu0 0.0
    %4635 = vmatpush1.xpose.msra.mxu0 0.0
    %4636 = vmatprep.subr.mxu0 0.0
    %4637 = vmatpush1.xpose.msra.mxu0 0.0
    %4638 = vmatprep.subr.mxu0 0.0
    %4639 = vmatpush1.xpose.msra.mxu0 0.0
    %4640 = vmatprep.subr.mxu0 0.0
    %4641 = vmatpush1.xpose.msra.mxu0 0.0
    %4642 = vmatprep.subr.mxu0 0.0
    %4643 = vmatpush1.xpose.msra.mxu0 0.0
    %4644 = vmatprep.subr.mxu0 0.0
    %4645 = vmatpush1.xpose.msra.mxu0 0.0
    %4646 = vmatprep.subr.mxu0 0.0
    %4647 = vmatpush1.xpose.msra.mxu0 0.0
    %4648 = vmatprep.subr.mxu0 0.0
    %4649 = vmatpush1.xpose.msra.mxu0 0.0
    %4650 = vmatprep.subr.mxu0 0.0
    %4651 = vmatpush1.xpose.msra.mxu0 0.0
    %4652 = vmatprep.subr.mxu0 0.0
    %4653 = vmatpush1.xpose.msra.mxu0 0.0
    %4654 = vmatprep.subr.mxu0 0.0
    %4655 = vmatpush1.xpose.msra.mxu0 0.0
    %4656 = vmatprep.subr.mxu0 0.0
    %4657 = vmatpush1.xpose.msra.mxu0 0.0
    %4658 = vmatprep.subr.mxu0 0.0
    %4659 = vmatpush1.xpose.msra.mxu0 0.0
    %4660 = vmatprep.subr.mxu0 0.0
    %4661 = vmatpush1.xpose.msra.mxu0 0.0
    %4662 = vmatprep.mubr.f32.mxu0 0.0
    %4663 = vmatmul.mubr.f32.gmra.mrb[0].mxu0 %v4581
    %v4664 = vpop.f32.mrb[0].mxu0
    %v4665 = vadd.f32 0.0, %v4664
    %v4666 = vpop.f32.mrb[0].mxu0
    %4667 = vmatprep.mubr.f32.mxu0 0.0
    %4668 = vmatmul.mubr.f32.gmra.mrb[0].mxu0 %v4584
    %v4669 = vpop.f32.mrb[0].mxu0
    %v4670 = vadd.f32 0.0, %v4669
    %v4671 = vpop.f32.mrb[0].mxu0
    %4672 = vdwg.mxu0
    %v4673 = vmul.f32 %v4665, 0.35355338
    %v4674 = vmul.f32 %v4670, 0.35355338
    %v4675 = vadd.f32 %v4673, %v202
    %v4676 = vadd.f32 %v4674, %v203
    %v4677 = vsel %vm614, %v4675, -inf
    %4678 = vmax.xlane.f32.xlu0 %v4677
    %v4679 = vpop.xlane.xlu0 %4678
    %v4680 = vsel %vm614, %v4676, -inf
    %4681 = vmax.xlane.f32.xlu0 %v4680
    %v4682 = vpop.xlane.xlu0 %4681
    %v4683 = vsub.f32 %v4675, %v4679
    %v4684 = vsub.f32 %v4676, %v4682
    %v4685 = vmul.f32 %v4683, 1.442695
    %v4686 = vpow.pop %v4685
    %v4687 = vmul.f32 %v4684, 1.442695
    %v4688 = vpow.pop %v4687
    %v4689 = vsel %vm614, %v4686, 0.0
    %4690 = vadd.xlane.f32.xlu0 %v4689
    %v4691 = vpop.xlane.xlu0 %4690
    %v4692 = vsel %vm614, %v4688, 0.0
    %4693 = vadd.xlane.f32.xlu0 %v4692
    %v4694 = vpop.xlane.xlu0 %4693
    %v4695 = vrcp.pop %v4691
    %v4696 = vrcp.pop %v4694
    %v4697 = vmul.f32 %v4686, %v4695
    %v4698 = vmul.f32 %v4688, %v4696
    %v4700 = vsel %vm614, %v4697, 0
    %v4703 = vsel %vm614, %v4698, 0
    %4705 = vmatprep.subr.mxu0 0.0
    %4706 = vmatpush1.msra.mxu0 %v4562
    %4707 = vmatprep.subr.mxu0 0.0
    %4708 = vmatpush1.msra.mxu0 %v4567
    %4709 = vmatprep.subr.mxu0 0.0
    %4710 = vmatpush1.msra.mxu0 %v4572
    %4711 = vmatprep.subr.mxu0 0.0
    %4712 = vmatpush1.msra.mxu0 %v4577
    %4713 = vmatprep.subr.mxu0 0.0
    %4714 = vmatpush1.msra.mxu0 0.0
    %4715 = vmatprep.subr.mxu0 0.0
    %4716 = vmatpush1.msra.mxu0 0.0
    %4717 = vmatprep.subr.mxu0 0.0
    %4718 = vmatpush1.msra.mxu0 0.0
    %4719 = vmatprep.subr.mxu0 0.0
    %4720 = vmatpush1.msra.mxu0 0.0
    %4721 = vmatprep.subr.mxu0 0.0
    %4722 = vmatpush1.msra.mxu0 0.0
    %4723 = vmatprep.subr.mxu0 0.0
    %4724 = vmatpush1.msra.mxu0 0.0
    %4725 = vmatprep.subr.mxu0 0.0
    %4726 = vmatpush1.msra.mxu0 0.0
    %4727 = vmatprep.subr.mxu0 0.0
    %4728 = vmatpush1.msra.mxu0 0.0
    %4729 = vmatprep.subr.mxu0 0.0
    %4730 = vmatpush1.msra.mxu0 0.0
    %4731 = vmatprep.subr.mxu0 0.0
    %4732 = vmatpush1.msra.mxu0 0.0
    %4733 = vmatprep.subr.mxu0 0.0
    %4734 = vmatpush1.msra.mxu0 0.0
    %4735 = vmatprep.subr.mxu0 0.0
    %4736 = vmatpush1.msra.mxu0 0.0
    %4737 = vmatprep.subr.mxu0 0.0
    %4738 = vmatpush1.msra.mxu0 0.0
    %4739 = vmatprep.subr.mxu0 0.0
    %4740 = vmatpush1.msra.mxu0 0.0
    %4741 = vmatprep.subr.mxu0 0.0
    %4742 = vmatpush1.msra.mxu0 0.0
    %4743 = vmatprep.subr.mxu0 0.0
    %4744 = vmatpush1.msra.mxu0 0.0
    %4745 = vmatprep.subr.mxu0 0.0
    %4746 = vmatpush1.msra.mxu0 0.0
    %4747 = vmatprep.subr.mxu0 0.0
    %4748 = vmatpush1.msra.mxu0 0.0
    %4749 = vmatprep.subr.mxu0 0.0
    %4750 = vmatpush1.msra.mxu0 0.0
    %4751 = vmatprep.subr.mxu0 0.0
    %4752 = vmatpush1.msra.mxu0 0.0
    %4753 = vmatprep.subr.mxu0 0.0
    %4754 = vmatpush1.msra.mxu0 0.0
    %4755 = vmatprep.subr.mxu0 0.0
    %4756 = vmatpush1.msra.mxu0 0.0
    %4757 = vmatprep.subr.mxu0 0.0
    %4758 = vmatpush1.msra.mxu0 0.0
    %4759 = vmatprep.subr.mxu0 0.0
    %4760 = vmatpush1.msra.mxu0 0.0
    %4761 = vmatprep.subr.mxu0 0.0
    %4762 = vmatpush1.msra.mxu0 0.0
    %4763 = vmatprep.subr.mxu0 0.0
    %4764 = vmatpush1.msra.mxu0 0.0
    %4765 = vmatprep.subr.mxu0 0.0
    %4766 = vmatpush1.msra.mxu0 0.0
    %4767 = vmatprep.subr.mxu0 0.0
    %4768 = vmatpush1.msra.mxu0 0.0
    %4769 = vmatprep.mubr.f32.mxu0 0.0
    %4770 = vmatmul.mubr.f32.gmra.mrb[0].mxu0 %v4700
    %v4771 = vpop.f32.mrb[0].mxu0
    %v4772 = vadd.f32 0.0, %v4771
    %v4773 = vpop.f32.mrb[0].mxu0
    %4774 = vmatprep.mubr.f32.mxu0 0.0
    %4775 = vmatmul.mubr.f32.gmra.mrb[0].mxu0 %v4703
    %v4776 = vpop.f32.mrb[0].mxu0
    %v4777 = vadd.f32 0.0, %v4776
    %v4778 = vpop.f32.mrb[0].mxu0
    %4779 = vdwg.mxu0
    %s4780 = scalar_lea.vmem %s8, 56
    %v4781 = vld [vmem:[%s4780] sm:$0xff]
    %v4783 = vsel %vm516, %v4772, 0
    %v4786 = vsel %vm516, %v4777, 0
    %4788 = vmatprep.subr.mxu0 0.0
    %4789 = vmatpush1.msra.mxu0 %v4781
    %4790 = vmatprep.subr.mxu0 0.0
    %4791 = vmatpush1.msra.mxu0 0.0
    %4792 = vmatprep.subr.mxu0 0.0
    %4793 = vmatpush1.msra.mxu0 0.0
    %4794 = vmatprep.subr.mxu0 0.0
    %4795 = vmatpush1.msra.mxu0 0.0
    %4796 = vmatprep.subr.mxu0 0.0
    %4797 = vmatpush1.msra.mxu0 0.0
    %4798 = vmatprep.subr.mxu0 0.0
    %4799 = vmatpush1.msra.mxu0 0.0
    %4800 = vmatprep.subr.mxu0 0.0
    %4801 = vmatpush1.msra.mxu0 0.0
    %4802 = vmatprep.subr.mxu0 0.0
    %4803 = vmatpush1.msra.mxu0 0.0
    %4804 = vmatprep.subr.mxu0 0.0
    %4805 = vmatpush1.msra.mxu0 0.0
    %4806 = vmatprep.subr.mxu0 0.0
    %4807 = vmatpush1.msra.mxu0 0.0
    %4808 = vmatprep.subr.mxu0 0.0
    %4809 = vmatpush1.msra.mxu0 0.0
    %4810 = vmatprep.subr.mxu0 0.0
    %4811 = vmatpush1.msra.mxu0 0.0
    %4812 = vmatprep.subr.mxu0 0.0
    %4813 = vmatpush1.msra.mxu0 0.0
    %4814 = vmatprep.subr.mxu0 0.0
    %4815 = vmatpush1.msra.mxu0 0.0
    %4816 = vmatprep.subr.mxu0 0.0
    %4817 = vmatpush1.msra.mxu0 0.0
    %4818 = vmatprep.subr.mxu0 0.0
    %4819 = vmatpush1.msra.mxu0 0.0
    %4820 = vmatprep.subr.mxu0 0.0
    %4821 = vmatpush1.msra.mxu0 0.0
    %4822 = vmatprep.subr.mxu0 0.0
    %4823 = vmatpush1.msra.mxu0 0.0
    %4824 = vmatprep.subr.mxu0 0.0
    %4825 = vmatpush1.msra.mxu0 0.0
    %4826 = vmatprep.subr.mxu0 0.0
    %4827 = vmatpush1.msra.mxu0 0.0
    %4828 = vmatprep.subr.mxu0 0.0
    %4829 = vmatpush1.msra.mxu0 0.0
    %4830 = vmatprep.subr.mxu0 0.0
    %4831 = vmatpush1.msra.mxu0 0.0
    %4832 = vmatprep.subr.mxu0 0.0
    %4833 = vmatpush1.msra.mxu0 0.0
    %4834 = vmatprep.subr.mxu0 0.0
    %4835 = vmatpush1.msra.mxu0 0.0
    %4836 = vmatprep.subr.mxu0 0.0
    %4837 = vmatpush1.msra.mxu0 0.0
    %4838 = vmatprep.subr.mxu0 0.0
    %4839 = vmatpush1.msra.mxu0 0.0
    %4840 = vmatprep.subr.mxu0 0.0
    %4841 = vmatpush1.msra.mxu0 0.0
    %4842 = vmatprep.subr.mxu0 0.0
    %4843 = vmatpush1.msra.mxu0 0.0
    %4844 = vmatprep.subr.mxu0 0.0
    %4845 = vmatpush1.msra.mxu0 0.0
    %4846 = vmatprep.subr.mxu0 0.0
    %4847 = vmatpush1.msra.mxu0 0.0
    %4848 = vmatprep.subr.mxu0 0.0
    %4849 = vmatpush1.msra.mxu0 0.0
    %4850 = vmatprep.subr.mxu0 0.0
    %4851 = vmatpush1.msra.mxu0 0.0
    %4852 = vmatprep.mubr.f32.mxu0 0.0
    %4853 = vmatmul.mubr.f32.gmra.mrb[0].mxu0 %v4783
    %v4854 = vpop.f32.mrb[0].mxu0
    %v4855 = vadd.f32 0.0, %v4854
    %v4856 = vpop.f32.mrb[0].mxu0
    %4857 = vmatprep.mubr.f32.mxu0 0.0
    %4858 = vmatmul.mubr.f32.gmra.mrb[0].mxu0 %v4786
    %v4859 = vpop.f32.mrb[0].mxu0
    %v4860 = vadd.f32 0.0, %v4859
    %v4861 = vpop.f32.mrb[0].mxu0
    %4862 = vdwg.mxu0
    %v4863 = vadd.f32 %v4282, %v4855
    %v4864 = vadd.f32 %v4283, %v4860
    %v4865 = vld [vmem:[%s5 + $0xa] sm:$0x1]
    %v4866 = vlaneseq
    %v4867 = vshrl.u32 %v4866, 7
    %v4868 = vsub.s32 0, %v4867
    %v4869 = vrot.slane %v4865, %v4868
    %v4870 = vadd.f32 %v4863, %v4869
    %v4871 = vadd.f32 %v4864, %v4869
    %v4872 = vadd.f32 %v90, %v4870
    %v4873 = vadd.f32 %v91, %v4871
    %v4874 = vsel %vm50, %v4872, 0.0
    %4875 = vadd.xlane.f32.xlu0 %v4874
    %v4876 = vpop.xlane.xlu0 %4875
    %v4877 = vsel %vm50, %v4873, 0.0
    %4878 = vadd.xlane.f32.xlu0 %v4877
    %v4879 = vpop.xlane.xlu0 %4878
    %v4880 = vmul.f32 %v4876, %v57
    %v4881 = vmul.f32 %v4879, %v57
    %v4882 = vsub.f32 %v4872, %v4880
    %v4883 = vsub.f32 %v4873, %v4881
    %v4884 = vmul.f32 %v4882, %v4882
    %v4885 = vmul.f32 %v4883, %v4883
    %v4886 = vsel %vm50, %v4884, 0.0
    %4887 = vadd.xlane.f32.xlu0 %v4886
    %v4888 = vpop.xlane.xlu0 %4887
    %v4889 = vsel %vm50, %v4885, 0.0
    %4890 = vadd.xlane.f32.xlu0 %v4889
    %v4891 = vpop.xlane.xlu0 %4890
    %v4892 = vmul.f32 %v4888, %v57
    %v4893 = vmul.f32 %v4891, %v57
    %v4894 = vadd.f32 %v4892, 1e-05
    %v4895 = vadd.f32 %v4893, 1e-05
    %v4896 = vrsqrt.pop %v4894
    %v4897 = vrsqrt.pop %v4895
    %v4898 = vmul.f32 %v4882, %v4896
    %v4899 = vmul.f32 %v4883, %v4897
    %v4900 = vld [vmem:[%s5 + $0x2] sm:$0x1]
    %v4901 = vlaneseq
    %v4902 = vshrl.u32 %v4901, 7
    %v4903 = vsub.s32 0, %v4902
    %v4904 = vrot.slane %v4900, %v4903
    %v4905 = vmul.f32 %v4898, %v4904
    %v4906 = vmul.f32 %v4899, %v4904
    %v4907 = vld [vmem:[%s5 + $0x7] sm:$0x1]
    %v4908 = vlaneseq
    %v4909 = vshrl.u32 %v4908, 7
    %v4910 = vsub.s32 0, %v4909
    %v4911 = vrot.slane %v4907, %v4910
    %v4912 = vadd.f32 %v4905, %v4911
    %v4913 = vadd.f32 %v4906, %v4911
    %v4914 = vld [vmem:[%s4] sm:$0xff]
    %v4915 = vld [vmem:[%s4 + $0x8] sm:$0xff]
    %s4916 = scalar_lea.vmem %s6, 1536
    %v4917 = vld [vmem:[%s4916] sm:$0xff]
    %v4918 = vld [vmem:[%s4916 + $0x8] sm:$0xff]
    %v4919 = vld [vmem:[%s4916 + $0x10] sm:$0xff]
    %v4920 = vld [vmem:[%s4916 + $0x18] sm:$0xff]
    %v4921 = vld [vmem:[%s4916 + $0x20] sm:$0xff]
    %v4922 = vld [vmem:[%s4916 + $0x28] sm:$0xff]
    %v4923 = vld [vmem:[%s4916 + $0x30] sm:$0xff]
    %v4924 = vld [vmem:[%s4916 + $0x38] sm:$0xff]
    %s4925 = scalar_lea.vmem %s7, 24
    %v4926 = vld [vmem:[%s4925] sm:$0x1]
    %v4928 = vlaneseq
    %v4929 = vshrl.u32 %v4928, 7
    %v4930 = vsub.s32 0, %v4929
    %v4931 = vrot.slane %v4926, %v4930
    %v4934 = vsel %vm50, %v4912, 0
    %v4937 = vsel %vm50, %v4913, 0
    %4939 = vmatprep.subr.mxu0 0.0
    %4940 = vmatpush1.msra.mxu0 %v4917
    %4941 = vmatprep.subr.mxu0 0.0
    %4942 = vmatpush1.msra.mxu0 %v4918
    %4943 = vmatprep.subr.mxu0 0.0
    %4944 = vmatpush1.msra.mxu0 %v4919
    %4945 = vmatprep.subr.mxu0 0.0
    %4946 = vmatpush1.msra.mxu0 %v4920
    %4947 = vmatprep.subr.mxu0 0.0
    %4948 = vmatpush1.msra.mxu0 %v4921
    %4949 = vmatprep.subr.mxu0 0.0
    %4950 = vmatpush1.msra.mxu0 %v4922
    %4951 = vmatprep.subr.mxu0 0.0
    %4952 = vmatpush1.msra.mxu0 %v4923
    %4953 = vmatprep.subr.mxu0 0.0
    %4954 = vmatpush1.msra.mxu0 %v4924
    %4955 = vmatprep.subr.mxu0 0.0
    %4956 = vmatpush1.msra.mxu0 0.0
    %4957 = vmatprep.subr.mxu0 0.0
    %4958 = vmatpush1.msra.mxu0 0.0
    %4959 = vmatprep.subr.mxu0 0.0
    %4960 = vmatpush1.msra.mxu0 0.0
    %4961 = vmatprep.subr.mxu0 0.0
    %4962 = vmatpush1.msra.mxu0 0.0
    %4963 = vmatprep.subr.mxu0 0.0
    %4964 = vmatpush1.msra.mxu0 0.0
    %4965 = vmatprep.subr.mxu0 0.0
    %4966 = vmatpush1.msra.mxu0 0.0
    %4967 = vmatprep.subr.mxu0 0.0
    %4968 = vmatpush1.msra.mxu0 0.0
    %4969 = vmatprep.subr.mxu0 0.0
    %4970 = vmatpush1.msra.mxu0 0.0
    %4971 = vmatprep.subr.mxu0 0.0
    %4972 = vmatpush1.msra.mxu0 0.0
    %4973 = vmatprep.subr.mxu0 0.0
    %4974 = vmatpush1.msra.mxu0 0.0
    %4975 = vmatprep.subr.mxu0 0.0
    %4976 = vmatpush1.msra.mxu0 0.0
    %4977 = vmatprep.subr.mxu0 0.0
    %4978 = vmatpush1.msra.mxu0 0.0
    %4979 = vmatprep.subr.mxu0 0.0
    %4980 = vmatpush1.msra.mxu0 0.0
    %4981 = vmatprep.subr.mxu0 0.0
    %4982 = vmatpush1.msra.mxu0 0.0
    %4983 = vmatprep.subr.mxu0 0.0
    %4984 = vmatpush1.msra.mxu0 0.0
    %4985 = vmatprep.subr.mxu0 0.0
    %4986 = vmatpush1.msra.mxu0 0.0
    %4987 = vmatprep.subr.mxu0 0.0
    %4988 = vmatpush1.msra.mxu0 0.0
    %4989 = vmatprep.subr.mxu0 0.0
    %4990 = vmatpush1.msra.mxu0 0.0
    %4991 = vmatprep.subr.mxu0 0.0
    %4992 = vmatpush1.msra.mxu0 0.0
    %4993 = vmatprep.subr.mxu0 0.0
    %4994 = vmatpush1.msra.mxu0 0.0
    %4995 = vmatprep.subr.mxu0 0.0
    %4996 = vmatpush1.msra.mxu0 0.0
    %4997 = vmatprep.subr.mxu0 0.0
    %4998 = vmatpush1.msra.mxu0 0.0
    %4999 = vmatprep.subr.mxu0 0.0
    %5000 = vmatpush1.msra.mxu0 0.0
    %5001 = vmatprep.subr.mxu0 0.0
    %5002 = vmatpush1.msra.mxu0 0.0
    %5003 = vmatprep.mubr.f32.mxu0 0.0
    %5004 = vmatmul.mubr.f32.gmra.mrb[0].mxu0 %v4934
    %v5005 = vpop.f32.mrb[0].mxu0
    %v5006 = vadd.f32 %v4931, %v5005
    %v5007 = vpop.f32.mrb[0].mxu0
    %5008 = vmatprep.mubr.f32.mxu0 0.0
    %5009 = vmatmul.mubr.f32.gmra.mrb[0].mxu0 %v4937
    %v5010 = vpop.f32.mrb[0].mxu0
    %v5011 = vadd.f32 %v4931, %v5010
    %v5012 = vpop.f32.mrb[0].mxu0
    %5013 = vdwg.mxu0
    %s5014 = scalar_lea.vmem %s6, 2048
    %v5015 = vld [vmem:[%s5014] sm:$0xff]
    %v5016 = vld [vmem:[%s5014 + $0x8] sm:$0xff]
    %v5017 = vld [vmem:[%s5014 + $0x10] sm:$0xff]
    %v5018 = vld [vmem:[%s5014 + $0x18] sm:$0xff]
    %v5019 = vld [vmem:[%s5014 + $0x20] sm:$0xff]
    %v5020 = vld [vmem:[%s5014 + $0x28] sm:$0xff]
    %v5021 = vld [vmem:[%s5014 + $0x30] sm:$0xff]
    %v5022 = vld [vmem:[%s5014 + $0x38] sm:$0xff]
    %s5023 = scalar_lea.vmem %s7, 32
    %v5024 = vld [vmem:[%s5023] sm:$0x1]
    %v5026 = vlaneseq
    %v5027 = vshrl.u32 %v5026, 7
    %v5028 = vsub.s32 0, %v5027
    %v5029 = vrot.slane %v5024, %v5028
    %v5032 = vsel %vm50, %v130, 0
    %v5035 = vsel %vm50, %v131, 0
    %5037 = vmatprep.subr.mxu0 0.0
    %5038 = vmatpush1.msra.mxu0 %v5015
    %5039 = vmatprep.subr.mxu0 0.0
    %5040 = vmatpush1.msra.mxu0 %v5016
    %5041 = vmatprep.subr.mxu0 0.0
    %5042 = vmatpush1.msra.mxu0 %v5017
    %5043 = vmatprep.subr.mxu0 0.0
    %5044 = vmatpush1.msra.mxu0 %v5018
    %5045 = vmatprep.subr.mxu0 0.0
    %5046 = vmatpush1.msra.mxu0 %v5019
    %5047 = vmatprep.subr.mxu0 0.0
    %5048 = vmatpush1.msra.mxu0 %v5020
    %5049 = vmatprep.subr.mxu0 0.0
    %5050 = vmatpush1.msra.mxu0 %v5021
    %5051 = vmatprep.subr.mxu0 0.0
    %5052 = vmatpush1.msra.mxu0 %v5022
    %5053 = vmatprep.subr.mxu0 0.0
    %5054 = vmatpush1.msra.mxu0 0.0
    %5055 = vmatprep.subr.mxu0 0.0
    %5056 = vmatpush1.msra.mxu0 0.0
    %5057 = vmatprep.subr.mxu0 0.0
    %5058 = vmatpush1.msra.mxu0 0.0
    %5059 = vmatprep.subr.mxu0 0.0
    %5060 = vmatpush1.msra.mxu0 0.0
    %5061 = vmatprep.subr.mxu0 0.0
    %5062 = vmatpush1.msra.mxu0 0.0
    %5063 = vmatprep.subr.mxu0 0.0
    %5064 = vmatpush1.msra.mxu0 0.0
    %5065 = vmatprep.subr.mxu0 0.0
    %5066 = vmatpush1.msra.mxu0 0.0
    %5067 = vmatprep.subr.mxu0 0.0
    %5068 = vmatpush1.msra.mxu0 0.0
    %5069 = vmatprep.subr.mxu0 0.0
    %5070 = vmatpush1.msra.mxu0 0.0
    %5071 = vmatprep.subr.mxu0 0.0
    %5072 = vmatpush1.msra.mxu0 0.0
    %5073 = vmatprep.subr.mxu0 0.0
    %5074 = vmatpush1.msra.mxu0 0.0
    %5075 = vmatprep.subr.mxu0 0.0
    %5076 = vmatpush1.msra.mxu0 0.0
    %5077 = vmatprep.subr.mxu0 0.0
    %5078 = vmatpush1.msra.mxu0 0.0
    %5079 = vmatprep.subr.mxu0 0.0
    %5080 = vmatpush1.msra.mxu0 0.0
    %5081 = vmatprep.subr.mxu0 0.0
    %5082 = vmatpush1.msra.mxu0 0.0
    %5083 = vmatprep.subr.mxu0 0.0
    %5084 = vmatpush1.msra.mxu0 0.0
    %5085 = vmatprep.subr.mxu0 0.0
    %5086 = vmatpush1.msra.mxu0 0.0
    %5087 = vmatprep.subr.mxu0 0.0
    %5088 = vmatpush1.msra.mxu0 0.0
    %5089 = vmatprep.subr.mxu0 0.0
    %5090 = vmatpush1.msra.mxu0 0.0
    %5091 = vmatprep.subr.mxu0 0.0
    %5092 = vmatpush1.msra.mxu0 0.0
    %5093 = vmatprep.subr.mxu0 0.0
    %5094 = vmatpush1.msra.mxu0 0.0
    %5095 = vmatprep.subr.mxu0 0.0
    %5096 = vmatpush1.msra.mxu0 0.0
    %5097 = vmatprep.subr.mxu0 0.0
    %5098 = vmatpush1.msra.mxu0 0.0
    %5099 = vmatprep.subr.mxu0 0.0
    %5100 = vmatpush1.msra.mxu0 0.0
    %5101 = vmatprep.mubr.f32.mxu0 0.0
    %5102 = vmatmul.mubr.f32.gmra.mrb[0].mxu0 %v5032
    %v5103 = vpop.f32.mrb[0].mxu0
    %v5104 = vadd.f32 %v5029, %v5103
    %v5105 = vpop.f32.mrb[0].mxu0
    %5106 = vmatprep.mubr.f32.mxu0 0.0
    %5107 = vmatmul.mubr.f32.gmra.mrb[0].mxu0 %v5035
    %v5108 = vpop.f32.mrb[0].mxu0
    %v5109 = vadd.f32 %v5029, %v5108
    %v5110 = vpop.f32.mrb[0].mxu0
    %5111 = vdwg.mxu0
    %s5112 = scalar_lea.vmem %s6, 2560
    %v5113 = vld [vmem:[%s5112] sm:$0xff]
    %v5114 = vld [vmem:[%s5112 + $0x8] sm:$0xff]
    %v5115 = vld [vmem:[%s5112 + $0x10] sm:$0xff]
    %v5116 = vld [vmem:[%s5112 + $0x18] sm:$0xff]
    %v5117 = vld [vmem:[%s5112 + $0x20] sm:$0xff]
    %v5118 = vld [vmem:[%s5112 + $0x28] sm:$0xff]
    %v5119 = vld [vmem:[%s5112 + $0x30] sm:$0xff]
    %v5120 = vld [vmem:[%s5112 + $0x38] sm:$0xff]
    %s5121 = scalar_lea.vmem %s7, 40
    %v5122 = vld [vmem:[%s5121] sm:$0x1]
    %v5124 = vlaneseq
    %v5125 = vshrl.u32 %v5124, 7
    %v5126 = vsub.s32 0, %v5125
    %v5127 = vrot.slane %v5122, %v5126
    %5129 = vmatprep.subr.mxu0 0.0
    %5130 = vmatpush1.msra.mxu0 %v5113
    %5131 = vmatprep.subr.mxu0 0.0
    %5132 = vmatpush1.msra.mxu0 %v5114
    %5133 = vmatprep.subr.mxu0 0.0
    %5134 = vmatpush1.msra.mxu0 %v5115
    %5135 = vmatprep.subr.mxu0 0.0
    %5136 = vmatpush1.msra.mxu0 %v5116
    %5137 = vmatprep.subr.mxu0 0.0
    %5138 = vmatpush1.msra.mxu0 %v5117
    %5139 = vmatprep.subr.mxu0 0.0
    %5140 = vmatpush1.msra.mxu0 %v5118
    %5141 = vmatprep.subr.mxu0 0.0
    %5142 = vmatpush1.msra.mxu0 %v5119
    %5143 = vmatprep.subr.mxu0 0.0
    %5144 = vmatpush1.msra.mxu0 %v5120
    %5145 = vmatprep.subr.mxu0 0.0
    %5146 = vmatpush1.msra.mxu0 0.0
    %5147 = vmatprep.subr.mxu0 0.0
    %5148 = vmatpush1.msra.mxu0 0.0
    %5149 = vmatprep.subr.mxu0 0.0
    %5150 = vmatpush1.msra.mxu0 0.0
    %5151 = vmatprep.subr.mxu0 0.0
    %5152 = vmatpush1.msra.mxu0 0.0
    %5153 = vmatprep.subr.mxu0 0.0
    %5154 = vmatpush1.msra.mxu0 0.0
    %5155 = vmatprep.subr.mxu0 0.0
    %5156 = vmatpush1.msra.mxu0 0.0
    %5157 = vmatprep.subr.mxu0 0.0
    %5158 = vmatpush1.msra.mxu0 0.0
    %5159 = vmatprep.subr.mxu0 0.0
    %5160 = vmatpush1.msra.mxu0 0.0
    %5161 = vmatprep.subr.mxu0 0.0
    %5162 = vmatpush1.msra.mxu0 0.0
    %5163 = vmatprep.subr.mxu0 0.0
    %5164 = vmatpush1.msra.mxu0 0.0
    %5165 = vmatprep.subr.mxu0 0.0
    %5166 = vmatpush1.msra.mxu0 0.0
    %5167 = vmatprep.subr.mxu0 0.0
    %5168 = vmatpush1.msra.mxu0 0.0
    %5169 = vmatprep.subr.mxu0 0.0
    %5170 = vmatpush1.msra.mxu0 0.0
    %5171 = vmatprep.subr.mxu0 0.0
    %5172 = vmatpush1.msra.mxu0 0.0
    %5173 = vmatprep.subr.mxu0 0.0
    %5174 = vmatpush1.msra.mxu0 0.0
    %5175 = vmatprep.subr.mxu0 0.0
    %5176 = vmatpush1.msra.mxu0 0.0
    %5177 = vmatprep.subr.mxu0 0.0
    %5178 = vmatpush1.msra.mxu0 0.0
    %5179 = vmatprep.subr.mxu0 0.0
    %5180 = vmatpush1.msra.mxu0 0.0
    %5181 = vmatprep.subr.mxu0 0.0
    %5182 = vmatpush1.msra.mxu0 0.0
    %5183 = vmatprep.subr.mxu0 0.0
    %5184 = vmatpush1.msra.mxu0 0.0
    %5185 = vmatprep.subr.mxu0 0.0
    %5186 = vmatpush1.msra.mxu0 0.0
    %5187 = vmatprep.subr.mxu0 0.0
    %5188 = vmatpush1.msra.mxu0 0.0
    %5189 = vmatprep.subr.mxu0 0.0
    %5190 = vmatpush1.msra.mxu0 0.0
    %5191 = vmatprep.subr.mxu0 0.0
    %5192 = vmatpush1.msra.mxu0 0.0
    %5193 = vmatprep.mubr.f32.mxu0 0.0
    %5194 = vmatmul.mubr.f32.gmra.mrb[0].mxu0 %v4934
    %v5195 = vpop.f32.mrb[0].mxu0
    %v5196 = vadd.f32 %v5127, %v5195
    %v5197 = vpop.f32.mrb[0].mxu0
    %5198 = vmatprep.mubr.f32.mxu0 0.0
    %5199 = vmatmul.mubr.f32.gmra.mrb[0].mxu0 %v4937
    %v5200 = vpop.f32.mrb[0].mxu0
    %v5201 = vadd.f32 %v5127, %v5200
    %v5202 = vpop.f32.mrb[0].mxu0
    %5203 = vdwg.mxu0
    %v5205 = vsel %vm516, %v5006, 0
    %v5208 = vsel %vm516, %v5011, 0
    %v5211 = vsel %vm516, %v5104, 0
    %v5214 = vsel %vm516, %v5109, 0
    %5216 = vmatprep.subr.mxu0 0.0
    %5217 = vmatpush1.xpose.msra.mxu0 %v5211
    %5218 = vmatprep.subr.mxu0 0.0
    %5219 = vmatpush1.xpose.msra.mxu0 %v5214
    %5220 = vmatprep.subr.mxu0 0.0
    %5221 = vmatpush1.xpose.msra.mxu0 0.0
    %5222 = vmatprep.subr.mxu0 0.0
    %5223 = vmatpush1.xpose.msra.mxu0 0.0
    %5224 = vmatprep.subr.mxu0 0.0
    %5225 = vmatpush1.xpose.msra.mxu0 0.0
    %5226 = vmatprep.subr.mxu0 0.0
    %5227 = vmatpush1.xpose.msra.mxu0 0.0
    %5228 = vmatprep.subr.mxu0 0.0
    %5229 = vmatpush1.xpose.msra.mxu0 0.0
    %5230 = vmatprep.subr.mxu0 0.0
    %5231 = vmatpush1.xpose.msra.mxu0 0.0
    %5232 = vmatprep.subr.mxu0 0.0
    %5233 = vmatpush1.xpose.msra.mxu0 0.0
    %5234 = vmatprep.subr.mxu0 0.0
    %5235 = vmatpush1.xpose.msra.mxu0 0.0
    %5236 = vmatprep.subr.mxu0 0.0
    %5237 = vmatpush1.xpose.msra.mxu0 0.0
    %5238 = vmatprep.subr.mxu0 0.0
    %5239 = vmatpush1.xpose.msra.mxu0 0.0
    %5240 = vmatprep.subr.mxu0 0.0
    %5241 = vmatpush1.xpose.msra.mxu0 0.0
    %5242 = vmatprep.subr.mxu0 0.0
    %5243 = vmatpush1.xpose.msra.mxu0 0.0
    %5244 = vmatprep.subr.mxu0 0.0
    %5245 = vmatpush1.xpose.msra.mxu0 0.0
    %5246 = vmatprep.subr.mxu0 0.0
    %5247 = vmatpush1.xpose.msra.mxu0 0.0
    %5248 = vmatprep.subr.mxu0 0.0
    %5249 = vmatpush1.xpose.msra.mxu0 0.0
    %5250 = vmatprep.subr.mxu0 0.0
    %5251 = vmatpush1.xpose.msra.mxu0 0.0
    %5252 = vmatprep.subr.mxu0 0.0
    %5253 = vmatpush1.xpose.msra.mxu0 0.0
    %5254 = vmatprep.subr.mxu0 0.0
    %5255 = vmatpush1.xpose.msra.mxu0 0.0
    %5256 = vmatprep.subr.mxu0 0.0
    %5257 = vmatpush1.xpose.msra.mxu0 0.0
    %5258 = vmatprep.subr.mxu0 0.0
    %5259 = vmatpush1.xpose.msra.mxu0 0.0
    %5260 = vmatprep.subr.mxu0 0.0
    %5261 = vmatpush1.xpose.msra.mxu0 0.0
    %5262 = vmatprep.subr.mxu0 0.0
    %5263 = vmatpush1.xpose.msra.mxu0 0.0
    %5264 = vmatprep.subr.mxu0 0.0
    %5265 = vmatpush1.xpose.msra.mxu0 0.0
    %5266 = vmatprep.subr.mxu0 0.0
    %5267 = vmatpush1.xpose.msra.mxu0 0.0
    %5268 = vmatprep.subr.mxu0 0.0
    %5269 = vmatpush1.xpose.msra.mxu0 0.0
    %5270 = vmatprep.subr.mxu0 0.0
    %5271 = vmatpush1.xpose.msra.mxu0 0.0
    %5272 = vmatprep.subr.mxu0 0.0
    %5273 = vmatpush1.xpose.msra.mxu0 0.0
    %5274 = vmatprep.subr.mxu0 0.0
    %5275 = vmatpush1.xpose.msra.mxu0 0.0
    %5276 = vmatprep.subr.mxu0 0.0
    %5277 = vmatpush1.xpose.msra.mxu0 0.0
    %5278 = vmatprep.subr.mxu0 0.0
    %5279 = vmatpush1.xpose.msra.mxu0 0.0
    %5280 = vmatprep.mubr.f32.mxu0 0.0
    %5281 = vmatmul.mubr.f32.gmra.mrb[0].mxu0 %v5205
    %v5282 = vpop.f32.mrb[0].mxu0
    %v5283 = vadd.f32 0.0, %v5282
    %v5284 = vpop.f32.mrb[0].mxu0
    %5285 = vmatprep.mubr.f32.mxu0 0.0
    %5286 = vmatmul.mubr.f32.gmra.mrb[0].mxu0 %v5208
    %v5287 = vpop.f32.mrb[0].mxu0
    %v5288 = vadd.f32 0.0, %v5287
    %v5289 = vpop.f32.mrb[0].mxu0
    %5290 = vdwg.mxu0
    %v5291 = vmul.f32 %v5283, 0.35355338
    %v5292 = vmul.f32 %v5288, 0.35355338
    %v5293 = vadd.f32 %v5291, %v4914
    %v5294 = vadd.f32 %v5292, %v4915
    %vm5295 = vcmask 130048
    %v5296 = vsel %vm5295, %v5293, -inf
    %5297 = vmax.xlane.f32.xlu0 %v5296
    %v5298 = vpop.xlane.xlu0 %5297
    %v5299 = vsel %vm5295, %v5294, -inf
    %5300 = vmax.xlane.f32.xlu0 %v5299
    %v5301 = vpop.xlane.xlu0 %5300
    %v5302 = vsub.f32 %v5293, %v5298
    %v5303 = vsub.f32 %v5294, %v5301
    %v5304 = vmul.f32 %v5302, 1.442695
    %v5305 = vpow.pop %v5304
    %v5306 = vmul.f32 %v5303, 1.442695
    %v5307 = vpow.pop %v5306
    %v5308 = vsel %vm5295, %v5305, 0.0
    %5309 = vadd.xlane.f32.xlu0 %v5308
    %v5310 = vpop.xlane.xlu0 %5309
    %v5311 = vsel %vm5295, %v5307, 0.0
    %5312 = vadd.xlane.f32.xlu0 %v5311
    %v5313 = vpop.xlane.xlu0 %5312
    %v5314 = vrcp.pop %v5310
    %v5315 = vrcp.pop %v5313
    %v5316 = vmul.f32 %v5305, %v5314
    %v5317 = vmul.f32 %v5307, %v5315
    %v5319 = vsel %vm5295, %v5316, 0
    %v5322 = vsel %vm5295, %v5317, 0
    %5324 = vmatprep.subr.mxu0 0.0
    %5325 = vmatpush1.msra.mxu0 %v5196
    %5326 = vmatprep.subr.mxu0 0.0
    %5327 = vmatpush1.msra.mxu0 %v5201
    %5328 = vmatprep.subr.mxu0 0.0
    %5329 = vmatpush1.msra.mxu0 0.0
    %5330 = vmatprep.subr.mxu0 0.0
    %5331 = vmatpush1.msra.mxu0 0.0
    %5332 = vmatprep.subr.mxu0 0.0
    %5333 = vmatpush1.msra.mxu0 0.0
    %5334 = vmatprep.subr.mxu0 0.0
    %5335 = vmatpush1.msra.mxu0 0.0
    %5336 = vmatprep.subr.mxu0 0.0
    %5337 = vmatpush1.msra.mxu0 0.0
    %5338 = vmatprep.subr.mxu0 0.0
    %5339 = vmatpush1.msra.mxu0 0.0
    %5340 = vmatprep.subr.mxu0 0.0
    %5341 = vmatpush1.msra.mxu0 0.0
    %5342 = vmatprep.subr.mxu0 0.0
    %5343 = vmatpush1.msra.mxu0 0.0
    %5344 = vmatprep.subr.mxu0 0.0
    %5345 = vmatpush1.msra.mxu0 0.0
    %5346 = vmatprep.subr.mxu0 0.0
    %5347 = vmatpush1.msra.mxu0 0.0
    %5348 = vmatprep.subr.mxu0 0.0
    %5349 = vmatpush1.msra.mxu0 0.0
    %5350 = vmatprep.subr.mxu0 0.0
    %5351 = vmatpush1.msra.mxu0 0.0
    %5352 = vmatprep.subr.mxu0 0.0
    %5353 = vmatpush1.msra.mxu0 0.0
    %5354 = vmatprep.subr.mxu0 0.0
    %5355 = vmatpush1.msra.mxu0 0.0
    %5356 = vmatprep.subr.mxu0 0.0
    %5357 = vmatpush1.msra.mxu0 0.0
    %5358 = vmatprep.subr.mxu0 0.0
    %5359 = vmatpush1.msra.mxu0 0.0
    %5360 = vmatprep.subr.mxu0 0.0
    %5361 = vmatpush1.msra.mxu0 0.0
    %5362 = vmatprep.subr.mxu0 0.0
    %5363 = vmatpush1.msra.mxu0 0.0
    %5364 = vmatprep.subr.mxu0 0.0
    %5365 = vmatpush1.msra.mxu0 0.0
    %5366 = vmatprep.subr.mxu0 0.0
    %5367 = vmatpush1.msra.mxu0 0.0
    %5368 = vmatprep.subr.mxu0 0.0
    %5369 = vmatpush1.msra.mxu0 0.0
    %5370 = vmatprep.subr.mxu0 0.0
    %5371 = vmatpush1.msra.mxu0 0.0
    %5372 = vmatprep.subr.mxu0 0.0
    %5373 = vmatpush1.msra.mxu0 0.0
    %5374 = vmatprep.subr.mxu0 0.0
    %5375 = vmatpush1.msra.mxu0 0.0
    %5376 = vmatprep.subr.mxu0 0.0
    %5377 = vmatpush1.msra.mxu0 0.0
    %5378 = vmatprep.subr.mxu0 0.0
    %5379 = vmatpush1.msra.mxu0 0.0
    %5380 = vmatprep.subr.mxu0 0.0
    %5381 = vmatpush1.msra.mxu0 0.0
    %5382 = vmatprep.subr.mxu0 0.0
    %5383 = vmatpush1.msra.mxu0 0.0
    %5384 = vmatprep.subr.mxu0 0.0
    %5385 = vmatpush1.msra.mxu0 0.0
    %5386 = vmatprep.subr.mxu0 0.0
    %5387 = vmatpush1.msra.mxu0 0.0
    %5388 = vmatprep.mubr.f32.mxu0 0.0
    %5389 = vmatmul.mubr.f32.gmra.mrb[0].mxu0 %v5319
    %v5390 = vpop.f32.mrb[0].mxu0
    %v5391 = vadd.f32 0.0, %v5390
    %v5392 = vpop.f32.mrb[0].mxu0
    %5393 = vmatprep.mubr.f32.mxu0 0.0
    %5394 = vmatmul.mubr.f32.gmra.mrb[0].mxu0 %v5322
    %v5395 = vpop.f32.mrb[0].mxu0
    %v5396 = vadd.f32 0.0, %v5395
    %v5397 = vpop.f32.mrb[0].mxu0
    %5398 = vdwg.mxu0
    %s5399 = scalar_lea.vmem %s8, 64
    %v5400 = vld [vmem:[%s5399] sm:$0xff]
    %s5401 = scalar_lea.vmem %s6, 1600
    %v5402 = vld [vmem:[%s5401] sm:$0xff]
    %v5403 = vld [vmem:[%s5401 + $0x8] sm:$0xff]
    %v5404 = vld [vmem:[%s5401 + $0x10] sm:$0xff]
    %v5405 = vld [vmem:[%s5401 + $0x18] sm:$0xff]
    %v5406 = vld [vmem:[%s5401 + $0x20] sm:$0xff]
    %v5407 = vld [vmem:[%s5401 + $0x28] sm:$0xff]
    %v5408 = vld [vmem:[%s5401 + $0x30] sm:$0xff]
    %v5409 = vld [vmem:[%s5401 + $0x38] sm:$0xff]
    %s5410 = scalar_lea.vmem %s7, 25
    %v5411 = vld [vmem:[%s5410] sm:$0x1]
    %v5413 = vlaneseq
    %v5414 = vshrl.u32 %v5413, 7
    %v5415 = vsub.s32 0, %v5414
    %v5416 = vrot.slane %v5411, %v5415
    %5418 = vmatprep.subr.mxu0 0.0
    %5419 = vmatpush1.msra.mxu0 %v5402
    %5420 = vmatprep.subr.mxu0 0.0
    %5421 = vmatpush1.msra.mxu0 %v5403
    %5422 = vmatprep.subr.mxu0 0.0
    %5423 = vmatpush1.msra.mxu0 %v5404
    %5424 = vmatprep.subr.mxu0 0.0
    %5425 = vmatpush1.msra.mxu0 %v5405
    %5426 = vmatprep.subr.mxu0 0.0
    %5427 = vmatpush1.msra.mxu0 %v5406
    %5428 = vmatprep.subr.mxu0 0.0
    %5429 = vmatpush1.msra.mxu0 %v5407
    %5430 = vmatprep.subr.mxu0 0.0
    %5431 = vmatpush1.msra.mxu0 %v5408
    %5432 = vmatprep.subr.mxu0 0.0
    %5433 = vmatpush1.msra.mxu0 %v5409
    %5434 = vmatprep.subr.mxu0 0.0
    %5435 = vmatpush1.msra.mxu0 0.0
    %5436 = vmatprep.subr.mxu0 0.0
    %5437 = vmatpush1.msra.mxu0 0.0
    %5438 = vmatprep.subr.mxu0 0.0
    %5439 = vmatpush1.msra.mxu0 0.0
    %5440 = vmatprep.subr.mxu0 0.0
    %5441 = vmatpush1.msra.mxu0 0.0
    %5442 = vmatprep.subr.mxu0 0.0
    %5443 = vmatpush1.msra.mxu0 0.0
    %5444 = vmatprep.subr.mxu0 0.0
    %5445 = vmatpush1.msra.mxu0 0.0
    %5446 = vmatprep.subr.mxu0 0.0
    %5447 = vmatpush1.msra.mxu0 0.0
    %5448 = vmatprep.subr.mxu0 0.0
    %5449 = vmatpush1.msra.mxu0 0.0
    %5450 = vmatprep.subr.mxu0 0.0
    %5451 = vmatpush1.msra.mxu0 0.0
    %5452 = vmatprep.subr.mxu0 0.0
    %5453 = vmatpush1.msra.mxu0 0.0
    %5454 = vmatprep.subr.mxu0 0.0
    %5455 = vmatpush1.msra.mxu0 0.0
    %5456 = vmatprep.subr.mxu0 0.0
    %5457 = vmatpush1.msra.mxu0 0.0
    %5458 = vmatprep.subr.mxu0 0.0
    %5459 = vmatpush1.msra.mxu0 0.0
    %5460 = vmatprep.subr.mxu0 0.0
    %5461 = vmatpush1.msra.mxu0 0.0
    %5462 = vmatprep.subr.mxu0 0.0
    %5463 = vmatpush1.msra.mxu0 0.0
    %5464 = vmatprep.subr.mxu0 0.0
    %5465 = vmatpush1.msra.mxu0 0.0
    %5466 = vmatprep.subr.mxu0 0.0
    %5467 = vmatpush1.msra.mxu0 0.0
    %5468 = vmatprep.subr.mxu0 0.0
    %5469 = vmatpush1.msra.mxu0 0.0
    %5470 = vmatprep.subr.mxu0 0.0
    %5471 = vmatpush1.msra.mxu0 0.0
    %5472 = vmatprep.subr.mxu0 0.0
    %5473 = vmatpush1.msra.mxu0 0.0
    %5474 = vmatprep.subr.mxu0 0.0
    %5475 = vmatpush1.msra.mxu0 0.0
    %5476 = vmatprep.subr.mxu0 0.0
    %5477 = vmatpush1.msra.mxu0 0.0
    %5478 = vmatprep.subr.mxu0 0.0
    %5479 = vmatpush1.msra.mxu0 0.0
    %5480 = vmatprep.subr.mxu0 0.0
    %5481 = vmatpush1.msra.mxu0 0.0
    %5482 = vmatprep.mubr.f32.mxu0 0.0
    %5483 = vmatmul.mubr.f32.gmra.mrb[0].mxu0 %v4934
    %v5484 = vpop.f32.mrb[0].mxu0
    %v5485 = vadd.f32 %v5416, %v5484
    %v5486 = vpop.f32.mrb[0].mxu0
    %5487 = vmatprep.mubr.f32.mxu0 0.0
    %5488 = vmatmul.mubr.f32.gmra.mrb[0].mxu0 %v4937
    %v5489 = vpop.f32.mrb[0].mxu0
    %v5490 = vadd.f32 %v5416, %v5489
    %v5491 = vpop.f32.mrb[0].mxu0
    %5492 = vdwg.mxu0
    %s5493 = scalar_lea.vmem %s6, 2112
    %v5494 = vld [vmem:[%s5493] sm:$0xff]
    %v5495 = vld [vmem:[%s5493 + $0x8] sm:$0xff]
    %v5496 = vld [vmem:[%s5493 + $0x10] sm:$0xff]
    %v5497 = vld [vmem:[%s5493 + $0x18] sm:$0xff]
    %v5498 = vld [vmem:[%s5493 + $0x20] sm:$0xff]
    %v5499 = vld [vmem:[%s5493 + $0x28] sm:$0xff]
    %v5500 = vld [vmem:[%s5493 + $0x30] sm:$0xff]
    %v5501 = vld [vmem:[%s5493 + $0x38] sm:$0xff]
    %s5502 = scalar_lea.vmem %s7, 33
    %v5503 = vld [vmem:[%s5502] sm:$0x1]
    %v5505 = vlaneseq
    %v5506 = vshrl.u32 %v5505, 7
    %v5507 = vsub.s32 0, %v5506
    %v5508 = vrot.slane %v5503, %v5507
    %5510 = vmatprep.subr.mxu0 0.0
    %5511 = vmatpush1.msra.mxu0 %v5494
    %5512 = vmatprep.subr.mxu0 0.0
    %5513 = vmatpush1.msra.mxu0 %v5495
    %5514 = vmatprep.subr.mxu0 0.0
    %5515 = vmatpush1.msra.mxu0 %v5496
    %5516 = vmatprep.subr.mxu0 0.0
    %5517 = vmatpush1.msra.mxu0 %v5497
    %5518 = vmatprep.subr.mxu0 0.0
    %5519 = vmatpush1.msra.mxu0 %v5498
    %5520 = vmatprep.subr.mxu0 0.0
    %5521 = vmatpush1.msra.mxu0 %v5499
    %5522 = vmatprep.subr.mxu0 0.0
    %5523 = vmatpush1.msra.mxu0 %v5500
    %5524 = vmatprep.subr.mxu0 0.0
    %5525 = vmatpush1.msra.mxu0 %v5501
    %5526 = vmatprep.subr.mxu0 0.0
    %5527 = vmatpush1.msra.mxu0 0.0
    %5528 = vmatprep.subr.mxu0 0.0
    %5529 = vmatpush1.msra.mxu0 0.0
    %5530 = vmatprep.subr.mxu0 0.0
    %5531 = vmatpush1.msra.mxu0 0.0
    %5532 = vmatprep.subr.mxu0 0.0
    %5533 = vmatpush1.msra.mxu0 0.0
    %5534 = vmatprep.subr.mxu0 0.0
    %5535 = vmatpush1.msra.mxu0 0.0
    %5536 = vmatprep.subr.mxu0 0.0
    %5537 = vmatpush1.msra.mxu0 0.0
    %5538 = vmatprep.subr.mxu0 0.0
    %5539 = vmatpush1.msra.mxu0 0.0
    %5540 = vmatprep.subr.mxu0 0.0
    %5541 = vmatpush1.msra.mxu0 0.0
    %5542 = vmatprep.subr.mxu0 0.0
    %5543 = vmatpush1.msra.mxu0 0.0
    %5544 = vmatprep.subr.mxu0 0.0
    %5545 = vmatpush1.msra.mxu0 0.0
    %5546 = vmatprep.subr.mxu0 0.0
    %5547 = vmatpush1.msra.mxu0 0.0
    %5548 = vmatprep.subr.mxu0 0.0
    %5549 = vmatpush1.msra.mxu0 0.0
    %5550 = vmatprep.subr.mxu0 0.0
    %5551 = vmatpush1.msra.mxu0 0.0
    %5552 = vmatprep.subr.mxu0 0.0
    %5553 = vmatpush1.msra.mxu0 0.0
    %5554 = vmatprep.subr.mxu0 0.0
    %5555 = vmatpush1.msra.mxu0 0.0
    %5556 = vmatprep.subr.mxu0 0.0
    %5557 = vmatpush1.msra.mxu0 0.0
    %5558 = vmatprep.subr.mxu0 0.0
    %5559 = vmatpush1.msra.mxu0 0.0
    %5560 = vmatprep.subr.mxu0 0.0
    %5561 = vmatpush1.msra.mxu0 0.0
    %5562 = vmatprep.subr.mxu0 0.0
    %5563 = vmatpush1.msra.mxu0 0.0
    %5564 = vmatprep.subr.mxu0 0.0
    %5565 = vmatpush1.msra.mxu0 0.0
    %5566 = vmatprep.subr.mxu0 0.0
    %5567 = vmatpush1.msra.mxu0 0.0
    %5568 = vmatprep.subr.mxu0 0.0
    %5569 = vmatpush1.msra.mxu0 0.0
    %5570 = vmatprep.subr.mxu0 0.0
    %5571 = vmatpush1.msra.mxu0 0.0
    %5572 = vmatprep.subr.mxu0 0.0
    %5573 = vmatpush1.msra.mxu0 0.0
    %5574 = vmatprep.mubr.f32.mxu0 0.0
    %5575 = vmatmul.mubr.f32.gmra.mrb[0].mxu0 %v5032
    %v5576 = vpop.f32.mrb[0].mxu0
    %v5577 = vadd.f32 %v5508, %v5576
    %v5578 = vpop.f32.mrb[0].mxu0
    %5579 = vmatprep.mubr.f32.mxu0 0.0
    %5580 = vmatmul.mubr.f32.gmra.mrb[0].mxu0 %v5035
    %v5581 = vpop.f32.mrb[0].mxu0
    %v5582 = vadd.f32 %v5508, %v5581
    %v5583 = vpop.f32.mrb[0].mxu0
    %5584 = vdwg.mxu0
    %s5585 = scalar_lea.vmem %s6, 2624
    %v5586 = vld [vmem:[%s5585] sm:$0xff]
    %v5587 = vld [vmem:[%s5585 + $0x8] sm:$0xff]
    %v5588 = vld [vmem:[%s5585 + $0x10] sm:$0xff]
    %v5589 = vld [vmem:[%s5585 + $0x18] sm:$0xff]
    %v5590 = vld [vmem:[%s5585 + $0x20] sm:$0xff]
    %v5591 = vld [vmem:[%s5585 + $0x28] sm:$0xff]
    %v5592 = vld [vmem:[%s5585 + $0x30] sm:$0xff]
    %v5593 = vld [vmem:[%s5585 + $0x38] sm:$0xff]
    %s5594 = scalar_lea.vmem %s7, 41
    %v5595 = vld [vmem:[%s5594] sm:$0x1]
    %v5597 = vlaneseq
    %v5598 = vshrl.u32 %v5597, 7
    %v5599 = vsub.s32 0, %v5598
    %v5600 = vrot.slane %v5595, %v5599
    %5602 = vmatprep.subr.mxu0 0.0
    %5603 = vmatpush1.msra.mxu0 %v5586
    %5604 = vmatprep.subr.mxu0 0.0
    %5605 = vmatpush1.msra.mxu0 %v5587
    %5606 = vmatprep.subr.mxu0 0.0
    %5607 = vmatpush1.msra.mxu0 %v5588
    %5608 = vmatprep.subr.mxu0 0.0
    %5609 = vmatpush1.msra.mxu0 %v5589
    %5610 = vmatprep.subr.mxu0 0.0
    %5611 = vmatpush1.msra.mxu0 %v5590
    %5612 = vmatprep.subr.mxu0 0.0
    %5613 = vmatpush1.msra.mxu0 %v5591
    %5614 = vmatprep.subr.mxu0 0.0
    %5615 = vmatpush1.msra.mxu0 %v5592
    %5616 = vmatprep.subr.mxu0 0.0
    %5617 = vmatpush1.msra.mxu0 %v5593
    %5618 = vmatprep.subr.mxu0 0.0
    %5619 = vmatpush1.msra.mxu0 0.0
    %5620 = vmatprep.subr.mxu0 0.0
    %5621 = vmatpush1.msra.mxu0 0.0
    %5622 = vmatprep.subr.mxu0 0.0
    %5623 = vmatpush1.msra.mxu0 0.0
    %5624 = vmatprep.subr.mxu0 0.0
    %5625 = vmatpush1.msra.mxu0 0.0
    %5626 = vmatprep.subr.mxu0 0.0
    %5627 = vmatpush1.msra.mxu0 0.0
    %5628 = vmatprep.subr.mxu0 0.0
    %5629 = vmatpush1.msra.mxu0 0.0
    %5630 = vmatprep.subr.mxu0 0.0
    %5631 = vmatpush1.msra.mxu0 0.0
    %5632 = vmatprep.subr.mxu0 0.0
    %5633 = vmatpush1.msra.mxu0 0.0
    %5634 = vmatprep.subr.mxu0 0.0
    %5635 = vmatpush1.msra.mxu0 0.0
    %5636 = vmatprep.subr.mxu0 0.0
    %5637 = vmatpush1.msra.mxu0 0.0
    %5638 = vmatprep.subr.mxu0 0.0
    %5639 = vmatpush1.msra.mxu0 0.0
    %5640 = vmatprep.subr.mxu0 0.0
    %5641 = vmatpush1.msra.mxu0 0.0
    %5642 = vmatprep.subr.mxu0 0.0
    %5643 = vmatpush1.msra.mxu0 0.0
    %5644 = vmatprep.subr.mxu0 0.0
    %5645 = vmatpush1.msra.mxu0 0.0
    %5646 = vmatprep.subr.mxu0 0.0
    %5647 = vmatpush1.msra.mxu0 0.0
    %5648 = vmatprep.subr.mxu0 0.0
    %5649 = vmatpush1.msra.mxu0 0.0
    %5650 = vmatprep.subr.mxu0 0.0
    %5651 = vmatpush1.msra.mxu0 0.0
    %5652 = vmatprep.subr.mxu0 0.0
    %5653 = vmatpush1.msra.mxu0 0.0
    %5654 = vmatprep.subr.mxu0 0.0
    %5655 = vmatpush1.msra.mxu0 0.0
    %5656 = vmatprep.subr.mxu0 0.0
    %5657 = vmatpush1.msra.mxu0 0.0
    %5658 = vmatprep.subr.mxu0 0.0
    %5659 = vmatpush1.msra.mxu0 0.0
    %5660 = vmatprep.subr.mxu0 0.0
    %5661 = vmatpush1.msra.mxu0 0.0
    %5662 = vmatprep.subr.mxu0 0.0
    %5663 = vmatpush1.msra.mxu0 0.0
    %5664 = vmatprep.subr.mxu0 0.0
    %5665 = vmatpush1.msra.mxu0 0.0
    %5666 = vmatprep.mubr.f32.mxu0 0.0
    %5667 = vmatmul.mubr.f32.gmra.mrb[0].mxu0 %v4934
    %v5668 = vpop.f32.mrb[0].mxu0
    %v5669 = vadd.f32 %v5600, %v5668
    %v5670 = vpop.f32.mrb[0].mxu0
    %5671 = vmatprep.mubr.f32.mxu0 0.0
    %5672 = vmatmul.mubr.f32.gmra.mrb[0].mxu0 %v4937
    %v5673 = vpop.f32.mrb[0].mxu0
    %v5674 = vadd.f32 %v5600, %v5673
    %v5675 = vpop.f32.mrb[0].mxu0
    %5676 = vdwg.mxu0
    %v5678 = vsel %vm516, %v5485, 0
    %v5681 = vsel %vm516, %v5490, 0
    %v5684 = vsel %vm516, %v5577, 0
    %v5687 = vsel %vm516, %v5582, 0
    %5689 = vmatprep.subr.mxu0 0.0
    %5690 = vmatpush1.xpose.msra.mxu0 %v5684
    %5691 = vmatprep.subr.mxu0 0.0
    %5692 = vmatpush1.xpose.msra.mxu0 %v5687
    %5693 = vmatprep.subr.mxu0 0.0
    %5694 = vmatpush1.xpose.msra.mxu0 0.0
    %5695 = vmatprep.subr.mxu0 0.0
    %5696 = vmatpush1.xpose.msra.mxu0 0.0
    %5697 = vmatprep.subr.mxu0 0.0
    %5698 = vmatpush1.xpose.msra.mxu0 0.0
    %5699 = vmatprep.subr.mxu0 0.0
    %5700 = vmatpush1.xpose.msra.mxu0 0.0
    %5701 = vmatprep.subr.mxu0 0.0
    %5702 = vmatpush1.xpose.msra.mxu0 0.0
    %5703 = vmatprep.subr.mxu0 0.0
    %5704 = vmatpush1.xpose.msra.mxu0 0.0
    %5705 = vmatprep.subr.mxu0 0.0
    %5706 = vmatpush1.xpose.msra.mxu0 0.0
    %5707 = vmatprep.subr.mxu0 0.0
    %5708 = vmatpush1.xpose.msra.mxu0 0.0
    %5709 = vmatprep.subr.mxu0 0.0
    %5710 = vmatpush1.xpose.msra.mxu0 0.0
    %5711 = vmatprep.subr.mxu0 0.0
    %5712 = vmatpush1.xpose.msra.mxu0 0.0
    %5713 = vmatprep.subr.mxu0 0.0
    %5714 = vmatpush1.xpose.msra.mxu0 0.0
    %5715 = vmatprep.subr.mxu0 0.0
    %5716 = vmatpush1.xpose.msra.mxu0 0.0
    %5717 = vmatprep.subr.mxu0 0.0
    %5718 = vmatpush1.xpose.msra.mxu0 0.0
    %5719 = vmatprep.subr.mxu0 0.0
    %5720 = vmatpush1.xpose.msra.mxu0 0.0
    %5721 = vmatprep.subr.mxu0 0.0
    %5722 = vmatpush1.xpose.msra.mxu0 0.0
    %5723 = vmatprep.subr.mxu0 0.0
    %5724 = vmatpush1.xpose.msra.mxu0 0.0
    %5725 = vmatprep.subr.mxu0 0.0
    %5726 = vmatpush1.xpose.msra.mxu0 0.0
    %5727 = vmatprep.subr.mxu0 0.0
    %5728 = vmatpush1.xpose.msra.mxu0 0.0
    %5729 = vmatprep.subr.mxu0 0.0
    %5730 = vmatpush1.xpose.msra.mxu0 0.0
    %5731 = vmatprep.subr.mxu0 0.0
    %5732 = vmatpush1.xpose.msra.mxu0 0.0
    %5733 = vmatprep.subr.mxu0 0.0
    %5734 = vmatpush1.xpose.msra.mxu0 0.0
    %5735 = vmatprep.subr.mxu0 0.0
    %5736 = vmatpush1.xpose.msra.mxu0 0.0
    %5737 = vmatprep.subr.mxu0 0.0
    %5738 = vmatpush1.xpose.msra.mxu0 0.0
    %5739 = vmatprep.subr.mxu0 0.0
    %5740 = vmatpush1.xpose.msra.mxu0 0.0
    %5741 = vmatprep.subr.mxu0 0.0
    %5742 = vmatpush1.xpose.msra.mxu0 0.0
    %5743 = vmatprep.subr.mxu0 0.0
    %5744 = vmatpush1.xpose.msra.mxu0 0.0
    %5745 = vmatprep.subr.mxu0 0.0
    %5746 = vmatpush1.xpose.msra.mxu0 0.0
    %5747 = vmatprep.subr.mxu0 0.0
    %5748 = vmatpush1.xpose.msra.mxu0 0.0
    %5749 = vmatprep.subr.mxu0 0.0
    %5750 = vmatpush1.xpose.msra.mxu0 0.0
    %5751 = vmatprep.subr.mxu0 0.0
    %5752 = vmatpush1.xpose.msra.mxu0 0.0
    %5753 = vmatprep.mubr.f32.mxu0 0.0
    %5754 = vmatmul.mubr.f32.gmra.mrb[0].mxu0 %v5678
    %v5755 = vpop.f32.mrb[0].mxu0
    %v5756 = vadd.f32 0.0, %v5755
    %v5757 = vpop.f32.mrb[0].mxu0
    %5758 = vmatprep.mubr.f32.mxu0 0.0
    %5759 = vmatmul.mubr.f32.gmra.mrb[0].mxu0 %v5681
    %v5760 = vpop.f32.mrb[0].mxu0
    %v5761 = vadd.f32 0.0, %v5760
    %v5762 = vpop.f32.mrb[0].mxu0
    %5763 = vdwg.mxu0
    %v5764 = vmul.f32 %v5756, 0.35355338
    %v5765 = vmul.f32 %v5761, 0.35355338
    %v5766 = vadd.f32 %v5764, %v4914
    %v5767 = vadd.f32 %v5765, %v4915
    %v5768 = vsel %vm5295, %v5766, -inf
    %5769 = vmax.xlane.f32.xlu0 %v5768
    %v5770 = vpop.xlane.xlu0 %5769
    %v5771 = vsel %vm5295, %v5767, -inf
    %5772 = vmax.xlane.f32.xlu0 %v5771
    %v5773 = vpop.xlane.xlu0 %5772
    %v5774 = vsub.f32 %v5766, %v5770
    %v5775 = vsub.f32 %v5767, %v5773
    %v5776 = vmul.f32 %v5774, 1.442695
    %v5777 = vpow.pop %v5776
    %v5778 = vmul.f32 %v5775, 1.442695
    %v5779 = vpow.pop %v5778
    %v5780 = vsel %vm5295, %v5777, 0.0
    %5781 = vadd.xlane.f32.xlu0 %v5780
    %v5782 = vpop.xlane.xlu0 %5781
    %v5783 = vsel %vm5295, %v5779, 0.0
    %5784 = vadd.xlane.f32.xlu0 %v5783
    %v5785 = vpop.xlane.xlu0 %5784
    %v5786 = vrcp.pop %v5782
    %v5787 = vrcp.pop %v5785
    %v5788 = vmul.f32 %v5777, %v5786
    %v5789 = vmul.f32 %v5779, %v5787
    %v5791 = vsel %vm5295, %v5788, 0
    %v5794 = vsel %vm5295, %v5789, 0
    %5796 = vmatprep.subr.mxu0 0.0
    %5797 = vmatpush1.msra.mxu0 %v5669
    %5798 = vmatprep.subr.mxu0 0.0
    %5799 = vmatpush1.msra.mxu0 %v5674
    %5800 = vmatprep.subr.mxu0 0.0
    %5801 = vmatpush1.msra.mxu0 0.0
    %5802 = vmatprep.subr.mxu0 0.0
    %5803 = vmatpush1.msra.mxu0 0.0
    %5804 = vmatprep.subr.mxu0 0.0
    %5805 = vmatpush1.msra.mxu0 0.0
    %5806 = vmatprep.subr.mxu0 0.0
    %5807 = vmatpush1.msra.mxu0 0.0
    %5808 = vmatprep.subr.mxu0 0.0
    %5809 = vmatpush1.msra.mxu0 0.0
    %5810 = vmatprep.subr.mxu0 0.0
    %5811 = vmatpush1.msra.mxu0 0.0
    %5812 = vmatprep.subr.mxu0 0.0
    %5813 = vmatpush1.msra.mxu0 0.0
    %5814 = vmatprep.subr.mxu0 0.0
    %5815 = vmatpush1.msra.mxu0 0.0
    %5816 = vmatprep.subr.mxu0 0.0
    %5817 = vmatpush1.msra.mxu0 0.0
    %5818 = vmatprep.subr.mxu0 0.0
    %5819 = vmatpush1.msra.mxu0 0.0
    %5820 = vmatprep.subr.mxu0 0.0
    %5821 = vmatpush1.msra.mxu0 0.0
    %5822 = vmatprep.subr.mxu0 0.0
    %5823 = vmatpush1.msra.mxu0 0.0
    %5824 = vmatprep.subr.mxu0 0.0
    %5825 = vmatpush1.msra.mxu0 0.0
    %5826 = vmatprep.subr.mxu0 0.0
    %5827 = vmatpush1.msra.mxu0 0.0
    %5828 = vmatprep.subr.mxu0 0.0
    %5829 = vmatpush1.msra.mxu0 0.0
    %5830 = vmatprep.subr.mxu0 0.0
    %5831 = vmatpush1.msra.mxu0 0.0
    %5832 = vmatprep.subr.mxu0 0.0
    %5833 = vmatpush1.msra.mxu0 0.0
    %5834 = vmatprep.subr.mxu0 0.0
    %5835 = vmatpush1.msra.mxu0 0.0
    %5836 = vmatprep.subr.mxu0 0.0
    %5837 = vmatpush1.msra.mxu0 0.0
    %5838 = vmatprep.subr.mxu0 0.0
    %5839 = vmatpush1.msra.mxu0 0.0
    %5840 = vmatprep.subr.mxu0 0.0
    %5841 = vmatpush1.msra.mxu0 0.0
    %5842 = vmatprep.subr.mxu0 0.0
    %5843 = vmatpush1.msra.mxu0 0.0
    %5844 = vmatprep.subr.mxu0 0.0
    %5845 = vmatpush1.msra.mxu0 0.0
    %5846 = vmatprep.subr.mxu0 0.0
    %5847 = vmatpush1.msra.mxu0 0.0
    %5848 = vmatprep.subr.mxu0 0.0
    %5849 = vmatpush1.msra.mxu0 0.0
    %5850 = vmatprep.subr.mxu0 0.0
    %5851 = vmatpush1.msra.mxu0 0.0
    %5852 = vmatprep.subr.mxu0 0.0
    %5853 = vmatpush1.msra.mxu0 0.0
    %5854 = vmatprep.subr.mxu0 0.0
    %5855 = vmatpush1.msra.mxu0 0.0
    %5856 = vmatprep.subr.mxu0 0.0
    %5857 = vmatpush1.msra.mxu0 0.0
    %5858 = vmatprep.subr.mxu0 0.0
    %5859 = vmatpush1.msra.mxu0 0.0
    %5860 = vmatprep.mubr.f32.mxu0 0.0
    %5861 = vmatmul.mubr.f32.gmra.mrb[0].mxu0 %v5791
    %v5862 = vpop.f32.mrb[0].mxu0
    %v5863 = vadd.f32 0.0, %v5862
    %v5864 = vpop.f32.mrb[0].mxu0
    %5865 = vmatprep.mubr.f32.mxu0 0.0
    %5866 = vmatmul.mubr.f32.gmra.mrb[0].mxu0 %v5794
    %v5867 = vpop.f32.mrb[0].mxu0
    %v5868 = vadd.f32 0.0, %v5867
    %v5869 = vpop.f32.mrb[0].mxu0
    %5870 = vdwg.mxu0
    %s5871 = scalar_lea.vmem %s8, 72
    %v5872 = vld [vmem:[%s5871] sm:$0xff]
    %v5874 = vsel %vm516, %v5863, 0
    %v5877 = vsel %vm516, %v5868, 0
    %5879 = vmatprep.subr.mxu0 0.0
    %5880 = vmatpush1.msra.mxu0 %v5872
    %5881 = vmatprep.subr.mxu0 0.0
    %5882 = vmatpush1.msra.mxu0 0.0
    %5883 = vmatprep.subr.mxu0 0.0
    %5884 = vmatpush1.msra.mxu0 0.0
    %5885 = vmatprep.subr.mxu0 0.0
    %5886 = vmatpush1.msra.mxu0 0.0
    %5887 = vmatprep.subr.mxu0 0.0
    %5888 = vmatpush1.msra.mxu0 0.0
    %5889 = vmatprep.subr.mxu0 0.0
    %5890 = vmatpush1.msra.mxu0 0.0
    %5891 = vmatprep.subr.mxu0 0.0
    %5892 = vmatpush1.msra.mxu0 0.0
    %5893 = vmatprep.subr.mxu0 0.0
    %5894 = vmatpush1.msra.mxu0 0.0
    %5895 = vmatprep.subr.mxu0 0.0
    %5896 = vmatpush1.msra.mxu0 0.0
    %5897 = vmatprep.subr.mxu0 0.0
    %5898 = vmatpush1.msra.mxu0 0.0
    %5899 = vmatprep.subr.mxu0 0.0
    %5900 = vmatpush1.msra.mxu0 0.0
    %5901 = vmatprep.subr.mxu0 0.0
    %5902 = vmatpush1.msra.mxu0 0.0
    %5903 = vmatprep.subr.mxu0 0.0
    %5904 = vmatpush1.msra.mxu0 0.0
    %5905 = vmatprep.subr.mxu0 0.0
    %5906 = vmatpush1.msra.mxu0 0.0
    %5907 = vmatprep.subr.mxu0 0.0
    %5908 = vmatpush1.msra.mxu0 0.0
    %5909 = vmatprep.subr.mxu0 0.0
    %5910 = vmatpush1.msra.mxu0 0.0
    %5911 = vmatprep.subr.mxu0 0.0
    %5912 = vmatpush1.msra.mxu0 0.0
    %5913 = vmatprep.subr.mxu0 0.0
    %5914 = vmatpush1.msra.mxu0 0.0
    %5915 = vmatprep.subr.mxu0 0.0
    %5916 = vmatpush1.msra.mxu0 0.0
    %5917 = vmatprep.subr.mxu0 0.0
    %5918 = vmatpush1.msra.mxu0 0.0
    %5919 = vmatprep.subr.mxu0 0.0
    %5920 = vmatpush1.msra.mxu0 0.0
    %5921 = vmatprep.subr.mxu0 0.0
    %5922 = vmatpush1.msra.mxu0 0.0
    %5923 = vmatprep.subr.mxu0 0.0
    %5924 = vmatpush1.msra.mxu0 0.0
    %5925 = vmatprep.subr.mxu0 0.0
    %5926 = vmatpush1.msra.mxu0 0.0
    %5927 = vmatprep.subr.mxu0 0.0
    %5928 = vmatpush1.msra.mxu0 0.0
    %5929 = vmatprep.subr.mxu0 0.0
    %5930 = vmatpush1.msra.mxu0 0.0
    %5931 = vmatprep.subr.mxu0 0.0
    %5932 = vmatpush1.msra.mxu0 0.0
    %5933 = vmatprep.subr.mxu0 0.0
    %5934 = vmatpush1.msra.mxu0 0.0
    %5935 = vmatprep.subr.mxu0 0.0
    %5936 = vmatpush1.msra.mxu0 0.0
    %5937 = vmatprep.subr.mxu0 0.0
    %5938 = vmatpush1.msra.mxu0 0.0
    %5939 = vmatprep.subr.mxu0 0.0
    %5940 = vmatpush1.msra.mxu0 0.0
    %5941 = vmatprep.subr.mxu0 0.0
    %5942 = vmatpush1.msra.mxu0 0.0
    %5943 = vmatprep.mubr.f32.mxu0 0.0
    %5944 = vmatmul.mubr.f32.gmra.mrb[0].mxu0 %v5874
    %v5945 = vpop.f32.mrb[0].mxu0
    %v5946 = vadd.f32 0.0, %v5945
    %v5947 = vpop.f32.mrb[0].mxu0
    %5948 = vmatprep.mubr.f32.mxu0 0.0
    %5949 = vmatmul.mubr.f32.gmra.mrb[0].mxu0 %v5877
    %v5950 = vpop.f32.mrb[0].mxu0
    %v5951 = vadd.f32 0.0, %v5950
    %v5952 = vpop.f32.mrb[0].mxu0
    %5953 = vdwg.mxu0
    %v5955 = vsel %vm516, %v5391, 0
    %v5958 = vsel %vm516, %v5396, 0
    %5960 = vmatprep.subr.mxu0 0.0
    %5961 = vmatpush1.msra.mxu0 %v5400
    %5962 = vmatprep.subr.mxu0 0.0
    %5963 = vmatpush1.msra.mxu0 0.0
    %5964 = vmatprep.subr.mxu0 0.0
    %5965 = vmatpush1.msra.mxu0 0.0
    %5966 = vmatprep.subr.mxu0 0.0
    %5967 = vmatpush1.msra.mxu0 0.0
    %5968 = vmatprep.subr.mxu0 0.0
    %5969 = vmatpush1.msra.mxu0 0.0
    %5970 = vmatprep.subr.mxu0 0.0
    %5971 = vmatpush1.msra.mxu0 0.0
    %5972 = vmatprep.subr.mxu0 0.0
    %5973 = vmatpush1.msra.mxu0 0.0
    %5974 = vmatprep.subr.mxu0 0.0
    %5975 = vmatpush1.msra.mxu0 0.0
    %5976 = vmatprep.subr.mxu0 0.0
    %5977 = vmatpush1.msra.mxu0 0.0
    %5978 = vmatprep.subr.mxu0 0.0
    %5979 = vmatpush1.msra.mxu0 0.0
    %5980 = vmatprep.subr.mxu0 0.0
    %5981 = vmatpush1.msra.mxu0 0.0
    %5982 = vmatprep.subr.mxu0 0.0
    %5983 = vmatpush1.msra.mxu0 0.0
    %5984 = vmatprep.subr.mxu0 0.0
    %5985 = vmatpush1.msra.mxu0 0.0
    %5986 = vmatprep.subr.mxu0 0.0
    %5987 = vmatpush1.msra.mxu0 0.0
    %5988 = vmatprep.subr.mxu0 0.0
    %5989 = vmatpush1.msra.mxu0 0.0
    %5990 = vmatprep.subr.mxu0 0.0
    %5991 = vmatpush1.msra.mxu0 0.0
    %5992 = vmatprep.subr.mxu0 0.0
    %5993 = vmatpush1.msra.mxu0 0.0
    %5994 = vmatprep.subr.mxu0 0.0
    %5995 = vmatpush1.msra.mxu0 0.0
    %5996 = vmatprep.subr.mxu0 0.0
    %5997 = vmatpush1.msra.mxu0 0.0
    %5998 = vmatprep.subr.mxu0 0.0
    %5999 = vmatpush1.msra.mxu0 0.0
    %6000 = vmatprep.subr.mxu0 0.0
    %6001 = vmatpush1.msra.mxu0 0.0
    %6002 = vmatprep.subr.mxu0 0.0
    %6003 = vmatpush1.msra.mxu0 0.0
    %6004 = vmatprep.subr.mxu0 0.0
    %6005 = vmatpush1.msra.mxu0 0.0
    %6006 = vmatprep.subr.mxu0 0.0
    %6007 = vmatpush1.msra.mxu0 0.0
    %6008 = vmatprep.subr.mxu0 0.0
    %6009 = vmatpush1.msra.mxu0 0.0
    %6010 = vmatprep.subr.mxu0 0.0
    %6011 = vmatpush1.msra.mxu0 0.0
    %6012 = vmatprep.subr.mxu0 0.0
    %6013 = vmatpush1.msra.mxu0 0.0
    %6014 = vmatprep.subr.mxu0 0.0
    %6015 = vmatpush1.msra.mxu0 0.0
    %6016 = vmatprep.subr.mxu0 0.0
    %6017 = vmatpush1.msra.mxu0 0.0
    %6018 = vmatprep.subr.mxu0 0.0
    %6019 = vmatpush1.msra.mxu0 0.0
    %6020 = vmatprep.subr.mxu0 0.0
    %6021 = vmatpush1.msra.mxu0 0.0
    %6022 = vmatprep.subr.mxu0 0.0
    %6023 = vmatpush1.msra.mxu0 0.0
    %6024 = vmatprep.mubr.f32.mxu0 0.0
    %6025 = vmatmul.mubr.f32.gmra.mrb[0].mxu0 %v5955
    %v6026 = vpop.f32.mrb[0].mxu0
    %v6027 = vadd.f32 %v5946, %v6026
    %v6028 = vpop.f32.mrb[0].mxu0
    %6029 = vmatprep.mubr.f32.mxu0 0.0
    %6030 = vmatmul.mubr.f32.gmra.mrb[0].mxu0 %v5958
    %v6031 = vpop.f32.mrb[0].mxu0
    %v6032 = vadd.f32 %v5951, %v6031
    %v6033 = vpop.f32.mrb[0].mxu0
    %6034 = vdwg.mxu0
    %s6035 = scalar_lea.vmem %s6, 1664
    %v6036 = vld [vmem:[%s6035] sm:$0xff]
    %v6037 = vld [vmem:[%s6035 + $0x8] sm:$0xff]
    %v6038 = vld [vmem:[%s6035 + $0x10] sm:$0xff]
    %v6039 = vld [vmem:[%s6035 + $0x18] sm:$0xff]
    %v6040 = vld [vmem:[%s6035 + $0x20] sm:$0xff]
    %v6041 = vld [vmem:[%s6035 + $0x28] sm:$0xff]
    %v6042 = vld [vmem:[%s6035 + $0x30] sm:$0xff]
    %v6043 = vld [vmem:[%s6035 + $0x38] sm:$0xff]
    %s6044 = scalar_lea.vmem %s7, 26
    %v6045 = vld [vmem:[%s6044] sm:$0x1]
    %v6047 = vlaneseq
    %v6048 = vshrl.u32 %v6047, 7
    %v6049 = vsub.s32 0, %v6048
    %v6050 = vrot.slane %v6045, %v6049
    %6052 = vmatprep.subr.mxu0 0.0
    %6053 = vmatpush1.msra.mxu0 %v6036
    %6054 = vmatprep.subr.mxu0 0.0
    %6055 = vmatpush1.msra.mxu0 %v6037
    %6056 = vmatprep.subr.mxu0 0.0
    %6057 = vmatpush1.msra.mxu0 %v6038
    %6058 = vmatprep.subr.mxu0 0.0
    %6059 = vmatpush1.msra.mxu0 %v6039
    %6060 = vmatprep.subr.mxu0 0.0
    %6061 = vmatpush1.msra.mxu0 %v6040
    %6062 = vmatprep.subr.mxu0 0.0
    %6063 = vmatpush1.msra.mxu0 %v6041
    %6064 = vmatprep.subr.mxu0 0.0
    %6065 = vmatpush1.msra.mxu0 %v6042
    %6066 = vmatprep.subr.mxu0 0.0
    %6067 = vmatpush1.msra.mxu0 %v6043
    %6068 = vmatprep.subr.mxu0 0.0
    %6069 = vmatpush1.msra.mxu0 0.0
    %6070 = vmatprep.subr.mxu0 0.0
    %6071 = vmatpush1.msra.mxu0 0.0
    %6072 = vmatprep.subr.mxu0 0.0
    %6073 = vmatpush1.msra.mxu0 0.0
    %6074 = vmatprep.subr.mxu0 0.0
    %6075 = vmatpush1.msra.mxu0 0.0
    %6076 = vmatprep.subr.mxu0 0.0
    %6077 = vmatpush1.msra.mxu0 0.0
    %6078 = vmatprep.subr.mxu0 0.0
    %6079 = vmatpush1.msra.mxu0 0.0
    %6080 = vmatprep.subr.mxu0 0.0
    %6081 = vmatpush1.msra.mxu0 0.0
    %6082 = vmatprep.subr.mxu0 0.0
    %6083 = vmatpush1.msra.mxu0 0.0
    %6084 = vmatprep.subr.mxu0 0.0
    %6085 = vmatpush1.msra.mxu0 0.0
    %6086 = vmatprep.subr.mxu0 0.0
    %6087 = vmatpush1.msra.mxu0 0.0
    %6088 = vmatprep.subr.mxu0 0.0
    %6089 = vmatpush1.msra.mxu0 0.0
    %6090 = vmatprep.subr.mxu0 0.0
    %6091 = vmatpush1.msra.mxu0 0.0
    %6092 = vmatprep.subr.mxu0 0.0
    %6093 = vmatpush1.msra.mxu0 0.0
    %6094 = vmatprep.subr.mxu0 0.0
    %6095 = vmatpush1.msra.mxu0 0.0
    %6096 = vmatprep.subr.mxu0 0.0
    %6097 = vmatpush1.msra.mxu0 0.0
    %6098 = vmatprep.subr.mxu0 0.0
    %6099 = vmatpush1.msra.mxu0 0.0
    %6100 = vmatprep.subr.mxu0 0.0
    %6101 = vmatpush1.msra.mxu0 0.0
    %6102 = vmatprep.subr.mxu0 0.0
    %6103 = vmatpush1.msra.mxu0 0.0
    %6104 = vmatprep.subr.mxu0 0.0
    %6105 = vmatpush1.msra.mxu0 0.0
    %6106 = vmatprep.subr.mxu0 0.0
    %6107 = vmatpush1.msra.mxu0 0.0
    %6108 = vmatprep.subr.mxu0 0.0
    %6109 = vmatpush1.msra.mxu0 0.0
    %6110 = vmatprep.subr.mxu0 0.0
    %6111 = vmatpush1.msra.mxu0 0.0
    %6112 = vmatprep.subr.mxu0 0.0
    %6113 = vmatpush1.msra.mxu0 0.0
    %6114 = vmatprep.subr.mxu0 0.0
    %6115 = vmatpush1.msra.mxu0 0.0
    %6116 = vmatprep.mubr.f32.mxu0 0.0
    %6117 = vmatmul.mubr.f32.gmra.mrb[0].mxu0 %v4934
    %v6118 = vpop.f32.mrb[0].mxu0
    %v6119 = vadd.f32 %v6050, %v6118
    %v6120 = vpop.f32.mrb[0].mxu0
    %6121 = vmatprep.mubr.f32.mxu0 0.0
    %6122 = vmatmul.mubr.f32.gmra.mrb[0].mxu0 %v4937
    %v6123 = vpop.f32.mrb[0].mxu0
    %v6124 = vadd.f32 %v6050, %v6123
    %v6125 = vpop.f32.mrb[0].mxu0
    %6126 = vdwg.mxu0
    %s6127 = scalar_lea.vmem %s6, 2176
    %v6128 = vld [vmem:[%s6127] sm:$0xff]
    %v6129 = vld [vmem:[%s6127 + $0x8] sm:$0xff]
    %v6130 = vld [vmem:[%s6127 + $0x10] sm:$0xff]
    %v6131 = vld [vmem:[%s6127 + $0x18] sm:$0xff]
    %v6132 = vld [vmem:[%s6127 + $0x20] sm:$0xff]
    %v6133 = vld [vmem:[%s6127 + $0x28] sm:$0xff]
    %v6134 = vld [vmem:[%s6127 + $0x30] sm:$0xff]
    %v6135 = vld [vmem:[%s6127 + $0x38] sm:$0xff]
    %s6136 = scalar_lea.vmem %s7, 34
    %v6137 = vld [vmem:[%s6136] sm:$0x1]
    %v6139 = vlaneseq
    %v6140 = vshrl.u32 %v6139, 7
    %v6141 = vsub.s32 0, %v6140
    %v6142 = vrot.slane %v6137, %v6141
    %6144 = vmatprep.subr.mxu0 0.0
    %6145 = vmatpush1.msra.mxu0 %v6128
    %6146 = vmatprep.subr.mxu0 0.0
    %6147 = vmatpush1.msra.mxu0 %v6129
    %6148 = vmatprep.subr.mxu0 0.0
    %6149 = vmatpush1.msra.mxu0 %v6130
    %6150 = vmatprep.subr.mxu0 0.0
    %6151 = vmatpush1.msra.mxu0 %v6131
    %6152 = vmatprep.subr.mxu0 0.0
    %6153 = vmatpush1.msra.mxu0 %v6132
    %6154 = vmatprep.subr.mxu0 0.0
    %6155 = vmatpush1.msra.mxu0 %v6133
    %6156 = vmatprep.subr.mxu0 0.0
    %6157 = vmatpush1.msra.mxu0 %v6134
    %6158 = vmatprep.subr.mxu0 0.0
    %6159 = vmatpush1.msra.mxu0 %v6135
    %6160 = vmatprep.subr.mxu0 0.0
    %6161 = vmatpush1.msra.mxu0 0.0
    %6162 = vmatprep.subr.mxu0 0.0
    %6163 = vmatpush1.msra.mxu0 0.0
    %6164 = vmatprep.subr.mxu0 0.0
    %6165 = vmatpush1.msra.mxu0 0.0
    %6166 = vmatprep.subr.mxu0 0.0
    %6167 = vmatpush1.msra.mxu0 0.0
    %6168 = vmatprep.subr.mxu0 0.0
    %6169 = vmatpush1.msra.mxu0 0.0
    %6170 = vmatprep.subr.mxu0 0.0
    %6171 = vmatpush1.msra.mxu0 0.0
    %6172 = vmatprep.subr.mxu0 0.0
    %6173 = vmatpush1.msra.mxu0 0.0
    %6174 = vmatprep.subr.mxu0 0.0
    %6175 = vmatpush1.msra.mxu0 0.0
    %6176 = vmatprep.subr.mxu0 0.0
    %6177 = vmatpush1.msra.mxu0 0.0
    %6178 = vmatprep.subr.mxu0 0.0
    %6179 = vmatpush1.msra.mxu0 0.0
    %6180 = vmatprep.subr.mxu0 0.0
    %6181 = vmatpush1.msra.mxu0 0.0
    %6182 = vmatprep.subr.mxu0 0.0
    %6183 = vmatpush1.msra.mxu0 0.0
    %6184 = vmatprep.subr.mxu0 0.0
    %6185 = vmatpush1.msra.mxu0 0.0
    %6186 = vmatprep.subr.mxu0 0.0
    %6187 = vmatpush1.msra.mxu0 0.0
    %6188 = vmatprep.subr.mxu0 0.0
    %6189 = vmatpush1.msra.mxu0 0.0
    %6190 = vmatprep.subr.mxu0 0.0
    %6191 = vmatpush1.msra.mxu0 0.0
    %6192 = vmatprep.subr.mxu0 0.0
    %6193 = vmatpush1.msra.mxu0 0.0
    %6194 = vmatprep.subr.mxu0 0.0
    %6195 = vmatpush1.msra.mxu0 0.0
    %6196 = vmatprep.subr.mxu0 0.0
    %6197 = vmatpush1.msra.mxu0 0.0
    %6198 = vmatprep.subr.mxu0 0.0
    %6199 = vmatpush1.msra.mxu0 0.0
    %6200 = vmatprep.subr.mxu0 0.0
    %6201 = vmatpush1.msra.mxu0 0.0
    %6202 = vmatprep.subr.mxu0 0.0
    %6203 = vmatpush1.msra.mxu0 0.0
    %6204 = vmatprep.subr.mxu0 0.0
    %6205 = vmatpush1.msra.mxu0 0.0
    %6206 = vmatprep.subr.mxu0 0.0
    %6207 = vmatpush1.msra.mxu0 0.0
    %6208 = vmatprep.mubr.f32.mxu0 0.0
    %6209 = vmatmul.mubr.f32.gmra.mrb[0].mxu0 %v5032
    %v6210 = vpop.f32.mrb[0].mxu0
    %v6211 = vadd.f32 %v6142, %v6210
    %v6212 = vpop.f32.mrb[0].mxu0
    %6213 = vmatprep.mubr.f32.mxu0 0.0
    %6214 = vmatmul.mubr.f32.gmra.mrb[0].mxu0 %v5035
    %v6215 = vpop.f32.mrb[0].mxu0
    %v6216 = vadd.f32 %v6142, %v6215
    %v6217 = vpop.f32.mrb[0].mxu0
    %6218 = vdwg.mxu0
    %s6219 = scalar_lea.vmem %s6, 2688
    %v6220 = vld [vmem:[%s6219] sm:$0xff]
    %v6221 = vld [vmem:[%s6219 + $0x8] sm:$0xff]
    %v6222 = vld [vmem:[%s6219 + $0x10] sm:$0xff]
    %v6223 = vld [vmem:[%s6219 + $0x18] sm:$0xff]
    %v6224 = vld [vmem:[%s6219 + $0x20] sm:$0xff]
    %v6225 = vld [vmem:[%s6219 + $0x28] sm:$0xff]
    %v6226 = vld [vmem:[%s6219 + $0x30] sm:$0xff]
    %v6227 = vld [vmem:[%s6219 + $0x38] sm:$0xff]
    %s6228 = scalar_lea.vmem %s7, 42
    %v6229 = vld [vmem:[%s6228] sm:$0x1]
    %v6231 = vlaneseq
    %v6232 = vshrl.u32 %v6231, 7
    %v6233 = vsub.s32 0, %v6232
    %v6234 = vrot.slane %v6229, %v6233
    %6236 = vmatprep.subr.mxu0 0.0
    %6237 = vmatpush1.msra.mxu0 %v6220
    %6238 = vmatprep.subr.mxu0 0.0
    %6239 = vmatpush1.msra.mxu0 %v6221
    %6240 = vmatprep.subr.mxu0 0.0
    %6241 = vmatpush1.msra.mxu0 %v6222
    %6242 = vmatprep.subr.mxu0 0.0
    %6243 = vmatpush1.msra.mxu0 %v6223
    %6244 = vmatprep.subr.mxu0 0.0
    %6245 = vmatpush1.msra.mxu0 %v6224
    %6246 = vmatprep.subr.mxu0 0.0
    %6247 = vmatpush1.msra.mxu0 %v6225
    %6248 = vmatprep.subr.mxu0 0.0
    %6249 = vmatpush1.msra.mxu0 %v6226
    %6250 = vmatprep.subr.mxu0 0.0
    %6251 = vmatpush1.msra.mxu0 %v6227
    %6252 = vmatprep.subr.mxu0 0.0
    %6253 = vmatpush1.msra.mxu0 0.0
    %6254 = vmatprep.subr.mxu0 0.0
    %6255 = vmatpush1.msra.mxu0 0.0
    %6256 = vmatprep.subr.mxu0 0.0
    %6257 = vmatpush1.msra.mxu0 0.0
    %6258 = vmatprep.subr.mxu0 0.0
    %6259 = vmatpush1.msra.mxu0 0.0
    %6260 = vmatprep.subr.mxu0 0.0
    %6261 = vmatpush1.msra.mxu0 0.0
    %6262 = vmatprep.subr.mxu0 0.0
    %6263 = vmatpush1.msra.mxu0 0.0
    %6264 = vmatprep.subr.mxu0 0.0
    %6265 = vmatpush1.msra.mxu0 0.0
    %6266 = vmatprep.subr.mxu0 0.0
    %6267 = vmatpush1.msra.mxu0 0.0
    %6268 = vmatprep.subr.mxu0 0.0
    %6269 = vmatpush1.msra.mxu0 0.0
    %6270 = vmatprep.subr.mxu0 0.0
    %6271 = vmatpush1.msra.mxu0 0.0
    %6272 = vmatprep.subr.mxu0 0.0
    %6273 = vmatpush1.msra.mxu0 0.0
    %6274 = vmatprep.subr.mxu0 0.0
    %6275 = vmatpush1.msra.mxu0 0.0
    %6276 = vmatprep.subr.mxu0 0.0
    %6277 = vmatpush1.msra.mxu0 0.0
    %6278 = vmatprep.subr.mxu0 0.0
    %6279 = vmatpush1.msra.mxu0 0.0
    %6280 = vmatprep.subr.mxu0 0.0
    %6281 = vmatpush1.msra.mxu0 0.0
    %6282 = vmatprep.subr.mxu0 0.0
    %6283 = vmatpush1.msra.mxu0 0.0
    %6284 = vmatprep.subr.mxu0 0.0
    %6285 = vmatpush1.msra.mxu0 0.0
    %6286 = vmatprep.subr.mxu0 0.0
    %6287 = vmatpush1.msra.mxu0 0.0
    %6288 = vmatprep.subr.mxu0 0.0
    %6289 = vmatpush1.msra.mxu0 0.0
    %6290 = vmatprep.subr.mxu0 0.0
    %6291 = vmatpush1.msra.mxu0 0.0
    %6292 = vmatprep.subr.mxu0 0.0
    %6293 = vmatpush1.msra.mxu0 0.0
    %6294 = vmatprep.subr.mxu0 0.0
    %6295 = vmatpush1.msra.mxu0 0.0
    %6296 = vmatprep.subr.mxu0 0.0
    %6297 = vmatpush1.msra.mxu0 0.0
    %6298 = vmatprep.subr.mxu0 0.0
    %6299 = vmatpush1.msra.mxu0 0.0
    %6300 = vmatprep.mubr.f32.mxu0 0.0
    %6301 = vmatmul.mubr.f32.gmra.mrb[0].mxu0 %v4934
    %v6302 = vpop.f32.mrb[0].mxu0
    %v6303 = vadd.f32 %v6234, %v6302
    %v6304 = vpop.f32.mrb[0].mxu0
    %6305 = vmatprep.mubr.f32.mxu0 0.0
    %6306 = vmatmul.mubr.f32.gmra.mrb[0].mxu0 %v4937
    %v6307 = vpop.f32.mrb[0].mxu0
    %v6308 = vadd.f32 %v6234, %v6307
    %v6309 = vpop.f32.mrb[0].mxu0
    %6310 = vdwg.mxu0
    %v6312 = vsel %vm516, %v6119, 0
    %v6315 = vsel %vm516, %v6124, 0
    %v6318 = vsel %vm516, %v6211, 0
    %v6321 = vsel %vm516, %v6216, 0
    %6323 = vmatprep.subr.mxu0 0.0
    %6324 = vmatpush1.xpose.msra.mxu0 %v6318
    %6325 = vmatprep.subr.mxu0 0.0
    %6326 = vmatpush1.xpose.msra.mxu0 %v6321
    %6327 = vmatprep.subr.mxu0 0.0
    %6328 = vmatpush1.xpose.msra.mxu0 0.0
    %6329 = vmatprep.subr.mxu0 0.0
    %6330 = vmatpush1.xpose.msra.mxu0 0.0
    %6331 = vmatprep.subr.mxu0 0.0
    %6332 = vmatpush1.xpose.msra.mxu0 0.0
    %6333 = vmatprep.subr.mxu0 0.0
    %6334 = vmatpush1.xpose.msra.mxu0 0.0
    %6335 = vmatprep.subr.mxu0 0.0
    %6336 = vmatpush1.xpose.msra.mxu0 0.0
    %6337 = vmatprep.subr.mxu0 0.0
    %6338 = vmatpush1.xpose.msra.mxu0 0.0
    %6339 = vmatprep.subr.mxu0 0.0
    %6340 = vmatpush1.xpose.msra.mxu0 0.0
    %6341 = vmatprep.subr.mxu0 0.0
    %6342 = vmatpush1.xpose.msra.mxu0 0.0
    %6343 = vmatprep.subr.mxu0 0.0
    %6344 = vmatpush1.xpose.msra.mxu0 0.0
    %6345 = vmatprep.subr.mxu0 0.0
    %6346 = vmatpush1.xpose.msra.mxu0 0.0
    %6347 = vmatprep.subr.mxu0 0.0
    %6348 = vmatpush1.xpose.msra.mxu0 0.0
    %6349 = vmatprep.subr.mxu0 0.0
    %6350 = vmatpush1.xpose.msra.mxu0 0.0
    %6351 = vmatprep.subr.mxu0 0.0
    %6352 = vmatpush1.xpose.msra.mxu0 0.0
    %6353 = vmatprep.subr.mxu0 0.0
    %6354 = vmatpush1.xpose.msra.mxu0 0.0
    %6355 = vmatprep.subr.mxu0 0.0
    %6356 = vmatpush1.xpose.msra.mxu0 0.0
    %6357 = vmatprep.subr.mxu0 0.0
    %6358 = vmatpush1.xpose.msra.mxu0 0.0
    %6359 = vmatprep.subr.mxu0 0.0
    %6360 = vmatpush1.xpose.msra.mxu0 0.0
    %6361 = vmatprep.subr.mxu0 0.0
    %6362 = vmatpush1.xpose.msra.mxu0 0.0
    %6363 = vmatprep.subr.mxu0 0.0
    %6364 = vmatpush1.xpose.msra.mxu0 0.0
    %6365 = vmatprep.subr.mxu0 0.0
    %6366 = vmatpush1.xpose.msra.mxu0 0.0
    %6367 = vmatprep.subr.mxu0 0.0
    %6368 = vmatpush1.xpose.msra.mxu0 0.0
    %6369 = vmatprep.subr.mxu0 0.0
    %6370 = vmatpush1.xpose.msra.mxu0 0.0
    %6371 = vmatprep.subr.mxu0 0.0
    %6372 = vmatpush1.xpose.msra.mxu0 0.0
    %6373 = vmatprep.subr.mxu0 0.0
    %6374 = vmatpush1.xpose.msra.mxu0 0.0
    %6375 = vmatprep.subr.mxu0 0.0
    %6376 = vmatpush1.xpose.msra.mxu0 0.0
    %6377 = vmatprep.subr.mxu0 0.0
    %6378 = vmatpush1.xpose.msra.mxu0 0.0
    %6379 = vmatprep.subr.mxu0 0.0
    %6380 = vmatpush1.xpose.msra.mxu0 0.0
    %6381 = vmatprep.subr.mxu0 0.0
    %6382 = vmatpush1.xpose.msra.mxu0 0.0
    %6383 = vmatprep.subr.mxu0 0.0
    %6384 = vmatpush1.xpose.msra.mxu0 0.0
    %6385 = vmatprep.subr.mxu0 0.0
    %6386 = vmatpush1.xpose.msra.mxu0 0.0
    %6387 = vmatprep.mubr.f32.mxu0 0.0
    %6388 = vmatmul.mubr.f32.gmra.mrb[0].mxu0 %v6312
    %v6389 = vpop.f32.mrb[0].mxu0
    %v6390 = vadd.f32 0.0, %v6389
    %v6391 = vpop.f32.mrb[0].mxu0
    %6392 = vmatprep.mubr.f32.mxu0 0.0
    %6393 = vmatmul.mubr.f32.gmra.mrb[0].mxu0 %v6315
    %v6394 = vpop.f32.mrb[0].mxu0
    %v6395 = vadd.f32 0.0, %v6394
    %v6396 = vpop.f32.mrb[0].mxu0
    %6397 = vdwg.mxu0
    %v6398 = vmul.f32 %v6390, 0.35355338
    %v6399 = vmul.f32 %v6395, 0.35355338
    %v6400 = vadd.f32 %v6398, %v4914
    %v6401 = vadd.f32 %v6399, %v4915
    %v6402 = vsel %vm5295, %v6400, -inf
    %6403 = vmax.xlane.f32.xlu0 %v6402
    %v6404 = vpop.xlane.xlu0 %6403
    %v6405 = vsel %vm5295, %v6401, -inf
    %6406 = vmax.xlane.f32.xlu0 %v6405
    %v6407 = vpop.xlane.xlu0 %6406
    %v6408 = vsub.f32 %v6400, %v6404
    %v6409 = vsub.f32 %v6401, %v6407
    %v6410 = vmul.f32 %v6408, 1.442695
    %v6411 = vpow.pop %v6410
    %v6412 = vmul.f32 %v6409, 1.442695
    %v6413 = vpow.pop %v6412
    %v6414 = vsel %vm5295, %v6411, 0.0
    %6415 = vadd.xlane.f32.xlu0 %v6414
    %v6416 = vpop.xlane.xlu0 %6415
    %v6417 = vsel %vm5295, %v6413, 0.0
    %6418 = vadd.xlane.f32.xlu0 %v6417
    %v6419 = vpop.xlane.xlu0 %6418
    %v6420 = vrcp.pop %v6416
    %v6421 = vrcp.pop %v6419
    %v6422 = vmul.f32 %v6411, %v6420
    %v6423 = vmul.f32 %v6413, %v6421
    %v6425 = vsel %vm5295, %v6422, 0
    %v6428 = vsel %vm5295, %v6423, 0
    %6430 = vmatprep.subr.mxu0 0.0
    %6431 = vmatpush1.msra.mxu0 %v6303
    %6432 = vmatprep.subr.mxu0 0.0
    %6433 = vmatpush1.msra.mxu0 %v6308
    %6434 = vmatprep.subr.mxu0 0.0
    %6435 = vmatpush1.msra.mxu0 0.0
    %6436 = vmatprep.subr.mxu0 0.0
    %6437 = vmatpush1.msra.mxu0 0.0
    %6438 = vmatprep.subr.mxu0 0.0
    %6439 = vmatpush1.msra.mxu0 0.0
    %6440 = vmatprep.subr.mxu0 0.0
    %6441 = vmatpush1.msra.mxu0 0.0
    %6442 = vmatprep.subr.mxu0 0.0
    %6443 = vmatpush1.msra.mxu0 0.0
    %6444 = vmatprep.subr.mxu0 0.0
    %6445 = vmatpush1.msra.mxu0 0.0
    %6446 = vmatprep.subr.mxu0 0.0
    %6447 = vmatpush1.msra.mxu0 0.0
    %6448 = vmatprep.subr.mxu0 0.0
    %6449 = vmatpush1.msra.mxu0 0.0
    %6450 = vmatprep.subr.mxu0 0.0
    %6451 = vmatpush1.msra.mxu0 0.0
    %6452 = vmatprep.subr.mxu0 0.0
    %6453 = vmatpush1.msra.mxu0 0.0
    %6454 = vmatprep.subr.mxu0 0.0
    %6455 = vmatpush1.msra.mxu0 0.0
    %6456 = vmatprep.subr.mxu0 0.0
    %6457 = vmatpush1.msra.mxu0 0.0
    %6458 = vmatprep.subr.mxu0 0.0
    %6459 = vmatpush1.msra.mxu0 0.0
    %6460 = vmatprep.subr.mxu0 0.0
    %6461 = vmatpush1.msra.mxu0 0.0
    %6462 = vmatprep.subr.mxu0 0.0
    %6463 = vmatpush1.msra.mxu0 0.0
    %6464 = vmatprep.subr.mxu0 0.0
    %6465 = vmatpush1.msra.mxu0 0.0
    %6466 = vmatprep.subr.mxu0 0.0
    %6467 = vmatpush1.msra.mxu0 0.0
    %6468 = vmatprep.subr.mxu0 0.0
    %6469 = vmatpush1.msra.mxu0 0.0
    %6470 = vmatprep.subr.mxu0 0.0
    %6471 = vmatpush1.msra.mxu0 0.0
    %6472 = vmatprep.subr.mxu0 0.0
    %6473 = vmatpush1.msra.mxu0 0.0
    %6474 = vmatprep.subr.mxu0 0.0
    %6475 = vmatpush1.msra.mxu0 0.0
    %6476 = vmatprep.subr.mxu0 0.0
    %6477 = vmatpush1.msra.mxu0 0.0
    %6478 = vmatprep.subr.mxu0 0.0
    %6479 = vmatpush1.msra.mxu0 0.0
    %6480 = vmatprep.subr.mxu0 0.0
    %6481 = vmatpush1.msra.mxu0 0.0
    %6482 = vmatprep.subr.mxu0 0.0
    %6483 = vmatpush1.msra.mxu0 0.0
    %6484 = vmatprep.subr.mxu0 0.0
    %6485 = vmatpush1.msra.mxu0 0.0
    %6486 = vmatprep.subr.mxu0 0.0
    %6487 = vmatpush1.msra.mxu0 0.0
    %6488 = vmatprep.subr.mxu0 0.0
    %6489 = vmatpush1.msra.mxu0 0.0
    %6490 = vmatprep.subr.mxu0 0.0
    %6491 = vmatpush1.msra.mxu0 0.0
    %6492 = vmatprep.subr.mxu0 0.0
    %6493 = vmatpush1.msra.mxu0 0.0
    %6494 = vmatprep.mubr.f32.mxu0 0.0
    %6495 = vmatmul.mubr.f32.gmra.mrb[0].mxu0 %v6425
    %v6496 = vpop.f32.mrb[0].mxu0
    %v6497 = vadd.f32 0.0, %v6496
    %v6498 = vpop.f32.mrb[0].mxu0
    %6499 = vmatprep.mubr.f32.mxu0 0.0
    %6500 = vmatmul.mubr.f32.gmra.mrb[0].mxu0 %v6428
    %v6501 = vpop.f32.mrb[0].mxu0
    %v6502 = vadd.f32 0.0, %v6501
    %v6503 = vpop.f32.mrb[0].mxu0
    %6504 = vdwg.mxu0
    %s6505 = scalar_lea.vmem %s8, 80
    %v6506 = vld [vmem:[%s6505] sm:$0xff]
    %v6508 = vsel %vm516, %v6497, 0
    %v6511 = vsel %vm516, %v6502, 0
    %6513 = vmatprep.subr.mxu0 0.0
    %6514 = vmatpush1.msra.mxu0 %v6506
    %6515 = vmatprep.subr.mxu0 0.0
    %6516 = vmatpush1.msra.mxu0 0.0
    %6517 = vmatprep.subr.mxu0 0.0
    %6518 = vmatpush1.msra.mxu0 0.0
    %6519 = vmatprep.subr.mxu0 0.0
    %6520 = vmatpush1.msra.mxu0 0.0
    %6521 = vmatprep.subr.mxu0 0.0
    %6522 = vmatpush1.msra.mxu0 0.0
    %6523 = vmatprep.subr.mxu0 0.0
    %6524 = vmatpush1.msra.mxu0 0.0
    %6525 = vmatprep.subr.mxu0 0.0
    %6526 = vmatpush1.msra.mxu0 0.0
    %6527 = vmatprep.subr.mxu0 0.0
    %6528 = vmatpush1.msra.mxu0 0.0
    %6529 = vmatprep.subr.mxu0 0.0
    %6530 = vmatpush1.msra.mxu0 0.0
    %6531 = vmatprep.subr.mxu0 0.0
    %6532 = vmatpush1.msra.mxu0 0.0
    %6533 = vmatprep.subr.mxu0 0.0
    %6534 = vmatpush1.msra.mxu0 0.0
    %6535 = vmatprep.subr.mxu0 0.0
    %6536 = vmatpush1.msra.mxu0 0.0
    %6537 = vmatprep.subr.mxu0 0.0
    %6538 = vmatpush1.msra.mxu0 0.0
    %6539 = vmatprep.subr.mxu0 0.0
    %6540 = vmatpush1.msra.mxu0 0.0
    %6541 = vmatprep.subr.mxu0 0.0
    %6542 = vmatpush1.msra.mxu0 0.0
    %6543 = vmatprep.subr.mxu0 0.0
    %6544 = vmatpush1.msra.mxu0 0.0
    %6545 = vmatprep.subr.mxu0 0.0
    %6546 = vmatpush1.msra.mxu0 0.0
    %6547 = vmatprep.subr.mxu0 0.0
    %6548 = vmatpush1.msra.mxu0 0.0
    %6549 = vmatprep.subr.mxu0 0.0
    %6550 = vmatpush1.msra.mxu0 0.0
    %6551 = vmatprep.subr.mxu0 0.0
    %6552 = vmatpush1.msra.mxu0 0.0
    %6553 = vmatprep.subr.mxu0 0.0
    %6554 = vmatpush1.msra.mxu0 0.0
    %6555 = vmatprep.subr.mxu0 0.0
    %6556 = vmatpush1.msra.mxu0 0.0
    %6557 = vmatprep.subr.mxu0 0.0
    %6558 = vmatpush1.msra.mxu0 0.0
    %6559 = vmatprep.subr.mxu0 0.0
    %6560 = vmatpush1.msra.mxu0 0.0
    %6561 = vmatprep.subr.mxu0 0.0
    %6562 = vmatpush1.msra.mxu0 0.0
    %6563 = vmatprep.subr.mxu0 0.0
    %6564 = vmatpush1.msra.mxu0 0.0
    %6565 = vmatprep.subr.mxu0 0.0
    %6566 = vmatpush1.msra.mxu0 0.0
    %6567 = vmatprep.subr.mxu0 0.0
    %6568 = vmatpush1.msra.mxu0 0.0
    %6569 = vmatprep.subr.mxu0 0.0
    %6570 = vmatpush1.msra.mxu0 0.0
    %6571 = vmatprep.subr.mxu0 0.0
    %6572 = vmatpush1.msra.mxu0 0.0
    %6573 = vmatprep.subr.mxu0 0.0
    %6574 = vmatpush1.msra.mxu0 0.0
    %6575 = vmatprep.subr.mxu0 0.0
    %6576 = vmatpush1.msra.mxu0 0.0
    %6577 = vmatprep.mubr.f32.mxu0 0.0
    %6578 = vmatmul.mubr.f32.gmra.mrb[0].mxu0 %v6508
    %v6579 = vpop.f32.mrb[0].mxu0
    %v6580 = vadd.f32 0.0, %v6579
    %v6581 = vpop.f32.mrb[0].mxu0
    %6582 = vmatprep.mubr.f32.mxu0 0.0
    %6583 = vmatmul.mubr.f32.gmra.mrb[0].mxu0 %v6511
    %v6584 = vpop.f32.mrb[0].mxu0
    %v6585 = vadd.f32 0.0, %v6584
    %v6586 = vpop.f32.mrb[0].mxu0
    %6587 = vdwg.mxu0
    %v6588 = vadd.f32 %v6027, %v6580
    %v6589 = vadd.f32 %v6032, %v6585
    %s6590 = scalar_lea.vmem %s6, 1728
    %v6591 = vld [vmem:[%s6590] sm:$0xff]
    %v6592 = vld [vmem:[%s6590 + $0x8] sm:$0xff]
    %v6593 = vld [vmem:[%s6590 + $0x10] sm:$0xff]
    %v6594 = vld [vmem:[%s6590 + $0x18] sm:$0xff]
    %v6595 = vld [vmem:[%s6590 + $0x20] sm:$0xff]
    %v6596 = vld [vmem:[%s6590 + $0x28] sm:$0xff]
    %v6597 = vld [vmem:[%s6590 + $0x30] sm:$0xff]
    %v6598 = vld [vmem:[%s6590 + $0x38] sm:$0xff]
    %s6599 = scalar_lea.vmem %s7, 27
    %v6600 = vld [vmem:[%s6599] sm:$0x1]
    %v6602 = vlaneseq
    %v6603 = vshrl.u32 %v6602, 7
    %v6604 = vsub.s32 0, %v6603
    %v6605 = vrot.slane %v6600, %v6604
    %6607 = vmatprep.subr.mxu0 0.0
    %6608 = vmatpush1.msra.mxu0 %v6591
    %6609 = vmatprep.subr.mxu0 0.0
    %6610 = vmatpush1.msra.mxu0 %v6592
    %6611 = vmatprep.subr.mxu0 0.0
    %6612 = vmatpush1.msra.mxu0 %v6593
    %6613 = vmatprep.subr.mxu0 0.0
    %6614 = vmatpush1.msra.mxu0 %v6594
    %6615 = vmatprep.subr.mxu0 0.0
    %6616 = vmatpush1.msra.mxu0 %v6595
    %6617 = vmatprep.subr.mxu0 0.0
    %6618 = vmatpush1.msra.mxu0 %v6596
    %6619 = vmatprep.subr.mxu0 0.0
    %6620 = vmatpush1.msra.mxu0 %v6597
    %6621 = vmatprep.subr.mxu0 0.0
    %6622 = vmatpush1.msra.mxu0 %v6598
    %6623 = vmatprep.subr.mxu0 0.0
    %6624 = vmatpush1.msra.mxu0 0.0
    %6625 = vmatprep.subr.mxu0 0.0
    %6626 = vmatpush1.msra.mxu0 0.0
    %6627 = vmatprep.subr.mxu0 0.0
    %6628 = vmatpush1.msra.mxu0 0.0
    %6629 = vmatprep.subr.mxu0 0.0
    %6630 = vmatpush1.msra.mxu0 0.0
    %6631 = vmatprep.subr.mxu0 0.0
    %6632 = vmatpush1.msra.mxu0 0.0
    %6633 = vmatprep.subr.mxu0 0.0
    %6634 = vmatpush1.msra.mxu0 0.0
    %6635 = vmatprep.subr.mxu0 0.0
    %6636 = vmatpush1.msra.mxu0 0.0
    %6637 = vmatprep.subr.mxu0 0.0
    %6638 = vmatpush1.msra.mxu0 0.0
    %6639 = vmatprep.subr.mxu0 0.0
    %6640 = vmatpush1.msra.mxu0 0.0
    %6641 = vmatprep.subr.mxu0 0.0
    %6642 = vmatpush1.msra.mxu0 0.0
    %6643 = vmatprep.subr.mxu0 0.0
    %6644 = vmatpush1.msra.mxu0 0.0
    %6645 = vmatprep.subr.mxu0 0.0
    %6646 = vmatpush1.msra.mxu0 0.0
    %6647 = vmatprep.subr.mxu0 0.0
    %6648 = vmatpush1.msra.mxu0 0.0
    %6649 = vmatprep.subr.mxu0 0.0
    %6650 = vmatpush1.msra.mxu0 0.0
    %6651 = vmatprep.subr.mxu0 0.0
    %6652 = vmatpush1.msra.mxu0 0.0
    %6653 = vmatprep.subr.mxu0 0.0
    %6654 = vmatpush1.msra.mxu0 0.0
    %6655 = vmatprep.subr.mxu0 0.0
    %6656 = vmatpush1.msra.mxu0 0.0
    %6657 = vmatprep.subr.mxu0 0.0
    %6658 = vmatpush1.msra.mxu0 0.0
    %6659 = vmatprep.subr.mxu0 0.0
    %6660 = vmatpush1.msra.mxu0 0.0
    %6661 = vmatprep.subr.mxu0 0.0
    %6662 = vmatpush1.msra.mxu0 0.0
    %6663 = vmatprep.subr.mxu0 0.0
    %6664 = vmatpush1.msra.mxu0 0.0
    %6665 = vmatprep.subr.mxu0 0.0
    %6666 = vmatpush1.msra.mxu0 0.0
    %6667 = vmatprep.subr.mxu0 0.0
    %6668 = vmatpush1.msra.mxu0 0.0
    %6669 = vmatprep.subr.mxu0 0.0
    %6670 = vmatpush1.msra.mxu0 0.0
    %6671 = vmatprep.mubr.f32.mxu0 0.0
    %6672 = vmatmul.mubr.f32.gmra.mrb[0].mxu0 %v4934
    %v6673 = vpop.f32.mrb[0].mxu0
    %v6674 = vadd.f32 %v6605, %v6673
    %v6675 = vpop.f32.mrb[0].mxu0
    %6676 = vmatprep.mubr.f32.mxu0 0.0
    %6677 = vmatmul.mubr.f32.gmra.mrb[0].mxu0 %v4937
    %v6678 = vpop.f32.mrb[0].mxu0
    %v6679 = vadd.f32 %v6605, %v6678
    %v6680 = vpop.f32.mrb[0].mxu0
    %6681 = vdwg.mxu0
    %s6682 = scalar_lea.vmem %s6, 2240
    %v6683 = vld [vmem:[%s6682] sm:$0xff]
    %v6684 = vld [vmem:[%s6682 + $0x8] sm:$0xff]
    %v6685 = vld [vmem:[%s6682 + $0x10] sm:$0xff]
    %v6686 = vld [vmem:[%s6682 + $0x18] sm:$0xff]
    %v6687 = vld [vmem:[%s6682 + $0x20] sm:$0xff]
    %v6688 = vld [vmem:[%s6682 + $0x28] sm:$0xff]
    %v6689 = vld [vmem:[%s6682 + $0x30] sm:$0xff]
    %v6690 = vld [vmem:[%s6682 + $0x38] sm:$0xff]
    %s6691 = scalar_lea.vmem %s7, 35
    %v6692 = vld [vmem:[%s6691] sm:$0x1]
    %v6694 = vlaneseq
    %v6695 = vshrl.u32 %v6694, 7
    %v6696 = vsub.s32 0, %v6695
    %v6697 = vrot.slane %v6692, %v6696
    %6699 = vmatprep.subr.mxu0 0.0
    %6700 = vmatpush1.msra.mxu0 %v6683
    %6701 = vmatprep.subr.mxu0 0.0
    %6702 = vmatpush1.msra.mxu0 %v6684
    %6703 = vmatprep.subr.mxu0 0.0
    %6704 = vmatpush1.msra.mxu0 %v6685
    %6705 = vmatprep.subr.mxu0 0.0
    %6706 = vmatpush1.msra.mxu0 %v6686
    %6707 = vmatprep.subr.mxu0 0.0
    %6708 = vmatpush1.msra.mxu0 %v6687
    %6709 = vmatprep.subr.mxu0 0.0
    %6710 = vmatpush1.msra.mxu0 %v6688
    %6711 = vmatprep.subr.mxu0 0.0
    %6712 = vmatpush1.msra.mxu0 %v6689
    %6713 = vmatprep.subr.mxu0 0.0
    %6714 = vmatpush1.msra.mxu0 %v6690
    %6715 = vmatprep.subr.mxu0 0.0
    %6716 = vmatpush1.msra.mxu0 0.0
    %6717 = vmatprep.subr.mxu0 0.0
    %6718 = vmatpush1.msra.mxu0 0.0
    %6719 = vmatprep.subr.mxu0 0.0
    %6720 = vmatpush1.msra.mxu0 0.0
    %6721 = vmatprep.subr.mxu0 0.0
    %6722 = vmatpush1.msra.mxu0 0.0
    %6723 = vmatprep.subr.mxu0 0.0
    %6724 = vmatpush1.msra.mxu0 0.0
    %6725 = vmatprep.subr.mxu0 0.0
    %6726 = vmatpush1.msra.mxu0 0.0
    %6727 = vmatprep.subr.mxu0 0.0
    %6728 = vmatpush1.msra.mxu0 0.0
    %6729 = vmatprep.subr.mxu0 0.0
    %6730 = vmatpush1.msra.mxu0 0.0
    %6731 = vmatprep.subr.mxu0 0.0
    %6732 = vmatpush1.msra.mxu0 0.0
    %6733 = vmatprep.subr.mxu0 0.0
    %6734 = vmatpush1.msra.mxu0 0.0
    %6735 = vmatprep.subr.mxu0 0.0
    %6736 = vmatpush1.msra.mxu0 0.0
    %6737 = vmatprep.subr.mxu0 0.0
    %6738 = vmatpush1.msra.mxu0 0.0
    %6739 = vmatprep.subr.mxu0 0.0
    %6740 = vmatpush1.msra.mxu0 0.0
    %6741 = vmatprep.subr.mxu0 0.0
    %6742 = vmatpush1.msra.mxu0 0.0
    %6743 = vmatprep.subr.mxu0 0.0
    %6744 = vmatpush1.msra.mxu0 0.0
    %6745 = vmatprep.subr.mxu0 0.0
    %6746 = vmatpush1.msra.mxu0 0.0
    %6747 = vmatprep.subr.mxu0 0.0
    %6748 = vmatpush1.msra.mxu0 0.0
    %6749 = vmatprep.subr.mxu0 0.0
    %6750 = vmatpush1.msra.mxu0 0.0
    %6751 = vmatprep.subr.mxu0 0.0
    %6752 = vmatpush1.msra.mxu0 0.0
    %6753 = vmatprep.subr.mxu0 0.0
    %6754 = vmatpush1.msra.mxu0 0.0
    %6755 = vmatprep.subr.mxu0 0.0
    %6756 = vmatpush1.msra.mxu0 0.0
    %6757 = vmatprep.subr.mxu0 0.0
    %6758 = vmatpush1.msra.mxu0 0.0
    %6759 = vmatprep.subr.mxu0 0.0
    %6760 = vmatpush1.msra.mxu0 0.0
    %6761 = vmatprep.subr.mxu0 0.0
    %6762 = vmatpush1.msra.mxu0 0.0
    %6763 = vmatprep.mubr.f32.mxu0 0.0
    %6764 = vmatmul.mubr.f32.gmra.mrb[0].mxu0 %v5032
    %v6765 = vpop.f32.mrb[0].mxu0
    %v6766 = vadd.f32 %v6697, %v6765
    %v6767 = vpop.f32.mrb[0].mxu0
    %6768 = vmatprep.mubr.f32.mxu0 0.0
    %6769 = vmatmul.mubr.f32.gmra.mrb[0].mxu0 %v5035
    %v6770 = vpop.f32.mrb[0].mxu0
    %v6771 = vadd.f32 %v6697, %v6770
    %v6772 = vpop.f32.mrb[0].mxu0
    %6773 = vdwg.mxu0
    %s6774 = scalar_lea.vmem %s6, 2752
    %v6775 = vld [vmem:[%s6774] sm:$0xff]
    %v6776 = vld [vmem:[%s6774 + $0x8] sm:$0xff]
    %v6777 = vld [vmem:[%s6774 + $0x10] sm:$0xff]
    %v6778 = vld [vmem:[%s6774 + $0x18] sm:$0xff]
    %v6779 = vld [vmem:[%s6774 + $0x20] sm:$0xff]
    %v6780 = vld [vmem:[%s6774 + $0x28] sm:$0xff]
    %v6781 = vld [vmem:[%s6774 + $0x30] sm:$0xff]
    %v6782 = vld [vmem:[%s6774 + $0x38] sm:$0xff]
    %s6783 = scalar_lea.vmem %s7, 43
    %v6784 = vld [vmem:[%s6783] sm:$0x1]
    %v6786 = vlaneseq
    %v6787 = vshrl.u32 %v6786, 7
    %v6788 = vsub.s32 0, %v6787
    %v6789 = vrot.slane %v6784, %v6788
    %6791 = vmatprep.subr.mxu0 0.0
    %6792 = vmatpush1.msra.mxu0 %v6775
    %6793 = vmatprep.subr.mxu0 0.0
    %6794 = vmatpush1.msra.mxu0 %v6776
    %6795 = vmatprep.subr.mxu0 0.0
    %6796 = vmatpush1.msra.mxu0 %v6777
    %6797 = vmatprep.subr.mxu0 0.0
    %6798 = vmatpush1.msra.mxu0 %v6778
    %6799 = vmatprep.subr.mxu0 0.0
    %6800 = vmatpush1.msra.mxu0 %v6779
    %6801 = vmatprep.subr.mxu0 0.0
    %6802 = vmatpush1.msra.mxu0 %v6780
    %6803 = vmatprep.subr.mxu0 0.0
    %6804 = vmatpush1.msra.mxu0 %v6781
    %6805 = vmatprep.subr.mxu0 0.0
    %6806 = vmatpush1.msra.mxu0 %v6782
    %6807 = vmatprep.subr.mxu0 0.0
    %6808 = vmatpush1.msra.mxu0 0.0
    %6809 = vmatprep.subr.mxu0 0.0
    %6810 = vmatpush1.msra.mxu0 0.0
    %6811 = vmatprep.subr.mxu0 0.0
    %6812 = vmatpush1.msra.mxu0 0.0
    %6813 = vmatprep.subr.mxu0 0.0
    %6814 = vmatpush1.msra.mxu0 0.0
    %6815 = vmatprep.subr.mxu0 0.0
    %6816 = vmatpush1.msra.mxu0 0.0
    %6817 = vmatprep.subr.mxu0 0.0
    %6818 = vmatpush1.msra.mxu0 0.0
    %6819 = vmatprep.subr.mxu0 0.0
    %6820 = vmatpush1.msra.mxu0 0.0
    %6821 = vmatprep.subr.mxu0 0.0
    %6822 = vmatpush1.msra.mxu0 0.0
    %6823 = vmatprep.subr.mxu0 0.0
    %6824 = vmatpush1.msra.mxu0 0.0
    %6825 = vmatprep.subr.mxu0 0.0
    %6826 = vmatpush1.msra.mxu0 0.0
    %6827 = vmatprep.subr.mxu0 0.0
    %6828 = vmatpush1.msra.mxu0 0.0
    %6829 = vmatprep.subr.mxu0 0.0
    %6830 = vmatpush1.msra.mxu0 0.0
    %6831 = vmatprep.subr.mxu0 0.0
    %6832 = vmatpush1.msra.mxu0 0.0
    %6833 = vmatprep.subr.mxu0 0.0
    %6834 = vmatpush1.msra.mxu0 0.0
    %6835 = vmatprep.subr.mxu0 0.0
    %6836 = vmatpush1.msra.mxu0 0.0
    %6837 = vmatprep.subr.mxu0 0.0
    %6838 = vmatpush1.msra.mxu0 0.0
    %6839 = vmatprep.subr.mxu0 0.0
    %6840 = vmatpush1.msra.mxu0 0.0
    %6841 = vmatprep.subr.mxu0 0.0
    %6842 = vmatpush1.msra.mxu0 0.0
    %6843 = vmatprep.subr.mxu0 0.0
    %6844 = vmatpush1.msra.mxu0 0.0
    %6845 = vmatprep.subr.mxu0 0.0
    %6846 = vmatpush1.msra.mxu0 0.0
    %6847 = vmatprep.subr.mxu0 0.0
    %6848 = vmatpush1.msra.mxu0 0.0
    %6849 = vmatprep.subr.mxu0 0.0
    %6850 = vmatpush1.msra.mxu0 0.0
    %6851 = vmatprep.subr.mxu0 0.0
    %6852 = vmatpush1.msra.mxu0 0.0
    %6853 = vmatprep.subr.mxu0 0.0
    %6854 = vmatpush1.msra.mxu0 0.0
    %6855 = vmatprep.mubr.f32.mxu0 0.0
    %6856 = vmatmul.mubr.f32.gmra.mrb[0].mxu0 %v4934
    %v6857 = vpop.f32.mrb[0].mxu0
    %v6858 = vadd.f32 %v6789, %v6857
    %v6859 = vpop.f32.mrb[0].mxu0
    %6860 = vmatprep.mubr.f32.mxu0 0.0
    %6861 = vmatmul.mubr.f32.gmra.mrb[0].mxu0 %v4937
    %v6862 = vpop.f32.mrb[0].mxu0
    %v6863 = vadd.f32 %v6789, %v6862
    %v6864 = vpop.f32.mrb[0].mxu0
    %6865 = vdwg.mxu0
    %v6867 = vsel %vm516, %v6674, 0
    %v6870 = vsel %vm516, %v6679, 0
    %v6873 = vsel %vm516, %v6766, 0
    %v6876 = vsel %vm516, %v6771, 0
    %6878 = vmatprep.subr.mxu0 0.0
    %6879 = vmatpush1.xpose.msra.mxu0 %v6873
    %6880 = vmatprep.subr.mxu0 0.0
    %6881 = vmatpush1.xpose.msra.mxu0 %v6876
    %6882 = vmatprep.subr.mxu0 0.0
    %6883 = vmatpush1.xpose.msra.mxu0 0.0
    %6884 = vmatprep.subr.mxu0 0.0
    %6885 = vmatpush1.xpose.msra.mxu0 0.0
    %6886 = vmatprep.subr.mxu0 0.0
    %6887 = vmatpush1.xpose.msra.mxu0 0.0
    %6888 = vmatprep.subr.mxu0 0.0
    %6889 = vmatpush1.xpose.msra.mxu0 0.0
    %6890 = vmatprep.subr.mxu0 0.0
    %6891 = vmatpush1.xpose.msra.mxu0 0.0
    %6892 = vmatprep.subr.mxu0 0.0
    %6893 = vmatpush1.xpose.msra.mxu0 0.0
    %6894 = vmatprep.subr.mxu0 0.0
    %6895 = vmatpush1.xpose.msra.mxu0 0.0
    %6896 = vmatprep.subr.mxu0 0.0
    %6897 = vmatpush1.xpose.msra.mxu0 0.0
    %6898 = vmatprep.subr.mxu0 0.0
    %6899 = vmatpush1.xpose.msra.mxu0 0.0
    %6900 = vmatprep.subr.mxu0 0.0
    %6901 = vmatpush1.xpose.msra.mxu0 0.0
    %6902 = vmatprep.subr.mxu0 0.0
    %6903 = vmatpush1.xpose.msra.mxu0 0.0
    %6904 = vmatprep.subr.mxu0 0.0
    %6905 = vmatpush1.xpose.msra.mxu0 0.0
    %6906 = vmatprep.subr.mxu0 0.0
    %6907 = vmatpush1.xpose.msra.mxu0 0.0
    %6908 = vmatprep.subr.mxu0 0.0
    %6909 = vmatpush1.xpose.msra.mxu0 0.0
    %6910 = vmatprep.subr.mxu0 0.0
    %6911 = vmatpush1.xpose.msra.mxu0 0.0
    %6912 = vmatprep.subr.mxu0 0.0
    %6913 = vmatpush1.xpose.msra.mxu0 0.0
    %6914 = vmatprep.subr.mxu0 0.0
    %6915 = vmatpush1.xpose.msra.mxu0 0.0
    %6916 = vmatprep.subr.mxu0 0.0
    %6917 = vmatpush1.xpose.msra.mxu0 0.0
    %6918 = vmatprep.subr.mxu0 0.0
    %6919 = vmatpush1.xpose.msra.mxu0 0.0
    %6920 = vmatprep.subr.mxu0 0.0
    %6921 = vmatpush1.xpose.msra.mxu0 0.0
    %6922 = vmatprep.subr.mxu0 0.0
    %6923 = vmatpush1.xpose.msra.mxu0 0.0
    %6924 = vmatprep.subr.mxu0 0.0
    %6925 = vmatpush1.xpose.msra.mxu0 0.0
    %6926 = vmatprep.subr.mxu0 0.0
    %6927 = vmatpush1.xpose.msra.mxu0 0.0
    %6928 = vmatprep.subr.mxu0 0.0
    %6929 = vmatpush1.xpose.msra.mxu0 0.0
    %6930 = vmatprep.subr.mxu0 0.0
    %6931 = vmatpush1.xpose.msra.mxu0 0.0
    %6932 = vmatprep.subr.mxu0 0.0
    %6933 = vmatpush1.xpose.msra.mxu0 0.0
    %6934 = vmatprep.subr.mxu0 0.0
    %6935 = vmatpush1.xpose.msra.mxu0 0.0
    %6936 = vmatprep.subr.mxu0 0.0
    %6937 = vmatpush1.xpose.msra.mxu0 0.0
    %6938 = vmatprep.subr.mxu0 0.0
    %6939 = vmatpush1.xpose.msra.mxu0 0.0
    %6940 = vmatprep.subr.mxu0 0.0
    %6941 = vmatpush1.xpose.msra.mxu0 0.0
    %6942 = vmatprep.mubr.f32.mxu0 0.0
    %6943 = vmatmul.mubr.f32.gmra.mrb[0].mxu0 %v6867
    %v6944 = vpop.f32.mrb[0].mxu0
    %v6945 = vadd.f32 0.0, %v6944
    %v6946 = vpop.f32.mrb[0].mxu0
    %6947 = vmatprep.mubr.f32.mxu0 0.0
    %6948 = vmatmul.mubr.f32.gmra.mrb[0].mxu0 %v6870
    %v6949 = vpop.f32.mrb[0].mxu0
    %v6950 = vadd.f32 0.0, %v6949
    %v6951 = vpop.f32.mrb[0].mxu0
    %6952 = vdwg.mxu0
    %v6953 = vmul.f32 %v6945, 0.35355338
    %v6954 = vmul.f32 %v6950, 0.35355338
    %v6955 = vadd.f32 %v6953, %v4914
    %v6956 = vadd.f32 %v6954, %v4915
    %v6957 = vsel %vm5295, %v6955, -inf
    %6958 = vmax.xlane.f32.xlu0 %v6957
    %v6959 = vpop.xlane.xlu0 %6958
    %v6960 = vsel %vm5295, %v6956, -inf
    %6961 = vmax.xlane.f32.xlu0 %v6960
    %v6962 = vpop.xlane.xlu0 %6961
    %v6963 = vsub.f32 %v6955, %v6959
    %v6964 = vsub.f32 %v6956, %v6962
    %v6965 = vmul.f32 %v6963, 1.442695
    %v6966 = vpow.pop %v6965
    %v6967 = vmul.f32 %v6964, 1.442695
    %v6968 = vpow.pop %v6967
    %v6969 = vsel %vm5295, %v6966, 0.0
    %6970 = vadd.xlane.f32.xlu0 %v6969
    %v6971 = vpop.xlane.xlu0 %6970
    %v6972 = vsel %vm5295, %v6968, 0.0
    %6973 = vadd.xlane.f32.xlu0 %v6972
    %v6974 = vpop.xlane.xlu0 %6973
    %v6975 = vrcp.pop %v6971
    %v6976 = vrcp.pop %v6974
    %v6977 = vmul.f32 %v6966, %v6975
    %v6978 = vmul.f32 %v6968, %v6976
    %v6980 = vsel %vm5295, %v6977, 0
    %v6983 = vsel %vm5295, %v6978, 0
    %6985 = vmatprep.subr.mxu0 0.0
    %6986 = vmatpush1.msra.mxu0 %v6858
    %6987 = vmatprep.subr.mxu0 0.0
    %6988 = vmatpush1.msra.mxu0 %v6863
    %6989 = vmatprep.subr.mxu0 0.0
    %6990 = vmatpush1.msra.mxu0 0.0
    %6991 = vmatprep.subr.mxu0 0.0
    %6992 = vmatpush1.msra.mxu0 0.0
    %6993 = vmatprep.subr.mxu0 0.0
    %6994 = vmatpush1.msra.mxu0 0.0
    %6995 = vmatprep.subr.mxu0 0.0
    %6996 = vmatpush1.msra.mxu0 0.0
    %6997 = vmatprep.subr.mxu0 0.0
    %6998 = vmatpush1.msra.mxu0 0.0
    %6999 = vmatprep.subr.mxu0 0.0
    %7000 = vmatpush1.msra.mxu0 0.0
    %7001 = vmatprep.subr.mxu0 0.0
    %7002 = vmatpush1.msra.mxu0 0.0
    %7003 = vmatprep.subr.mxu0 0.0
    %7004 = vmatpush1.msra.mxu0 0.0
    %7005 = vmatprep.subr.mxu0 0.0
    %7006 = vmatpush1.msra.mxu0 0.0
    %7007 = vmatprep.subr.mxu0 0.0
    %7008 = vmatpush1.msra.mxu0 0.0
    %7009 = vmatprep.subr.mxu0 0.0
    %7010 = vmatpush1.msra.mxu0 0.0
    %7011 = vmatprep.subr.mxu0 0.0
    %7012 = vmatpush1.msra.mxu0 0.0
    %7013 = vmatprep.subr.mxu0 0.0
    %7014 = vmatpush1.msra.mxu0 0.0
    %7015 = vmatprep.subr.mxu0 0.0
    %7016 = vmatpush1.msra.mxu0 0.0
    %7017 = vmatprep.subr.mxu0 0.0
    %7018 = vmatpush1.msra.mxu0 0.0
    %7019 = vmatprep.subr.mxu0 0.0
    %7020 = vmatpush1.msra.mxu0 0.0
    %7021 = vmatprep.subr.mxu0 0.0
    %7022 = vmatpush1.msra.mxu0 0.0
    %7023 = vmatprep.subr.mxu0 0.0
    %7024 = vmatpush1.msra.mxu0 0.0
    %7025 = vmatprep.subr.mxu0 0.0
    %7026 = vmatpush1.msra.mxu0 0.0
    %7027 = vmatprep.subr.mxu0 0.0
    %7028 = vmatpush1.msra.mxu0 0.0
    %7029 = vmatprep.subr.mxu0 0.0
    %7030 = vmatpush1.msra.mxu0 0.0
    %7031 = vmatprep.subr.mxu0 0.0
    %7032 = vmatpush1.msra.mxu0 0.0
    %7033 = vmatprep.subr.mxu0 0.0
    %7034 = vmatpush1.msra.mxu0 0.0
    %7035 = vmatprep.subr.mxu0 0.0
    %7036 = vmatpush1.msra.mxu0 0.0
    %7037 = vmatprep.subr.mxu0 0.0
    %7038 = vmatpush1.msra.mxu0 0.0
    %7039 = vmatprep.subr.mxu0 0.0
    %7040 = vmatpush1.msra.mxu0 0.0
    %7041 = vmatprep.subr.mxu0 0.0
    %7042 = vmatpush1.msra.mxu0 0.0
    %7043 = vmatprep.subr.mxu0 0.0
    %7044 = vmatpush1.msra.mxu0 0.0
    %7045 = vmatprep.subr.mxu0 0.0
    %7046 = vmatpush1.msra.mxu0 0.0
    %7047 = vmatprep.subr.mxu0 0.0
    %7048 = vmatpush1.msra.mxu0 0.0
    %7049 = vmatprep.mubr.f32.mxu0 0.0
    %7050 = vmatmul.mubr.f32.gmra.mrb[0].mxu0 %v6980
    %v7051 = vpop.f32.mrb[0].mxu0
    %v7052 = vadd.f32 0.0, %v7051
    %v7053 = vpop.f32.mrb[0].mxu0
    %7054 = vmatprep.mubr.f32.mxu0 0.0
    %7055 = vmatmul.mubr.f32.gmra.mrb[0].mxu0 %v6983
    %v7056 = vpop.f32.mrb[0].mxu0
    %v7057 = vadd.f32 0.0, %v7056
    %v7058 = vpop.f32.mrb[0].mxu0
    %7059 = vdwg.mxu0
    %s7060 = scalar_lea.vmem %s8, 88
    %v7061 = vld [vmem:[%s7060] sm:$0xff]
    %v7063 = vsel %vm516, %v7052, 0
    %v7066 = vsel %vm516, %v7057, 0
    %7068 = vmatprep.subr.mxu0 0.0
    %7069 = vmatpush1.msra.mxu0 %v7061
    %7070 = vmatprep.subr.mxu0 0.0
    %7071 = vmatpush1.msra.mxu0 0.0
    %7072 = vmatprep.subr.mxu0 0.0
    %7073 = vmatpush1.msra.mxu0 0.0
    %7074 = vmatprep.subr.mxu0 0.0
    %7075 = vmatpush1.msra.mxu0 0.0
    %7076 = vmatprep.subr.mxu0 0.0
    %7077 = vmatpush1.msra.mxu0 0.0
    %7078 = vmatprep.subr.mxu0 0.0
    %7079 = vmatpush1.msra.mxu0 0.0
    %7080 = vmatprep.subr.mxu0 0.0
    %7081 = vmatpush1.msra.mxu0 0.0
    %7082 = vmatprep.subr.mxu0 0.0
    %7083 = vmatpush1.msra.mxu0 0.0
    %7084 = vmatprep.subr.mxu0 0.0
    %7085 = vmatpush1.msra.mxu0 0.0
    %7086 = vmatprep.subr.mxu0 0.0
    %7087 = vmatpush1.msra.mxu0 0.0
    %7088 = vmatprep.subr.mxu0 0.0
    %7089 = vmatpush1.msra.mxu0 0.0
    %7090 = vmatprep.subr.mxu0 0.0
    %7091 = vmatpush1.msra.mxu0 0.0
    %7092 = vmatprep.subr.mxu0 0.0
    %7093 = vmatpush1.msra.mxu0 0.0
    %7094 = vmatprep.subr.mxu0 0.0
    %7095 = vmatpush1.msra.mxu0 0.0
    %7096 = vmatprep.subr.mxu0 0.0
    %7097 = vmatpush1.msra.mxu0 0.0
    %7098 = vmatprep.subr.mxu0 0.0
    %7099 = vmatpush1.msra.mxu0 0.0
    %7100 = vmatprep.subr.mxu0 0.0
    %7101 = vmatpush1.msra.mxu0 0.0
    %7102 = vmatprep.subr.mxu0 0.0
    %7103 = vmatpush1.msra.mxu0 0.0
    %7104 = vmatprep.subr.mxu0 0.0
    %7105 = vmatpush1.msra.mxu0 0.0
    %7106 = vmatprep.subr.mxu0 0.0
    %7107 = vmatpush1.msra.mxu0 0.0
    %7108 = vmatprep.subr.mxu0 0.0
    %7109 = vmatpush1.msra.mxu0 0.0
    %7110 = vmatprep.subr.mxu0 0.0
    %7111 = vmatpush1.msra.mxu0 0.0
    %7112 = vmatprep.subr.mxu0 0.0
    %7113 = vmatpush1.msra.mxu0 0.0
    %7114 = vmatprep.subr.mxu0 0.0
    %7115 = vmatpush1.msra.mxu0 0.0
    %7116 = vmatprep.subr.mxu0 0.0
    %7117 = vmatpush1.msra.mxu0 0.0
    %7118 = vmatprep.subr.mxu0 0.0
    %7119 = vmatpush1.msra.mxu0 0.0
    %7120 = vmatprep.subr.mxu0 0.0
    %7121 = vmatpush1.msra.mxu0 0.0
    %7122 = vmatprep.subr.mxu0 0.0
    %7123 = vmatpush1.msra.mxu0 0.0
    %7124 = vmatprep.subr.mxu0 0.0
    %7125 = vmatpush1.msra.mxu0 0.0
    %7126 = vmatprep.subr.mxu0 0.0
    %7127 = vmatpush1.msra.mxu0 0.0
    %7128 = vmatprep.subr.mxu0 0.0
    %7129 = vmatpush1.msra.mxu0 0.0
    %7130 = vmatprep.subr.mxu0 0.0
    %7131 = vmatpush1.msra.mxu0 0.0
    %7132 = vmatprep.mubr.f32.mxu0 0.0
    %7133 = vmatmul.mubr.f32.gmra.mrb[0].mxu0 %v7063
    %v7134 = vpop.f32.mrb[0].mxu0
    %v7135 = vadd.f32 0.0, %v7134
    %v7136 = vpop.f32.mrb[0].mxu0
    %7137 = vmatprep.mubr.f32.mxu0 0.0
    %7138 = vmatmul.mubr.f32.gmra.mrb[0].mxu0 %v7066
    %v7139 = vpop.f32.mrb[0].mxu0
    %v7140 = vadd.f32 0.0, %v7139
    %v7141 = vpop.f32.mrb[0].mxu0
    %7142 = vdwg.mxu0
    %v7143 = vadd.f32 %v6588, %v7135
    %v7144 = vadd.f32 %v6589, %v7140
    %s7145 = scalar_lea.vmem %s6, 1792
    %v7146 = vld [vmem:[%s7145] sm:$0xff]
    %v7147 = vld [vmem:[%s7145 + $0x8] sm:$0xff]
    %v7148 = vld [vmem:[%s7145 + $0x10] sm:$0xff]
    %v7149 = vld [vmem:[%s7145 + $0x18] sm:$0xff]
    %v7150 = vld [vmem:[%s7145 + $0x20] sm:$0xff]
    %v7151 = vld [vmem:[%s7145 + $0x28] sm:$0xff]
    %v7152 = vld [vmem:[%s7145 + $0x30] sm:$0xff]
    %v7153 = vld [vmem:[%s7145 + $0x38] sm:$0xff]
    %s7154 = scalar_lea.vmem %s7, 28
    %v7155 = vld [vmem:[%s7154] sm:$0x1]
    %v7157 = vlaneseq
    %v7158 = vshrl.u32 %v7157, 7
    %v7159 = vsub.s32 0, %v7158
    %v7160 = vrot.slane %v7155, %v7159
    %7162 = vmatprep.subr.mxu0 0.0
    %7163 = vmatpush1.msra.mxu0 %v7146
    %7164 = vmatprep.subr.mxu0 0.0
    %7165 = vmatpush1.msra.mxu0 %v7147
    %7166 = vmatprep.subr.mxu0 0.0
    %7167 = vmatpush1.msra.mxu0 %v7148
    %7168 = vmatprep.subr.mxu0 0.0
    %7169 = vmatpush1.msra.mxu0 %v7149
    %7170 = vmatprep.subr.mxu0 0.0
    %7171 = vmatpush1.msra.mxu0 %v7150
    %7172 = vmatprep.subr.mxu0 0.0
    %7173 = vmatpush1.msra.mxu0 %v7151
    %7174 = vmatprep.subr.mxu0 0.0
    %7175 = vmatpush1.msra.mxu0 %v7152
    %7176 = vmatprep.subr.mxu0 0.0
    %7177 = vmatpush1.msra.mxu0 %v7153
    %7178 = vmatprep.subr.mxu0 0.0
    %7179 = vmatpush1.msra.mxu0 0.0
    %7180 = vmatprep.subr.mxu0 0.0
    %7181 = vmatpush1.msra.mxu0 0.0
    %7182 = vmatprep.subr.mxu0 0.0
    %7183 = vmatpush1.msra.mxu0 0.0
    %7184 = vmatprep.subr.mxu0 0.0
    %7185 = vmatpush1.msra.mxu0 0.0
    %7186 = vmatprep.subr.mxu0 0.0
    %7187 = vmatpush1.msra.mxu0 0.0
    %7188 = vmatprep.subr.mxu0 0.0
    %7189 = vmatpush1.msra.mxu0 0.0
    %7190 = vmatprep.subr.mxu0 0.0
    %7191 = vmatpush1.msra.mxu0 0.0
    %7192 = vmatprep.subr.mxu0 0.0
    %7193 = vmatpush1.msra.mxu0 0.0
    %7194 = vmatprep.subr.mxu0 0.0
    %7195 = vmatpush1.msra.mxu0 0.0
    %7196 = vmatprep.subr.mxu0 0.0
    %7197 = vmatpush1.msra.mxu0 0.0
    %7198 = vmatprep.subr.mxu0 0.0
    %7199 = vmatpush1.msra.mxu0 0.0
    %7200 = vmatprep.subr.mxu0 0.0
    %7201 = vmatpush1.msra.mxu0 0.0
    %7202 = vmatprep.subr.mxu0 0.0
    %7203 = vmatpush1.msra.mxu0 0.0
    %7204 = vmatprep.subr.mxu0 0.0
    %7205 = vmatpush1.msra.mxu0 0.0
    %7206 = vmatprep.subr.mxu0 0.0
    %7207 = vmatpush1.msra.mxu0 0.0
    %7208 = vmatprep.subr.mxu0 0.0
    %7209 = vmatpush1.msra.mxu0 0.0
    %7210 = vmatprep.subr.mxu0 0.0
    %7211 = vmatpush1.msra.mxu0 0.0
    %7212 = vmatprep.subr.mxu0 0.0
    %7213 = vmatpush1.msra.mxu0 0.0
    %7214 = vmatprep.subr.mxu0 0.0
    %7215 = vmatpush1.msra.mxu0 0.0
    %7216 = vmatprep.subr.mxu0 0.0
    %7217 = vmatpush1.msra.mxu0 0.0
    %7218 = vmatprep.subr.mxu0 0.0
    %7219 = vmatpush1.msra.mxu0 0.0
    %7220 = vmatprep.subr.mxu0 0.0
    %7221 = vmatpush1.msra.mxu0 0.0
    %7222 = vmatprep.subr.mxu0 0.0
    %7223 = vmatpush1.msra.mxu0 0.0
    %7224 = vmatprep.subr.mxu0 0.0
    %7225 = vmatpush1.msra.mxu0 0.0
    %7226 = vmatprep.mubr.f32.mxu0 0.0
    %7227 = vmatmul.mubr.f32.gmra.mrb[0].mxu0 %v4934
    %v7228 = vpop.f32.mrb[0].mxu0
    %v7229 = vadd.f32 %v7160, %v7228
    %v7230 = vpop.f32.mrb[0].mxu0
    %7231 = vmatprep.mubr.f32.mxu0 0.0
    %7232 = vmatmul.mubr.f32.gmra.mrb[0].mxu0 %v4937
    %v7233 = vpop.f32.mrb[0].mxu0
    %v7234 = vadd.f32 %v7160, %v7233
    %v7235 = vpop.f32.mrb[0].mxu0
    %7236 = vdwg.mxu0
    %s7237 = scalar_lea.vmem %s6, 2304
    %v7238 = vld [vmem:[%s7237] sm:$0xff]
    %v7239 = vld [vmem:[%s7237 + $0x8] sm:$0xff]
    %v7240 = vld [vmem:[%s7237 + $0x10] sm:$0xff]
    %v7241 = vld [vmem:[%s7237 + $0x18] sm:$0xff]
    %v7242 = vld [vmem:[%s7237 + $0x20] sm:$0xff]
    %v7243 = vld [vmem:[%s7237 + $0x28] sm:$0xff]
    %v7244 = vld [vmem:[%s7237 + $0x30] sm:$0xff]
    %v7245 = vld [vmem:[%s7237 + $0x38] sm:$0xff]
    %s7246 = scalar_lea.vmem %s7, 36
    %v7247 = vld [vmem:[%s7246] sm:$0x1]
    %v7249 = vlaneseq
    %v7250 = vshrl.u32 %v7249, 7
    %v7251 = vsub.s32 0, %v7250
    %v7252 = vrot.slane %v7247, %v7251
    %7254 = vmatprep.subr.mxu0 0.0
    %7255 = vmatpush1.msra.mxu0 %v7238
    %7256 = vmatprep.subr.mxu0 0.0
    %7257 = vmatpush1.msra.mxu0 %v7239
    %7258 = vmatprep.subr.mxu0 0.0
    %7259 = vmatpush1.msra.mxu0 %v7240
    %7260 = vmatprep.subr.mxu0 0.0
    %7261 = vmatpush1.msra.mxu0 %v7241
    %7262 = vmatprep.subr.mxu0 0.0
    %7263 = vmatpush1.msra.mxu0 %v7242
    %7264 = vmatprep.subr.mxu0 0.0
    %7265 = vmatpush1.msra.mxu0 %v7243
    %7266 = vmatprep.subr.mxu0 0.0
    %7267 = vmatpush1.msra.mxu0 %v7244
    %7268 = vmatprep.subr.mxu0 0.0
    %7269 = vmatpush1.msra.mxu0 %v7245
    %7270 = vmatprep.subr.mxu0 0.0
    %7271 = vmatpush1.msra.mxu0 0.0
    %7272 = vmatprep.subr.mxu0 0.0
    %7273 = vmatpush1.msra.mxu0 0.0
    %7274 = vmatprep.subr.mxu0 0.0
    %7275 = vmatpush1.msra.mxu0 0.0
    %7276 = vmatprep.subr.mxu0 0.0
    %7277 = vmatpush1.msra.mxu0 0.0
    %7278 = vmatprep.subr.mxu0 0.0
    %7279 = vmatpush1.msra.mxu0 0.0
    %7280 = vmatprep.subr.mxu0 0.0
    %7281 = vmatpush1.msra.mxu0 0.0
    %7282 = vmatprep.subr.mxu0 0.0
    %7283 = vmatpush1.msra.mxu0 0.0
    %7284 = vmatprep.subr.mxu0 0.0
    %7285 = vmatpush1.msra.mxu0 0.0
    %7286 = vmatprep.subr.mxu0 0.0
    %7287 = vmatpush1.msra.mxu0 0.0
    %7288 = vmatprep.subr.mxu0 0.0
    %7289 = vmatpush1.msra.mxu0 0.0
    %7290 = vmatprep.subr.mxu0 0.0
    %7291 = vmatpush1.msra.mxu0 0.0
    %7292 = vmatprep.subr.mxu0 0.0
    %7293 = vmatpush1.msra.mxu0 0.0
    %7294 = vmatprep.subr.mxu0 0.0
    %7295 = vmatpush1.msra.mxu0 0.0
    %7296 = vmatprep.subr.mxu0 0.0
    %7297 = vmatpush1.msra.mxu0 0.0
    %7298 = vmatprep.subr.mxu0 0.0
    %7299 = vmatpush1.msra.mxu0 0.0
    %7300 = vmatprep.subr.mxu0 0.0
    %7301 = vmatpush1.msra.mxu0 0.0
    %7302 = vmatprep.subr.mxu0 0.0
    %7303 = vmatpush1.msra.mxu0 0.0
    %7304 = vmatprep.subr.mxu0 0.0
    %7305 = vmatpush1.msra.mxu0 0.0
    %7306 = vmatprep.subr.mxu0 0.0
    %7307 = vmatpush1.msra.mxu0 0.0
    %7308 = vmatprep.subr.mxu0 0.0
    %7309 = vmatpush1.msra.mxu0 0.0
    %7310 = vmatprep.subr.mxu0 0.0
    %7311 = vmatpush1.msra.mxu0 0.0
    %7312 = vmatprep.subr.mxu0 0.0
    %7313 = vmatpush1.msra.mxu0 0.0
    %7314 = vmatprep.subr.mxu0 0.0
    %7315 = vmatpush1.msra.mxu0 0.0
    %7316 = vmatprep.subr.mxu0 0.0
    %7317 = vmatpush1.msra.mxu0 0.0
    %7318 = vmatprep.mubr.f32.mxu0 0.0
    %7319 = vmatmul.mubr.f32.gmra.mrb[0].mxu0 %v5032
    %v7320 = vpop.f32.mrb[0].mxu0
    %v7321 = vadd.f32 %v7252, %v7320
    %v7322 = vpop.f32.mrb[0].mxu0
    %7323 = vmatprep.mubr.f32.mxu0 0.0
    %7324 = vmatmul.mubr.f32.gmra.mrb[0].mxu0 %v5035
    %v7325 = vpop.f32.mrb[0].mxu0
    %v7326 = vadd.f32 %v7252, %v7325
    %v7327 = vpop.f32.mrb[0].mxu0
    %7328 = vdwg.mxu0
    %s7329 = scalar_lea.vmem %s6, 2816
    %v7330 = vld [vmem:[%s7329] sm:$0xff]
    %v7331 = vld [vmem:[%s7329 + $0x8] sm:$0xff]
    %v7332 = vld [vmem:[%s7329 + $0x10] sm:$0xff]
    %v7333 = vld [vmem:[%s7329 + $0x18] sm:$0xff]
    %v7334 = vld [vmem:[%s7329 + $0x20] sm:$0xff]
    %v7335 = vld [vmem:[%s7329 + $0x28] sm:$0xff]
    %v7336 = vld [vmem:[%s7329 + $0x30] sm:$0xff]
    %v7337 = vld [vmem:[%s7329 + $0x38] sm:$0xff]
    %s7338 = scalar_lea.vmem %s7, 44
    %v7339 = vld [vmem:[%s7338] sm:$0x1]
    %v7341 = vlaneseq
    %v7342 = vshrl.u32 %v7341, 7
    %v7343 = vsub.s32 0, %v7342
    %v7344 = vrot.slane %v7339, %v7343
    %7346 = vmatprep.subr.mxu0 0.0
    %7347 = vmatpush1.msra.mxu0 %v7330
    %7348 = vmatprep.subr.mxu0 0.0
    %7349 = vmatpush1.msra.mxu0 %v7331
    %7350 = vmatprep.subr.mxu0 0.0
    %7351 = vmatpush1.msra.mxu0 %v7332
    %7352 = vmatprep.subr.mxu0 0.0
    %7353 = vmatpush1.msra.mxu0 %v7333
    %7354 = vmatprep.subr.mxu0 0.0
    %7355 = vmatpush1.msra.mxu0 %v7334
    %7356 = vmatprep.subr.mxu0 0.0
    %7357 = vmatpush1.msra.mxu0 %v7335
    %7358 = vmatprep.subr.mxu0 0.0
    %7359 = vmatpush1.msra.mxu0 %v7336
    %7360 = vmatprep.subr.mxu0 0.0
    %7361 = vmatpush1.msra.mxu0 %v7337
    %7362 = vmatprep.subr.mxu0 0.0
    %7363 = vmatpush1.msra.mxu0 0.0
    %7364 = vmatprep.subr.mxu0 0.0
    %7365 = vmatpush1.msra.mxu0 0.0
    %7366 = vmatprep.subr.mxu0 0.0
    %7367 = vmatpush1.msra.mxu0 0.0
    %7368 = vmatprep.subr.mxu0 0.0
    %7369 = vmatpush1.msra.mxu0 0.0
    %7370 = vmatprep.subr.mxu0 0.0
    %7371 = vmatpush1.msra.mxu0 0.0
    %7372 = vmatprep.subr.mxu0 0.0
    %7373 = vmatpush1.msra.mxu0 0.0
    %7374 = vmatprep.subr.mxu0 0.0
    %7375 = vmatpush1.msra.mxu0 0.0
    %7376 = vmatprep.subr.mxu0 0.0
    %7377 = vmatpush1.msra.mxu0 0.0
    %7378 = vmatprep.subr.mxu0 0.0
    %7379 = vmatpush1.msra.mxu0 0.0
    %7380 = vmatprep.subr.mxu0 0.0
    %7381 = vmatpush1.msra.mxu0 0.0
    %7382 = vmatprep.subr.mxu0 0.0
    %7383 = vmatpush1.msra.mxu0 0.0
    %7384 = vmatprep.subr.mxu0 0.0
    %7385 = vmatpush1.msra.mxu0 0.0
    %7386 = vmatprep.subr.mxu0 0.0
    %7387 = vmatpush1.msra.mxu0 0.0
    %7388 = vmatprep.subr.mxu0 0.0
    %7389 = vmatpush1.msra.mxu0 0.0
    %7390 = vmatprep.subr.mxu0 0.0
    %7391 = vmatpush1.msra.mxu0 0.0
    %7392 = vmatprep.subr.mxu0 0.0
    %7393 = vmatpush1.msra.mxu0 0.0
    %7394 = vmatprep.subr.mxu0 0.0
    %7395 = vmatpush1.msra.mxu0 0.0
    %7396 = vmatprep.subr.mxu0 0.0
    %7397 = vmatpush1.msra.mxu0 0.0
    %7398 = vmatprep.subr.mxu0 0.0
    %7399 = vmatpush1.msra.mxu0 0.0
    %7400 = vmatprep.subr.mxu0 0.0
    %7401 = vmatpush1.msra.mxu0 0.0
    %7402 = vmatprep.subr.mxu0 0.0
    %7403 = vmatpush1.msra.mxu0 0.0
    %7404 = vmatprep.subr.mxu0 0.0
    %7405 = vmatpush1.msra.mxu0 0.0
    %7406 = vmatprep.subr.mxu0 0.0
    %7407 = vmatpush1.msra.mxu0 0.0
    %7408 = vmatprep.subr.mxu0 0.0
    %7409 = vmatpush1.msra.mxu0 0.0
    %7410 = vmatprep.mubr.f32.mxu0 0.0
    %7411 = vmatmul.mubr.f32.gmra.mrb[0].mxu0 %v4934
    %v7412 = vpop.f32.mrb[0].mxu0
    %v7413 = vadd.f32 %v7344, %v7412
    %v7414 = vpop.f32.mrb[0].mxu0
    %7415 = vmatprep.mubr.f32.mxu0 0.0
    %7416 = vmatmul.mubr.f32.gmra.mrb[0].mxu0 %v4937
    %v7417 = vpop.f32.mrb[0].mxu0
    %v7418 = vadd.f32 %v7344, %v7417
    %v7419 = vpop.f32.mrb[0].mxu0
    %7420 = vdwg.mxu0
    %v7422 = vsel %vm516, %v7229, 0
    %v7425 = vsel %vm516, %v7234, 0
    %v7428 = vsel %vm516, %v7321, 0
    %v7431 = vsel %vm516, %v7326, 0
    %7433 = vmatprep.subr.mxu0 0.0
    %7434 = vmatpush1.xpose.msra.mxu0 %v7428
    %7435 = vmatprep.subr.mxu0 0.0
    %7436 = vmatpush1.xpose.msra.mxu0 %v7431
    %7437 = vmatprep.subr.mxu0 0.0
    %7438 = vmatpush1.xpose.msra.mxu0 0.0
    %7439 = vmatprep.subr.mxu0 0.0
    %7440 = vmatpush1.xpose.msra.mxu0 0.0
    %7441 = vmatprep.subr.mxu0 0.0
    %7442 = vmatpush1.xpose.msra.mxu0 0.0
    %7443 = vmatprep.subr.mxu0 0.0
    %7444 = vmatpush1.xpose.msra.mxu0 0.0
    %7445 = vmatprep.subr.mxu0 0.0
    %7446 = vmatpush1.xpose.msra.mxu0 0.0
    %7447 = vmatprep.subr.mxu0 0.0
    %7448 = vmatpush1.xpose.msra.mxu0 0.0
    %7449 = vmatprep.subr.mxu0 0.0
    %7450 = vmatpush1.xpose.msra.mxu0 0.0
    %7451 = vmatprep.subr.mxu0 0.0
    %7452 = vmatpush1.xpose.msra.mxu0 0.0
    %7453 = vmatprep.subr.mxu0 0.0
    %7454 = vmatpush1.xpose.msra.mxu0 0.0
    %7455 = vmatprep.subr.mxu0 0.0
    %7456 = vmatpush1.xpose.msra.mxu0 0.0
    %7457 = vmatprep.subr.mxu0 0.0
    %7458 = vmatpush1.xpose.msra.mxu0 0.0
    %7459 = vmatprep.subr.mxu0 0.0
    %7460 = vmatpush1.xpose.msra.mxu0 0.0
    %7461 = vmatprep.subr.mxu0 0.0
    %7462 = vmatpush1.xpose.msra.mxu0 0.0
    %7463 = vmatprep.subr.mxu0 0.0
    %7464 = vmatpush1.xpose.msra.mxu0 0.0
    %7465 = vmatprep.subr.mxu0 0.0
    %7466 = vmatpush1.xpose.msra.mxu0 0.0
    %7467 = vmatprep.subr.mxu0 0.0
    %7468 = vmatpush1.xpose.msra.mxu0 0.0
    %7469 = vmatprep.subr.mxu0 0.0
    %7470 = vmatpush1.xpose.msra.mxu0 0.0
    %7471 = vmatprep.subr.mxu0 0.0
    %7472 = vmatpush1.xpose.msra.mxu0 0.0
    %7473 = vmatprep.subr.mxu0 0.0
    %7474 = vmatpush1.xpose.msra.mxu0 0.0
    %7475 = vmatprep.subr.mxu0 0.0
    %7476 = vmatpush1.xpose.msra.mxu0 0.0
    %7477 = vmatprep.subr.mxu0 0.0
    %7478 = vmatpush1.xpose.msra.mxu0 0.0
    %7479 = vmatprep.subr.mxu0 0.0
    %7480 = vmatpush1.xpose.msra.mxu0 0.0
    %7481 = vmatprep.subr.mxu0 0.0
    %7482 = vmatpush1.xpose.msra.mxu0 0.0
    %7483 = vmatprep.subr.mxu0 0.0
    %7484 = vmatpush1.xpose.msra.mxu0 0.0
    %7485 = vmatprep.subr.mxu0 0.0
    %7486 = vmatpush1.xpose.msra.mxu0 0.0
    %7487 = vmatprep.subr.mxu0 0.0
    %7488 = vmatpush1.xpose.msra.mxu0 0.0
    %7489 = vmatprep.subr.mxu0 0.0
    %7490 = vmatpush1.xpose.msra.mxu0 0.0
    %7491 = vmatprep.subr.mxu0 0.0
    %7492 = vmatpush1.xpose.msra.mxu0 0.0
    %7493 = vmatprep.subr.mxu0 0.0
    %7494 = vmatpush1.xpose.msra.mxu0 0.0
    %7495 = vmatprep.subr.mxu0 0.0
    %7496 = vmatpush1.xpose.msra.mxu0 0.0
    %7497 = vmatprep.mubr.f32.mxu0 0.0
    %7498 = vmatmul.mubr.f32.gmra.mrb[0].mxu0 %v7422
    %v7499 = vpop.f32.mrb[0].mxu0
    %v7500 = vadd.f32 0.0, %v7499
    %v7501 = vpop.f32.mrb[0].mxu0
    %7502 = vmatprep.mubr.f32.mxu0 0.0
    %7503 = vmatmul.mubr.f32.gmra.mrb[0].mxu0 %v7425
    %v7504 = vpop.f32.mrb[0].mxu0
    %v7505 = vadd.f32 0.0, %v7504
    %v7506 = vpop.f32.mrb[0].mxu0
    %7507 = vdwg.mxu0
    %v7508 = vmul.f32 %v7500, 0.35355338
    %v7509 = vmul.f32 %v7505, 0.35355338
    %v7510 = vadd.f32 %v7508, %v4914
    %v7511 = vadd.f32 %v7509, %v4915
    %v7512 = vsel %vm5295, %v7510, -inf
    %7513 = vmax.xlane.f32.xlu0 %v7512
    %v7514 = vpop.xlane.xlu0 %7513
    %v7515 = vsel %vm5295, %v7511, -inf
    %7516 = vmax.xlane.f32.xlu0 %v7515
    %v7517 = vpop.xlane.xlu0 %7516
    %v7518 = vsub.f32 %v7510, %v7514
    %v7519 = vsub.f32 %v7511, %v7517
    %v7520 = vmul.f32 %v7518, 1.442695
    %v7521 = vpow.pop %v7520
    %v7522 = vmul.f32 %v7519, 1.442695
    %v7523 = vpow.pop %v7522
    %v7524 = vsel %vm5295, %v7521, 0.0
    %7525 = vadd.xlane.f32.xlu0 %v7524
    %v7526 = vpop.xlane.xlu0 %7525
    %v7527 = vsel %vm5295, %v7523, 0.0
    %7528 = vadd.xlane.f32.xlu0 %v7527
    %v7529 = vpop.xlane.xlu0 %7528
    %v7530 = vrcp.pop %v7526
    %v7531 = vrcp.pop %v7529
    %v7532 = vmul.f32 %v7521, %v7530
    %v7533 = vmul.f32 %v7523, %v7531
    %v7535 = vsel %vm5295, %v7532, 0
    %v7538 = vsel %vm5295, %v7533, 0
    %7540 = vmatprep.subr.mxu0 0.0
    %7541 = vmatpush1.msra.mxu0 %v7413
    %7542 = vmatprep.subr.mxu0 0.0
    %7543 = vmatpush1.msra.mxu0 %v7418
    %7544 = vmatprep.subr.mxu0 0.0
    %7545 = vmatpush1.msra.mxu0 0.0
    %7546 = vmatprep.subr.mxu0 0.0
    %7547 = vmatpush1.msra.mxu0 0.0
    %7548 = vmatprep.subr.mxu0 0.0
    %7549 = vmatpush1.msra.mxu0 0.0
    %7550 = vmatprep.subr.mxu0 0.0
    %7551 = vmatpush1.msra.mxu0 0.0
    %7552 = vmatprep.subr.mxu0 0.0
    %7553 = vmatpush1.msra.mxu0 0.0
    %7554 = vmatprep.subr.mxu0 0.0
    %7555 = vmatpush1.msra.mxu0 0.0
    %7556 = vmatprep.subr.mxu0 0.0
    %7557 = vmatpush1.msra.mxu0 0.0
    %7558 = vmatprep.subr.mxu0 0.0
    %7559 = vmatpush1.msra.mxu0 0.0
    %7560 = vmatprep.subr.mxu0 0.0
    %7561 = vmatpush1.msra.mxu0 0.0
    %7562 = vmatprep.subr.mxu0 0.0
    %7563 = vmatpush1.msra.mxu0 0.0
    %7564 = vmatprep.subr.mxu0 0.0
    %7565 = vmatpush1.msra.mxu0 0.0
    %7566 = vmatprep.subr.mxu0 0.0
    %7567 = vmatpush1.msra.mxu0 0.0
    %7568 = vmatprep.subr.mxu0 0.0
    %7569 = vmatpush1.msra.mxu0 0.0
    %7570 = vmatprep.subr.mxu0 0.0
    %7571 = vmatpush1.msra.mxu0 0.0
    %7572 = vmatprep.subr.mxu0 0.0
    %7573 = vmatpush1.msra.mxu0 0.0
    %7574 = vmatprep.subr.mxu0 0.0
    %7575 = vmatpush1.msra.mxu0 0.0
    %7576 = vmatprep.subr.mxu0 0.0
    %7577 = vmatpush1.msra.mxu0 0.0
    %7578 = vmatprep.subr.mxu0 0.0
    %7579 = vmatpush1.msra.mxu0 0.0
    %7580 = vmatprep.subr.mxu0 0.0
    %7581 = vmatpush1.msra.mxu0 0.0
    %7582 = vmatprep.subr.mxu0 0.0
    %7583 = vmatpush1.msra.mxu0 0.0
    %7584 = vmatprep.subr.mxu0 0.0
    %7585 = vmatpush1.msra.mxu0 0.0
    %7586 = vmatprep.subr.mxu0 0.0
    %7587 = vmatpush1.msra.mxu0 0.0
    %7588 = vmatprep.subr.mxu0 0.0
    %7589 = vmatpush1.msra.mxu0 0.0
    %7590 = vmatprep.subr.mxu0 0.0
    %7591 = vmatpush1.msra.mxu0 0.0
    %7592 = vmatprep.subr.mxu0 0.0
    %7593 = vmatpush1.msra.mxu0 0.0
    %7594 = vmatprep.subr.mxu0 0.0
    %7595 = vmatpush1.msra.mxu0 0.0
    %7596 = vmatprep.subr.mxu0 0.0
    %7597 = vmatpush1.msra.mxu0 0.0
    %7598 = vmatprep.subr.mxu0 0.0
    %7599 = vmatpush1.msra.mxu0 0.0
    %7600 = vmatprep.subr.mxu0 0.0
    %7601 = vmatpush1.msra.mxu0 0.0
    %7602 = vmatprep.subr.mxu0 0.0
    %7603 = vmatpush1.msra.mxu0 0.0
    %7604 = vmatprep.mubr.f32.mxu0 0.0
    %7605 = vmatmul.mubr.f32.gmra.mrb[0].mxu0 %v7535
    %v7606 = vpop.f32.mrb[0].mxu0
    %v7607 = vadd.f32 0.0, %v7606
    %v7608 = vpop.f32.mrb[0].mxu0
    %7609 = vmatprep.mubr.f32.mxu0 0.0
    %7610 = vmatmul.mubr.f32.gmra.mrb[0].mxu0 %v7538
    %v7611 = vpop.f32.mrb[0].mxu0
    %v7612 = vadd.f32 0.0, %v7611
    %v7613 = vpop.f32.mrb[0].mxu0
    %7614 = vdwg.mxu0
    %s7615 = scalar_lea.vmem %s8, 96
    %v7616 = vld [vmem:[%s7615] sm:$0xff]
    %v7618 = vsel %vm516, %v7607, 0
    %v7621 = vsel %vm516, %v7612, 0
    %7623 = vmatprep.subr.mxu0 0.0
    %7624 = vmatpush1.msra.mxu0 %v7616
    %7625 = vmatprep.subr.mxu0 0.0
    %7626 = vmatpush1.msra.mxu0 0.0
    %7627 = vmatprep.subr.mxu0 0.0
    %7628 = vmatpush1.msra.mxu0 0.0
    %7629 = vmatprep.subr.mxu0 0.0
    %7630 = vmatpush1.msra.mxu0 0.0
    %7631 = vmatprep.subr.mxu0 0.0
    %7632 = vmatpush1.msra.mxu0 0.0
    %7633 = vmatprep.subr.mxu0 0.0
    %7634 = vmatpush1.msra.mxu0 0.0
    %7635 = vmatprep.subr.mxu0 0.0
    %7636 = vmatpush1.msra.mxu0 0.0
    %7637 = vmatprep.subr.mxu0 0.0
    %7638 = vmatpush1.msra.mxu0 0.0
    %7639 = vmatprep.subr.mxu0 0.0
    %7640 = vmatpush1.msra.mxu0 0.0
    %7641 = vmatprep.subr.mxu0 0.0
    %7642 = vmatpush1.msra.mxu0 0.0
    %7643 = vmatprep.subr.mxu0 0.0
    %7644 = vmatpush1.msra.mxu0 0.0
    %7645 = vmatprep.subr.mxu0 0.0
    %7646 = vmatpush1.msra.mxu0 0.0
    %7647 = vmatprep.subr.mxu0 0.0
    %7648 = vmatpush1.msra.mxu0 0.0
    %7649 = vmatprep.subr.mxu0 0.0
    %7650 = vmatpush1.msra.mxu0 0.0
    %7651 = vmatprep.subr.mxu0 0.0
    %7652 = vmatpush1.msra.mxu0 0.0
    %7653 = vmatprep.subr.mxu0 0.0
    %7654 = vmatpush1.msra.mxu0 0.0
    %7655 = vmatprep.subr.mxu0 0.0
    %7656 = vmatpush1.msra.mxu0 0.0
    %7657 = vmatprep.subr.mxu0 0.0
    %7658 = vmatpush1.msra.mxu0 0.0
    %7659 = vmatprep.subr.mxu0 0.0
    %7660 = vmatpush1.msra.mxu0 0.0
    %7661 = vmatprep.subr.mxu0 0.0
    %7662 = vmatpush1.msra.mxu0 0.0
    %7663 = vmatprep.subr.mxu0 0.0
    %7664 = vmatpush1.msra.mxu0 0.0
    %7665 = vmatprep.subr.mxu0 0.0
    %7666 = vmatpush1.msra.mxu0 0.0
    %7667 = vmatprep.subr.mxu0 0.0
    %7668 = vmatpush1.msra.mxu0 0.0
    %7669 = vmatprep.subr.mxu0 0.0
    %7670 = vmatpush1.msra.mxu0 0.0
    %7671 = vmatprep.subr.mxu0 0.0
    %7672 = vmatpush1.msra.mxu0 0.0
    %7673 = vmatprep.subr.mxu0 0.0
    %7674 = vmatpush1.msra.mxu0 0.0
    %7675 = vmatprep.subr.mxu0 0.0
    %7676 = vmatpush1.msra.mxu0 0.0
    %7677 = vmatprep.subr.mxu0 0.0
    %7678 = vmatpush1.msra.mxu0 0.0
    %7679 = vmatprep.subr.mxu0 0.0
    %7680 = vmatpush1.msra.mxu0 0.0
    %7681 = vmatprep.subr.mxu0 0.0
    %7682 = vmatpush1.msra.mxu0 0.0
    %7683 = vmatprep.subr.mxu0 0.0
    %7684 = vmatpush1.msra.mxu0 0.0
    %7685 = vmatprep.subr.mxu0 0.0
    %7686 = vmatpush1.msra.mxu0 0.0
    %7687 = vmatprep.mubr.f32.mxu0 0.0
    %7688 = vmatmul.mubr.f32.gmra.mrb[0].mxu0 %v7618
    %v7689 = vpop.f32.mrb[0].mxu0
    %v7690 = vadd.f32 0.0, %v7689
    %v7691 = vpop.f32.mrb[0].mxu0
    %7692 = vmatprep.mubr.f32.mxu0 0.0
    %7693 = vmatmul.mubr.f32.gmra.mrb[0].mxu0 %v7621
    %v7694 = vpop.f32.mrb[0].mxu0
    %v7695 = vadd.f32 0.0, %v7694
    %v7696 = vpop.f32.mrb[0].mxu0
    %7697 = vdwg.mxu0
    %v7698 = vadd.f32 %v7143, %v7690
    %v7699 = vadd.f32 %v7144, %v7695
    %s7700 = scalar_lea.vmem %s6, 1856
    %v7701 = vld [vmem:[%s7700] sm:$0xff]
    %v7702 = vld [vmem:[%s7700 + $0x8] sm:$0xff]
    %v7703 = vld [vmem:[%s7700 + $0x10] sm:$0xff]
    %v7704 = vld [vmem:[%s7700 + $0x18] sm:$0xff]
    %v7705 = vld [vmem:[%s7700 + $0x20] sm:$0xff]
    %v7706 = vld [vmem:[%s7700 + $0x28] sm:$0xff]
    %v7707 = vld [vmem:[%s7700 + $0x30] sm:$0xff]
    %v7708 = vld [vmem:[%s7700 + $0x38] sm:$0xff]
    %s7709 = scalar_lea.vmem %s7, 29
    %v7710 = vld [vmem:[%s7709] sm:$0x1]
    %v7712 = vlaneseq
    %v7713 = vshrl.u32 %v7712, 7
    %v7714 = vsub.s32 0, %v7713
    %v7715 = vrot.slane %v7710, %v7714
    %7717 = vmatprep.subr.mxu0 0.0
    %7718 = vmatpush1.msra.mxu0 %v7701
    %7719 = vmatprep.subr.mxu0 0.0
    %7720 = vmatpush1.msra.mxu0 %v7702
    %7721 = vmatprep.subr.mxu0 0.0
    %7722 = vmatpush1.msra.mxu0 %v7703
    %7723 = vmatprep.subr.mxu0 0.0
    %7724 = vmatpush1.msra.mxu0 %v7704
    %7725 = vmatprep.subr.mxu0 0.0
    %7726 = vmatpush1.msra.mxu0 %v7705
    %7727 = vmatprep.subr.mxu0 0.0
    %7728 = vmatpush1.msra.mxu0 %v7706
    %7729 = vmatprep.subr.mxu0 0.0
    %7730 = vmatpush1.msra.mxu0 %v7707
    %7731 = vmatprep.subr.mxu0 0.0
    %7732 = vmatpush1.msra.mxu0 %v7708
    %7733 = vmatprep.subr.mxu0 0.0
    %7734 = vmatpush1.msra.mxu0 0.0
    %7735 = vmatprep.subr.mxu0 0.0
    %7736 = vmatpush1.msra.mxu0 0.0
    %7737 = vmatprep.subr.mxu0 0.0
    %7738 = vmatpush1.msra.mxu0 0.0
    %7739 = vmatprep.subr.mxu0 0.0
    %7740 = vmatpush1.msra.mxu0 0.0
    %7741 = vmatprep.subr.mxu0 0.0
    %7742 = vmatpush1.msra.mxu0 0.0
    %7743 = vmatprep.subr.mxu0 0.0
    %7744 = vmatpush1.msra.mxu0 0.0
    %7745 = vmatprep.subr.mxu0 0.0
    %7746 = vmatpush1.msra.mxu0 0.0
    %7747 = vmatprep.subr.mxu0 0.0
    %7748 = vmatpush1.msra.mxu0 0.0
    %7749 = vmatprep.subr.mxu0 0.0
    %7750 = vmatpush1.msra.mxu0 0.0
    %7751 = vmatprep.subr.mxu0 0.0
    %7752 = vmatpush1.msra.mxu0 0.0
    %7753 = vmatprep.subr.mxu0 0.0
    %7754 = vmatpush1.msra.mxu0 0.0
    %7755 = vmatprep.subr.mxu0 0.0
    %7756 = vmatpush1.msra.mxu0 0.0
    %7757 = vmatprep.subr.mxu0 0.0
    %7758 = vmatpush1.msra.mxu0 0.0
    %7759 = vmatprep.subr.mxu0 0.0
    %7760 = vmatpush1.msra.mxu0 0.0
    %7761 = vmatprep.subr.mxu0 0.0
    %7762 = vmatpush1.msra.mxu0 0.0
    %7763 = vmatprep.subr.mxu0 0.0
    %7764 = vmatpush1.msra.mxu0 0.0
    %7765 = vmatprep.subr.mxu0 0.0
    %7766 = vmatpush1.msra.mxu0 0.0
    %7767 = vmatprep.subr.mxu0 0.0
    %7768 = vmatpush1.msra.mxu0 0.0
    %7769 = vmatprep.subr.mxu0 0.0
    %7770 = vmatpush1.msra.mxu0 0.0
    %7771 = vmatprep.subr.mxu0 0.0
    %7772 = vmatpush1.msra.mxu0 0.0
    %7773 = vmatprep.subr.mxu0 0.0
    %7774 = vmatpush1.msra.mxu0 0.0
    %7775 = vmatprep.subr.mxu0 0.0
    %7776 = vmatpush1.msra.mxu0 0.0
    %7777 = vmatprep.subr.mxu0 0.0
    %7778 = vmatpush1.msra.mxu0 0.0
    %7779 = vmatprep.subr.mxu0 0.0
    %7780 = vmatpush1.msra.mxu0 0.0
    %7781 = vmatprep.mubr.f32.mxu0 0.0
    %7782 = vmatmul.mubr.f32.gmra.mrb[0].mxu0 %v4934
    %v7783 = vpop.f32.mrb[0].mxu0
    %v7784 = vadd.f32 %v7715, %v7783
    %v7785 = vpop.f32.mrb[0].mxu0
    %7786 = vmatprep.mubr.f32.mxu0 0.0
    %7787 = vmatmul.mubr.f32.gmra.mrb[0].mxu0 %v4937
    %v7788 = vpop.f32.mrb[0].mxu0
    %v7789 = vadd.f32 %v7715, %v7788
    %v7790 = vpop.f32.mrb[0].mxu0
    %7791 = vdwg.mxu0
    %s7792 = scalar_lea.vmem %s6, 2368
    %v7793 = vld [vmem:[%s7792] sm:$0xff]
    %v7794 = vld [vmem:[%s7792 + $0x8] sm:$0xff]
    %v7795 = vld [vmem:[%s7792 + $0x10] sm:$0xff]
    %v7796 = vld [vmem:[%s7792 + $0x18] sm:$0xff]
    %v7797 = vld [vmem:[%s7792 + $0x20] sm:$0xff]
    %v7798 = vld [vmem:[%s7792 + $0x28] sm:$0xff]
    %v7799 = vld [vmem:[%s7792 + $0x30] sm:$0xff]
    %v7800 = vld [vmem:[%s7792 + $0x38] sm:$0xff]
    %s7801 = scalar_lea.vmem %s7, 37
    %v7802 = vld [vmem:[%s7801] sm:$0x1]
    %v7804 = vlaneseq
    %v7805 = vshrl.u32 %v7804, 7
    %v7806 = vsub.s32 0, %v7805
    %v7807 = vrot.slane %v7802, %v7806
    %7809 = vmatprep.subr.mxu0 0.0
    %7810 = vmatpush1.msra.mxu0 %v7793
    %7811 = vmatprep.subr.mxu0 0.0
    %7812 = vmatpush1.msra.mxu0 %v7794
    %7813 = vmatprep.subr.mxu0 0.0
    %7814 = vmatpush1.msra.mxu0 %v7795
    %7815 = vmatprep.subr.mxu0 0.0
    %7816 = vmatpush1.msra.mxu0 %v7796
    %7817 = vmatprep.subr.mxu0 0.0
    %7818 = vmatpush1.msra.mxu0 %v7797
    %7819 = vmatprep.subr.mxu0 0.0
    %7820 = vmatpush1.msra.mxu0 %v7798
    %7821 = vmatprep.subr.mxu0 0.0
    %7822 = vmatpush1.msra.mxu0 %v7799
    %7823 = vmatprep.subr.mxu0 0.0
    %7824 = vmatpush1.msra.mxu0 %v7800
    %7825 = vmatprep.subr.mxu0 0.0
    %7826 = vmatpush1.msra.mxu0 0.0
    %7827 = vmatprep.subr.mxu0 0.0
    %7828 = vmatpush1.msra.mxu0 0.0
    %7829 = vmatprep.subr.mxu0 0.0
    %7830 = vmatpush1.msra.mxu0 0.0
    %7831 = vmatprep.subr.mxu0 0.0
    %7832 = vmatpush1.msra.mxu0 0.0
    %7833 = vmatprep.subr.mxu0 0.0
    %7834 = vmatpush1.msra.mxu0 0.0
    %7835 = vmatprep.subr.mxu0 0.0
    %7836 = vmatpush1.msra.mxu0 0.0
    %7837 = vmatprep.subr.mxu0 0.0
    %7838 = vmatpush1.msra.mxu0 0.0
    %7839 = vmatprep.subr.mxu0 0.0
    %7840 = vmatpush1.msra.mxu0 0.0
    %7841 = vmatprep.subr.mxu0 0.0
    %7842 = vmatpush1.msra.mxu0 0.0
    %7843 = vmatprep.subr.mxu0 0.0
    %7844 = vmatpush1.msra.mxu0 0.0
    %7845 = vmatprep.subr.mxu0 0.0
    %7846 = vmatpush1.msra.mxu0 0.0
    %7847 = vmatprep.subr.mxu0 0.0
    %7848 = vmatpush1.msra.mxu0 0.0
    %7849 = vmatprep.subr.mxu0 0.0
    %7850 = vmatpush1.msra.mxu0 0.0
    %7851 = vmatprep.subr.mxu0 0.0
    %7852 = vmatpush1.msra.mxu0 0.0
    %7853 = vmatprep.subr.mxu0 0.0
    %7854 = vmatpush1.msra.mxu0 0.0
    %7855 = vmatprep.subr.mxu0 0.0
    %7856 = vmatpush1.msra.mxu0 0.0
    %7857 = vmatprep.subr.mxu0 0.0
    %7858 = vmatpush1.msra.mxu0 0.0
    %7859 = vmatprep.subr.mxu0 0.0
    %7860 = vmatpush1.msra.mxu0 0.0
    %7861 = vmatprep.subr.mxu0 0.0
    %7862 = vmatpush1.msra.mxu0 0.0
    %7863 = vmatprep.subr.mxu0 0.0
    %7864 = vmatpush1.msra.mxu0 0.0
    %7865 = vmatprep.subr.mxu0 0.0
    %7866 = vmatpush1.msra.mxu0 0.0
    %7867 = vmatprep.subr.mxu0 0.0
    %7868 = vmatpush1.msra.mxu0 0.0
    %7869 = vmatprep.subr.mxu0 0.0
    %7870 = vmatpush1.msra.mxu0 0.0
    %7871 = vmatprep.subr.mxu0 0.0
    %7872 = vmatpush1.msra.mxu0 0.0
    %7873 = vmatprep.mubr.f32.mxu0 0.0
    %7874 = vmatmul.mubr.f32.gmra.mrb[0].mxu0 %v5032
    %v7875 = vpop.f32.mrb[0].mxu0
    %v7876 = vadd.f32 %v7807, %v7875
    %v7877 = vpop.f32.mrb[0].mxu0
    %7878 = vmatprep.mubr.f32.mxu0 0.0
    %7879 = vmatmul.mubr.f32.gmra.mrb[0].mxu0 %v5035
    %v7880 = vpop.f32.mrb[0].mxu0
    %v7881 = vadd.f32 %v7807, %v7880
    %v7882 = vpop.f32.mrb[0].mxu0
    %7883 = vdwg.mxu0
    %s7884 = scalar_lea.vmem %s6, 2880
    %v7885 = vld [vmem:[%s7884] sm:$0xff]
    %v7886 = vld [vmem:[%s7884 + $0x8] sm:$0xff]
    %v7887 = vld [vmem:[%s7884 + $0x10] sm:$0xff]
    %v7888 = vld [vmem:[%s7884 + $0x18] sm:$0xff]
    %v7889 = vld [vmem:[%s7884 + $0x20] sm:$0xff]
    %v7890 = vld [vmem:[%s7884 + $0x28] sm:$0xff]
    %v7891 = vld [vmem:[%s7884 + $0x30] sm:$0xff]
    %v7892 = vld [vmem:[%s7884 + $0x38] sm:$0xff]
    %s7893 = scalar_lea.vmem %s7, 45
    %v7894 = vld [vmem:[%s7893] sm:$0x1]
    %v7896 = vlaneseq
    %v7897 = vshrl.u32 %v7896, 7
    %v7898 = vsub.s32 0, %v7897
    %v7899 = vrot.slane %v7894, %v7898
    %7901 = vmatprep.subr.mxu0 0.0
    %7902 = vmatpush1.msra.mxu0 %v7885
    %7903 = vmatprep.subr.mxu0 0.0
    %7904 = vmatpush1.msra.mxu0 %v7886
    %7905 = vmatprep.subr.mxu0 0.0
    %7906 = vmatpush1.msra.mxu0 %v7887
    %7907 = vmatprep.subr.mxu0 0.0
    %7908 = vmatpush1.msra.mxu0 %v7888
    %7909 = vmatprep.subr.mxu0 0.0
    %7910 = vmatpush1.msra.mxu0 %v7889
    %7911 = vmatprep.subr.mxu0 0.0
    %7912 = vmatpush1.msra.mxu0 %v7890
    %7913 = vmatprep.subr.mxu0 0.0
    %7914 = vmatpush1.msra.mxu0 %v7891
    %7915 = vmatprep.subr.mxu0 0.0
    %7916 = vmatpush1.msra.mxu0 %v7892
    %7917 = vmatprep.subr.mxu0 0.0
    %7918 = vmatpush1.msra.mxu0 0.0
    %7919 = vmatprep.subr.mxu0 0.0
    %7920 = vmatpush1.msra.mxu0 0.0
    %7921 = vmatprep.subr.mxu0 0.0
    %7922 = vmatpush1.msra.mxu0 0.0
    %7923 = vmatprep.subr.mxu0 0.0
    %7924 = vmatpush1.msra.mxu0 0.0
    %7925 = vmatprep.subr.mxu0 0.0
    %7926 = vmatpush1.msra.mxu0 0.0
    %7927 = vmatprep.subr.mxu0 0.0
    %7928 = vmatpush1.msra.mxu0 0.0
    %7929 = vmatprep.subr.mxu0 0.0
    %7930 = vmatpush1.msra.mxu0 0.0
    %7931 = vmatprep.subr.mxu0 0.0
    %7932 = vmatpush1.msra.mxu0 0.0
    %7933 = vmatprep.subr.mxu0 0.0
    %7934 = vmatpush1.msra.mxu0 0.0
    %7935 = vmatprep.subr.mxu0 0.0
    %7936 = vmatpush1.msra.mxu0 0.0
    %7937 = vmatprep.subr.mxu0 0.0
    %7938 = vmatpush1.msra.mxu0 0.0
    %7939 = vmatprep.subr.mxu0 0.0
    %7940 = vmatpush1.msra.mxu0 0.0
    %7941 = vmatprep.subr.mxu0 0.0
    %7942 = vmatpush1.msra.mxu0 0.0
    %7943 = vmatprep.subr.mxu0 0.0
    %7944 = vmatpush1.msra.mxu0 0.0
    %7945 = vmatprep.subr.mxu0 0.0
    %7946 = vmatpush1.msra.mxu0 0.0
    %7947 = vmatprep.subr.mxu0 0.0
    %7948 = vmatpush1.msra.mxu0 0.0
    %7949 = vmatprep.subr.mxu0 0.0
    %7950 = vmatpush1.msra.mxu0 0.0
    %7951 = vmatprep.subr.mxu0 0.0
    %7952 = vmatpush1.msra.mxu0 0.0
    %7953 = vmatprep.subr.mxu0 0.0
    %7954 = vmatpush1.msra.mxu0 0.0
    %7955 = vmatprep.subr.mxu0 0.0
    %7956 = vmatpush1.msra.mxu0 0.0
    %7957 = vmatprep.subr.mxu0 0.0
    %7958 = vmatpush1.msra.mxu0 0.0
    %7959 = vmatprep.subr.mxu0 0.0
    %7960 = vmatpush1.msra.mxu0 0.0
    %7961 = vmatprep.subr.mxu0 0.0
    %7962 = vmatpush1.msra.mxu0 0.0
    %7963 = vmatprep.subr.mxu0 0.0
    %7964 = vmatpush1.msra.mxu0 0.0
    %7965 = vmatprep.mubr.f32.mxu0 0.0
    %7966 = vmatmul.mubr.f32.gmra.mrb[0].mxu0 %v4934
    %v7967 = vpop.f32.mrb[0].mxu0
    %v7968 = vadd.f32 %v7899, %v7967
    %v7969 = vpop.f32.mrb[0].mxu0
    %7970 = vmatprep.mubr.f32.mxu0 0.0
    %7971 = vmatmul.mubr.f32.gmra.mrb[0].mxu0 %v4937
    %v7972 = vpop.f32.mrb[0].mxu0
    %v7973 = vadd.f32 %v7899, %v7972
    %v7974 = vpop.f32.mrb[0].mxu0
    %7975 = vdwg.mxu0
    %v7977 = vsel %vm516, %v7784, 0
    %v7980 = vsel %vm516, %v7789, 0
    %v7983 = vsel %vm516, %v7876, 0
    %v7986 = vsel %vm516, %v7881, 0
    %7988 = vmatprep.subr.mxu0 0.0
    %7989 = vmatpush1.xpose.msra.mxu0 %v7983
    %7990 = vmatprep.subr.mxu0 0.0
    %7991 = vmatpush1.xpose.msra.mxu0 %v7986
    %7992 = vmatprep.subr.mxu0 0.0
    %7993 = vmatpush1.xpose.msra.mxu0 0.0
    %7994 = vmatprep.subr.mxu0 0.0
    %7995 = vmatpush1.xpose.msra.mxu0 0.0
    %7996 = vmatprep.subr.mxu0 0.0
    %7997 = vmatpush1.xpose.msra.mxu0 0.0
    %7998 = vmatprep.subr.mxu0 0.0
    %7999 = vmatpush1.xpose.msra.mxu0 0.0
    %8000 = vmatprep.subr.mxu0 0.0
    %8001 = vmatpush1.xpose.msra.mxu0 0.0
    %8002 = vmatprep.subr.mxu0 0.0
    %8003 = vmatpush1.xpose.msra.mxu0 0.0
    %8004 = vmatprep.subr.mxu0 0.0
    %8005 = vmatpush1.xpose.msra.mxu0 0.0
    %8006 = vmatprep.subr.mxu0 0.0
    %8007 = vmatpush1.xpose.msra.mxu0 0.0
    %8008 = vmatprep.subr.mxu0 0.0
    %8009 = vmatpush1.xpose.msra.mxu0 0.0
    %8010 = vmatprep.subr.mxu0 0.0
    %8011 = vmatpush1.xpose.msra.mxu0 0.0
    %8012 = vmatprep.subr.mxu0 0.0
    %8013 = vmatpush1.xpose.msra.mxu0 0.0
    %8014 = vmatprep.subr.mxu0 0.0
    %8015 = vmatpush1.xpose.msra.mxu0 0.0
    %8016 = vmatprep.subr.mxu0 0.0
    %8017 = vmatpush1.xpose.msra.mxu0 0.0
    %8018 = vmatprep.subr.mxu0 0.0
    %8019 = vmatpush1.xpose.msra.mxu0 0.0
    %8020 = vmatprep.subr.mxu0 0.0
    %8021 = vmatpush1.xpose.msra.mxu0 0.0
    %8022 = vmatprep.subr.mxu0 0.0
    %8023 = vmatpush1.xpose.msra.mxu0 0.0
    %8024 = vmatprep.subr.mxu0 0.0
    %8025 = vmatpush1.xpose.msra.mxu0 0.0
    %8026 = vmatprep.subr.mxu0 0.0
    %8027 = vmatpush1.xpose.msra.mxu0 0.0
    %8028 = vmatprep.subr.mxu0 0.0
    %8029 = vmatpush1.xpose.msra.mxu0 0.0
    %8030 = vmatprep.subr.mxu0 0.0
    %8031 = vmatpush1.xpose.msra.mxu0 0.0
    %8032 = vmatprep.subr.mxu0 0.0
    %8033 = vmatpush1.xpose.msra.mxu0 0.0
    %8034 = vmatprep.subr.mxu0 0.0
    %8035 = vmatpush1.xpose.msra.mxu0 0.0
    %8036 = vmatprep.subr.mxu0 0.0
    %8037 = vmatpush1.xpose.msra.mxu0 0.0
    %8038 = vmatprep.subr.mxu0 0.0
    %8039 = vmatpush1.xpose.msra.mxu0 0.0
    %8040 = vmatprep.subr.mxu0 0.0
    %8041 = vmatpush1.xpose.msra.mxu0 0.0
    %8042 = vmatprep.subr.mxu0 0.0
    %8043 = vmatpush1.xpose.msra.mxu0 0.0
    %8044 = vmatprep.subr.mxu0 0.0
    %8045 = vmatpush1.xpose.msra.mxu0 0.0
    %8046 = vmatprep.subr.mxu0 0.0
    %8047 = vmatpush1.xpose.msra.mxu0 0.0
    %8048 = vmatprep.subr.mxu0 0.0
    %8049 = vmatpush1.xpose.msra.mxu0 0.0
    %8050 = vmatprep.subr.mxu0 0.0
    %8051 = vmatpush1.xpose.msra.mxu0 0.0
    %8052 = vmatprep.mubr.f32.mxu0 0.0
    %8053 = vmatmul.mubr.f32.gmra.mrb[0].mxu0 %v7977
    %v8054 = vpop.f32.mrb[0].mxu0
    %v8055 = vadd.f32 0.0, %v8054
    %v8056 = vpop.f32.mrb[0].mxu0
    %8057 = vmatprep.mubr.f32.mxu0 0.0
    %8058 = vmatmul.mubr.f32.gmra.mrb[0].mxu0 %v7980
    %v8059 = vpop.f32.mrb[0].mxu0
    %v8060 = vadd.f32 0.0, %v8059
    %v8061 = vpop.f32.mrb[0].mxu0
    %8062 = vdwg.mxu0
    %v8063 = vmul.f32 %v8055, 0.35355338
    %v8064 = vmul.f32 %v8060, 0.35355338
    %v8065 = vadd.f32 %v8063, %v4914
    %v8066 = vadd.f32 %v8064, %v4915
    %v8067 = vsel %vm5295, %v8065, -inf
    %8068 = vmax.xlane.f32.xlu0 %v8067
    %v8069 = vpop.xlane.xlu0 %8068
    %v8070 = vsel %vm5295, %v8066, -inf
    %8071 = vmax.xlane.f32.xlu0 %v8070
    %v8072 = vpop.xlane.xlu0 %8071
    %v8073 = vsub.f32 %v8065, %v8069
    %v8074 = vsub.f32 %v8066, %v8072
    %v8075 = vmul.f32 %v8073, 1.442695
    %v8076 = vpow.pop %v8075
    %v8077 = vmul.f32 %v8074, 1.442695
    %v8078 = vpow.pop %v8077
    %v8079 = vsel %vm5295, %v8076, 0.0
    %8080 = vadd.xlane.f32.xlu0 %v8079
    %v8081 = vpop.xlane.xlu0 %8080
    %v8082 = vsel %vm5295, %v8078, 0.0
    %8083 = vadd.xlane.f32.xlu0 %v8082
    %v8084 = vpop.xlane.xlu0 %8083
    %v8085 = vrcp.pop %v8081
    %v8086 = vrcp.pop %v8084
    %v8087 = vmul.f32 %v8076, %v8085
    %v8088 = vmul.f32 %v8078, %v8086
    %v8090 = vsel %vm5295, %v8087, 0
    %v8093 = vsel %vm5295, %v8088, 0
    %8095 = vmatprep.subr.mxu0 0.0
    %8096 = vmatpush1.msra.mxu0 %v7968
    %8097 = vmatprep.subr.mxu0 0.0
    %8098 = vmatpush1.msra.mxu0 %v7973
    %8099 = vmatprep.subr.mxu0 0.0
    %8100 = vmatpush1.msra.mxu0 0.0
    %8101 = vmatprep.subr.mxu0 0.0
    %8102 = vmatpush1.msra.mxu0 0.0
    %8103 = vmatprep.subr.mxu0 0.0
    %8104 = vmatpush1.msra.mxu0 0.0
    %8105 = vmatprep.subr.mxu0 0.0
    %8106 = vmatpush1.msra.mxu0 0.0
    %8107 = vmatprep.subr.mxu0 0.0
    %8108 = vmatpush1.msra.mxu0 0.0
    %8109 = vmatprep.subr.mxu0 0.0
    %8110 = vmatpush1.msra.mxu0 0.0
    %8111 = vmatprep.subr.mxu0 0.0
    %8112 = vmatpush1.msra.mxu0 0.0
    %8113 = vmatprep.subr.mxu0 0.0
    %8114 = vmatpush1.msra.mxu0 0.0
    %8115 = vmatprep.subr.mxu0 0.0
    %8116 = vmatpush1.msra.mxu0 0.0
    %8117 = vmatprep.subr.mxu0 0.0
    %8118 = vmatpush1.msra.mxu0 0.0
    %8119 = vmatprep.subr.mxu0 0.0
    %8120 = vmatpush1.msra.mxu0 0.0
    %8121 = vmatprep.subr.mxu0 0.0
    %8122 = vmatpush1.msra.mxu0 0.0
    %8123 = vmatprep.subr.mxu0 0.0
    %8124 = vmatpush1.msra.mxu0 0.0
    %8125 = vmatprep.subr.mxu0 0.0
    %8126 = vmatpush1.msra.mxu0 0.0
    %8127 = vmatprep.subr.mxu0 0.0
    %8128 = vmatpush1.msra.mxu0 0.0
    %8129 = vmatprep.subr.mxu0 0.0
    %8130 = vmatpush1.msra.mxu0 0.0
    %8131 = vmatprep.subr.mxu0 0.0
    %8132 = vmatpush1.msra.mxu0 0.0
    %8133 = vmatprep.subr.mxu0 0.0
    %8134 = vmatpush1.msra.mxu0 0.0
    %8135 = vmatprep.subr.mxu0 0.0
    %8136 = vmatpush1.msra.mxu0 0.0
    %8137 = vmatprep.subr.mxu0 0.0
    %8138 = vmatpush1.msra.mxu0 0.0
    %8139 = vmatprep.subr.mxu0 0.0
    %8140 = vmatpush1.msra.mxu0 0.0
    %8141 = vmatprep.subr.mxu0 0.0
    %8142 = vmatpush1.msra.mxu0 0.0
    %8143 = vmatprep.subr.mxu0 0.0
    %8144 = vmatpush1.msra.mxu0 0.0
    %8145 = vmatprep.subr.mxu0 0.0
    %8146 = vmatpush1.msra.mxu0 0.0
    %8147 = vmatprep.subr.mxu0 0.0
    %8148 = vmatpush1.msra.mxu0 0.0
    %8149 = vmatprep.subr.mxu0 0.0
    %8150 = vmatpush1.msra.mxu0 0.0
    %8151 = vmatprep.subr.mxu0 0.0
    %8152 = vmatpush1.msra.mxu0 0.0
    %8153 = vmatprep.subr.mxu0 0.0
    %8154 = vmatpush1.msra.mxu0 0.0
    %8155 = vmatprep.subr.mxu0 0.0
    %8156 = vmatpush1.msra.mxu0 0.0
    %8157 = vmatprep.subr.mxu0 0.0
    %8158 = vmatpush1.msra.mxu0 0.0
    %8159 = vmatprep.mubr.f32.mxu0 0.0
    %8160 = vmatmul.mubr.f32.gmra.mrb[0].mxu0 %v8090
    %v8161 = vpop.f32.mrb[0].mxu0
    %v8162 = vadd.f32 0.0, %v8161
    %v8163 = vpop.f32.mrb[0].mxu0
    %8164 = vmatprep.mubr.f32.mxu0 0.0
    %8165 = vmatmul.mubr.f32.gmra.mrb[0].mxu0 %v8093
    %v8166 = vpop.f32.mrb[0].mxu0
    %v8167 = vadd.f32 0.0, %v8166
    %v8168 = vpop.f32.mrb[0].mxu0
    %8169 = vdwg.mxu0
    %s8170 = scalar_lea.vmem %s8, 104
    %v8171 = vld [vmem:[%s8170] sm:$0xff]
    %v8173 = vsel %vm516, %v8162, 0
    %v8176 = vsel %vm516, %v8167, 0
    %8178 = vmatprep.subr.mxu0 0.0
    %8179 = vmatpush1.msra.mxu0 %v8171
    %8180 = vmatprep.subr.mxu0 0.0
    %8181 = vmatpush1.msra.mxu0 0.0
    %8182 = vmatprep.subr.mxu0 0.0
    %8183 = vmatpush1.msra.mxu0 0.0
    %8184 = vmatprep.subr.mxu0 0.0
    %8185 = vmatpush1.msra.mxu0 0.0
    %8186 = vmatprep.subr.mxu0 0.0
    %8187 = vmatpush1.msra.mxu0 0.0
    %8188 = vmatprep.subr.mxu0 0.0
    %8189 = vmatpush1.msra.mxu0 0.0
    %8190 = vmatprep.subr.mxu0 0.0
    %8191 = vmatpush1.msra.mxu0 0.0
    %8192 = vmatprep.subr.mxu0 0.0
    %8193 = vmatpush1.msra.mxu0 0.0
    %8194 = vmatprep.subr.mxu0 0.0
    %8195 = vmatpush1.msra.mxu0 0.0
    %8196 = vmatprep.subr.mxu0 0.0
    %8197 = vmatpush1.msra.mxu0 0.0
    %8198 = vmatprep.subr.mxu0 0.0
    %8199 = vmatpush1.msra.mxu0 0.0
    %8200 = vmatprep.subr.mxu0 0.0
    %8201 = vmatpush1.msra.mxu0 0.0
    %8202 = vmatprep.subr.mxu0 0.0
    %8203 = vmatpush1.msra.mxu0 0.0
    %8204 = vmatprep.subr.mxu0 0.0
    %8205 = vmatpush1.msra.mxu0 0.0
    %8206 = vmatprep.subr.mxu0 0.0
    %8207 = vmatpush1.msra.mxu0 0.0
    %8208 = vmatprep.subr.mxu0 0.0
    %8209 = vmatpush1.msra.mxu0 0.0
    %8210 = vmatprep.subr.mxu0 0.0
    %8211 = vmatpush1.msra.mxu0 0.0
    %8212 = vmatprep.subr.mxu0 0.0
    %8213 = vmatpush1.msra.mxu0 0.0
    %8214 = vmatprep.subr.mxu0 0.0
    %8215 = vmatpush1.msra.mxu0 0.0
    %8216 = vmatprep.subr.mxu0 0.0
    %8217 = vmatpush1.msra.mxu0 0.0
    %8218 = vmatprep.subr.mxu0 0.0
    %8219 = vmatpush1.msra.mxu0 0.0
    %8220 = vmatprep.subr.mxu0 0.0
    %8221 = vmatpush1.msra.mxu0 0.0
    %8222 = vmatprep.subr.mxu0 0.0
    %8223 = vmatpush1.msra.mxu0 0.0
    %8224 = vmatprep.subr.mxu0 0.0
    %8225 = vmatpush1.msra.mxu0 0.0
    %8226 = vmatprep.subr.mxu0 0.0
    %8227 = vmatpush1.msra.mxu0 0.0
    %8228 = vmatprep.subr.mxu0 0.0
    %8229 = vmatpush1.msra.mxu0 0.0
    %8230 = vmatprep.subr.mxu0 0.0
    %8231 = vmatpush1.msra.mxu0 0.0
    %8232 = vmatprep.subr.mxu0 0.0
    %8233 = vmatpush1.msra.mxu0 0.0
    %8234 = vmatprep.subr.mxu0 0.0
    %8235 = vmatpush1.msra.mxu0 0.0
    %8236 = vmatprep.subr.mxu0 0.0
    %8237 = vmatpush1.msra.mxu0 0.0
    %8238 = vmatprep.subr.mxu0 0.0
    %8239 = vmatpush1.msra.mxu0 0.0
    %8240 = vmatprep.subr.mxu0 0.0
    %8241 = vmatpush1.msra.mxu0 0.0
    %8242 = vmatprep.mubr.f32.mxu0 0.0
    %8243 = vmatmul.mubr.f32.gmra.mrb[0].mxu0 %v8173
    %v8244 = vpop.f32.mrb[0].mxu0
    %v8245 = vadd.f32 0.0, %v8244
    %v8246 = vpop.f32.mrb[0].mxu0
    %8247 = vmatprep.mubr.f32.mxu0 0.0
    %8248 = vmatmul.mubr.f32.gmra.mrb[0].mxu0 %v8176
    %v8249 = vpop.f32.mrb[0].mxu0
    %v8250 = vadd.f32 0.0, %v8249
    %v8251 = vpop.f32.mrb[0].mxu0
    %8252 = vdwg.mxu0
    %v8253 = vadd.f32 %v7698, %v8245
    %v8254 = vadd.f32 %v7699, %v8250
    %s8255 = scalar_lea.vmem %s6, 1920
    %v8256 = vld [vmem:[%s8255] sm:$0xff]
    %v8257 = vld [vmem:[%s8255 + $0x8] sm:$0xff]
    %v8258 = vld [vmem:[%s8255 + $0x10] sm:$0xff]
    %v8259 = vld [vmem:[%s8255 + $0x18] sm:$0xff]
    %v8260 = vld [vmem:[%s8255 + $0x20] sm:$0xff]
    %v8261 = vld [vmem:[%s8255 + $0x28] sm:$0xff]
    %v8262 = vld [vmem:[%s8255 + $0x30] sm:$0xff]
    %v8263 = vld [vmem:[%s8255 + $0x38] sm:$0xff]
    %s8264 = scalar_lea.vmem %s7, 30
    %v8265 = vld [vmem:[%s8264] sm:$0x1]
    %v8267 = vlaneseq
    %v8268 = vshrl.u32 %v8267, 7
    %v8269 = vsub.s32 0, %v8268
    %v8270 = vrot.slane %v8265, %v8269
    %8272 = vmatprep.subr.mxu0 0.0
    %8273 = vmatpush1.msra.mxu0 %v8256
    %8274 = vmatprep.subr.mxu0 0.0
    %8275 = vmatpush1.msra.mxu0 %v8257
    %8276 = vmatprep.subr.mxu0 0.0
    %8277 = vmatpush1.msra.mxu0 %v8258
    %8278 = vmatprep.subr.mxu0 0.0
    %8279 = vmatpush1.msra.mxu0 %v8259
    %8280 = vmatprep.subr.mxu0 0.0
    %8281 = vmatpush1.msra.mxu0 %v8260
    %8282 = vmatprep.subr.mxu0 0.0
    %8283 = vmatpush1.msra.mxu0 %v8261
    %8284 = vmatprep.subr.mxu0 0.0
    %8285 = vmatpush1.msra.mxu0 %v8262
    %8286 = vmatprep.subr.mxu0 0.0
    %8287 = vmatpush1.msra.mxu0 %v8263
    %8288 = vmatprep.subr.mxu0 0.0
    %8289 = vmatpush1.msra.mxu0 0.0
    %8290 = vmatprep.subr.mxu0 0.0
    %8291 = vmatpush1.msra.mxu0 0.0
    %8292 = vmatprep.subr.mxu0 0.0
    %8293 = vmatpush1.msra.mxu0 0.0
    %8294 = vmatprep.subr.mxu0 0.0
    %8295 = vmatpush1.msra.mxu0 0.0
    %8296 = vmatprep.subr.mxu0 0.0
    %8297 = vmatpush1.msra.mxu0 0.0
    %8298 = vmatprep.subr.mxu0 0.0
    %8299 = vmatpush1.msra.mxu0 0.0
    %8300 = vmatprep.subr.mxu0 0.0
    %8301 = vmatpush1.msra.mxu0 0.0
    %8302 = vmatprep.subr.mxu0 0.0
    %8303 = vmatpush1.msra.mxu0 0.0
    %8304 = vmatprep.subr.mxu0 0.0
    %8305 = vmatpush1.msra.mxu0 0.0
    %8306 = vmatprep.subr.mxu0 0.0
    %8307 = vmatpush1.msra.mxu0 0.0
    %8308 = vmatprep.subr.mxu0 0.0
    %8309 = vmatpush1.msra.mxu0 0.0
    %8310 = vmatprep.subr.mxu0 0.0
    %8311 = vmatpush1.msra.mxu0 0.0
    %8312 = vmatprep.subr.mxu0 0.0
    %8313 = vmatpush1.msra.mxu0 0.0
    %8314 = vmatprep.subr.mxu0 0.0
    %8315 = vmatpush1.msra.mxu0 0.0
    %8316 = vmatprep.subr.mxu0 0.0
    %8317 = vmatpush1.msra.mxu0 0.0
    %8318 = vmatprep.subr.mxu0 0.0
    %8319 = vmatpush1.msra.mxu0 0.0
    %8320 = vmatprep.subr.mxu0 0.0
    %8321 = vmatpush1.msra.mxu0 0.0
    %8322 = vmatprep.subr.mxu0 0.0
    %8323 = vmatpush1.msra.mxu0 0.0
    %8324 = vmatprep.subr.mxu0 0.0
    %8325 = vmatpush1.msra.mxu0 0.0
    %8326 = vmatprep.subr.mxu0 0.0
    %8327 = vmatpush1.msra.mxu0 0.0
    %8328 = vmatprep.subr.mxu0 0.0
    %8329 = vmatpush1.msra.mxu0 0.0
    %8330 = vmatprep.subr.mxu0 0.0
    %8331 = vmatpush1.msra.mxu0 0.0
    %8332 = vmatprep.subr.mxu0 0.0
    %8333 = vmatpush1.msra.mxu0 0.0
    %8334 = vmatprep.subr.mxu0 0.0
    %8335 = vmatpush1.msra.mxu0 0.0
    %8336 = vmatprep.mubr.f32.mxu0 0.0
    %8337 = vmatmul.mubr.f32.gmra.mrb[0].mxu0 %v4934
    %v8338 = vpop.f32.mrb[0].mxu0
    %v8339 = vadd.f32 %v8270, %v8338
    %v8340 = vpop.f32.mrb[0].mxu0
    %8341 = vmatprep.mubr.f32.mxu0 0.0
    %8342 = vmatmul.mubr.f32.gmra.mrb[0].mxu0 %v4937
    %v8343 = vpop.f32.mrb[0].mxu0
    %v8344 = vadd.f32 %v8270, %v8343
    %v8345 = vpop.f32.mrb[0].mxu0
    %8346 = vdwg.mxu0
    %s8347 = scalar_lea.vmem %s6, 2432
    %v8348 = vld [vmem:[%s8347] sm:$0xff]
    %v8349 = vld [vmem:[%s8347 + $0x8] sm:$0xff]
    %v8350 = vld [vmem:[%s8347 + $0x10] sm:$0xff]
    %v8351 = vld [vmem:[%s8347 + $0x18] sm:$0xff]
    %v8352 = vld [vmem:[%s8347 + $0x20] sm:$0xff]
    %v8353 = vld [vmem:[%s8347 + $0x28] sm:$0xff]
    %v8354 = vld [vmem:[%s8347 + $0x30] sm:$0xff]
    %v8355 = vld [vmem:[%s8347 + $0x38] sm:$0xff]
    %s8356 = scalar_lea.vmem %s7, 38
    %v8357 = vld [vmem:[%s8356] sm:$0x1]
    %v8359 = vlaneseq
    %v8360 = vshrl.u32 %v8359, 7
    %v8361 = vsub.s32 0, %v8360
    %v8362 = vrot.slane %v8357, %v8361
    %8364 = vmatprep.subr.mxu0 0.0
    %8365 = vmatpush1.msra.mxu0 %v8348
    %8366 = vmatprep.subr.mxu0 0.0
    %8367 = vmatpush1.msra.mxu0 %v8349
    %8368 = vmatprep.subr.mxu0 0.0
    %8369 = vmatpush1.msra.mxu0 %v8350
    %8370 = vmatprep.subr.mxu0 0.0
    %8371 = vmatpush1.msra.mxu0 %v8351
    %8372 = vmatprep.subr.mxu0 0.0
    %8373 = vmatpush1.msra.mxu0 %v8352
    %8374 = vmatprep.subr.mxu0 0.0
    %8375 = vmatpush1.msra.mxu0 %v8353
    %8376 = vmatprep.subr.mxu0 0.0
    %8377 = vmatpush1.msra.mxu0 %v8354
    %8378 = vmatprep.subr.mxu0 0.0
    %8379 = vmatpush1.msra.mxu0 %v8355
    %8380 = vmatprep.subr.mxu0 0.0
    %8381 = vmatpush1.msra.mxu0 0.0
    %8382 = vmatprep.subr.mxu0 0.0
    %8383 = vmatpush1.msra.mxu0 0.0
    %8384 = vmatprep.subr.mxu0 0.0
    %8385 = vmatpush1.msra.mxu0 0.0
    %8386 = vmatprep.subr.mxu0 0.0
    %8387 = vmatpush1.msra.mxu0 0.0
    %8388 = vmatprep.subr.mxu0 0.0
    %8389 = vmatpush1.msra.mxu0 0.0
    %8390 = vmatprep.subr.mxu0 0.0
    %8391 = vmatpush1.msra.mxu0 0.0
    %8392 = vmatprep.subr.mxu0 0.0
    %8393 = vmatpush1.msra.mxu0 0.0
    %8394 = vmatprep.subr.mxu0 0.0
    %8395 = vmatpush1.msra.mxu0 0.0
    %8396 = vmatprep.subr.mxu0 0.0
    %8397 = vmatpush1.msra.mxu0 0.0
    %8398 = vmatprep.subr.mxu0 0.0
    %8399 = vmatpush1.msra.mxu0 0.0
    %8400 = vmatprep.subr.mxu0 0.0
    %8401 = vmatpush1.msra.mxu0 0.0
    %8402 = vmatprep.subr.mxu0 0.0
    %8403 = vmatpush1.msra.mxu0 0.0
    %8404 = vmatprep.subr.mxu0 0.0
    %8405 = vmatpush1.msra.mxu0 0.0
    %8406 = vmatprep.subr.mxu0 0.0
    %8407 = vmatpush1.msra.mxu0 0.0
    %8408 = vmatprep.subr.mxu0 0.0
    %8409 = vmatpush1.msra.mxu0 0.0
    %8410 = vmatprep.subr.mxu0 0.0
    %8411 = vmatpush1.msra.mxu0 0.0
    %8412 = vmatprep.subr.mxu0 0.0
    %8413 = vmatpush1.msra.mxu0 0.0
    %8414 = vmatprep.subr.mxu0 0.0
    %8415 = vmatpush1.msra.mxu0 0.0
    %8416 = vmatprep.subr.mxu0 0.0
    %8417 = vmatpush1.msra.mxu0 0.0
    %8418 = vmatprep.subr.mxu0 0.0
    %8419 = vmatpush1.msra.mxu0 0.0
    %8420 = vmatprep.subr.mxu0 0.0
    %8421 = vmatpush1.msra.mxu0 0.0
    %8422 = vmatprep.subr.mxu0 0.0
    %8423 = vmatpush1.msra.mxu0 0.0
    %8424 = vmatprep.subr.mxu0 0.0
    %8425 = vmatpush1.msra.mxu0 0.0
    %8426 = vmatprep.subr.mxu0 0.0
    %8427 = vmatpush1.msra.mxu0 0.0
    %8428 = vmatprep.mubr.f32.mxu0 0.0
    %8429 = vmatmul.mubr.f32.gmra.mrb[0].mxu0 %v5032
    %v8430 = vpop.f32.mrb[0].mxu0
    %v8431 = vadd.f32 %v8362, %v8430
    %v8432 = vpop.f32.mrb[0].mxu0
    %8433 = vmatprep.mubr.f32.mxu0 0.0
    %8434 = vmatmul.mubr.f32.gmra.mrb[0].mxu0 %v5035
    %v8435 = vpop.f32.mrb[0].mxu0
    %v8436 = vadd.f32 %v8362, %v8435
    %v8437 = vpop.f32.mrb[0].mxu0
    %8438 = vdwg.mxu0
    %s8439 = scalar_lea.vmem %s6, 2944
    %v8440 = vld [vmem:[%s8439] sm:$0xff]
    %v8441 = vld [vmem:[%s8439 + $0x8] sm:$0xff]
    %v8442 = vld [vmem:[%s8439 + $0x10] sm:$0xff]
    %v8443 = vld [vmem:[%s8439 + $0x18] sm:$0xff]
    %v8444 = vld [vmem:[%s8439 + $0x20] sm:$0xff]
    %v8445 = vld [vmem:[%s8439 + $0x28] sm:$0xff]
    %v8446 = vld [vmem:[%s8439 + $0x30] sm:$0xff]
    %v8447 = vld [vmem:[%s8439 + $0x38] sm:$0xff]
    %s8448 = scalar_lea.vmem %s7, 46
    %v8449 = vld [vmem:[%s8448] sm:$0x1]
    %v8451 = vlaneseq
    %v8452 = vshrl.u32 %v8451, 7
    %v8453 = vsub.s32 0, %v8452
    %v8454 = vrot.slane %v8449, %v8453
    %8456 = vmatprep.subr.mxu0 0.0
    %8457 = vmatpush1.msra.mxu0 %v8440
    %8458 = vmatprep.subr.mxu0 0.0
    %8459 = vmatpush1.msra.mxu0 %v8441
    %8460 = vmatprep.subr.mxu0 0.0
    %8461 = vmatpush1.msra.mxu0 %v8442
    %8462 = vmatprep.subr.mxu0 0.0
    %8463 = vmatpush1.msra.mxu0 %v8443
    %8464 = vmatprep.subr.mxu0 0.0
    %8465 = vmatpush1.msra.mxu0 %v8444
    %8466 = vmatprep.subr.mxu0 0.0
    %8467 = vmatpush1.msra.mxu0 %v8445
    %8468 = vmatprep.subr.mxu0 0.0
    %8469 = vmatpush1.msra.mxu0 %v8446
    %8470 = vmatprep.subr.mxu0 0.0
    %8471 = vmatpush1.msra.mxu0 %v8447
    %8472 = vmatprep.subr.mxu0 0.0
    %8473 = vmatpush1.msra.mxu0 0.0
    %8474 = vmatprep.subr.mxu0 0.0
    %8475 = vmatpush1.msra.mxu0 0.0
    %8476 = vmatprep.subr.mxu0 0.0
    %8477 = vmatpush1.msra.mxu0 0.0
    %8478 = vmatprep.subr.mxu0 0.0
    %8479 = vmatpush1.msra.mxu0 0.0
    %8480 = vmatprep.subr.mxu0 0.0
    %8481 = vmatpush1.msra.mxu0 0.0
    %8482 = vmatprep.subr.mxu0 0.0
    %8483 = vmatpush1.msra.mxu0 0.0
    %8484 = vmatprep.subr.mxu0 0.0
    %8485 = vmatpush1.msra.mxu0 0.0
    %8486 = vmatprep.subr.mxu0 0.0
    %8487 = vmatpush1.msra.mxu0 0.0
    %8488 = vmatprep.subr.mxu0 0.0
    %8489 = vmatpush1.msra.mxu0 0.0
    %8490 = vmatprep.subr.mxu0 0.0
    %8491 = vmatpush1.msra.mxu0 0.0
    %8492 = vmatprep.subr.mxu0 0.0
    %8493 = vmatpush1.msra.mxu0 0.0
    %8494 = vmatprep.subr.mxu0 0.0
    %8495 = vmatpush1.msra.mxu0 0.0
    %8496 = vmatprep.subr.mxu0 0.0
    %8497 = vmatpush1.msra.mxu0 0.0
    %8498 = vmatprep.subr.mxu0 0.0
    %8499 = vmatpush1.msra.mxu0 0.0
    %8500 = vmatprep.subr.mxu0 0.0
    %8501 = vmatpush1.msra.mxu0 0.0
    %8502 = vmatprep.subr.mxu0 0.0
    %8503 = vmatpush1.msra.mxu0 0.0
    %8504 = vmatprep.subr.mxu0 0.0
    %8505 = vmatpush1.msra.mxu0 0.0
    %8506 = vmatprep.subr.mxu0 0.0
    %8507 = vmatpush1.msra.mxu0 0.0
    %8508 = vmatprep.subr.mxu0 0.0
    %8509 = vmatpush1.msra.mxu0 0.0
    %8510 = vmatprep.subr.mxu0 0.0
    %8511 = vmatpush1.msra.mxu0 0.0
    %8512 = vmatprep.subr.mxu0 0.0
    %8513 = vmatpush1.msra.mxu0 0.0
    %8514 = vmatprep.subr.mxu0 0.0
    %8515 = vmatpush1.msra.mxu0 0.0
    %8516 = vmatprep.subr.mxu0 0.0
    %8517 = vmatpush1.msra.mxu0 0.0
    %8518 = vmatprep.subr.mxu0 0.0
    %8519 = vmatpush1.msra.mxu0 0.0
    %8520 = vmatprep.mubr.f32.mxu0 0.0
    %8521 = vmatmul.mubr.f32.gmra.mrb[0].mxu0 %v4934
    %v8522 = vpop.f32.mrb[0].mxu0
    %v8523 = vadd.f32 %v8454, %v8522
    %v8524 = vpop.f32.mrb[0].mxu0
    %8525 = vmatprep.mubr.f32.mxu0 0.0
    %8526 = vmatmul.mubr.f32.gmra.mrb[0].mxu0 %v4937
    %v8527 = vpop.f32.mrb[0].mxu0
    %v8528 = vadd.f32 %v8454, %v8527
    %v8529 = vpop.f32.mrb[0].mxu0
    %8530 = vdwg.mxu0
    %v8532 = vsel %vm516, %v8339, 0
    %v8535 = vsel %vm516, %v8344, 0
    %v8538 = vsel %vm516, %v8431, 0
    %v8541 = vsel %vm516, %v8436, 0
    %8543 = vmatprep.subr.mxu0 0.0
    %8544 = vmatpush1.xpose.msra.mxu0 %v8538
    %8545 = vmatprep.subr.mxu0 0.0
    %8546 = vmatpush1.xpose.msra.mxu0 %v8541
    %8547 = vmatprep.subr.mxu0 0.0
    %8548 = vmatpush1.xpose.msra.mxu0 0.0
    %8549 = vmatprep.subr.mxu0 0.0
    %8550 = vmatpush1.xpose.msra.mxu0 0.0
    %8551 = vmatprep.subr.mxu0 0.0
    %8552 = vmatpush1.xpose.msra.mxu0 0.0
    %8553 = vmatprep.subr.mxu0 0.0
    %8554 = vmatpush1.xpose.msra.mxu0 0.0
    %8555 = vmatprep.subr.mxu0 0.0
    %8556 = vmatpush1.xpose.msra.mxu0 0.0
    %8557 = vmatprep.subr.mxu0 0.0
    %8558 = vmatpush1.xpose.msra.mxu0 0.0
    %8559 = vmatprep.subr.mxu0 0.0
    %8560 = vmatpush1.xpose.msra.mxu0 0.0
    %8561 = vmatprep.subr.mxu0 0.0
    %8562 = vmatpush1.xpose.msra.mxu0 0.0
    %8563 = vmatprep.subr.mxu0 0.0
    %8564 = vmatpush1.xpose.msra.mxu0 0.0
    %8565 = vmatprep.subr.mxu0 0.0
    %8566 = vmatpush1.xpose.msra.mxu0 0.0
    %8567 = vmatprep.subr.mxu0 0.0
    %8568 = vmatpush1.xpose.msra.mxu0 0.0
    %8569 = vmatprep.subr.mxu0 0.0
    %8570 = vmatpush1.xpose.msra.mxu0 0.0
    %8571 = vmatprep.subr.mxu0 0.0
    %8572 = vmatpush1.xpose.msra.mxu0 0.0
    %8573 = vmatprep.subr.mxu0 0.0
    %8574 = vmatpush1.xpose.msra.mxu0 0.0
    %8575 = vmatprep.subr.mxu0 0.0
    %8576 = vmatpush1.xpose.msra.mxu0 0.0
    %8577 = vmatprep.subr.mxu0 0.0
    %8578 = vmatpush1.xpose.msra.mxu0 0.0
    %8579 = vmatprep.subr.mxu0 0.0
    %8580 = vmatpush1.xpose.msra.mxu0 0.0
    %8581 = vmatprep.subr.mxu0 0.0
    %8582 = vmatpush1.xpose.msra.mxu0 0.0
    %8583 = vmatprep.subr.mxu0 0.0
    %8584 = vmatpush1.xpose.msra.mxu0 0.0
    %8585 = vmatprep.subr.mxu0 0.0
    %8586 = vmatpush1.xpose.msra.mxu0 0.0
    %8587 = vmatprep.subr.mxu0 0.0
    %8588 = vmatpush1.xpose.msra.mxu0 0.0
    %8589 = vmatprep.subr.mxu0 0.0
    %8590 = vmatpush1.xpose.msra.mxu0 0.0
    %8591 = vmatprep.subr.mxu0 0.0
    %8592 = vmatpush1.xpose.msra.mxu0 0.0
    %8593 = vmatprep.subr.mxu0 0.0
    %8594 = vmatpush1.xpose.msra.mxu0 0.0
    %8595 = vmatprep.subr.mxu0 0.0
    %8596 = vmatpush1.xpose.msra.mxu0 0.0
    %8597 = vmatprep.subr.mxu0 0.0
    %8598 = vmatpush1.xpose.msra.mxu0 0.0
    %8599 = vmatprep.subr.mxu0 0.0
    %8600 = vmatpush1.xpose.msra.mxu0 0.0
    %8601 = vmatprep.subr.mxu0 0.0
    %8602 = vmatpush1.xpose.msra.mxu0 0.0
    %8603 = vmatprep.subr.mxu0 0.0
    %8604 = vmatpush1.xpose.msra.mxu0 0.0
    %8605 = vmatprep.subr.mxu0 0.0
    %8606 = vmatpush1.xpose.msra.mxu0 0.0
    %8607 = vmatprep.mubr.f32.mxu0 0.0
    %8608 = vmatmul.mubr.f32.gmra.mrb[0].mxu0 %v8532
    %v8609 = vpop.f32.mrb[0].mxu0
    %v8610 = vadd.f32 0.0, %v8609
    %v8611 = vpop.f32.mrb[0].mxu0
    %8612 = vmatprep.mubr.f32.mxu0 0.0
    %8613 = vmatmul.mubr.f32.gmra.mrb[0].mxu0 %v8535
    %v8614 = vpop.f32.mrb[0].mxu0
    %v8615 = vadd.f32 0.0, %v8614
    %v8616 = vpop.f32.mrb[0].mxu0
    %8617 = vdwg.mxu0
    %v8618 = vmul.f32 %v8610, 0.35355338
    %v8619 = vmul.f32 %v8615, 0.35355338
    %v8620 = vadd.f32 %v8618, %v4914
    %v8621 = vadd.f32 %v8619, %v4915
    %v8622 = vsel %vm5295, %v8620, -inf
    %8623 = vmax.xlane.f32.xlu0 %v8622
    %v8624 = vpop.xlane.xlu0 %8623
    %v8625 = vsel %vm5295, %v8621, -inf
    %8626 = vmax.xlane.f32.xlu0 %v8625
    %v8627 = vpop.xlane.xlu0 %8626
    %v8628 = vsub.f32 %v8620, %v8624
    %v8629 = vsub.f32 %v8621, %v8627
    %v8630 = vmul.f32 %v8628, 1.442695
    %v8631 = vpow.pop %v8630
    %v8632 = vmul.f32 %v8629, 1.442695
    %v8633 = vpow.pop %v8632
    %v8634 = vsel %vm5295, %v8631, 0.0
    %8635 = vadd.xlane.f32.xlu0 %v8634
    %v8636 = vpop.xlane.xlu0 %8635
    %v8637 = vsel %vm5295, %v8633, 0.0
    %8638 = vadd.xlane.f32.xlu0 %v8637
    %v8639 = vpop.xlane.xlu0 %8638
    %v8640 = vrcp.pop %v8636
    %v8641 = vrcp.pop %v8639
    %v8642 = vmul.f32 %v8631, %v8640
    %v8643 = vmul.f32 %v8633, %v8641
    %v8645 = vsel %vm5295, %v8642, 0
    %v8648 = vsel %vm5295, %v8643, 0
    %8650 = vmatprep.subr.mxu0 0.0
    %8651 = vmatpush1.msra.mxu0 %v8523
    %8652 = vmatprep.subr.mxu0 0.0
    %8653 = vmatpush1.msra.mxu0 %v8528
    %8654 = vmatprep.subr.mxu0 0.0
    %8655 = vmatpush1.msra.mxu0 0.0
    %8656 = vmatprep.subr.mxu0 0.0
    %8657 = vmatpush1.msra.mxu0 0.0
    %8658 = vmatprep.subr.mxu0 0.0
    %8659 = vmatpush1.msra.mxu0 0.0
    %8660 = vmatprep.subr.mxu0 0.0
    %8661 = vmatpush1.msra.mxu0 0.0
    %8662 = vmatprep.subr.mxu0 0.0
    %8663 = vmatpush1.msra.mxu0 0.0
    %8664 = vmatprep.subr.mxu0 0.0
    %8665 = vmatpush1.msra.mxu0 0.0
    %8666 = vmatprep.subr.mxu0 0.0
    %8667 = vmatpush1.msra.mxu0 0.0
    %8668 = vmatprep.subr.mxu0 0.0
    %8669 = vmatpush1.msra.mxu0 0.0
    %8670 = vmatprep.subr.mxu0 0.0
    %8671 = vmatpush1.msra.mxu0 0.0
    %8672 = vmatprep.subr.mxu0 0.0
    %8673 = vmatpush1.msra.mxu0 0.0
    %8674 = vmatprep.subr.mxu0 0.0
    %8675 = vmatpush1.msra.mxu0 0.0
    %8676 = vmatprep.subr.mxu0 0.0
    %8677 = vmatpush1.msra.mxu0 0.0
    %8678 = vmatprep.subr.mxu0 0.0
    %8679 = vmatpush1.msra.mxu0 0.0
    %8680 = vmatprep.subr.mxu0 0.0
    %8681 = vmatpush1.msra.mxu0 0.0
    %8682 = vmatprep.subr.mxu0 0.0
    %8683 = vmatpush1.msra.mxu0 0.0
    %8684 = vmatprep.subr.mxu0 0.0
    %8685 = vmatpush1.msra.mxu0 0.0
    %8686 = vmatprep.subr.mxu0 0.0
    %8687 = vmatpush1.msra.mxu0 0.0
    %8688 = vmatprep.subr.mxu0 0.0
    %8689 = vmatpush1.msra.mxu0 0.0
    %8690 = vmatprep.subr.mxu0 0.0
    %8691 = vmatpush1.msra.mxu0 0.0
    %8692 = vmatprep.subr.mxu0 0.0
    %8693 = vmatpush1.msra.mxu0 0.0
    %8694 = vmatprep.subr.mxu0 0.0
    %8695 = vmatpush1.msra.mxu0 0.0
    %8696 = vmatprep.subr.mxu0 0.0
    %8697 = vmatpush1.msra.mxu0 0.0
    %8698 = vmatprep.subr.mxu0 0.0
    %8699 = vmatpush1.msra.mxu0 0.0
    %8700 = vmatprep.subr.mxu0 0.0
    %8701 = vmatpush1.msra.mxu0 0.0
    %8702 = vmatprep.subr.mxu0 0.0
    %8703 = vmatpush1.msra.mxu0 0.0
    %8704 = vmatprep.subr.mxu0 0.0
    %8705 = vmatpush1.msra.mxu0 0.0
    %8706 = vmatprep.subr.mxu0 0.0
    %8707 = vmatpush1.msra.mxu0 0.0
    %8708 = vmatprep.subr.mxu0 0.0
    %8709 = vmatpush1.msra.mxu0 0.0
    %8710 = vmatprep.subr.mxu0 0.0
    %8711 = vmatpush1.msra.mxu0 0.0
    %8712 = vmatprep.subr.mxu0 0.0
    %8713 = vmatpush1.msra.mxu0 0.0
    %8714 = vmatprep.mubr.f32.mxu0 0.0
    %8715 = vmatmul.mubr.f32.gmra.mrb[0].mxu0 %v8645
    %v8716 = vpop.f32.mrb[0].mxu0
    %v8717 = vadd.f32 0.0, %v8716
    %v8718 = vpop.f32.mrb[0].mxu0
    %8719 = vmatprep.mubr.f32.mxu0 0.0
    %8720 = vmatmul.mubr.f32.gmra.mrb[0].mxu0 %v8648
    %v8721 = vpop.f32.mrb[0].mxu0
    %v8722 = vadd.f32 0.0, %v8721
    %v8723 = vpop.f32.mrb[0].mxu0
    %8724 = vdwg.mxu0
    %s8725 = scalar_lea.vmem %s8, 112
    %v8726 = vld [vmem:[%s8725] sm:$0xff]
    %v8728 = vsel %vm516, %v8717, 0
    %v8731 = vsel %vm516, %v8722, 0
    %8733 = vmatprep.subr.mxu0 0.0
    %8734 = vmatpush1.msra.mxu0 %v8726
    %8735 = vmatprep.subr.mxu0 0.0
    %8736 = vmatpush1.msra.mxu0 0.0
    %8737 = vmatprep.subr.mxu0 0.0
    %8738 = vmatpush1.msra.mxu0 0.0
    %8739 = vmatprep.subr.mxu0 0.0
    %8740 = vmatpush1.msra.mxu0 0.0
    %8741 = vmatprep.subr.mxu0 0.0
    %8742 = vmatpush1.msra.mxu0 0.0
    %8743 = vmatprep.subr.mxu0 0.0
    %8744 = vmatpush1.msra.mxu0 0.0
    %8745 = vmatprep.subr.mxu0 0.0
    %8746 = vmatpush1.msra.mxu0 0.0
    %8747 = vmatprep.subr.mxu0 0.0
    %8748 = vmatpush1.msra.mxu0 0.0
    %8749 = vmatprep.subr.mxu0 0.0
    %8750 = vmatpush1.msra.mxu0 0.0
    %8751 = vmatprep.subr.mxu0 0.0
    %8752 = vmatpush1.msra.mxu0 0.0
    %8753 = vmatprep.subr.mxu0 0.0
    %8754 = vmatpush1.msra.mxu0 0.0
    %8755 = vmatprep.subr.mxu0 0.0
    %8756 = vmatpush1.msra.mxu0 0.0
    %8757 = vmatprep.subr.mxu0 0.0
    %8758 = vmatpush1.msra.mxu0 0.0
    %8759 = vmatprep.subr.mxu0 0.0
    %8760 = vmatpush1.msra.mxu0 0.0
    %8761 = vmatprep.subr.mxu0 0.0
    %8762 = vmatpush1.msra.mxu0 0.0
    %8763 = vmatprep.subr.mxu0 0.0
    %8764 = vmatpush1.msra.mxu0 0.0
    %8765 = vmatprep.subr.mxu0 0.0
    %8766 = vmatpush1.msra.mxu0 0.0
    %8767 = vmatprep.subr.mxu0 0.0
    %8768 = vmatpush1.msra.mxu0 0.0
    %8769 = vmatprep.subr.mxu0 0.0
    %8770 = vmatpush1.msra.mxu0 0.0
    %8771 = vmatprep.subr.mxu0 0.0
    %8772 = vmatpush1.msra.mxu0 0.0
    %8773 = vmatprep.subr.mxu0 0.0
    %8774 = vmatpush1.msra.mxu0 0.0
    %8775 = vmatprep.subr.mxu0 0.0
    %8776 = vmatpush1.msra.mxu0 0.0
    %8777 = vmatprep.subr.mxu0 0.0
    %8778 = vmatpush1.msra.mxu0 0.0
    %8779 = vmatprep.subr.mxu0 0.0
    %8780 = vmatpush1.msra.mxu0 0.0
    %8781 = vmatprep.subr.mxu0 0.0
    %8782 = vmatpush1.msra.mxu0 0.0
    %8783 = vmatprep.subr.mxu0 0.0
    %8784 = vmatpush1.msra.mxu0 0.0
    %8785 = vmatprep.subr.mxu0 0.0
    %8786 = vmatpush1.msra.mxu0 0.0
    %8787 = vmatprep.subr.mxu0 0.0
    %8788 = vmatpush1.msra.mxu0 0.0
    %8789 = vmatprep.subr.mxu0 0.0
    %8790 = vmatpush1.msra.mxu0 0.0
    %8791 = vmatprep.subr.mxu0 0.0
    %8792 = vmatpush1.msra.mxu0 0.0
    %8793 = vmatprep.subr.mxu0 0.0
    %8794 = vmatpush1.msra.mxu0 0.0
    %8795 = vmatprep.subr.mxu0 0.0
    %8796 = vmatpush1.msra.mxu0 0.0
    %8797 = vmatprep.mubr.f32.mxu0 0.0
    %8798 = vmatmul.mubr.f32.gmra.mrb[0].mxu0 %v8728
    %v8799 = vpop.f32.mrb[0].mxu0
    %v8800 = vadd.f32 0.0, %v8799
    %v8801 = vpop.f32.mrb[0].mxu0
    %8802 = vmatprep.mubr.f32.mxu0 0.0
    %8803 = vmatmul.mubr.f32.gmra.mrb[0].mxu0 %v8731
    %v8804 = vpop.f32.mrb[0].mxu0
    %v8805 = vadd.f32 0.0, %v8804
    %v8806 = vpop.f32.mrb[0].mxu0
    %8807 = vdwg.mxu0
    %v8808 = vadd.f32 %v8253, %v8800
    %v8809 = vadd.f32 %v8254, %v8805
    %s8810 = scalar_lea.vmem %s6, 1984
    %v8811 = vld [vmem:[%s8810] sm:$0xff]
    %v8812 = vld [vmem:[%s8810 + $0x8] sm:$0xff]
    %v8813 = vld [vmem:[%s8810 + $0x10] sm:$0xff]
    %v8814 = vld [vmem:[%s8810 + $0x18] sm:$0xff]
    %v8815 = vld [vmem:[%s8810 + $0x20] sm:$0xff]
    %v8816 = vld [vmem:[%s8810 + $0x28] sm:$0xff]
    %v8817 = vld [vmem:[%s8810 + $0x30] sm:$0xff]
    %v8818 = vld [vmem:[%s8810 + $0x38] sm:$0xff]
    %s8819 = scalar_lea.vmem %s7, 31
    %v8820 = vld [vmem:[%s8819] sm:$0x1]
    %v8822 = vlaneseq
    %v8823 = vshrl.u32 %v8822, 7
    %v8824 = vsub.s32 0, %v8823
    %v8825 = vrot.slane %v8820, %v8824
    %8827 = vmatprep.subr.mxu0 0.0
    %8828 = vmatpush1.msra.mxu0 %v8811
    %8829 = vmatprep.subr.mxu0 0.0
    %8830 = vmatpush1.msra.mxu0 %v8812
    %8831 = vmatprep.subr.mxu0 0.0
    %8832 = vmatpush1.msra.mxu0 %v8813
    %8833 = vmatprep.subr.mxu0 0.0
    %8834 = vmatpush1.msra.mxu0 %v8814
    %8835 = vmatprep.subr.mxu0 0.0
    %8836 = vmatpush1.msra.mxu0 %v8815
    %8837 = vmatprep.subr.mxu0 0.0
    %8838 = vmatpush1.msra.mxu0 %v8816
    %8839 = vmatprep.subr.mxu0 0.0
    %8840 = vmatpush1.msra.mxu0 %v8817
    %8841 = vmatprep.subr.mxu0 0.0
    %8842 = vmatpush1.msra.mxu0 %v8818
    %8843 = vmatprep.subr.mxu0 0.0
    %8844 = vmatpush1.msra.mxu0 0.0
    %8845 = vmatprep.subr.mxu0 0.0
    %8846 = vmatpush1.msra.mxu0 0.0
    %8847 = vmatprep.subr.mxu0 0.0
    %8848 = vmatpush1.msra.mxu0 0.0
    %8849 = vmatprep.subr.mxu0 0.0
    %8850 = vmatpush1.msra.mxu0 0.0
    %8851 = vmatprep.subr.mxu0 0.0
    %8852 = vmatpush1.msra.mxu0 0.0
    %8853 = vmatprep.subr.mxu0 0.0
    %8854 = vmatpush1.msra.mxu0 0.0
    %8855 = vmatprep.subr.mxu0 0.0
    %8856 = vmatpush1.msra.mxu0 0.0
    %8857 = vmatprep.subr.mxu0 0.0
    %8858 = vmatpush1.msra.mxu0 0.0
    %8859 = vmatprep.subr.mxu0 0.0
    %8860 = vmatpush1.msra.mxu0 0.0
    %8861 = vmatprep.subr.mxu0 0.0
    %8862 = vmatpush1.msra.mxu0 0.0
    %8863 = vmatprep.subr.mxu0 0.0
    %8864 = vmatpush1.msra.mxu0 0.0
    %8865 = vmatprep.subr.mxu0 0.0
    %8866 = vmatpush1.msra.mxu0 0.0
    %8867 = vmatprep.subr.mxu0 0.0
    %8868 = vmatpush1.msra.mxu0 0.0
    %8869 = vmatprep.subr.mxu0 0.0
    %8870 = vmatpush1.msra.mxu0 0.0
    %8871 = vmatprep.subr.mxu0 0.0
    %8872 = vmatpush1.msra.mxu0 0.0
    %8873 = vmatprep.subr.mxu0 0.0
    %8874 = vmatpush1.msra.mxu0 0.0
    %8875 = vmatprep.subr.mxu0 0.0
    %8876 = vmatpush1.msra.mxu0 0.0
    %8877 = vmatprep.subr.mxu0 0.0
    %8878 = vmatpush1.msra.mxu0 0.0
    %8879 = vmatprep.subr.mxu0 0.0
    %8880 = vmatpush1.msra.mxu0 0.0
    %8881 = vmatprep.subr.mxu0 0.0
    %8882 = vmatpush1.msra.mxu0 0.0
    %8883 = vmatprep.subr.mxu0 0.0
    %8884 = vmatpush1.msra.mxu0 0.0
    %8885 = vmatprep.subr.mxu0 0.0
    %8886 = vmatpush1.msra.mxu0 0.0
    %8887 = vmatprep.subr.mxu0 0.0
    %8888 = vmatpush1.msra.mxu0 0.0
    %8889 = vmatprep.subr.mxu0 0.0
    %8890 = vmatpush1.msra.mxu0 0.0
    %8891 = vmatprep.mubr.f32.mxu0 0.0
    %8892 = vmatmul.mubr.f32.gmra.mrb[0].mxu0 %v4934
    %v8893 = vpop.f32.mrb[0].mxu0
    %v8894 = vadd.f32 %v8825, %v8893
    %v8895 = vpop.f32.mrb[0].mxu0
    %8896 = vmatprep.mubr.f32.mxu0 0.0
    %8897 = vmatmul.mubr.f32.gmra.mrb[0].mxu0 %v4937
    %v8898 = vpop.f32.mrb[0].mxu0
    %v8899 = vadd.f32 %v8825, %v8898
    %v8900 = vpop.f32.mrb[0].mxu0
    %8901 = vdwg.mxu0
    %s8902 = scalar_lea.vmem %s6, 2496
    %v8903 = vld [vmem:[%s8902] sm:$0xff]
    %v8904 = vld [vmem:[%s8902 + $0x8] sm:$0xff]
    %v8905 = vld [vmem:[%s8902 + $0x10] sm:$0xff]
    %v8906 = vld [vmem:[%s8902 + $0x18] sm:$0xff]
    %v8907 = vld [vmem:[%s8902 + $0x20] sm:$0xff]
    %v8908 = vld [vmem:[%s8902 + $0x28] sm:$0xff]
    %v8909 = vld [vmem:[%s8902 + $0x30] sm:$0xff]
    %v8910 = vld [vmem:[%s8902 + $0x38] sm:$0xff]
    %s8911 = scalar_lea.vmem %s7, 39
    %v8912 = vld [vmem:[%s8911] sm:$0x1]
    %v8914 = vlaneseq
    %v8915 = vshrl.u32 %v8914, 7
    %v8916 = vsub.s32 0, %v8915
    %v8917 = vrot.slane %v8912, %v8916
    %8919 = vmatprep.subr.mxu0 0.0
    %8920 = vmatpush1.msra.mxu0 %v8903
    %8921 = vmatprep.subr.mxu0 0.0
    %8922 = vmatpush1.msra.mxu0 %v8904
    %8923 = vmatprep.subr.mxu0 0.0
    %8924 = vmatpush1.msra.mxu0 %v8905
    %8925 = vmatprep.subr.mxu0 0.0
    %8926 = vmatpush1.msra.mxu0 %v8906
    %8927 = vmatprep.subr.mxu0 0.0
    %8928 = vmatpush1.msra.mxu0 %v8907
    %8929 = vmatprep.subr.mxu0 0.0
    %8930 = vmatpush1.msra.mxu0 %v8908
    %8931 = vmatprep.subr.mxu0 0.0
    %8932 = vmatpush1.msra.mxu0 %v8909
    %8933 = vmatprep.subr.mxu0 0.0
    %8934 = vmatpush1.msra.mxu0 %v8910
    %8935 = vmatprep.subr.mxu0 0.0
    %8936 = vmatpush1.msra.mxu0 0.0
    %8937 = vmatprep.subr.mxu0 0.0
    %8938 = vmatpush1.msra.mxu0 0.0
    %8939 = vmatprep.subr.mxu0 0.0
    %8940 = vmatpush1.msra.mxu0 0.0
    %8941 = vmatprep.subr.mxu0 0.0
    %8942 = vmatpush1.msra.mxu0 0.0
    %8943 = vmatprep.subr.mxu0 0.0
    %8944 = vmatpush1.msra.mxu0 0.0
    %8945 = vmatprep.subr.mxu0 0.0
    %8946 = vmatpush1.msra.mxu0 0.0
    %8947 = vmatprep.subr.mxu0 0.0
    %8948 = vmatpush1.msra.mxu0 0.0
    %8949 = vmatprep.subr.mxu0 0.0
    %8950 = vmatpush1.msra.mxu0 0.0
    %8951 = vmatprep.subr.mxu0 0.0
    %8952 = vmatpush1.msra.mxu0 0.0
    %8953 = vmatprep.subr.mxu0 0.0
    %8954 = vmatpush1.msra.mxu0 0.0
    %8955 = vmatprep.subr.mxu0 0.0
    %8956 = vmatpush1.msra.mxu0 0.0
    %8957 = vmatprep.subr.mxu0 0.0
    %8958 = vmatpush1.msra.mxu0 0.0
    %8959 = vmatprep.subr.mxu0 0.0
    %8960 = vmatpush1.msra.mxu0 0.0
    %8961 = vmatprep.subr.mxu0 0.0
    %8962 = vmatpush1.msra.mxu0 0.0
    %8963 = vmatprep.subr.mxu0 0.0
    %8964 = vmatpush1.msra.mxu0 0.0
    %8965 = vmatprep.subr.mxu0 0.0
    %8966 = vmatpush1.msra.mxu0 0.0
    %8967 = vmatprep.subr.mxu0 0.0
    %8968 = vmatpush1.msra.mxu0 0.0
    %8969 = vmatprep.subr.mxu0 0.0
    %8970 = vmatpush1.msra.mxu0 0.0
    %8971 = vmatprep.subr.mxu0 0.0
    %8972 = vmatpush1.msra.mxu0 0.0
    %8973 = vmatprep.subr.mxu0 0.0
    %8974 = vmatpush1.msra.mxu0 0.0
    %8975 = vmatprep.subr.mxu0 0.0
    %8976 = vmatpush1.msra.mxu0 0.0
    %8977 = vmatprep.subr.mxu0 0.0
    %8978 = vmatpush1.msra.mxu0 0.0
    %8979 = vmatprep.subr.mxu0 0.0
    %8980 = vmatpush1.msra.mxu0 0.0
    %8981 = vmatprep.subr.mxu0 0.0
    %8982 = vmatpush1.msra.mxu0 0.0
    %8983 = vmatprep.mubr.f32.mxu0 0.0
    %8984 = vmatmul.mubr.f32.gmra.mrb[0].mxu0 %v5032
    %v8985 = vpop.f32.mrb[0].mxu0
    %v8986 = vadd.f32 %v8917, %v8985
    %v8987 = vpop.f32.mrb[0].mxu0
    %8988 = vmatprep.mubr.f32.mxu0 0.0
    %8989 = vmatmul.mubr.f32.gmra.mrb[0].mxu0 %v5035
    %v8990 = vpop.f32.mrb[0].mxu0
    %v8991 = vadd.f32 %v8917, %v8990
    %v8992 = vpop.f32.mrb[0].mxu0
    %8993 = vdwg.mxu0
    %s8994 = scalar_lea.vmem %s6, 3008
    %v8995 = vld [vmem:[%s8994] sm:$0xff]
    %v8996 = vld [vmem:[%s8994 + $0x8] sm:$0xff]
    %v8997 = vld [vmem:[%s8994 + $0x10] sm:$0xff]
    %v8998 = vld [vmem:[%s8994 + $0x18] sm:$0xff]
    %v8999 = vld [vmem:[%s8994 + $0x20] sm:$0xff]
    %v9000 = vld [vmem:[%s8994 + $0x28] sm:$0xff]
    %v9001 = vld [vmem:[%s8994 + $0x30] sm:$0xff]
    %v9002 = vld [vmem:[%s8994 + $0x38] sm:$0xff]
    %s9003 = scalar_lea.vmem %s7, 47
    %v9004 = vld [vmem:[%s9003] sm:$0x1]
    %v9006 = vlaneseq
    %v9007 = vshrl.u32 %v9006, 7
    %v9008 = vsub.s32 0, %v9007
    %v9009 = vrot.slane %v9004, %v9008
    %9011 = vmatprep.subr.mxu0 0.0
    %9012 = vmatpush1.msra.mxu0 %v8995
    %9013 = vmatprep.subr.mxu0 0.0
    %9014 = vmatpush1.msra.mxu0 %v8996
    %9015 = vmatprep.subr.mxu0 0.0
    %9016 = vmatpush1.msra.mxu0 %v8997
    %9017 = vmatprep.subr.mxu0 0.0
    %9018 = vmatpush1.msra.mxu0 %v8998
    %9019 = vmatprep.subr.mxu0 0.0
    %9020 = vmatpush1.msra.mxu0 %v8999
    %9021 = vmatprep.subr.mxu0 0.0
    %9022 = vmatpush1.msra.mxu0 %v9000
    %9023 = vmatprep.subr.mxu0 0.0
    %9024 = vmatpush1.msra.mxu0 %v9001
    %9025 = vmatprep.subr.mxu0 0.0
    %9026 = vmatpush1.msra.mxu0 %v9002
    %9027 = vmatprep.subr.mxu0 0.0
    %9028 = vmatpush1.msra.mxu0 0.0
    %9029 = vmatprep.subr.mxu0 0.0
    %9030 = vmatpush1.msra.mxu0 0.0
    %9031 = vmatprep.subr.mxu0 0.0
    %9032 = vmatpush1.msra.mxu0 0.0
    %9033 = vmatprep.subr.mxu0 0.0
    %9034 = vmatpush1.msra.mxu0 0.0
    %9035 = vmatprep.subr.mxu0 0.0
    %9036 = vmatpush1.msra.mxu0 0.0
    %9037 = vmatprep.subr.mxu0 0.0
    %9038 = vmatpush1.msra.mxu0 0.0
    %9039 = vmatprep.subr.mxu0 0.0
    %9040 = vmatpush1.msra.mxu0 0.0
    %9041 = vmatprep.subr.mxu0 0.0
    %9042 = vmatpush1.msra.mxu0 0.0
    %9043 = vmatprep.subr.mxu0 0.0
    %9044 = vmatpush1.msra.mxu0 0.0
    %9045 = vmatprep.subr.mxu0 0.0
    %9046 = vmatpush1.msra.mxu0 0.0
    %9047 = vmatprep.subr.mxu0 0.0
    %9048 = vmatpush1.msra.mxu0 0.0
    %9049 = vmatprep.subr.mxu0 0.0
    %9050 = vmatpush1.msra.mxu0 0.0
    %9051 = vmatprep.subr.mxu0 0.0
    %9052 = vmatpush1.msra.mxu0 0.0
    %9053 = vmatprep.subr.mxu0 0.0
    %9054 = vmatpush1.msra.mxu0 0.0
    %9055 = vmatprep.subr.mxu0 0.0
    %9056 = vmatpush1.msra.mxu0 0.0
    %9057 = vmatprep.subr.mxu0 0.0
    %9058 = vmatpush1.msra.mxu0 0.0
    %9059 = vmatprep.subr.mxu0 0.0
    %9060 = vmatpush1.msra.mxu0 0.0
    %9061 = vmatprep.subr.mxu0 0.0
    %9062 = vmatpush1.msra.mxu0 0.0
    %9063 = vmatprep.subr.mxu0 0.0
    %9064 = vmatpush1.msra.mxu0 0.0
    %9065 = vmatprep.subr.mxu0 0.0
    %9066 = vmatpush1.msra.mxu0 0.0
    %9067 = vmatprep.subr.mxu0 0.0
    %9068 = vmatpush1.msra.mxu0 0.0
    %9069 = vmatprep.subr.mxu0 0.0
    %9070 = vmatpush1.msra.mxu0 0.0
    %9071 = vmatprep.subr.mxu0 0.0
    %9072 = vmatpush1.msra.mxu0 0.0
    %9073 = vmatprep.subr.mxu0 0.0
    %9074 = vmatpush1.msra.mxu0 0.0
    %9075 = vmatprep.mubr.f32.mxu0 0.0
    %9076 = vmatmul.mubr.f32.gmra.mrb[0].mxu0 %v4934
    %v9077 = vpop.f32.mrb[0].mxu0
    %v9078 = vadd.f32 %v9009, %v9077
    %v9079 = vpop.f32.mrb[0].mxu0
    %9080 = vmatprep.mubr.f32.mxu0 0.0
    %9081 = vmatmul.mubr.f32.gmra.mrb[0].mxu0 %v4937
    %v9082 = vpop.f32.mrb[0].mxu0
    %v9083 = vadd.f32 %v9009, %v9082
    %v9084 = vpop.f32.mrb[0].mxu0
    %9085 = vdwg.mxu0
    %v9087 = vsel %vm516, %v8894, 0
    %v9090 = vsel %vm516, %v8899, 0
    %v9093 = vsel %vm516, %v8986, 0
    %v9096 = vsel %vm516, %v8991, 0
    %9098 = vmatprep.subr.mxu0 0.0
    %9099 = vmatpush1.xpose.msra.mxu0 %v9093
    %9100 = vmatprep.subr.mxu0 0.0
    %9101 = vmatpush1.xpose.msra.mxu0 %v9096
    %9102 = vmatprep.subr.mxu0 0.0
    %9103 = vmatpush1.xpose.msra.mxu0 0.0
    %9104 = vmatprep.subr.mxu0 0.0
    %9105 = vmatpush1.xpose.msra.mxu0 0.0
    %9106 = vmatprep.subr.mxu0 0.0
    %9107 = vmatpush1.xpose.msra.mxu0 0.0
    %9108 = vmatprep.subr.mxu0 0.0
    %9109 = vmatpush1.xpose.msra.mxu0 0.0
    %9110 = vmatprep.subr.mxu0 0.0
    %9111 = vmatpush1.xpose.msra.mxu0 0.0
    %9112 = vmatprep.subr.mxu0 0.0
    %9113 = vmatpush1.xpose.msra.mxu0 0.0
    %9114 = vmatprep.subr.mxu0 0.0
    %9115 = vmatpush1.xpose.msra.mxu0 0.0
    %9116 = vmatprep.subr.mxu0 0.0
    %9117 = vmatpush1.xpose.msra.mxu0 0.0
    %9118 = vmatprep.subr.mxu0 0.0
    %9119 = vmatpush1.xpose.msra.mxu0 0.0
    %9120 = vmatprep.subr.mxu0 0.0
    %9121 = vmatpush1.xpose.msra.mxu0 0.0
    %9122 = vmatprep.subr.mxu0 0.0
    %9123 = vmatpush1.xpose.msra.mxu0 0.0
    %9124 = vmatprep.subr.mxu0 0.0
    %9125 = vmatpush1.xpose.msra.mxu0 0.0
    %9126 = vmatprep.subr.mxu0 0.0
    %9127 = vmatpush1.xpose.msra.mxu0 0.0
    %9128 = vmatprep.subr.mxu0 0.0
    %9129 = vmatpush1.xpose.msra.mxu0 0.0
    %9130 = vmatprep.subr.mxu0 0.0
    %9131 = vmatpush1.xpose.msra.mxu0 0.0
    %9132 = vmatprep.subr.mxu0 0.0
    %9133 = vmatpush1.xpose.msra.mxu0 0.0
    %9134 = vmatprep.subr.mxu0 0.0
    %9135 = vmatpush1.xpose.msra.mxu0 0.0
    %9136 = vmatprep.subr.mxu0 0.0
    %9137 = vmatpush1.xpose.msra.mxu0 0.0
    %9138 = vmatprep.subr.mxu0 0.0
    %9139 = vmatpush1.xpose.msra.mxu0 0.0
    %9140 = vmatprep.subr.mxu0 0.0
    %9141 = vmatpush1.xpose.msra.mxu0 0.0
    %9142 = vmatprep.subr.mxu0 0.0
    %9143 = vmatpush1.xpose.msra.mxu0 0.0
    %9144 = vmatprep.subr.mxu0 0.0
    %9145 = vmatpush1.xpose.msra.mxu0 0.0
    %9146 = vmatprep.subr.mxu0 0.0
    %9147 = vmatpush1.xpose.msra.mxu0 0.0
    %9148 = vmatprep.subr.mxu0 0.0
    %9149 = vmatpush1.xpose.msra.mxu0 0.0
    %9150 = vmatprep.subr.mxu0 0.0
    %9151 = vmatpush1.xpose.msra.mxu0 0.0
    %9152 = vmatprep.subr.mxu0 0.0
    %9153 = vmatpush1.xpose.msra.mxu0 0.0
    %9154 = vmatprep.subr.mxu0 0.0
    %9155 = vmatpush1.xpose.msra.mxu0 0.0
    %9156 = vmatprep.subr.mxu0 0.0
    %9157 = vmatpush1.xpose.msra.mxu0 0.0
    %9158 = vmatprep.subr.mxu0 0.0
    %9159 = vmatpush1.xpose.msra.mxu0 0.0
    %9160 = vmatprep.subr.mxu0 0.0
    %9161 = vmatpush1.xpose.msra.mxu0 0.0
    %9162 = vmatprep.mubr.f32.mxu0 0.0
    %9163 = vmatmul.mubr.f32.gmra.mrb[0].mxu0 %v9087
    %v9164 = vpop.f32.mrb[0].mxu0
    %v9165 = vadd.f32 0.0, %v9164
    %v9166 = vpop.f32.mrb[0].mxu0
    %9167 = vmatprep.mubr.f32.mxu0 0.0
    %9168 = vmatmul.mubr.f32.gmra.mrb[0].mxu0 %v9090
    %v9169 = vpop.f32.mrb[0].mxu0
    %v9170 = vadd.f32 0.0, %v9169
    %v9171 = vpop.f32.mrb[0].mxu0
    %9172 = vdwg.mxu0
    %v9173 = vmul.f32 %v9165, 0.35355338
    %v9174 = vmul.f32 %v9170, 0.35355338
    %v9175 = vadd.f32 %v9173, %v4914
    %v9176 = vadd.f32 %v9174, %v4915
    %v9177 = vsel %vm5295, %v9175, -inf
    %9178 = vmax.xlane.f32.xlu0 %v9177
    %v9179 = vpop.xlane.xlu0 %9178
    %v9180 = vsel %vm5295, %v9176, -inf
    %9181 = vmax.xlane.f32.xlu0 %v9180
    %v9182 = vpop.xlane.xlu0 %9181
    %v9183 = vsub.f32 %v9175, %v9179
    %v9184 = vsub.f32 %v9176, %v9182
    %v9185 = vmul.f32 %v9183, 1.442695
    %v9186 = vpow.pop %v9185
    %v9187 = vmul.f32 %v9184, 1.442695
    %v9188 = vpow.pop %v9187
    %v9189 = vsel %vm5295, %v9186, 0.0
    %9190 = vadd.xlane.f32.xlu0 %v9189
    %v9191 = vpop.xlane.xlu0 %9190
    %v9192 = vsel %vm5295, %v9188, 0.0
    %9193 = vadd.xlane.f32.xlu0 %v9192
    %v9194 = vpop.xlane.xlu0 %9193
    %v9195 = vrcp.pop %v9191
    %v9196 = vrcp.pop %v9194
    %v9197 = vmul.f32 %v9186, %v9195
    %v9198 = vmul.f32 %v9188, %v9196
    %v9200 = vsel %vm5295, %v9197, 0
    %v9203 = vsel %vm5295, %v9198, 0
    %9205 = vmatprep.subr.mxu0 0.0
    %9206 = vmatpush1.msra.mxu0 %v9078
    %9207 = vmatprep.subr.mxu0 0.0
    %9208 = vmatpush1.msra.mxu0 %v9083
    %9209 = vmatprep.subr.mxu0 0.0
    %9210 = vmatpush1.msra.mxu0 0.0
    %9211 = vmatprep.subr.mxu0 0.0
    %9212 = vmatpush1.msra.mxu0 0.0
    %9213 = vmatprep.subr.mxu0 0.0
    %9214 = vmatpush1.msra.mxu0 0.0
    %9215 = vmatprep.subr.mxu0 0.0
    %9216 = vmatpush1.msra.mxu0 0.0
    %9217 = vmatprep.subr.mxu0 0.0
    %9218 = vmatpush1.msra.mxu0 0.0
    %9219 = vmatprep.subr.mxu0 0.0
    %9220 = vmatpush1.msra.mxu0 0.0
    %9221 = vmatprep.subr.mxu0 0.0
    %9222 = vmatpush1.msra.mxu0 0.0
    %9223 = vmatprep.subr.mxu0 0.0
    %9224 = vmatpush1.msra.mxu0 0.0
    %9225 = vmatprep.subr.mxu0 0.0
    %9226 = vmatpush1.msra.mxu0 0.0
    %9227 = vmatprep.subr.mxu0 0.0
    %9228 = vmatpush1.msra.mxu0 0.0
    %9229 = vmatprep.subr.mxu0 0.0
    %9230 = vmatpush1.msra.mxu0 0.0
    %9231 = vmatprep.subr.mxu0 0.0
    %9232 = vmatpush1.msra.mxu0 0.0
    %9233 = vmatprep.subr.mxu0 0.0
    %9234 = vmatpush1.msra.mxu0 0.0
    %9235 = vmatprep.subr.mxu0 0.0
    %9236 = vmatpush1.msra.mxu0 0.0
    %9237 = vmatprep.subr.mxu0 0.0
    %9238 = vmatpush1.msra.mxu0 0.0
    %9239 = vmatprep.subr.mxu0 0.0
    %9240 = vmatpush1.msra.mxu0 0.0
    %9241 = vmatprep.subr.mxu0 0.0
    %9242 = vmatpush1.msra.mxu0 0.0
    %9243 = vmatprep.subr.mxu0 0.0
    %9244 = vmatpush1.msra.mxu0 0.0
    %9245 = vmatprep.subr.mxu0 0.0
    %9246 = vmatpush1.msra.mxu0 0.0
    %9247 = vmatprep.subr.mxu0 0.0
    %9248 = vmatpush1.msra.mxu0 0.0
    %9249 = vmatprep.subr.mxu0 0.0
    %9250 = vmatpush1.msra.mxu0 0.0
    %9251 = vmatprep.subr.mxu0 0.0
    %9252 = vmatpush1.msra.mxu0 0.0
    %9253 = vmatprep.subr.mxu0 0.0
    %9254 = vmatpush1.msra.mxu0 0.0
    %9255 = vmatprep.subr.mxu0 0.0
    %9256 = vmatpush1.msra.mxu0 0.0
    %9257 = vmatprep.subr.mxu0 0.0
    %9258 = vmatpush1.msra.mxu0 0.0
    %9259 = vmatprep.subr.mxu0 0.0
    %9260 = vmatpush1.msra.mxu0 0.0
    %9261 = vmatprep.subr.mxu0 0.0
    %9262 = vmatpush1.msra.mxu0 0.0
    %9263 = vmatprep.subr.mxu0 0.0
    %9264 = vmatpush1.msra.mxu0 0.0
    %9265 = vmatprep.subr.mxu0 0.0
    %9266 = vmatpush1.msra.mxu0 0.0
    %9267 = vmatprep.subr.mxu0 0.0
    %9268 = vmatpush1.msra.mxu0 0.0
    %9269 = vmatprep.mubr.f32.mxu0 0.0
    %9270 = vmatmul.mubr.f32.gmra.mrb[0].mxu0 %v9200
    %v9271 = vpop.f32.mrb[0].mxu0
    %v9272 = vadd.f32 0.0, %v9271
    %v9273 = vpop.f32.mrb[0].mxu0
    %9274 = vmatprep.mubr.f32.mxu0 0.0
    %9275 = vmatmul.mubr.f32.gmra.mrb[0].mxu0 %v9203
    %v9276 = vpop.f32.mrb[0].mxu0
    %v9277 = vadd.f32 0.0, %v9276
    %v9278 = vpop.f32.mrb[0].mxu0
    %9279 = vdwg.mxu0
    %s9280 = scalar_lea.vmem %s8, 120
    %v9281 = vld [vmem:[%s9280] sm:$0xff]
    %v9283 = vsel %vm516, %v9272, 0
    %v9286 = vsel %vm516, %v9277, 0
    %9288 = vmatprep.subr.mxu0 0.0
    %9289 = vmatpush1.msra.mxu0 %v9281
    %9290 = vmatprep.subr.mxu0 0.0
    %9291 = vmatpush1.msra.mxu0 0.0
    %9292 = vmatprep.subr.mxu0 0.0
    %9293 = vmatpush1.msra.mxu0 0.0
    %9294 = vmatprep.subr.mxu0 0.0
    %9295 = vmatpush1.msra.mxu0 0.0
    %9296 = vmatprep.subr.mxu0 0.0
    %9297 = vmatpush1.msra.mxu0 0.0
    %9298 = vmatprep.subr.mxu0 0.0
    %9299 = vmatpush1.msra.mxu0 0.0
    %9300 = vmatprep.subr.mxu0 0.0
    %9301 = vmatpush1.msra.mxu0 0.0
    %9302 = vmatprep.subr.mxu0 0.0
    %9303 = vmatpush1.msra.mxu0 0.0
    %9304 = vmatprep.subr.mxu0 0.0
    %9305 = vmatpush1.msra.mxu0 0.0
    %9306 = vmatprep.subr.mxu0 0.0
    %9307 = vmatpush1.msra.mxu0 0.0
    %9308 = vmatprep.subr.mxu0 0.0
    %9309 = vmatpush1.msra.mxu0 0.0
    %9310 = vmatprep.subr.mxu0 0.0
    %9311 = vmatpush1.msra.mxu0 0.0
    %9312 = vmatprep.subr.mxu0 0.0
    %9313 = vmatpush1.msra.mxu0 0.0
    %9314 = vmatprep.subr.mxu0 0.0
    %9315 = vmatpush1.msra.mxu0 0.0
    %9316 = vmatprep.subr.mxu0 0.0
    %9317 = vmatpush1.msra.mxu0 0.0
    %9318 = vmatprep.subr.mxu0 0.0
    %9319 = vmatpush1.msra.mxu0 0.0
    %9320 = vmatprep.subr.mxu0 0.0
    %9321 = vmatpush1.msra.mxu0 0.0
    %9322 = vmatprep.subr.mxu0 0.0
    %9323 = vmatpush1.msra.mxu0 0.0
    %9324 = vmatprep.subr.mxu0 0.0
    %9325 = vmatpush1.msra.mxu0 0.0
    %9326 = vmatprep.subr.mxu0 0.0
    %9327 = vmatpush1.msra.mxu0 0.0
    %9328 = vmatprep.subr.mxu0 0.0
    %9329 = vmatpush1.msra.mxu0 0.0
    %9330 = vmatprep.subr.mxu0 0.0
    %9331 = vmatpush1.msra.mxu0 0.0
    %9332 = vmatprep.subr.mxu0 0.0
    %9333 = vmatpush1.msra.mxu0 0.0
    %9334 = vmatprep.subr.mxu0 0.0
    %9335 = vmatpush1.msra.mxu0 0.0
    %9336 = vmatprep.subr.mxu0 0.0
    %9337 = vmatpush1.msra.mxu0 0.0
    %9338 = vmatprep.subr.mxu0 0.0
    %9339 = vmatpush1.msra.mxu0 0.0
    %9340 = vmatprep.subr.mxu0 0.0
    %9341 = vmatpush1.msra.mxu0 0.0
    %9342 = vmatprep.subr.mxu0 0.0
    %9343 = vmatpush1.msra.mxu0 0.0
    %9344 = vmatprep.subr.mxu0 0.0
    %9345 = vmatpush1.msra.mxu0 0.0
    %9346 = vmatprep.subr.mxu0 0.0
    %9347 = vmatpush1.msra.mxu0 0.0
    %9348 = vmatprep.subr.mxu0 0.0
    %9349 = vmatpush1.msra.mxu0 0.0
    %9350 = vmatprep.subr.mxu0 0.0
    %9351 = vmatpush1.msra.mxu0 0.0
    %9352 = vmatprep.mubr.f32.mxu0 0.0
    %9353 = vmatmul.mubr.f32.gmra.mrb[0].mxu0 %v9283
    %v9354 = vpop.f32.mrb[0].mxu0
    %v9355 = vadd.f32 0.0, %v9354
    %v9356 = vpop.f32.mrb[0].mxu0
    %9357 = vmatprep.mubr.f32.mxu0 0.0
    %9358 = vmatmul.mubr.f32.gmra.mrb[0].mxu0 %v9286
    %v9359 = vpop.f32.mrb[0].mxu0
    %v9360 = vadd.f32 0.0, %v9359
    %v9361 = vpop.f32.mrb[0].mxu0
    %9362 = vdwg.mxu0
    %v9363 = vadd.f32 %v8808, %v9355
    %v9364 = vadd.f32 %v8809, %v9360
    %v9365 = vld [vmem:[%s5 + $0xb] sm:$0x1]
    %v9366 = vlaneseq
    %v9367 = vshrl.u32 %v9366, 7
    %v9368 = vsub.s32 0, %v9367
    %v9369 = vrot.slane %v9365, %v9368
    %v9370 = vadd.f32 %v9363, %v9369
    %v9371 = vadd.f32 %v9364, %v9369
    %v9372 = vadd.f32 %v4912, %v9370
    %v9373 = vadd.f32 %v4913, %v9371
    %v9374 = vsel %vm50, %v9372, 0.0
    %9375 = vadd.xlane.f32.xlu0 %v9374
    %v9376 = vpop.xlane.xlu0 %9375
    %v9377 = vsel %vm50, %v9373, 0.0
    %9378 = vadd.xlane.f32.xlu0 %v9377
    %v9379 = vpop.xlane.xlu0 %9378
    %v9380 = vmul.f32 %v9376, %v57
    %v9381 = vmul.f32 %v9379, %v57
    %v9382 = vsub.f32 %v9372, %v9380
    %v9383 = vsub.f32 %v9373, %v9381
    %v9384 = vmul.f32 %v9382, %v9382
    %v9385 = vmul.f32 %v9383, %v9383
    %v9386 = vsel %vm50, %v9384, 0.0
    %9387 = vadd.xlane.f32.xlu0 %v9386
    %v9388 = vpop.xlane.xlu0 %9387
    %v9389 = vsel %vm50, %v9385, 0.0
    %9390 = vadd.xlane.f32.xlu0 %v9389
    %v9391 = vpop.xlane.xlu0 %9390
    %v9392 = vmul.f32 %v9388, %v57
    %v9393 = vmul.f32 %v9391, %v57
    %v9394 = vadd.f32 %v9392, 1e-05
    %v9395 = vadd.f32 %v9393, 1e-05
    %v9396 = vrsqrt.pop %v9394
    %v9397 = vrsqrt.pop %v9395
    %v9398 = vmul.f32 %v9382, %v9396
    %v9399 = vmul.f32 %v9383, %v9397
    %v9400 = vld [vmem:[%s5 + $0x3] sm:$0x1]
    %v9401 = vlaneseq
    %v9402 = vshrl.u32 %v9401, 7
    %v9403 = vsub.s32 0, %v9402
    %v9404 = vrot.slane %v9400, %v9403
    %v9405 = vmul.f32 %v9398, %v9404
    %v9406 = vmul.f32 %v9399, %v9404
    %v9407 = vld [vmem:[%s5 + $0x8] sm:$0x1]
    %v9408 = vlaneseq
    %v9409 = vshrl.u32 %v9408, 7
    %v9410 = vsub.s32 0, %v9409
    %v9411 = vrot.slane %v9407, %v9410
    %v9412 = vadd.f32 %v9405, %v9411
    %v9413 = vadd.f32 %v9406, %v9411
    %v9414 = vld [vmem:[%s9] sm:$0xff]
    %v9415 = vld [vmem:[%s9 + $0x8] sm:$0xff]
    %v9416 = vld [vmem:[%s9 + $0x10] sm:$0xff]
    %v9417 = vld [vmem:[%s9 + $0x18] sm:$0xff]
    %v9418 = vld [vmem:[%s9 + $0x20] sm:$0xff]
    %v9419 = vld [vmem:[%s9 + $0x28] sm:$0xff]
    %v9420 = vld [vmem:[%s9 + $0x30] sm:$0xff]
    %v9421 = vld [vmem:[%s9 + $0x38] sm:$0xff]
    %v9422 = vld [vmem:[%s9 + $0x40] sm:$0xff]
    %v9423 = vld [vmem:[%s9 + $0x48] sm:$0xff]
    %v9424 = vld [vmem:[%s9 + $0x50] sm:$0xff]
    %v9425 = vld [vmem:[%s9 + $0x58] sm:$0xff]
    %v9426 = vld [vmem:[%s9 + $0x60] sm:$0xff]
    %v9427 = vld [vmem:[%s9 + $0x68] sm:$0xff]
    %v9428 = vld [vmem:[%s9 + $0x70] sm:$0xff]
    %v9429 = vld [vmem:[%s9 + $0x78] sm:$0xff]
    %s9430 = scalar_lea.vmem %s9, 128
    %v9431 = vld [vmem:[%s9430] ss:$8 sm:$0x3]
    %v9433 = vlaneseq
    %v9434 = vshrl.u32 %v9433, 7
    %v9435 = vsub.s32 0, %v9434
    %v9436 = vrot.slane %v9431, %v9435
    %v9437 = vlaneseq
    %v9438 = vshrl.u32 %v9437, 7
    %v9439 = vsub.s32 1, %v9438
    %v9440 = vrot.slane %v9431, %v9439
    %v9444 = vsel %vm50, %v9412, 0
    %v9447 = vsel %vm50, %v9413, 0
    %9449 = vmatprep.subr.mxu0 %v9415
    %9450 = vmatpush1.msra.mxu0 %v9414
    %9451 = vmatprep.subr.mxu0 %v9417
    %9452 = vmatpush1.msra.mxu0 %v9416
    %9453 = vmatprep.subr.mxu0 %v9419
    %9454 = vmatpush1.msra.mxu0 %v9418
    %9455 = vmatprep.subr.mxu0 %v9421
    %9456 = vmatpush1.msra.mxu0 %v9420
    %9457 = vmatprep.subr.mxu0 %v9423
    %9458 = vmatpush1.msra.mxu0 %v9422
    %9459 = vmatprep.subr.mxu0 %v9425
    %9460 = vmatpush1.msra.mxu0 %v9424
    %9461 = vmatprep.subr.mxu0 %v9427
    %9462 = vmatpush1.msra.mxu0 %v9426
    %9463 = vmatprep.subr.mxu0 %v9429
    %9464 = vmatpush1.msra.mxu0 %v9428
    %9465 = vmatprep.subr.mxu0 0.0
    %9466 = vmatpush1.msra.mxu0 0.0
    %9467 = vmatprep.subr.mxu0 0.0
    %9468 = vmatpush1.msra.mxu0 0.0
    %9469 = vmatprep.subr.mxu0 0.0
    %9470 = vmatpush1.msra.mxu0 0.0
    %9471 = vmatprep.subr.mxu0 0.0
    %9472 = vmatpush1.msra.mxu0 0.0
    %9473 = vmatprep.subr.mxu0 0.0
    %9474 = vmatpush1.msra.mxu0 0.0
    %9475 = vmatprep.subr.mxu0 0.0
    %9476 = vmatpush1.msra.mxu0 0.0
    %9477 = vmatprep.subr.mxu0 0.0
    %9478 = vmatpush1.msra.mxu0 0.0
    %9479 = vmatprep.subr.mxu0 0.0
    %9480 = vmatpush1.msra.mxu0 0.0
    %9481 = vmatprep.subr.mxu0 0.0
    %9482 = vmatpush1.msra.mxu0 0.0
    %9483 = vmatprep.subr.mxu0 0.0
    %9484 = vmatpush1.msra.mxu0 0.0
    %9485 = vmatprep.subr.mxu0 0.0
    %9486 = vmatpush1.msra.mxu0 0.0
    %9487 = vmatprep.subr.mxu0 0.0
    %9488 = vmatpush1.msra.mxu0 0.0
    %9489 = vmatprep.subr.mxu0 0.0
    %9490 = vmatpush1.msra.mxu0 0.0
    %9491 = vmatprep.subr.mxu0 0.0
    %9492 = vmatpush1.msra.mxu0 0.0
    %9493 = vmatprep.subr.mxu0 0.0
    %9494 = vmatpush1.msra.mxu0 0.0
    %9495 = vmatprep.subr.mxu0 0.0
    %9496 = vmatpush1.msra.mxu0 0.0
    %9497 = vmatprep.subr.mxu0 0.0
    %9498 = vmatpush1.msra.mxu0 0.0
    %9499 = vmatprep.subr.mxu0 0.0
    %9500 = vmatpush1.msra.mxu0 0.0
    %9501 = vmatprep.subr.mxu0 0.0
    %9502 = vmatpush1.msra.mxu0 0.0
    %9503 = vmatprep.subr.mxu0 0.0
    %9504 = vmatpush1.msra.mxu0 0.0
    %9505 = vmatprep.subr.mxu0 0.0
    %9506 = vmatpush1.msra.mxu0 0.0
    %9507 = vmatprep.subr.mxu0 0.0
    %9508 = vmatpush1.msra.mxu0 0.0
    %9509 = vmatprep.subr.mxu0 0.0
    %9510 = vmatpush1.msra.mxu0 0.0
    %9511 = vmatprep.subr.mxu0 0.0
    %9512 = vmatpush1.msra.mxu0 0.0
    %9513 = vmatprep.mubr.f32.mxu0 0.0
    %9514 = vmatmul.mubr.f32.gmra.mrb[0].mxu0 %v9444
    %v9515 = vpop.f32.mrb[0].mxu0
    %v9516 = vadd.f32 %v9436, %v9515
    %v9517 = vpop.f32.mrb[0].mxu0
    %v9518 = vadd.f32 %v9440, %v9517
    %9519 = vmatprep.mubr.f32.mxu0 0.0
    %9520 = vmatmul.mubr.f32.gmra.mrb[0].mxu0 %v9447
    %v9521 = vpop.f32.mrb[0].mxu0
    %v9522 = vadd.f32 %v9436, %v9521
    %v9523 = vpop.f32.mrb[0].mxu0
    %v9524 = vadd.f32 %v9440, %v9523
    %9525 = vdwg.mxu0
    %v9526 = vmul.f32 %v9516, -1.702
    %v9527 = vmul.f32 %v9518, -1.702
    %v9528 = vmul.f32 %v9522, -1.702
    %v9529 = vmul.f32 %v9524, -1.702
    %v9530 = vmul.f32 %v9526, 1.442695
    %v9531 = vpow.pop %v9530
    %v9532 = vmul.f32 %v9527, 1.442695
    %v9533 = vpow.pop %v9532
    %v9534 = vmul.f32 %v9528, 1.442695
    %v9535 = vpow.pop %v9534
    %v9536 = vmul.f32 %v9529, 1.442695
    %v9537 = vpow.pop %v9536
    %v9538 = vadd.f32 %v9531, 1.0
    %v9539 = vadd.f32 %v9533, 1.0
    %v9540 = vadd.f32 %v9535, 1.0
    %v9541 = vadd.f32 %v9537, 1.0
    %v9542 = vrcp.pop %v9538
    %v9543 = vrcp.pop %v9539
    %v9544 = vrcp.pop %v9540
    %v9545 = vrcp.pop %v9541
    %v9546 = vmul.f32 %v9516, %v9542
    %v9547 = vmul.f32 %v9518, %v9543
    %v9548 = vmul.f32 %v9522, %v9544
    %v9549 = vmul.f32 %v9524, %v9545
    %v9550 = vld [vmem:[%s10] sm:$0xff]
    %v9551 = vld [vmem:[%s10 + $0x8] sm:$0xff]
    %v9552 = vld [vmem:[%s10 + $0x10] sm:$0xff]
    %v9553 = vld [vmem:[%s10 + $0x18] sm:$0xff]
    %v9554 = vld [vmem:[%s10 + $0x20] sm:$0xff]
    %v9555 = vld [vmem:[%s10 + $0x28] sm:$0xff]
    %v9556 = vld [vmem:[%s10 + $0x30] sm:$0xff]
    %v9557 = vld [vmem:[%s10 + $0x38] sm:$0xff]
    %v9558 = vld [vmem:[%s10 + $0x40] sm:$0xff]
    %v9559 = vld [vmem:[%s10 + $0x48] sm:$0xff]
    %v9560 = vld [vmem:[%s10 + $0x50] sm:$0xff]
    %v9561 = vld [vmem:[%s10 + $0x58] sm:$0xff]
    %v9562 = vld [vmem:[%s10 + $0x60] sm:$0xff]
    %v9563 = vld [vmem:[%s10 + $0x68] sm:$0xff]
    %v9564 = vld [vmem:[%s10 + $0x70] sm:$0xff]
    %v9565 = vld [vmem:[%s10 + $0x78] sm:$0xff]
    %v9566 = vld [vmem:[%s10 + $0x80] sm:$0xff]
    %v9567 = vld [vmem:[%s10 + $0x88] sm:$0xff]
    %v9568 = vld [vmem:[%s10 + $0x90] sm:$0xff]
    %v9569 = vld [vmem:[%s10 + $0x98] sm:$0xff]
    %v9570 = vld [vmem:[%s10 + $0xa0] sm:$0xff]
    %v9571 = vld [vmem:[%s10 + $0xa8] sm:$0xff]
    %v9572 = vld [vmem:[%s10 + $0xb0] sm:$0xff]
    %v9573 = vld [vmem:[%s10 + $0xb8] sm:$0xff]
    %v9574 = vld [vmem:[%s10 + $0xc0] sm:$0xff]
    %v9575 = vld [vmem:[%s10 + $0xc8] sm:$0xff]
    %v9576 = vld [vmem:[%s10 + $0xd0] sm:$0xff]
    %v9577 = vld [vmem:[%s10 + $0xd8] sm:$0xff]
    %v9578 = vld [vmem:[%s10 + $0xe0] sm:$0xff]
    %v9579 = vld [vmem:[%s10 + $0xe8] sm:$0xff]
    %v9580 = vld [vmem:[%s10 + $0xf0] sm:$0xff]
    %v9581 = vld [vmem:[%s10 + $0xf8] sm:$0xff]
    %9582 = vmatprep.subr.mxu0 0.0
    %9583 = vmatpush1.msra.mxu0 %v9550
    %9584 = vmatprep.subr.mxu0 0.0
    %9585 = vmatpush1.msra.mxu0 %v9551
    %9586 = vmatprep.subr.mxu0 0.0
    %9587 = vmatpush1.msra.mxu0 %v9552
    %9588 = vmatprep.subr.mxu0 0.0
    %9589 = vmatpush1.msra.mxu0 %v9553
    %9590 = vmatprep.subr.mxu0 0.0
    %9591 = vmatpush1.msra.mxu0 %v9554
    %9592 = vmatprep.subr.mxu0 0.0
    %9593 = vmatpush1.msra.mxu0 %v9555
    %9594 = vmatprep.subr.mxu0 0.0
    %9595 = vmatpush1.msra.mxu0 %v9556
    %9596 = vmatprep.subr.mxu0 0.0
    %9597 = vmatpush1.msra.mxu0 %v9557
    %9598 = vmatprep.subr.mxu0 0.0
    %9599 = vmatpush1.msra.mxu0 %v9558
    %9600 = vmatprep.subr.mxu0 0.0
    %9601 = vmatpush1.msra.mxu0 %v9559
    %9602 = vmatprep.subr.mxu0 0.0
    %9603 = vmatpush1.msra.mxu0 %v9560
    %9604 = vmatprep.subr.mxu0 0.0
    %9605 = vmatpush1.msra.mxu0 %v9561
    %9606 = vmatprep.subr.mxu0 0.0
    %9607 = vmatpush1.msra.mxu0 %v9562
    %9608 = vmatprep.subr.mxu0 0.0
    %9609 = vmatpush1.msra.mxu0 %v9563
    %9610 = vmatprep.subr.mxu0 0.0
    %9611 = vmatpush1.msra.mxu0 %v9564
    %9612 = vmatprep.subr.mxu0 0.0
    %9613 = vmatpush1.msra.mxu0 %v9565
    %9614 = vmatprep.subr.mxu0 0.0
    %9615 = vmatpush1.msra.mxu0 %v9566
    %9616 = vmatprep.subr.mxu0 0.0
    %9617 = vmatpush1.msra.mxu0 %v9567
    %9618 = vmatprep.subr.mxu0 0.0
    %9619 = vmatpush1.msra.mxu0 %v9568
    %9620 = vmatprep.subr.mxu0 0.0
    %9621 = vmatpush1.msra.mxu0 %v9569
    %9622 = vmatprep.subr.mxu0 0.0
    %9623 = vmatpush1.msra.mxu0 %v9570
    %9624 = vmatprep.subr.mxu0 0.0
    %9625 = vmatpush1.msra.mxu0 %v9571
    %9626 = vmatprep.subr.mxu0 0.0
    %9627 = vmatpush1.msra.mxu0 %v9572
    %9628 = vmatprep.subr.mxu0 0.0
    %9629 = vmatpush1.msra.mxu0 %v9573
    %9630 = vmatprep.subr.mxu0 0.0
    %9631 = vmatpush1.msra.mxu0 %v9574
    %9632 = vmatprep.subr.mxu0 0.0
    %9633 = vmatpush1.msra.mxu0 %v9575
    %9634 = vmatprep.subr.mxu0 0.0
    %9635 = vmatpush1.msra.mxu0 %v9576
    %9636 = vmatprep.subr.mxu0 0.0
    %9637 = vmatpush1.msra.mxu0 %v9577
    %9638 = vmatprep.subr.mxu0 0.0
    %9639 = vmatpush1.msra.mxu0 %v9578
    %9640 = vmatprep.subr.mxu0 0.0
    %9641 = vmatpush1.msra.mxu0 %v9579
    %9642 = vmatprep.subr.mxu0 0.0
    %9643 = vmatpush1.msra.mxu0 %v9580
    %9644 = vmatprep.subr.mxu0 0.0
    %9645 = vmatpush1.msra.mxu0 %v9581
    %9646 = vmatprep.mubr.f32.mxu0 %v9547
    %9647 = vmatmul.mubr.f32.gmra.mrb[0].mxu0 %v9546
    %v9648 = vpop.f32.mrb[0].mxu0
    %v9649 = vadd.f32 0.0, %v9648
    %v9650 = vpop.f32.mrb[0].mxu0
    %9651 = vmatprep.mubr.f32.mxu0 %v9549
    %9652 = vmatmul.mubr.f32.gmra.mrb[0].mxu0 %v9548
    %v9653 = vpop.f32.mrb[0].mxu0
    %v9654 = vadd.f32 0.0, %v9653
    %v9655 = vpop.f32.mrb[0].mxu0
    %9656 = vdwg.mxu0
    %v9657 = vadd.f32 %v9372, %v9649
    %v9658 = vadd.f32 %v9373, %v9654
    %v9659 = vld [vmem:[%s5 + $0xc] sm:$0x1]
    %v9660 = vlaneseq
    %v9661 = vshrl.u32 %v9660, 7
    %v9662 = vsub.s32 0, %v9661
    %v9663 = vrot.slane %v9659, %v9662
    %v9664 = vadd.f32 %v9657, %v9663
    %v9665 = vadd.f32 %v9658, %v9663
    %9666 = vst.msk [vmem:[#allocation2] sm:$0xff] %vm50, %v9664
    %9667 = vst.msk [vmem:[#allocation2 + $0x8] sm:$0xff] %vm50, %v9665
    %9668 = vst.msk [vmem:[#allocation4] sm:$0xff] %vm50, %v198
    %9669 = vst.msk [vmem:[#allocation4 + $0x8] sm:$0xff] %vm50, %v199
    %9670 = vst.msk [vmem:[#allocation4 + $0x10] sm:$0xff] %vm50, %v200
    %9671 = vst.msk [vmem:[#allocation4 + $0x18] sm:$0xff] %vm50, %v201
    // Predicated region
    $region46: #{pathway_forward.1} parent=1 // pred_check
      _
    $region47: #{pathway_forward.1} parent=1 // pred_check_branch
      %9673 = sbr.rel (0) target = $region49
    $region48: #{pathway_forward.1} parent=1 // pred_region
      %s9675 = ssub.s32 256, 256
      %9676 = vsyncadd [#allocation3], %s9675
      %s9677 = sshll.u32 [#allocation2], 4
      %s9678 = int_to_ptr.vmem [resolvable:$true] %s9677
      %9683 = dma.vmem_to_hbm [thread:$0]  %s9678, 256, %s11, [#allocation3], 128, 128, 8
    $region49: #{pathway_forward.1} parent=1 // pred_fallthru
      _
    // Predicated region
    $region50: #{pathway_forward.1} parent=1 // pred_check
      _
    $region51: #{pathway_forward.1} parent=1 // pred_check_branch
      %9685 = sbr.rel (0) target = $region53
    $region52: #{pathway_forward.1} parent=1 // pred_region
      %s9687 = ssub.s32 512, 512
      %9688 = vsyncadd [#allocation5], %s9687
      %s9689 = sshll.u32 [#allocation4], 4
      %s9690 = int_to_ptr.vmem [resolvable:$true] %s9689
      %9695 = dma.vmem_to_hbm [thread:$0]  %s9690, 512, %s12, [#allocation5], 128, 128, 8
    $region53: #{pathway_forward.1} parent=1 // pred_fallthru
      _
    // Predicated region
    $region54: #{pathway_forward.1} parent=1 // pred_check
      _
    $region55: #{pathway_forward.1} parent=1 // pred_check_branch
      %9697 = sbr.rel (0) target = $region57
    $region56: #{pathway_forward.1} parent=1 // pred_region
      %9698 = dma.done [#allocation3], 256
    $region57: #{pathway_forward.1} parent=1 // pred_fallthru
      _
    // Predicated region
    $region58: #{pathway_forward.1} parent=1 // pred_check
      _
    $region59: #{pathway_forward.1} parent=1 // pred_check_branch
      %9700 = sbr.rel (0) target = $region61
    $region60: #{pathway_forward.1} parent=1 // pred_region
      %9701 = dma.done [#allocation5], 512
    $region61: #{pathway_forward.1} parent=1 // pred_fallthru
      _
    %9702 = vsyncpa [#allocation3], 1
    %9703 = vsyncpa [#allocation5], 1

</llo_original>
